<compile_context>
chip_gen: v6e
topology: v6e:2x2x1
jax: 0.10.0
libtpu: 0.0.40
codegen_flags: <defaults>
</compile_context>

<pallas_src>
import functools
import math

import jax
import jax.numpy as jnp
from jax import lax
from jax.experimental import pallas as pl
from jax.experimental.pallas import tpu as pltpu


def _decoder_block_kernel(x_ref, w1_ref, w2_ref, wd_ref, gmat_ref, pv_ref,
                          o_ref, xpad1_ref, xpad2_ref, *, H, W, eps):
    """Fused decoder block for one batch sample (grid step).

    x_ref   : (1, H, W, Cin)          input tile (NHWC)
    w1_ref  : (9*Cin, Cmid)  bf16     conv1 weights, (ky,kx,cin) flattened
    w2_ref  : (9, Cmid, Cmid) bf16    conv2 weights, one slab per 3x3 tap
    wd_ref  : (Cmid, 4*Cout) bf16     ConvTranspose2d weights, cols = (a,b,cout)
    gmat_ref: (Cmid, Cmid)            group-averaging matrix (1/cg inside group)
    pv_ref  : (8, P)                  packed rows: b1,g1,be1,b2,g2,be2,bd4,0
    o_ref   : (1, H*W, 4*Cout) bf16   lane-dense output
    xpad1/2 : VMEM scratch, zero-border padded activation buffers
    """
    Cin = x_ref.shape[-1]
    Cmid = gmat_ref.shape[0]
    C4out = wd_ref.shape[-1]

    inv_hw = 1.0 / float(H * W)
    kappa = math.sqrt(2.0 / math.pi)
    gmat = gmat_ref[...]

    # Packed per-channel vectors: one (8,P) DMA instead of seven (1,C) padded-tile DMAs.
    b1 = pv_ref[0:1, :Cmid]
    g1 = pv_ref[1:2, :Cmid]
    be1 = pv_ref[2:3, :Cmid]
    b2 = pv_ref[3:4, :Cmid]
    g2 = pv_ref[4:5, :Cmid]
    be2 = pv_ref[5:6, :Cmid]
    bd = pv_ref[6:7, :C4out]

    def zero_border(pad_ref, c):
        # Zero only the 1-pixel ring; interior is overwritten immediately afterwards.
        pad_ref[0:1, :, :] = jnp.zeros((1, W + 2, c), jnp.float32)
        pad_ref[H + 1:H + 2, :, :] = jnp.zeros((1, W + 2, c), jnp.float32)
        pad_ref[1:H + 1, 0:1, :] = jnp.zeros((H, 1, c), jnp.float32)
        pad_ref[1:H + 1, W + 1:W + 2, :] = jnp.zeros((H, 1, c), jnp.float32)

    def gn_gelu(y, gamma, beta):
        # GroupNorm(32, C): biased variance, eps, affine — per-channel sums combined with a
        # tiny (1,C)@(C,C) group-averaging matmul (no odd-shaped reshapes).  Kept in f32.
        ch_mean = jnp.sum(y, axis=0, keepdims=True) * inv_hw
        ch_sqmean = jnp.sum(y * y, axis=0, keepdims=True) * inv_hw
        mean_c = jnp.dot(ch_mean, gmat, preferred_element_type=jnp.float32)
        ex2_c = jnp.dot(ch_sqmean, gmat, preferred_element_type=jnp.float32)
        var_c = ex2_c - mean_c * mean_c
        scale_c = lax.rsqrt(var_c + eps) * gamma
        z = (y - mean_c) * scale_c + beta
        # tanh-approx GELU -> EUP (otherwise idle); ~1e-3 from nn.GELU's exact erf form.
        return 0.5 * z * (1.0 + jnp.tanh(kappa * (z + 0.044715 * (z * z * z))))

    # ---- conv1 (3x3, pad=1): single im2col matmul (K = 9*Cin is tiny) + GN + GELU ----
    zero_border(xpad1_ref, Cin)
    xpad1_ref[1:H + 1, 1:W + 1, :] = x_ref[0]
    slab = jnp.concatenate(
        [xpad1_ref[ky:ky + H, kx:kx + W, :]
         for ky in range(3) for kx in range(3)],
        axis=-1).reshape(H * W, 9 * Cin).astype(jnp.bfloat16)
    y1 = jnp.dot(slab, w1_ref[...], preferred_element_type=jnp.float32) + b1
    a1 = gn_gelu(y1, g1, be1)

    # ---- conv2 (3x3, pad=1): 9 tap-accumulated matmuls (no 576-lane concat) + GN + GELU ----
    zero_border(xpad2_ref, Cmid)
    xpad2_ref[1:H + 1, 1:W + 1, :] = a1.reshape(H, W, Cmid)
    acc = None
    for ky in range(3):
        for kx in range(3):
            patch = xpad2_ref[ky:ky + H, kx:kx + W, :].reshape(H * W, Cmid)
            part = jnp.dot(patch.astype(jnp.bfloat16), w2_ref[ky * 3 + kx],
                           preferred_element_type=jnp.float32)
            acc = part if acc is None else acc + part
    a2 = gn_gelu(acc + b2, g2, be2)

    # ---- ConvTranspose2d(kernel=2, stride=2): per-pixel matmul onto (a,b,Cout) lanes ----
    out = jnp.dot(a2.astype(jnp.bfloat16), wd_ref[...],
                  preferred_element_type=jnp.float32) + bd
    o_ref[0] = out.astype(o_ref.dtype)


@jax.jit
def decoder_block_forward(x_nchw, params):
    """Forward pass matching _DecoderBlock(bn=False, dropout=False); NCHW in/out."""
    w1, b1, g1, be1, w2, b2, g2, be2, wd, bd = params
    N, Cin, H, W = x_nchw.shape
    Cmid = w1.shape[-1]
    Cout = wd.shape[1]
    groups = 32
    cg = Cmid // groups

    x = jnp.transpose(x_nchw, (0, 2, 3, 1))  # NCHW -> NHWC (channels on lanes)

    # Host-side weight plumbing (free layout work outside the kernel).
    w1f = w1.reshape(9 * Cin, Cmid).astype(jnp.bfloat16)           # (ky,kx,cin) flattened
    w2t = w2.reshape(9, Cmid, Cmid).astype(jnp.bfloat16)           # per-tap slabs
    wdf = jnp.transpose(wd, (0, 2, 3, 1)).reshape(Cmid, 4 * Cout).astype(jnp.bfloat16)

    # Block-diagonal group-averaging matrix for GroupNorm statistics.
    gids = jnp.arange(Cmid) // cg
    gmat = (gids[:, None] == gids[None, :]).astype(jnp.float32) / float(cg)

    # Pack the seven tiny per-channel vectors into a single (8, P) array.
    P = max(Cmid, 4 * Cout)

    def _row(v):
        return jnp.pad(v.astype(jnp.float32), (0, P - v.shape[0]))

    pv = jnp.stack([_row(b1), _row(g1), _row(be1),
                    _row(b2), _row(g2), _row(be2),
                    _row(jnp.tile(bd, 4)),
                    jnp.zeros((P,), jnp.float32)], axis=0)

    kernel = functools.partial(_decoder_block_kernel, H=H, W=W, eps=1e-5)

    outk = pl.pallas_call(
        kernel,
        out_shape=jax.ShapeDtypeStruct((N, H * W, 4 * Cout), jnp.bfloat16),
        grid=(N,),
        in_specs=[
            pl.BlockSpec((1, H, W, Cin), lambda n: (n, 0, 0, 0)),
            pl.BlockSpec((9 * Cin, Cmid), lambda n: (0, 0)),
            pl.BlockSpec((9, Cmid, Cmid), lambda n: (0, 0, 0)),
            pl.BlockSpec((Cmid, 4 * Cout), lambda n: (0, 0)),
            pl.BlockSpec((Cmid, Cmid), lambda n: (0, 0)),
            pl.BlockSpec((8, P), lambda n: (0, 0)),
        ],
        out_specs=pl.BlockSpec((1, H * W, 4 * Cout), lambda n: (n, 0, 0)),
        scratch_shapes=[
            pltpu.VMEM((H + 2, W + 2, Cin), jnp.float32),
            pltpu.VMEM((H + 2, W + 2, Cmid), jnp.float32),
        ],
        compiler_params=pltpu.CompilerParams(
            dimension_semantics=("parallel",)),
    )(x, w1f, w2t, wdf, gmat, pv)

    # (N, H*W, (a,b,o)) -> NCHW up-sampled (N, Cout, 2H, 2W): pure layout plumbing.
    out = outk.astype(jnp.float32).reshape(N, H, W, 2, 2, Cout)
    out = jnp.transpose(out, (0, 5, 1, 3, 2, 4))       # n, o, i, a, j, b
    return out.reshape(N, Cout, 2 * H, 2 * W)


def init_params(key, in_channels=4, middle_channels=64, out_channels=16):
    """Deterministic params. Conv weights in HWIO; deconv in PyTorch (Cin,Cout,kH,kW)."""
    k = jax.random.split(key, 10)

    def conv_init(kw, kb, ksz, cin, cout):
        bound = 1.0 / math.sqrt(cin * ksz * ksz)
        w = jax.random.uniform(kw, (ksz, ksz, cin, cout), jnp.float32, -bound, bound)
        b = jax.random.uniform(kb, (cout,), jnp.float32, -bound, bound)
        return w, b

    w1, b1 = conv_init(k[0], k[1], 3, in_channels, middle_channels)
    w2, b2 = conv_init(k[2], k[3], 3, middle_channels, middle_channels)
    # GroupNorm affine params (randomized slightly so the affine path is exercised).
    g1 = 1.0 + 0.1 * jax.random.normal(k[4], (middle_channels,), jnp.float32)
    be1 = 0.1 * jax.random.normal(k[5], (middle_channels,), jnp.float32)
    g2 = 1.0 + 0.1 * jax.random.normal(k[6], (middle_channels,), jnp.float32)
    be2 = 0.1 * jax.random.normal(k[7], (middle_channels,), jnp.float32)
    # ConvTranspose2d(middle, out, kernel=2, stride=2)
    bound = 1.0 / math.sqrt(middle_channels * 2 * 2)
    wd = jax.random.uniform(k[8], (middle_channels, out_channels, 2, 2),
                            jnp.float32, -bound, bound)
    bd = jax.random.uniform(k[9], (out_channels,), jnp.float32, -bound, bound)
    return (w1, b1, g1, be1, w2, b2, g2, be2, wd, bd)


def _reference_forward(x_nchw, params):
    """Pure-JAX f32 reference (lax conv + explicit GroupNorm / exact-erf GELU / deconv)."""
    w1, b1, g1, be1, w2, b2, g2, be2, wd, bd = params

    def conv(x, w, b):
        y = lax.conv_general_dilated(
            x, w, (1, 1), [(1, 1), (1, 1)],
            dimension_numbers=('NCHW', 'HWIO', 'NCHW'),
            precision=lax.Precision.HIGHEST)
        return y + b[None, :, None, None]

    def gn_gelu(x, gamma, beta, groups=32, eps=1e-5):
        N, C, H, W = x.shape
        xg = x.reshape(N, groups, C // groups, H, W)
        mean = jnp.mean(xg, axis=(2, 3, 4), keepdims=True)
        var = jnp.mean((xg - mean) ** 2, axis=(2, 3, 4), keepdims=True)
        xg = (xg - mean) * lax.rsqrt(var + eps)
        x = xg.reshape(N, C, H, W) * gamma[None, :, None, None] + beta[None, :, None, None]
        return 0.5 * x * (1.0 + lax.erf(x / math.sqrt(2.0)))

    x = gn_gelu(conv(x_nchw, w1, b1), g1, be1)
    x = gn_gelu(conv(x, w2, b2), g2, be2)
    y = jnp.einsum('nchw,coab->nohawb', x, wd, precision=lax.Precision.HIGHEST)
    N, Cout, H, _, W, _ = y.shape
    return y.reshape(N, Cout, 2 * H, 2 * W) + bd[None, :, None, None]


if __name__ == "__main__":
    key = jax.random.PRNGKey(0)
    kp, kx = jax.random.split(key)
    params = init_params(kp, in_channels=4, middle_channels=64, out_channels=16)

    # NCHW input consistent with the module: (batch=2, in_channels=4, 16, 16)
    x = jax.random.normal(kx, (2, 4, 16, 16), jnp.float32)

    out = jax.block_until_ready(decoder_block_forward(x, params))
    assert out.shape == (2, 16, 32, 32), out.shape

    ref = jax.block_until_ready(_reference_forward(x, params))
    max_err = float(jnp.max(jnp.abs(out - ref)))
    assert jnp.allclose(out, ref, rtol=2e-2, atol=2e-2), max_err

    print("KERNEL_OK")
</pallas_src>

<mosaic_0001>
module attributes {stable_mosaic.version = 11 : i64} {
  func.func @_decoder_block_kernel(%arg0: i32, %arg1: memref<1x16x16x4xf32, #tpu.memory_space<vmem>>, %arg2: memref<36x64xbf16, #tpu.memory_space<vmem>>, %arg3: memref<9x64x64xbf16, #tpu.memory_space<vmem>>, %arg4: memref<64x64xbf16, #tpu.memory_space<vmem>>, %arg5: memref<64x64xf32, #tpu.memory_space<vmem>>, %arg6: memref<8x64xf32, #tpu.memory_space<vmem>>, %arg7: memref<1x256x64xbf16, #tpu.memory_space<vmem>>, %arg8: memref<18x18x4xf32, #tpu.memory_space<vmem>>, %arg9: memref<18x18x64xf32, #tpu.memory_space<vmem>>) attributes {dimension_semantics = [#tpu.dimension_semantics<parallel>], iteration_bounds = array<i64: 2>, scalar_prefetch = 0 : i64, scratch_operands = 2 : i64, tpu.core_type = #tpu.core_type<tc>, window_params = [{transform_indices = @transform_0, window_bounds = array<i64: 1, 16, 16, 4>}, {pipeline_mode = #tpu.pipeline_mode<synchronous>, transform_indices = @transform_1, window_bounds = array<i64: 36, 64>}, {pipeline_mode = #tpu.pipeline_mode<synchronous>, transform_indices = @transform_2, window_bounds = array<i64: 9, 64, 64>}, {pipeline_mode = #tpu.pipeline_mode<synchronous>, transform_indices = @transform_3, window_bounds = array<i64: 64, 64>}, {pipeline_mode = #tpu.pipeline_mode<synchronous>, transform_indices = @transform_4, window_bounds = array<i64: 64, 64>}, {pipeline_mode = #tpu.pipeline_mode<synchronous>, transform_indices = @transform_5, window_bounds = array<i64: 8, 64>}, {transform_indices = @transform_6, window_bounds = array<i64: 1, 256, 64>}]} {
    %c0 = arith.constant 0 : index
    %c0_0 = arith.constant 0 : index
    %0 = vector.load %arg5[%c0, %c0_0] : memref<64x64xf32, #tpu.memory_space<vmem>>, vector<64x64xf32>
    %c0_1 = arith.constant 0 : index
    %c0_2 = arith.constant 0 : index
    %1 = vector.load %arg6[%c0_1, %c0_2] : memref<8x64xf32, #tpu.memory_space<vmem>>, vector<1x64xf32>
    %c1 = arith.constant 1 : index
    %c0_3 = arith.constant 0 : index
    %2 = vector.load %arg6[%c1, %c0_3] : memref<8x64xf32, #tpu.memory_space<vmem>>, vector<1x64xf32>
    %c2 = arith.constant 2 : index
    %c0_4 = arith.constant 0 : index
    %3 = vector.load %arg6[%c2, %c0_4] : memref<8x64xf32, #tpu.memory_space<vmem>>, vector<1x64xf32>
    %c3 = arith.constant 3 : index
    %c0_5 = arith.constant 0 : index
    %4 = vector.load %arg6[%c3, %c0_5] : memref<8x64xf32, #tpu.memory_space<vmem>>, vector<1x64xf32>
    %c4 = arith.constant 4 : index
    %c0_6 = arith.constant 0 : index
    %5 = vector.load %arg6[%c4, %c0_6] : memref<8x64xf32, #tpu.memory_space<vmem>>, vector<1x64xf32>
    %c5 = arith.constant 5 : index
    %c0_7 = arith.constant 0 : index
    %6 = vector.load %arg6[%c5, %c0_7] : memref<8x64xf32, #tpu.memory_space<vmem>>, vector<1x64xf32>
    %c6 = arith.constant 6 : index
    %c0_8 = arith.constant 0 : index
    %7 = vector.load %arg6[%c6, %c0_8] : memref<8x64xf32, #tpu.memory_space<vmem>>, vector<1x64xf32>
    %cst = arith.constant 0.000000e+00 : f32
    %8 = vector.broadcast %cst : f32 to vector<1x18x4xf32>
    %c0_9 = arith.constant 0 : index
    %c0_10 = arith.constant 0 : index
    %c0_11 = arith.constant 0 : index
    %9 = vector.load %arg8[%c0_9, %c0_10, %c0_11] : memref<18x18x4xf32, #tpu.memory_space<vmem>>, vector<1x18x4xf32>
    tpu.vector_store %arg8[%c0_9, %c0_10, %c0_11], %8 {strides = array<i32>} : memref<18x18x4xf32, #tpu.memory_space<vmem>>, vector<1x18x4xf32>,
    %cst_12 = arith.constant 0.000000e+00 : f32
    %10 = vector.broadcast %cst_12 : f32 to vector<1x18x4xf32>
    %c17 = arith.constant 17 : index
    %c0_13 = arith.constant 0 : index
    %c0_14 = arith.constant 0 : index
    %11 = vector.load %arg8[%c17, %c0_13, %c0_14] : memref<18x18x4xf32, #tpu.memory_space<vmem>>, vector<1x18x4xf32>
    tpu.vector_store %arg8[%c17, %c0_13, %c0_14], %10 {strides = array<i32>} : memref<18x18x4xf32, #tpu.memory_space<vmem>>, vector<1x18x4xf32>,
    %cst_15 = arith.constant 0.000000e+00 : f32
    %12 = vector.broadcast %cst_15 : f32 to vector<16x1x4xf32>
    %c1_16 = arith.constant 1 : index
    %c0_17 = arith.constant 0 : index
    %c0_18 = arith.constant 0 : index
    %13 = vector.load %arg8[%c1_16, %c0_17, %c0_18] : memref<18x18x4xf32, #tpu.memory_space<vmem>>, vector<16x1x4xf32>
    tpu.vector_store %arg8[%c1_16, %c0_17, %c0_18], %12 {strides = array<i32>} : memref<18x18x4xf32, #tpu.memory_space<vmem>>, vector<16x1x4xf32>,
    %cst_19 = arith.constant 0.000000e+00 : f32
    %14 = vector.broadcast %cst_19 : f32 to vector<16x1x4xf32>
    %c1_20 = arith.constant 1 : index
    %c17_21 = arith.constant 17 : index
    %c0_22 = arith.constant 0 : index
    %15 = vector.load %arg8[%c1_20, %c17_21, %c0_22] : memref<18x18x4xf32, #tpu.memory_space<vmem>>, vector<16x1x4xf32>
    tpu.vector_store %arg8[%c1_20, %c17_21, %c0_22], %14 {strides = array<i32>} : memref<18x18x4xf32, #tpu.memory_space<vmem>>, vector<16x1x4xf32>,
    %c0_23 = arith.constant 0 : index
    %c0_24 = arith.constant 0 : index
    %c0_25 = arith.constant 0 : index
    %c0_26 = arith.constant 0 : index
    %16 = vector.load %arg1[%c0_23, %c0_24, %c0_25, %c0_26] : memref<1x16x16x4xf32, #tpu.memory_space<vmem>>, vector<1x16x16x4xf32>
    %17 = vector.shape_cast %16 : vector<1x16x16x4xf32> to vector<16x16x4xf32>
    %c1_27 = arith.constant 1 : index
    %c1_28 = arith.constant 1 : index
    %c0_29 = arith.constant 0 : index
    %18 = vector.load %arg8[%c1_27, %c1_28, %c0_29] : memref<18x18x4xf32, #tpu.memory_space<vmem>>, vector<16x16x4xf32>
    tpu.vector_store %arg8[%c1_27, %c1_28, %c0_29], %17 {strides = array<i32>} : memref<18x18x4xf32, #tpu.memory_space<vmem>>, vector<16x16x4xf32>,
    %c0_30 = arith.constant 0 : index
    %c0_31 = arith.constant 0 : index
    %c0_32 = arith.constant 0 : index
    %19 = vector.load %arg8[%c0_30, %c0_31, %c0_32] : memref<18x18x4xf32, #tpu.memory_space<vmem>>, vector<16x16x4xf32>
    %c0_33 = arith.constant 0 : index
    %c1_34 = arith.constant 1 : index
    %c0_35 = arith.constant 0 : index
    %20 = vector.load %arg8[%c0_33, %c1_34, %c0_35] : memref<18x18x4xf32, #tpu.memory_space<vmem>>, vector<16x16x4xf32>
    %c0_36 = arith.constant 0 : index
    %c2_37 = arith.constant 2 : index
    %c0_38 = arith.constant 0 : index
    %21 = vector.load %arg8[%c0_36, %c2_37, %c0_38] : memref<18x18x4xf32, #tpu.memory_space<vmem>>, vector<16x16x4xf32>
    %c1_39 = arith.constant 1 : index
    %c0_40 = arith.constant 0 : index
    %c0_41 = arith.constant 0 : index
    %22 = vector.load %arg8[%c1_39, %c0_40, %c0_41] : memref<18x18x4xf32, #tpu.memory_space<vmem>>, vector<16x16x4xf32>
    %c1_42 = arith.constant 1 : index
    %c1_43 = arith.constant 1 : index
    %c0_44 = arith.constant 0 : index
    %23 = vector.load %arg8[%c1_42, %c1_43, %c0_44] : memref<18x18x4xf32, #tpu.memory_space<vmem>>, vector<16x16x4xf32>
    %c1_45 = arith.constant 1 : index
    %c2_46 = arith.constant 2 : index
    %c0_47 = arith.constant 0 : index
    %24 = vector.load %arg8[%c1_45, %c2_46, %c0_47] : memref<18x18x4xf32, #tpu.memory_space<vmem>>, vector<16x16x4xf32>
    %c2_48 = arith.constant 2 : index
    %c0_49 = arith.constant 0 : index
    %c0_50 = arith.constant 0 : index
    %25 = vector.load %arg8[%c2_48, %c0_49, %c0_50] : memref<18x18x4xf32, #tpu.memory_space<vmem>>, vector<16x16x4xf32>
    %c2_51 = arith.constant 2 : index
    %c1_52 = arith.constant 1 : index
    %c0_53 = arith.constant 0 : index
    %26 = vector.load %arg8[%c2_51, %c1_52, %c0_53] : memref<18x18x4xf32, #tpu.memory_space<vmem>>, vector<16x16x4xf32>
    %c2_54 = arith.constant 2 : index
    %c2_55 = arith.constant 2 : index
    %c0_56 = arith.constant 0 : index
    %27 = vector.load %arg8[%c2_54, %c2_55, %c0_56] : memref<18x18x4xf32, #tpu.memory_space<vmem>>, vector<16x16x4xf32>
    %28 = tpu.concatenate %19, %20, %21, %22, %23, %24, %25, %26, %27 in 2 : vector<16x16x4xf32>, vector<16x16x4xf32>, vector<16x16x4xf32>, vector<16x16x4xf32>, vector<16x16x4xf32>, vector<16x16x4xf32>, vector<16x16x4xf32>, vector<16x16x4xf32>, vector<16x16x4xf32> -> vector<16x16x36xf32>
    %29 = vector.shape_cast %28 : vector<16x16x36xf32> to vector<256x36xf32>
    %30 = arith.truncf %29 : vector<256x36xf32> to vector<256x36xbf16>
    %c0_57 = arith.constant 0 : index
    %c0_58 = arith.constant 0 : index
    %31 = vector.load %arg2[%c0_57, %c0_58] : memref<36x64xbf16, #tpu.memory_space<vmem>>, vector<36x64xbf16>
    %cst_59 = arith.constant dense<0.000000e+00> : vector<256x64xf32>
    %32 = tpu.matmul %30, %31, %cst_59 {dimension_numbers = #tpu.dot_dimension_numbers<[1], [0], [0], [1], [0, 0, 1, 1], [], []>} : vector<256x36xbf16>, vector<36x64xbf16>, vector<256x64xf32> -> vector<256x64xf32>
    %33 = vector.broadcast %1 : vector<1x64xf32> to vector<256x64xf32>
    %34 = arith.addf %32, %33 : vector<256x64xf32>
    %cst_60 = arith.constant dense<0.000000e+00> : vector<64xf32>
    %35 = vector.multi_reduction <add>, %34, %cst_60 [0] : vector<256x64xf32> to vector<64xf32>
    %36 = vector.shape_cast %35 : vector<64xf32> to vector<1x64xf32>
    %cst_61 = arith.constant 3.906250e-03 : f32
    %37 = vector.broadcast %cst_61 : f32 to vector<1x64xf32>
    %38 = arith.mulf %36, %37 : vector<1x64xf32>
    %39 = arith.mulf %34, %34 : vector<256x64xf32>
    %cst_62 = arith.constant dense<0.000000e+00> : vector<64xf32>
    %40 = vector.multi_reduction <add>, %39, %cst_62 [0] : vector<256x64xf32> to vector<64xf32>
    %41 = vector.shape_cast %40 : vector<64xf32> to vector<1x64xf32>
    %cst_63 = arith.constant 3.906250e-03 : f32
    %42 = vector.broadcast %cst_63 : f32 to vector<1x64xf32>
    %43 = arith.mulf %41, %42 : vector<1x64xf32>
    %cst_64 = arith.constant dense<0.000000e+00> : vector<1x64xf32>
    %44 = tpu.matmul %38, %0, %cst_64 {dimension_numbers = #tpu.dot_dimension_numbers<[1], [0], [0], [1], [0, 0, 1, 1], [], []>} : vector<1x64xf32>, vector<64x64xf32>, vector<1x64xf32> -> vector<1x64xf32>
    %cst_65 = arith.constant dense<0.000000e+00> : vector<1x64xf32>
    %45 = tpu.matmul %43, %0, %cst_65 {dimension_numbers = #tpu.dot_dimension_numbers<[1], [0], [0], [1], [0, 0, 1, 1], [], []>} : vector<1x64xf32>, vector<64x64xf32>, vector<1x64xf32> -> vector<1x64xf32>
    %46 = arith.mulf %44, %44 : vector<1x64xf32>
    %47 = arith.subf %45, %46 : vector<1x64xf32>
    %cst_66 = arith.constant 9.99999974E-6 : f32
    %48 = vector.broadcast %cst_66 : f32 to vector<1x64xf32>
    %49 = arith.addf %47, %48 : vector<1x64xf32>
    %50 = math.rsqrt %49 : vector<1x64xf32>
    %51 = arith.mulf %50, %2 : vector<1x64xf32>
    %52 = vector.broadcast %44 : vector<1x64xf32> to vector<256x64xf32>
    %53 = arith.subf %34, %52 : vector<256x64xf32>
    %54 = vector.broadcast %51 : vector<1x64xf32> to vector<256x64xf32>
    %55 = arith.mulf %53, %54 : vector<256x64xf32>
    %56 = vector.broadcast %3 : vector<1x64xf32> to vector<256x64xf32>
    %57 = arith.addf %55, %56 : vector<256x64xf32>
    %cst_67 = arith.constant 5.000000e-01 : f32
    %58 = vector.broadcast %cst_67 : f32 to vector<256x64xf32>
    %59 = arith.mulf %58, %57 : vector<256x64xf32>
    %60 = arith.mulf %57, %57 : vector<256x64xf32>
    %61 = arith.mulf %60, %57 : vector<256x64xf32>
    %cst_68 = arith.constant 4.471500e-02 : f32
    %62 = vector.broadcast %cst_68 : f32 to vector<256x64xf32>
    %63 = arith.mulf %62, %61 : vector<256x64xf32>
    %64 = arith.addf %57, %63 : vector<256x64xf32>
    %cst_69 = arith.constant 0.797884583 : f32
    %65 = vector.broadcast %cst_69 : f32 to vector<256x64xf32>
    %66 = arith.mulf %65, %64 : vector<256x64xf32>
    %67 = math.tanh %66 : vector<256x64xf32>
    %cst_70 = arith.constant 1.000000e+00 : f32
    %68 = vector.broadcast %cst_70 : f32 to vector<256x64xf32>
    %69 = arith.addf %68, %67 : vector<256x64xf32>
    %70 = arith.mulf %59, %69 : vector<256x64xf32>
    %cst_71 = arith.constant 0.000000e+00 : f32
    %71 = vector.broadcast %cst_71 : f32 to vector<1x18x64xf32>
    %c0_72 = arith.constant 0 : index
    %c0_73 = arith.constant 0 : index
    %c0_74 = arith.constant 0 : index
    %72 = vector.load %arg9[%c0_72, %c0_73, %c0_74] : memref<18x18x64xf32, #tpu.memory_space<vmem>>, vector<1x18x64xf32>
    tpu.vector_store %arg9[%c0_72, %c0_73, %c0_74], %71 {strides = array<i32>} : memref<18x18x64xf32, #tpu.memory_space<vmem>>, vector<1x18x64xf32>,
    %cst_75 = arith.constant 0.000000e+00 : f32
    %73 = vector.broadcast %cst_75 : f32 to vector<1x18x64xf32>
    %c17_76 = arith.constant 17 : index
    %c0_77 = arith.constant 0 : index
    %c0_78 = arith.constant 0 : index
    %74 = vector.load %arg9[%c17_76, %c0_77, %c0_78] : memref<18x18x64xf32, #tpu.memory_space<vmem>>, vector<1x18x64xf32>
    tpu.vector_store %arg9[%c17_76, %c0_77, %c0_78], %73 {strides = array<i32>} : memref<18x18x64xf32, #tpu.memory_space<vmem>>, vector<1x18x64xf32>,
    %cst_79 = arith.constant 0.000000e+00 : f32
    %75 = vector.broadcast %cst_79 : f32 to vector<16x1x64xf32>
    %c1_80 = arith.constant 1 : index
    %c0_81 = arith.constant 0 : index
    %c0_82 = arith.constant 0 : index
    %76 = vector.load %arg9[%c1_80, %c0_81, %c0_82] : memref<18x18x64xf32, #tpu.memory_space<vmem>>, vector<16x1x64xf32>
    tpu.vector_store %arg9[%c1_80, %c0_81, %c0_82], %75 {strides = array<i32>} : memref<18x18x64xf32, #tpu.memory_space<vmem>>, vector<16x1x64xf32>,
    %cst_83 = arith.constant 0.000000e+00 : f32
    %77 = vector.broadcast %cst_83 : f32 to vector<16x1x64xf32>
    %c1_84 = arith.constant 1 : index
    %c17_85 = arith.constant 17 : index
    %c0_86 = arith.constant 0 : index
    %78 = vector.load %arg9[%c1_84, %c17_85, %c0_86] : memref<18x18x64xf32, #tpu.memory_space<vmem>>, vector<16x1x64xf32>
    tpu.vector_store %arg9[%c1_84, %c17_85, %c0_86], %77 {strides = array<i32>} : memref<18x18x64xf32, #tpu.memory_space<vmem>>, vector<16x1x64xf32>,
    %79 = vector.shape_cast %70 : vector<256x64xf32> to vector<16x16x64xf32>
    %c1_87 = arith.constant 1 : index
    %c1_88 = arith.constant 1 : index
    %c0_89 = arith.constant 0 : index
    %80 = vector.load %arg9[%c1_87, %c1_88, %c0_89] : memref<18x18x64xf32, #tpu.memory_space<vmem>>, vector<16x16x64xf32>
    tpu.vector_store %arg9[%c1_87, %c1_88, %c0_89], %79 {strides = array<i32>} : memref<18x18x64xf32, #tpu.memory_space<vmem>>, vector<16x16x64xf32>,
    %c0_90 = arith.constant 0 : index
    %c0_91 = arith.constant 0 : index
    %c0_92 = arith.constant 0 : index
    %81 = vector.load %arg9[%c0_90, %c0_91, %c0_92] : memref<18x18x64xf32, #tpu.memory_space<vmem>>, vector<16x16x64xf32>
    %82 = vector.shape_cast %81 : vector<16x16x64xf32> to vector<256x64xf32>
    %83 = arith.truncf %82 : vector<256x64xf32> to vector<256x64xbf16>
    %c0_93 = arith.constant 0 : index
    %c0_94 = arith.constant 0 : index
    %c0_95 = arith.constant 0 : index
    %84 = vector.load %arg3[%c0_93, %c0_94, %c0_95] : memref<9x64x64xbf16, #tpu.memory_space<vmem>>, vector<1x64x64xbf16>
    %85 = vector.shape_cast %84 : vector<1x64x64xbf16> to vector<64x64xbf16>
    %cst_96 = arith.constant dense<0.000000e+00> : vector<256x64xf32>
    %86 = tpu.matmul %83, %85, %cst_96 {dimension_numbers = #tpu.dot_dimension_numbers<[1], [0], [0], [1], [0, 0, 1, 1], [], []>} : vector<256x64xbf16>, vector<64x64xbf16>, vector<256x64xf32> -> vector<256x64xf32>
    %c0_97 = arith.constant 0 : index
    %c1_98 = arith.constant 1 : index
    %c0_99 = arith.constant 0 : index
    %87 = vector.load %arg9[%c0_97, %c1_98, %c0_99] : memref<18x18x64xf32, #tpu.memory_space<vmem>>, vector<16x16x64xf32>
    %88 = vector.shape_cast %87 : vector<16x16x64xf32> to vector<256x64xf32>
    %89 = arith.truncf %88 : vector<256x64xf32> to vector<256x64xbf16>
    %c1_100 = arith.constant 1 : index
    %c0_101 = arith.constant 0 : index
    %c0_102 = arith.constant 0 : index
    %90 = vector.load %arg3[%c1_100, %c0_101, %c0_102] : memref<9x64x64xbf16, #tpu.memory_space<vmem>>, vector<1x64x64xbf16>
    %91 = vector.shape_cast %90 : vector<1x64x64xbf16> to vector<64x64xbf16>
    %cst_103 = arith.constant dense<0.000000e+00> : vector<256x64xf32>
    %92 = tpu.matmul %89, %91, %cst_103 {dimension_numbers = #tpu.dot_dimension_numbers<[1], [0], [0], [1], [0, 0, 1, 1], [], []>} : vector<256x64xbf16>, vector<64x64xbf16>, vector<256x64xf32> -> vector<256x64xf32>
    %93 = arith.addf %86, %92 : vector<256x64xf32>
    %c0_104 = arith.constant 0 : index
    %c2_105 = arith.constant 2 : index
    %c0_106 = arith.constant 0 : index
    %94 = vector.load %arg9[%c0_104, %c2_105, %c0_106] : memref<18x18x64xf32, #tpu.memory_space<vmem>>, vector<16x16x64xf32>
    %95 = vector.shape_cast %94 : vector<16x16x64xf32> to vector<256x64xf32>
    %96 = arith.truncf %95 : vector<256x64xf32> to vector<256x64xbf16>
    %c2_107 = arith.constant 2 : index
    %c0_108 = arith.constant 0 : index
    %c0_109 = arith.constant 0 : index
    %97 = vector.load %arg3[%c2_107, %c0_108, %c0_109] : memref<9x64x64xbf16, #tpu.memory_space<vmem>>, vector<1x64x64xbf16>
    %98 = vector.shape_cast %97 : vector<1x64x64xbf16> to vector<64x64xbf16>
    %cst_110 = arith.constant dense<0.000000e+00> : vector<256x64xf32>
    %99 = tpu.matmul %96, %98, %cst_110 {dimension_numbers = #tpu.dot_dimension_numbers<[1], [0], [0], [1], [0, 0, 1, 1], [], []>} : vector<256x64xbf16>, vector<64x64xbf16>, vector<256x64xf32> -> vector<256x64xf32>
    %100 = arith.addf %93, %99 : vector<256x64xf32>
    %c1_111 = arith.constant 1 : index
    %c0_112 = arith.constant 0 : index
    %c0_113 = arith.constant 0 : index
    %101 = vector.load %arg9[%c1_111, %c0_112, %c0_113] : memref<18x18x64xf32, #tpu.memory_space<vmem>>, vector<16x16x64xf32>
    %102 = vector.shape_cast %101 : vector<16x16x64xf32> to vector<256x64xf32>
    %103 = arith.truncf %102 : vector<256x64xf32> to vector<256x64xbf16>
    %c3_114 = arith.constant 3 : index
    %c0_115 = arith.constant 0 : index
    %c0_116 = arith.constant 0 : index
    %104 = vector.load %arg3[%c3_114, %c0_115, %c0_116] : memref<9x64x64xbf16, #tpu.memory_space<vmem>>, vector<1x64x64xbf16>
    %105 = vector.shape_cast %104 : vector<1x64x64xbf16> to vector<64x64xbf16>
    %cst_117 = arith.constant dense<0.000000e+00> : vector<256x64xf32>
    %106 = tpu.matmul %103, %105, %cst_117 {dimension_numbers = #tpu.dot_dimension_numbers<[1], [0], [0], [1], [0, 0, 1, 1], [], []>} : vector<256x64xbf16>, vector<64x64xbf16>, vector<256x64xf32> -> vector<256x64xf32>
    %107 = arith.addf %100, %106 : vector<256x64xf32>
    %c1_118 = arith.constant 1 : index
    %c1_119 = arith.constant 1 : index
    %c0_120 = arith.constant 0 : index
    %108 = vector.load %arg9[%c1_118, %c1_119, %c0_120] : memref<18x18x64xf32, #tpu.memory_space<vmem>>, vector<16x16x64xf32>
    %109 = vector.shape_cast %108 : vector<16x16x64xf32> to vector<256x64xf32>
    %110 = arith.truncf %109 : vector<256x64xf32> to vector<256x64xbf16>
    %c4_121 = arith.constant 4 : index
    %c0_122 = arith.constant 0 : index
    %c0_123 = arith.constant 0 : index
    %111 = vector.load %arg3[%c4_121, %c0_122, %c0_123] : memref<9x64x64xbf16, #tpu.memory_space<vmem>>, vector<1x64x64xbf16>
    %112 = vector.shape_cast %111 : vector<1x64x64xbf16> to vector<64x64xbf16>
    %cst_124 = arith.constant dense<0.000000e+00> : vector<256x64xf32>
    %113 = tpu.matmul %110, %112, %cst_124 {dimension_numbers = #tpu.dot_dimension_numbers<[1], [0], [0], [1], [0, 0, 1, 1], [], []>} : vector<256x64xbf16>, vector<64x64xbf16>, vector<256x64xf32> -> vector<256x64xf32>
    %114 = arith.addf %107, %113 : vector<256x64xf32>
    %c1_125 = arith.constant 1 : index
    %c2_126 = arith.constant 2 : index
    %c0_127 = arith.constant 0 : index
    %115 = vector.load %arg9[%c1_125, %c2_126, %c0_127] : memref<18x18x64xf32, #tpu.memory_space<vmem>>, vector<16x16x64xf32>
    %116 = vector.shape_cast %115 : vector<16x16x64xf32> to vector<256x64xf32>
    %117 = arith.truncf %116 : vector<256x64xf32> to vector<256x64xbf16>
    %c5_128 = arith.constant 5 : index
    %c0_129 = arith.constant 0 : index
    %c0_130 = arith.constant 0 : index
    %118 = vector.load %arg3[%c5_128, %c0_129, %c0_130] : memref<9x64x64xbf16, #tpu.memory_space<vmem>>, vector<1x64x64xbf16>
    %119 = vector.shape_cast %118 : vector<1x64x64xbf16> to vector<64x64xbf16>
    %cst_131 = arith.constant dense<0.000000e+00> : vector<256x64xf32>
    %120 = tpu.matmul %117, %119, %cst_131 {dimension_numbers = #tpu.dot_dimension_numbers<[1], [0], [0], [1], [0, 0, 1, 1], [], []>} : vector<256x64xbf16>, vector<64x64xbf16>, vector<256x64xf32> -> vector<256x64xf32>
    %121 = arith.addf %114, %120 : vector<256x64xf32>
    %c2_132 = arith.constant 2 : index
    %c0_133 = arith.constant 0 : index
    %c0_134 = arith.constant 0 : index
    %122 = vector.load %arg9[%c2_132, %c0_133, %c0_134] : memref<18x18x64xf32, #tpu.memory_space<vmem>>, vector<16x16x64xf32>
    %123 = vector.shape_cast %122 : vector<16x16x64xf32> to vector<256x64xf32>
    %124 = arith.truncf %123 : vector<256x64xf32> to vector<256x64xbf16>
    %c6_135 = arith.constant 6 : index
    %c0_136 = arith.constant 0 : index
    %c0_137 = arith.constant 0 : index
    %125 = vector.load %arg3[%c6_135, %c0_136, %c0_137] : memref<9x64x64xbf16, #tpu.memory_space<vmem>>, vector<1x64x64xbf16>
    %126 = vector.shape_cast %125 : vector<1x64x64xbf16> to vector<64x64xbf16>
    %cst_138 = arith.constant dense<0.000000e+00> : vector<256x64xf32>
    %127 = tpu.matmul %124, %126, %cst_138 {dimension_numbers = #tpu.dot_dimension_numbers<[1], [0], [0], [1], [0, 0, 1, 1], [], []>} : vector<256x64xbf16>, vector<64x64xbf16>, vector<256x64xf32> -> vector<256x64xf32>
    %128 = arith.addf %121, %127 : vector<256x64xf32>
    %c2_139 = arith.constant 2 : index
    %c1_140 = arith.constant 1 : index
    %c0_141 = arith.constant 0 : index
    %129 = vector.load %arg9[%c2_139, %c1_140, %c0_141] : memref<18x18x64xf32, #tpu.memory_space<vmem>>, vector<16x16x64xf32>
    %130 = vector.shape_cast %129 : vector<16x16x64xf32> to vector<256x64xf32>
    %131 = arith.truncf %130 : vector<256x64xf32> to vector<256x64xbf16>
    %c7 = arith.constant 7 : index
    %c0_142 = arith.constant 0 : index
    %c0_143 = arith.constant 0 : index
    %132 = vector.load %arg3[%c7, %c0_142, %c0_143] : memref<9x64x64xbf16, #tpu.memory_space<vmem>>, vector<1x64x64xbf16>
    %133 = vector.shape_cast %132 : vector<1x64x64xbf16> to vector<64x64xbf16>
    %cst_144 = arith.constant dense<0.000000e+00> : vector<256x64xf32>
    %134 = tpu.matmul %131, %133, %cst_144 {dimension_numbers = #tpu.dot_dimension_numbers<[1], [0], [0], [1], [0, 0, 1, 1], [], []>} : vector<256x64xbf16>, vector<64x64xbf16>, vector<256x64xf32> -> vector<256x64xf32>
    %135 = arith.addf %128, %134 : vector<256x64xf32>
    %c2_145 = arith.constant 2 : index
    %c2_146 = arith.constant 2 : index
    %c0_147 = arith.constant 0 : index
    %136 = vector.load %arg9[%c2_145, %c2_146, %c0_147] : memref<18x18x64xf32, #tpu.memory_space<vmem>>, vector<16x16x64xf32>
    %137 = vector.shape_cast %136 : vector<16x16x64xf32> to vector<256x64xf32>
    %138 = arith.truncf %137 : vector<256x64xf32> to vector<256x64xbf16>
    %c8 = arith.constant 8 : index
    %c0_148 = arith.constant 0 : index
    %c0_149 = arith.constant 0 : index
    %139 = vector.load %arg3[%c8, %c0_148, %c0_149] : memref<9x64x64xbf16, #tpu.memory_space<vmem>>, vector<1x64x64xbf16>
    %140 = vector.shape_cast %139 : vector<1x64x64xbf16> to vector<64x64xbf16>
    %cst_150 = arith.constant dense<0.000000e+00> : vector<256x64xf32>
    %141 = tpu.matmul %138, %140, %cst_150 {dimension_numbers = #tpu.dot_dimension_numbers<[1], [0], [0], [1], [0, 0, 1, 1], [], []>} : vector<256x64xbf16>, vector<64x64xbf16>, vector<256x64xf32> -> vector<256x64xf32>
    %142 = arith.addf %135, %141 : vector<256x64xf32>
    %143 = vector.broadcast %4 : vector<1x64xf32> to vector<256x64xf32>
    %144 = arith.addf %142, %143 : vector<256x64xf32>
    %cst_151 = arith.constant dense<0.000000e+00> : vector<64xf32>
    %145 = vector.multi_reduction <add>, %144, %cst_151 [0] : vector<256x64xf32> to vector<64xf32>
    %146 = vector.shape_cast %145 : vector<64xf32> to vector<1x64xf32>
    %cst_152 = arith.constant 3.906250e-03 : f32
    %147 = vector.broadcast %cst_152 : f32 to vector<1x64xf32>
    %148 = arith.mulf %146, %147 : vector<1x64xf32>
    %149 = arith.mulf %144, %144 : vector<256x64xf32>
    %cst_153 = arith.constant dense<0.000000e+00> : vector<64xf32>
    %150 = vector.multi_reduction <add>, %149, %cst_153 [0] : vector<256x64xf32> to vector<64xf32>
    %151 = vector.shape_cast %150 : vector<64xf32> to vector<1x64xf32>
    %cst_154 = arith.constant 3.906250e-03 : f32
    %152 = vector.broadcast %cst_154 : f32 to vector<1x64xf32>
    %153 = arith.mulf %151, %152 : vector<1x64xf32>
    %cst_155 = arith.constant dense<0.000000e+00> : vector<1x64xf32>
    %154 = tpu.matmul %148, %0, %cst_155 {dimension_numbers = #tpu.dot_dimension_numbers<[1], [0], [0], [1], [0, 0, 1, 1], [], []>} : vector<1x64xf32>, vector<64x64xf32>, vector<1x64xf32> -> vector<1x64xf32>
    %cst_156 = arith.constant dense<0.000000e+00> : vector<1x64xf32>
    %155 = tpu.matmul %153, %0, %cst_156 {dimension_numbers = #tpu.dot_dimension_numbers<[1], [0], [0], [1], [0, 0, 1, 1], [], []>} : vector<1x64xf32>, vector<64x64xf32>, vector<1x64xf32> -> vector<1x64xf32>
    %156 = arith.mulf %154, %154 : vector<1x64xf32>
    %157 = arith.subf %155, %156 : vector<1x64xf32>
    %cst_157 = arith.constant 9.99999974E-6 : f32
    %158 = vector.broadcast %cst_157 : f32 to vector<1x64xf32>
    %159 = arith.addf %157, %158 : vector<1x64xf32>
    %160 = math.rsqrt %159 : vector<1x64xf32>
    %161 = arith.mulf %160, %5 : vector<1x64xf32>
    %162 = vector.broadcast %154 : vector<1x64xf32> to vector<256x64xf32>
    %163 = arith.subf %144, %162 : vector<256x64xf32>
    %164 = vector.broadcast %161 : vector<1x64xf32> to vector<256x64xf32>
    %165 = arith.mulf %163, %164 : vector<256x64xf32>
    %166 = vector.broadcast %6 : vector<1x64xf32> to vector<256x64xf32>
    %167 = arith.addf %165, %166 : vector<256x64xf32>
    %cst_158 = arith.constant 5.000000e-01 : f32
    %168 = vector.broadcast %cst_158 : f32 to vector<256x64xf32>
    %169 = arith.mulf %168, %167 : vector<256x64xf32>
    %170 = arith.mulf %167, %167 : vector<256x64xf32>
    %171 = arith.mulf %170, %167 : vector<256x64xf32>
    %cst_159 = arith.constant 4.471500e-02 : f32
    %172 = vector.broadcast %cst_159 : f32 to vector<256x64xf32>
    %173 = arith.mulf %172, %171 : vector<256x64xf32>
    %174 = arith.addf %167, %173 : vector<256x64xf32>
    %cst_160 = arith.constant 0.797884583 : f32
    %175 = vector.broadcast %cst_160 : f32 to vector<256x64xf32>
    %176 = arith.mulf %175, %174 : vector<256x64xf32>
    %177 = math.tanh %176 : vector<256x64xf32>
    %cst_161 = arith.constant 1.000000e+00 : f32
    %178 = vector.broadcast %cst_161 : f32 to vector<256x64xf32>
    %179 = arith.addf %178, %177 : vector<256x64xf32>
    %180 = arith.mulf %169, %179 : vector<256x64xf32>
    %181 = arith.truncf %180 : vector<256x64xf32> to vector<256x64xbf16>
    %c0_162 = arith.constant 0 : index
    %c0_163 = arith.constant 0 : index
    %182 = vector.load %arg4[%c0_162, %c0_163] : memref<64x64xbf16, #tpu.memory_space<vmem>>, vector<64x64xbf16>
    %cst_164 = arith.constant dense<0.000000e+00> : vector<256x64xf32>
    %183 = tpu.matmul %181, %182, %cst_164 {dimension_numbers = #tpu.dot_dimension_numbers<[1], [0], [0], [1], [0, 0, 1, 1], [], []>} : vector<256x64xbf16>, vector<64x64xbf16>, vector<256x64xf32> -> vector<256x64xf32>
    %184 = vector.broadcast %7 : vector<1x64xf32> to vector<256x64xf32>
    %185 = arith.addf %183, %184 : vector<256x64xf32>
    %186 = arith.truncf %185 : vector<256x64xf32> to vector<256x64xbf16>
    %c0_165 = arith.constant 0 : index
    %c0_166 = arith.constant 0 : index
    %c0_167 = arith.constant 0 : index
    %187 = vector.load %arg7[%c0_165, %c0_166, %c0_167] : memref<1x256x64xbf16, #tpu.memory_space<vmem>>, vector<1x256x64xbf16>
    %188 = vector.shape_cast %187 : vector<1x256x64xbf16> to vector<256x64xbf16>
    %189 = vector.shape_cast %186 : vector<256x64xbf16> to vector<1x256x64xbf16>
    tpu.vector_store %arg7[%c0_165, %c0_166, %c0_167], %189 {strides = array<i32>} : memref<1x256x64xbf16, #tpu.memory_space<vmem>>, vector<1x256x64xbf16>,
    return
  }
  func.func @transform_0(%arg0: i32) -> (i32, i32, i32, i32) {
    %c0_i32 = arith.constant 0 : i32
    %c0_i32_0 = arith.constant 0 : i32
    %c0_i32_1 = arith.constant 0 : i32
    %c0_i32_2 = arith.constant 0 : i32
    return %arg0, %c0_i32, %c0_i32_0, %c0_i32_1 : i32, i32, i32, i32
  }
  func.func @transform_1(%arg0: i32) -> (i32, i32) {
    %c0_i32 = arith.constant 0 : i32
    %c0_i32_0 = arith.constant 0 : i32
    %c0_i32_1 = arith.constant 0 : i32
    return %c0_i32, %c0_i32_0 : i32, i32
  }
  func.func @transform_2(%arg0: i32) -> (i32, i32, i32) {
    %c0_i32 = arith.constant 0 : i32
    %c0_i32_0 = arith.constant 0 : i32
    %c0_i32_1 = arith.constant 0 : i32
    %c0_i32_2 = arith.constant 0 : i32
    return %c0_i32, %c0_i32_0, %c0_i32_1 : i32, i32, i32
  }
  func.func @transform_3(%arg0: i32) -> (i32, i32) {
    %c0_i32 = arith.constant 0 : i32
    %c0_i32_0 = arith.constant 0 : i32
    %c0_i32_1 = arith.constant 0 : i32
    return %c0_i32, %c0_i32_0 : i32, i32
  }
  func.func @transform_4(%arg0: i32) -> (i32, i32) {
    %c0_i32 = arith.constant 0 : i32
    %c0_i32_0 = arith.constant 0 : i32
    %c0_i32_1 = arith.constant 0 : i32
    return %c0_i32, %c0_i32_0 : i32, i32
  }
  func.func @transform_5(%arg0: i32) -> (i32, i32) {
    %c0_i32 = arith.constant 0 : i32
    %c0_i32_0 = arith.constant 0 : i32
    %c0_i32_1 = arith.constant 0 : i32
    return %c0_i32, %c0_i32_0 : i32, i32
  }
  func.func @transform_6(%arg0: i32) -> (i32, i32, i32) {
    %c0_i32 = arith.constant 0 : i32
    %c0_i32_0 = arith.constant 0 : i32
    %c0_i32_1 = arith.constant 0 : i32
    return %arg0, %c0_i32, %c0_i32_0 : i32, i32, i32
  }
}

</mosaic_0001>

<llo_original>
// kernel: tile.8
$region0: #{tile.8}
  #allocation0 [shape = 's32[1]{0}', space=sflag, size = 0x4, scoped, tag = 'scoped memory for tile.8']
  %s0 = inlined_call_operand.vmem [shape: f32[16], index: 0, kind: input, shape index: {}]
  %s1 = inlined_call_operand.vmem [shape: f32[4,16], index: 1, kind: output, shape index: {}]
  // Predicated region
  $region2: #{tile.8} parent=0 // pred_check
    _
  $region3: #{tile.8} parent=0 // pred_check_branch
    %3 = sbr.rel (0) target = $region5
  $region4: #{tile.8} parent=0 // pred_region
    _
  $region5: #{tile.8} parent=0 // pred_fallthru
    _
  %v4 = vld [vmem:[%s0] ss:$0 sm:$0xff]
  %5 = vst [vmem:[%s1] sm:$0xf] %v4

// kernel: decoder_block_forward.1
$region0: #{decoder_block_forward.1}
  #allocation0 [shape = 'u32[]', space=smem, size = 0x4, offset = 0x4, fixed_abs, tag = 'smem constant byte address 0x4 - core index']
  #allocation1 [shape = 'u32[144,128]{1,0:T(1,128)}', space=vmem, size = 0x12000, scoped, tag = 'internal scratch']
  #allocation2 [shape = 'f32[18,18,4]{2,1,0:T(8,128)}', space=vmem, size = 0x36000, scoped, tag = 'scratch operand']
  #allocation3 [shape = 'f32[18,18,64]{2,1,0:T(8,128)}', space=vmem, size = 0x36000, scoped, tag = 'scratch operand']
  %s0 = inlined_call_operand.vmem [shape: f32[2,16,16,4], index: 0, kind: input, shape index: {}]
  %s1 = inlined_call_operand.vmem [shape: bf16[36,64], index: 1, kind: input, shape index: {}]
  %s2 = inlined_call_operand.vmem [shape: bf16[9,64,64], index: 2, kind: input, shape index: {}]
  %s3 = inlined_call_operand.vmem [shape: bf16[64,64], index: 3, kind: input, shape index: {}]
  %s4 = inlined_call_operand.vmem [shape: f32[64,64], index: 4, kind: input, shape index: {}]
  %s5 = inlined_call_operand.vmem [shape: f32[8,64], index: 5, kind: input, shape index: {}]
  %s6 = inlined_call_operand.vmem [shape: bf16[2,256,64], index: 6, kind: output, shape index: {}]
  %s7 = sld [smem:[#allocation0]]
  $region57: #{decoder_block_forward.1} parent=0
    _
  %s9 = ssub.s32 1, %s7
  %s10 = scalar_select 0, %s9, %s7
  loop: start=0, step=1, limit=4
  $region2: #{decoder_block_forward.1} parent=0 // loop_pre_header
    _
  $region3: #{decoder_block_forward.1} parent=0 // loop_header
    %s12 = sphi 0, %s16
    %p13 = scmp.ge.s32.totalorder %s12, 4
    %s22 = sphi 0, %s24
    %s25 = sphi 0, %s22
    %s26 = sphi 0, %s25
    %s42 = sphi 0, %s26
    %s46 = sphi 0, %s46
    %s48 = sphi 0, %s46
    %s49 = sphi 0, %s48
    %s63 = sphi 0, %s49
    %s67 = sphi 0, %s67
    %s69 = sphi 0, %s67
    %s70 = sphi 0, %s69
    %s84 = sphi 0, %s70
    %s88 = sphi 0, %s88
    %s90 = sphi 0, %s88
    %s91 = sphi 0, %s90
    %s105 = sphi 0, %s91
    %s109 = sphi 0, %s109
    %s111 = sphi 0, %s109
    %s112 = sphi 0, %s111
    %s126 = sphi 0, %s112
    %s130 = sphi 0, %s130
    %s132 = sphi 0, %s130
    %s133 = sphi 0, %s132
    %s147 = sphi 0, %s133
    %s153 = sphi 0, %s155
    %s156 = sphi 0, %s153
    %s157 = sphi 0, %s156
    %s173 = sphi 0, %s157
  $region4: #{decoder_block_forward.1} parent=0 // loop_header_branch
    %15 = sbr.rel (%p13) target = $region8
  $region5: #{decoder_block_forward.1} parent=0 // loop_body
    %s17 = ssub.s32 %s12, 1
    %s18 = ssub.s32 %s12, 2
    %s19 = sadd.s32 %s12, 1
    %s20 = ssub.s32 %s12, %s19
    %p21 = scmp.eq.s32.totalorder %s20, 0
    %s23 = sadd.s32 %s22, 1
    %s24 = scalar_select %p21, %s22, %s23
    %p27 = pneg %p21
    %p28 = scmp.eq.s32.totalorder %s12, 1
    %p29 = por %p27, %p28
    %p30 = scmp.ne.s32.totalorder %s22, %s25
    %p31 = scmp.eq.s32.totalorder %s12, 0
    %p32 = por %p30, %p31
    %p33 = scmp.ne.s32.totalorder %s22, %s25
    %p34 = scmp.eq.s32.totalorder %s17, 1
    %p35 = por %p33, %p34
    %p36 = scmp.ne.s32.totalorder %s25, %s26
    %p37 = scmp.eq.s32.totalorder %s17, 0
    %p38 = por %p36, %p37
    %p39 = scmp.ne.s32.totalorder %s25, %s26
    %p40 = scmp.eq.s32.totalorder %s18, 1
    %p41 = por %p39, %p40
    %p43 = scmp.ne.s32.totalorder %s26, %s42
    %p44 = scmp.eq.s32.totalorder %s18, 0
    %p45 = por %p43, %p44
    %s47 = sadd.s32 %s46, 1
    %p50 = scmp.eq.s32.totalorder %s12, 1
    %p51 = scmp.ne.s32.totalorder %s46, %s48
    %p52 = scmp.eq.s32.totalorder %s12, 0
    %p53 = por %p51, %p52
    %p54 = scmp.ne.s32.totalorder %s46, %s48
    %p55 = scmp.eq.s32.totalorder %s17, 1
    %p56 = por %p54, %p55
    %p57 = scmp.ne.s32.totalorder %s48, %s49
    %p58 = scmp.eq.s32.totalorder %s17, 0
    %p59 = por %p57, %p58
    %p60 = scmp.ne.s32.totalorder %s48, %s49
    %p61 = scmp.eq.s32.totalorder %s18, 1
    %p62 = por %p60, %p61
    %p64 = scmp.ne.s32.totalorder %s49, %s63
    %p65 = scmp.eq.s32.totalorder %s18, 0
    %p66 = por %p64, %p65
    %s68 = sadd.s32 %s67, 1
    %p71 = scmp.eq.s32.totalorder %s12, 1
    %p72 = scmp.ne.s32.totalorder %s67, %s69
    %p73 = scmp.eq.s32.totalorder %s12, 0
    %p74 = por %p72, %p73
    %p75 = scmp.ne.s32.totalorder %s67, %s69
    %p76 = scmp.eq.s32.totalorder %s17, 1
    %p77 = por %p75, %p76
    %p78 = scmp.ne.s32.totalorder %s69, %s70
    %p79 = scmp.eq.s32.totalorder %s17, 0
    %p80 = por %p78, %p79
    %p81 = scmp.ne.s32.totalorder %s69, %s70
    %p82 = scmp.eq.s32.totalorder %s18, 1
    %p83 = por %p81, %p82
    %p85 = scmp.ne.s32.totalorder %s70, %s84
    %p86 = scmp.eq.s32.totalorder %s18, 0
    %p87 = por %p85, %p86
    %s89 = sadd.s32 %s88, 1
    %p92 = scmp.eq.s32.totalorder %s12, 1
    %p93 = scmp.ne.s32.totalorder %s88, %s90
    %p94 = scmp.eq.s32.totalorder %s12, 0
    %p95 = por %p93, %p94
    %p96 = scmp.ne.s32.totalorder %s88, %s90
    %p97 = scmp.eq.s32.totalorder %s17, 1
    %p98 = por %p96, %p97
    %p99 = scmp.ne.s32.totalorder %s90, %s91
    %p100 = scmp.eq.s32.totalorder %s17, 0
    %p101 = por %p99, %p100
    %p102 = scmp.ne.s32.totalorder %s90, %s91
    %p103 = scmp.eq.s32.totalorder %s18, 1
    %p104 = por %p102, %p103
    %p106 = scmp.ne.s32.totalorder %s91, %s105
    %p107 = scmp.eq.s32.totalorder %s18, 0
    %p108 = por %p106, %p107
    %s110 = sadd.s32 %s109, 1
    %p113 = scmp.eq.s32.totalorder %s12, 1
    %p114 = scmp.ne.s32.totalorder %s109, %s111
    %p115 = scmp.eq.s32.totalorder %s12, 0
    %p116 = por %p114, %p115
    %p117 = scmp.ne.s32.totalorder %s109, %s111
    %p118 = scmp.eq.s32.totalorder %s17, 1
    %p119 = por %p117, %p118
    %p120 = scmp.ne.s32.totalorder %s111, %s112
    %p121 = scmp.eq.s32.totalorder %s17, 0
    %p122 = por %p120, %p121
    %p123 = scmp.ne.s32.totalorder %s111, %s112
    %p124 = scmp.eq.s32.totalorder %s18, 1
    %p125 = por %p123, %p124
    %p127 = scmp.ne.s32.totalorder %s112, %s126
    %p128 = scmp.eq.s32.totalorder %s18, 0
    %p129 = por %p127, %p128
    %s131 = sadd.s32 %s130, 1
    %p134 = scmp.eq.s32.totalorder %s12, 1
    %p135 = scmp.ne.s32.totalorder %s130, %s132
    %p136 = scmp.eq.s32.totalorder %s12, 0
    %p137 = por %p135, %p136
    %p138 = scmp.ne.s32.totalorder %s130, %s132
    %p139 = scmp.eq.s32.totalorder %s17, 1
    %p140 = por %p138, %p139
    %p141 = scmp.ne.s32.totalorder %s132, %s133
    %p142 = scmp.eq.s32.totalorder %s17, 0
    %p143 = por %p141, %p142
    %p144 = scmp.ne.s32.totalorder %s132, %s133
    %p145 = scmp.eq.s32.totalorder %s18, 1
    %p146 = por %p144, %p145
    %p148 = scmp.ne.s32.totalorder %s133, %s147
    %p149 = scmp.eq.s32.totalorder %s18, 0
    %p150 = por %p148, %p149
    %s151 = ssub.s32 %s12, %s19
    %p152 = scmp.eq.s32.totalorder %s151, 0
    %s154 = sadd.s32 %s153, 1
    %s155 = scalar_select %p152, %s153, %s154
    %p158 = pneg %p152
    %p159 = scmp.eq.s32.totalorder %s12, 1
    %p160 = por %p158, %p159
    %p161 = scmp.ne.s32.totalorder %s153, %s156
    %p162 = scmp.eq.s32.totalorder %s12, 0
    %p163 = por %p161, %p162
    %p164 = scmp.ne.s32.totalorder %s153, %s156
    %p165 = scmp.eq.s32.totalorder %s17, 1
    %p166 = por %p164, %p165
    %p167 = scmp.ne.s32.totalorder %s156, %s157
    %p168 = scmp.eq.s32.totalorder %s17, 0
    %p169 = por %p167, %p168
    %p170 = scmp.ne.s32.totalorder %s156, %s157
    %p171 = scmp.eq.s32.totalorder %s18, 1
    %p172 = por %p170, %p171
    %p174 = scmp.ne.s32.totalorder %s157, %s173
    %p175 = scmp.eq.s32.totalorder %s18, 0
    %p176 = por %p174, %p175
    %p177 = scmp.le.s32.totalorder 1, %s12
    %p178 = scmp.lt.s32.totalorder %s12, 3
    %p179 = pnand %p177, %p178
    %p180 = pneg %p179
    // Predicated region
    $region9: #{decoder_block_forward.1} parent=5 // pred_check
      _
    $region10: #{decoder_block_forward.1} parent=5 // pred_check_branch
      %182 = sbr.rel (%p179) target = $region12
    $region11: #{decoder_block_forward.1} parent=5 // pred_region
      %s183 = ssub.s32 %s12, 1
      // Predicated region
      $region13: #{decoder_block_forward.1} parent=11 // pred_check
        %p184 = pneg %p59
      $region14: #{decoder_block_forward.1} parent=11 // pred_check_branch
        %186 = sbr.rel (%p184) target = $region16
      $region15: #{decoder_block_forward.1} parent=11 // pred_region
        _
      $region16: #{decoder_block_forward.1} parent=11 // pred_fallthru
        _
      // Predicated region
      $region17: #{decoder_block_forward.1} parent=11 // pred_check
        %p187 = pneg %p80
      $region18: #{decoder_block_forward.1} parent=11 // pred_check_branch
        %189 = sbr.rel (%p187) target = $region20
      $region19: #{decoder_block_forward.1} parent=11 // pred_region
        _
      $region20: #{decoder_block_forward.1} parent=11 // pred_fallthru
        _
      // Predicated region
      $region21: #{decoder_block_forward.1} parent=11 // pred_check
        %p190 = pneg %p101
      $region22: #{decoder_block_forward.1} parent=11 // pred_check_branch
        %192 = sbr.rel (%p190) target = $region24
      $region23: #{decoder_block_forward.1} parent=11 // pred_region
        _
      $region24: #{decoder_block_forward.1} parent=11 // pred_fallthru
        _
      // Predicated region
      $region25: #{decoder_block_forward.1} parent=11 // pred_check
        %p193 = pneg %p122
      $region26: #{decoder_block_forward.1} parent=11 // pred_check_branch
        %195 = sbr.rel (%p193) target = $region28
      $region27: #{decoder_block_forward.1} parent=11 // pred_region
        _
      $region28: #{decoder_block_forward.1} parent=11 // pred_fallthru
        _
      // Predicated region
      $region29: #{decoder_block_forward.1} parent=11 // pred_check
        %p196 = pneg %p143
      $region30: #{decoder_block_forward.1} parent=11 // pred_check_branch
        %198 = sbr.rel (%p196) target = $region32
      $region31: #{decoder_block_forward.1} parent=11 // pred_region
        _
      $region32: #{decoder_block_forward.1} parent=11 // pred_fallthru
        _
    $region12: #{decoder_block_forward.1} parent=5 // pred_fallthru
      _
    %p199 = scmp.lt.s32.totalorder %s12, 2
    // Predicated region
    $region33: #{decoder_block_forward.1} parent=5 // pred_check
      %p200 = pneg %p199
    $region34: #{decoder_block_forward.1} parent=5 // pred_check_branch
      %202 = sbr.rel (%p200) target = $region36
    $region35: #{decoder_block_forward.1} parent=5 // pred_region
      // Predicated region
      $region37: #{decoder_block_forward.1} parent=35 // pred_check
        %p203 = pneg %p32
      $region38: #{decoder_block_forward.1} parent=35 // pred_check_branch
        %205 = sbr.rel (%p203) target = $region40
      $region39: #{decoder_block_forward.1} parent=35 // pred_region
        %p206 = scmp.lt.s32.totalorder %s12, 1
        %s207 = scalar_select %p206, %s12, 1
        %s208 = smul.addr %s207, 32
        %s209 = smul.addr %s208, 8
        %s210 = scalar_lea.vmem %s0, %s209
      $region40: #{decoder_block_forward.1} parent=35 // pred_fallthru
        _
    $region36: #{decoder_block_forward.1} parent=5 // pred_fallthru
      _
    %p211 = scmp.le.s32.totalorder 1, %s12
    %p212 = scmp.lt.s32.totalorder %s12, 3
    %p213 = pnand %p211, %p212
    %p214 = pneg %p213
    // Predicated region
    $region41: #{decoder_block_forward.1} parent=5 // pred_check
      _
    $region42: #{decoder_block_forward.1} parent=5 // pred_check_branch
      %216 = sbr.rel (%p213) target = $region44
    $region43: #{decoder_block_forward.1} parent=5 // pred_region
      %s217 = ssub.s32 %s12, 1
      %p218 = scmp.lt.s32.totalorder %s17, 1
      %s219 = scalar_select %p218, %s17, 1
      %s220 = smul.addr %s219, 32
      %s221 = smul.addr %s220, 8
      %s222 = scalar_lea.vmem %s0, %s221
      %p223 = pneg %p38
      %p224 = pneg %p35
      %p225 = pneg %p59
      %p226 = pneg %p56
      %p227 = pneg %p80
      %p228 = pneg %p77
      %p229 = pneg %p101
      %p230 = pneg %p98
      %p231 = pneg %p122
      %p232 = pneg %p119
      %p233 = pneg %p143
      %p234 = pneg %p140
      %p235 = pneg %p169
      %p236 = pneg %p166
      %p237 = scmp.lt.s32.totalorder %s17, 1
      %s238 = scalar_select %p237, %s17, 1
      %s239 = smul.addr %s238, 32
      %s240 = smul.addr %s239, 4
      %s241 = scalar_lea.vmem %s6, %s240
      %p242 = scmp.lt.s32.totalorder %s17, 1
      %s243 = scalar_select %p242, %s17, 1
      %s244 = smul.addr %s243, 32
      %s245 = smul.addr %s244, 8
      %s246 = scalar_lea.vmem %s0, %s245
      %p247 = scmp.lt.s32.totalorder %s17, 1
      %s248 = scalar_select %p247, %s17, 1
      %s249 = smul.addr %s248, 32
      %s250 = smul.addr %s249, 4
      %s251 = scalar_lea.vmem %s6, %s250
      %v253 = vld [vmem:[%s4] sm:$0xff]
      %v254 = vld [vmem:[%s4 + $0x8] sm:$0xff]
      %v255 = vld [vmem:[%s4 + $0x10] sm:$0xff]
      %v256 = vld [vmem:[%s4 + $0x18] sm:$0xff]
      %v257 = vld [vmem:[%s4 + $0x20] sm:$0xff]
      %v258 = vld [vmem:[%s4 + $0x28] sm:$0xff]
      %v259 = vld [vmem:[%s4 + $0x30] sm:$0xff]
      %v260 = vld [vmem:[%s4 + $0x38] sm:$0xff]
      %v261 = vld [vmem:[%s5] sm:$0x1]
      %v262 = vld [vmem:[%s5 + $0x1] sm:$0x1]
      %v263 = vld [vmem:[%s5 + $0x2] sm:$0x1]
      %v264 = vld [vmem:[%s5 + $0x3] sm:$0x1]
      %v265 = vld [vmem:[%s5 + $0x4] sm:$0x1]
      %v266 = vld [vmem:[%s5 + $0x5] sm:$0x1]
      %v267 = vld [vmem:[%s5 + $0x6] sm:$0x1]
      %vm268 = vcmask 31744
      %269 = vst.msk [vmem:[#allocation2] sm:$0xff] %vm268, 0.0
      %270 = vst.msk [vmem:[#allocation2 + $0x8] sm:$0xff] %vm268, 0.0
      %vm271 = vcmask 25600
      %272 = vst.msk [vmem:[#allocation2 + $0x10] sm:$0x3] %vm271, 0.0
      %s273 = scalar_lea.vmem [#allocation2], 408
      %274 = vst.msk [vmem:[%s273] sm:$0xff] %vm268, 0.0
      %275 = vst.msk [vmem:[%s273 + $0x8] sm:$0xff] %vm268, 0.0
      %276 = vst.msk [vmem:[%s273 + $0x10] sm:$0x3] %vm271, 0.0
      %s277 = scalar_lea.vmem [#allocation2], 24
      %vm278 = vcmask 24576
      %279 = vst.msk [vmem:[%s277] sm:$0x1] %vm278, 0.0
      %280 = vst.msk [vmem:[%s277 + $0x18] sm:$0x1] %vm278, 0.0
      %281 = vst.msk [vmem:[%s277 + $0x30] sm:$0x1] %vm278, 0.0
      %282 = vst.msk [vmem:[%s277 + $0x48] sm:$0x1] %vm278, 0.0
      %283 = vst.msk [vmem:[%s277 + $0x60] sm:$0x1] %vm278, 0.0
      %284 = vst.msk [vmem:[%s277 + $0x78] sm:$0x1] %vm278, 0.0
      %285 = vst.msk [vmem:[%s277 + $0x90] sm:$0x1] %vm278, 0.0
      %286 = vst.msk [vmem:[%s277 + $0xa8] sm:$0x1] %vm278, 0.0
      %287 = vst.msk [vmem:[%s277 + $0xc0] sm:$0x1] %vm278, 0.0
      %288 = vst.msk [vmem:[%s277 + $0xd8] sm:$0x1] %vm278, 0.0
      %289 = vst.msk [vmem:[%s277 + $0xf0] sm:$0x1] %vm278, 0.0
      %290 = vst.msk [vmem:[%s277 + $0x108] sm:$0x1] %vm278, 0.0
      %291 = vst.msk [vmem:[%s277 + $0x120] sm:$0x1] %vm278, 0.0
      %292 = vst.msk [vmem:[%s277 + $0x138] sm:$0x1] %vm278, 0.0
      %293 = vst.msk [vmem:[%s277 + $0x150] sm:$0x1] %vm278, 0.0
      %294 = vst.msk [vmem:[%s277 + $0x168] sm:$0x1] %vm278, 0.0
      %295 = vst.msk [vmem:[%s277 + $0x11] sm:$0x1] %vm278, 0.0
      %296 = vst.msk [vmem:[%s277 + $0x29] sm:$0x1] %vm278, 0.0
      %297 = vst.msk [vmem:[%s277 + $0x41] sm:$0x1] %vm278, 0.0
      %298 = vst.msk [vmem:[%s277 + $0x59] sm:$0x1] %vm278, 0.0
      %299 = vst.msk [vmem:[%s277 + $0x71] sm:$0x1] %vm278, 0.0
      %300 = vst.msk [vmem:[%s277 + $0x89] sm:$0x1] %vm278, 0.0
      %301 = vst.msk [vmem:[%s277 + $0xa1] sm:$0x1] %vm278, 0.0
      %302 = vst.msk [vmem:[%s277 + $0xb9] sm:$0x1] %vm278, 0.0
      %303 = vst.msk [vmem:[%s277 + $0xd1] sm:$0x1] %vm278, 0.0
      %304 = vst.msk [vmem:[%s277 + $0xe9] sm:$0x1] %vm278, 0.0
      %305 = vst.msk [vmem:[%s277 + $0x101] sm:$0x1] %vm278, 0.0
      %306 = vst.msk [vmem:[%s277 + $0x119] sm:$0x1] %vm278, 0.0
      %307 = vst.msk [vmem:[%s277 + $0x131] sm:$0x1] %vm278, 0.0
      %308 = vst.msk [vmem:[%s277 + $0x149] sm:$0x1] %vm278, 0.0
      %309 = vst.msk [vmem:[%s277 + $0x161] sm:$0x1] %vm278, 0.0
      %310 = vst.msk [vmem:[%s277 + $0x179] sm:$0x1] %vm278, 0.0
      %v311 = vld [vmem:[%s246] sm:$0xff]
      %v312 = vld [vmem:[%s246 + $0x8] sm:$0xff]
      %v313 = vld [vmem:[%s246 + $0x10] sm:$0xff]
      %v314 = vld [vmem:[%s246 + $0x18] sm:$0xff]
      %v315 = vld [vmem:[%s246 + $0x20] sm:$0xff]
      %v316 = vld [vmem:[%s246 + $0x28] sm:$0xff]
      %v317 = vld [vmem:[%s246 + $0x30] sm:$0xff]
      %v318 = vld [vmem:[%s246 + $0x38] sm:$0xff]
      %v319 = vld [vmem:[%s246 + $0x40] sm:$0xff]
      %v320 = vld [vmem:[%s246 + $0x48] sm:$0xff]
      %v321 = vld [vmem:[%s246 + $0x50] sm:$0xff]
      %v322 = vld [vmem:[%s246 + $0x58] sm:$0xff]
      %v323 = vld [vmem:[%s246 + $0x60] sm:$0xff]
      %v324 = vld [vmem:[%s246 + $0x68] sm:$0xff]
      %v325 = vld [vmem:[%s246 + $0x70] sm:$0xff]
      %v326 = vld [vmem:[%s246 + $0x78] sm:$0xff]
      %v327 = vld [vmem:[%s246 + $0x80] sm:$0xff]
      %v328 = vld [vmem:[%s246 + $0x88] sm:$0xff]
      %v329 = vld [vmem:[%s246 + $0x90] sm:$0xff]
      %v330 = vld [vmem:[%s246 + $0x98] sm:$0xff]
      %v331 = vld [vmem:[%s246 + $0xa0] sm:$0xff]
      %v332 = vld [vmem:[%s246 + $0xa8] sm:$0xff]
      %v333 = vld [vmem:[%s246 + $0xb0] sm:$0xff]
      %v334 = vld [vmem:[%s246 + $0xb8] sm:$0xff]
      %v335 = vld [vmem:[%s246 + $0xc0] sm:$0xff]
      %v336 = vld [vmem:[%s246 + $0xc8] sm:$0xff]
      %v337 = vld [vmem:[%s246 + $0xd0] sm:$0xff]
      %v338 = vld [vmem:[%s246 + $0xd8] sm:$0xff]
      %v339 = vld [vmem:[%s246 + $0xe0] sm:$0xff]
      %v340 = vld [vmem:[%s246 + $0xe8] sm:$0xff]
      %v341 = vld [vmem:[%s246 + $0xf0] sm:$0xff]
      %v342 = vld [vmem:[%s246 + $0xf8] sm:$0xff]
      %343 = vst.msk [vmem:[%s277 + $0x1] sm:$0xff] %vm268, %v311
      %344 = vst.msk [vmem:[%s277 + $0x9] sm:$0xff] %vm268, %v312
      %345 = vst.msk [vmem:[%s277 + $0x19] sm:$0xff] %vm268, %v313
      %346 = vst.msk [vmem:[%s277 + $0x21] sm:$0xff] %vm268, %v314
      %347 = vst.msk [vmem:[%s277 + $0x31] sm:$0xff] %vm268, %v315
      %348 = vst.msk [vmem:[%s277 + $0x39] sm:$0xff] %vm268, %v316
      %349 = vst.msk [vmem:[%s277 + $0x49] sm:$0xff] %vm268, %v317
      %350 = vst.msk [vmem:[%s277 + $0x51] sm:$0xff] %vm268, %v318
      %351 = vst.msk [vmem:[%s277 + $0x61] sm:$0xff] %vm268, %v319
      %352 = vst.msk [vmem:[%s277 + $0x69] sm:$0xff] %vm268, %v320
      %353 = vst.msk [vmem:[%s277 + $0x79] sm:$0xff] %vm268, %v321
      %354 = vst.msk [vmem:[%s277 + $0x81] sm:$0xff] %vm268, %v322
      %355 = vst.msk [vmem:[%s277 + $0x91] sm:$0xff] %vm268, %v323
      %356 = vst.msk [vmem:[%s277 + $0x99] sm:$0xff] %vm268, %v324
      %357 = vst.msk [vmem:[%s277 + $0xa9] sm:$0xff] %vm268, %v325
      %358 = vst.msk [vmem:[%s277 + $0xb1] sm:$0xff] %vm268, %v326
      %359 = vst.msk [vmem:[%s277 + $0xc1] sm:$0xff] %vm268, %v327
      %360 = vst.msk [vmem:[%s277 + $0xc9] sm:$0xff] %vm268, %v328
      %361 = vst.msk [vmem:[%s277 + $0xd9] sm:$0xff] %vm268, %v329
      %362 = vst.msk [vmem:[%s277 + $0xe1] sm:$0xff] %vm268, %v330
      %363 = vst.msk [vmem:[%s277 + $0xf1] sm:$0xff] %vm268, %v331
      %364 = vst.msk [vmem:[%s277 + $0xf9] sm:$0xff] %vm268, %v332
      %365 = vst.msk [vmem:[%s277 + $0x109] sm:$0xff] %vm268, %v333
      %366 = vst.msk [vmem:[%s277 + $0x111] sm:$0xff] %vm268, %v334
      %367 = vst.msk [vmem:[%s277 + $0x121] sm:$0xff] %vm268, %v335
      %368 = vst.msk [vmem:[%s277 + $0x129] sm:$0xff] %vm268, %v336
      %369 = vst.msk [vmem:[%s277 + $0x139] sm:$0xff] %vm268, %v337
      %370 = vst.msk [vmem:[%s277 + $0x141] sm:$0xff] %vm268, %v338
      %371 = vst.msk [vmem:[%s277 + $0x151] sm:$0xff] %vm268, %v339
      %372 = vst.msk [vmem:[%s277 + $0x159] sm:$0xff] %vm268, %v340
      %373 = vst.msk [vmem:[%s277 + $0x169] sm:$0xff] %vm268, %v341
      %374 = vst.msk [vmem:[%s277 + $0x171] sm:$0xff] %vm268, %v342
      %v375 = vld [vmem:[#allocation2] sm:$0xff]
      %v376 = vld [vmem:[#allocation2 + $0x8] sm:$0xff]
      %v377 = vld [vmem:[#allocation2 + $0x18] sm:$0xff]
      %v378 = vld [vmem:[#allocation2 + $0x20] sm:$0xff]
      %v379 = vld [vmem:[#allocation2 + $0x30] sm:$0xff]
      %v380 = vld [vmem:[#allocation2 + $0x38] sm:$0xff]
      %v381 = vld [vmem:[#allocation2 + $0x48] sm:$0xff]
      %v382 = vld [vmem:[#allocation2 + $0x50] sm:$0xff]
      %v383 = vld [vmem:[#allocation2 + $0x60] sm:$0xff]
      %v384 = vld [vmem:[#allocation2 + $0x68] sm:$0xff]
      %v385 = vld [vmem:[#allocation2 + $0x78] sm:$0xff]
      %v386 = vld [vmem:[#allocation2 + $0x80] sm:$0xff]
      %v387 = vld [vmem:[#allocation2 + $0x90] sm:$0xff]
      %v388 = vld [vmem:[#allocation2 + $0x98] sm:$0xff]
      %v389 = vld [vmem:[#allocation2 + $0xa8] sm:$0xff]
      %v390 = vld [vmem:[#allocation2 + $0xb0] sm:$0xff]
      %v391 = vld [vmem:[#allocation2 + $0xc0] sm:$0xff]
      %v392 = vld [vmem:[#allocation2 + $0xc8] sm:$0xff]
      %v393 = vld [vmem:[#allocation2 + $0xd8] sm:$0xff]
      %v394 = vld [vmem:[#allocation2 + $0xe0] sm:$0xff]
      %v395 = vld [vmem:[#allocation2 + $0xf0] sm:$0xff]
      %v396 = vld [vmem:[#allocation2 + $0xf8] sm:$0xff]
      %v397 = vld [vmem:[#allocation2 + $0x108] sm:$0xff]
      %v398 = vld [vmem:[#allocation2 + $0x110] sm:$0xff]
      %v399 = vld [vmem:[#allocation2 + $0x120] sm:$0xff]
      %v400 = vld [vmem:[#allocation2 + $0x128] sm:$0xff]
      %v401 = vld [vmem:[#allocation2 + $0x138] sm:$0xff]
      %v402 = vld [vmem:[#allocation2 + $0x140] sm:$0xff]
      %v403 = vld [vmem:[#allocation2 + $0x150] sm:$0xff]
      %v404 = vld [vmem:[#allocation2 + $0x158] sm:$0xff]
      %v405 = vld [vmem:[#allocation2 + $0x168] sm:$0xff]
      %v406 = vld [vmem:[#allocation2 + $0x170] sm:$0xff]
      %v407 = vld [vmem:[#allocation2 + $0x1] sm:$0xff]
      %v408 = vld [vmem:[#allocation2 + $0x9] sm:$0xff]
      %v409 = vld [vmem:[#allocation2 + $0x19] sm:$0xff]
      %v410 = vld [vmem:[#allocation2 + $0x21] sm:$0xff]
      %v411 = vld [vmem:[#allocation2 + $0x31] sm:$0xff]
      %v412 = vld [vmem:[#allocation2 + $0x39] sm:$0xff]
      %v413 = vld [vmem:[#allocation2 + $0x49] sm:$0xff]
      %v414 = vld [vmem:[#allocation2 + $0x51] sm:$0xff]
      %v415 = vld [vmem:[#allocation2 + $0x61] sm:$0xff]
      %v416 = vld [vmem:[#allocation2 + $0x69] sm:$0xff]
      %v417 = vld [vmem:[#allocation2 + $0x79] sm:$0xff]
      %v418 = vld [vmem:[#allocation2 + $0x81] sm:$0xff]
      %v419 = vld [vmem:[#allocation2 + $0x91] sm:$0xff]
      %v420 = vld [vmem:[#allocation2 + $0x99] sm:$0xff]
      %v421 = vld [vmem:[#allocation2 + $0xa9] sm:$0xff]
      %v422 = vld [vmem:[#allocation2 + $0xb1] sm:$0xff]
      %v423 = vld [vmem:[#allocation2 + $0xc1] sm:$0xff]
      %v424 = vld [vmem:[#allocation2 + $0xc9] sm:$0xff]
      %v425 = vld [vmem:[#allocation2 + $0xd9] sm:$0xff]
      %v426 = vld [vmem:[#allocation2 + $0xe1] sm:$0xff]
      %v427 = vld [vmem:[#allocation2 + $0xf1] sm:$0xff]
      %v428 = vld [vmem:[#allocation2 + $0xf9] sm:$0xff]
      %v429 = vld [vmem:[#allocation2 + $0x109] sm:$0xff]
      %v430 = vld [vmem:[#allocation2 + $0x111] sm:$0xff]
      %v431 = vld [vmem:[#allocation2 + $0x121] sm:$0xff]
      %v432 = vld [vmem:[#allocation2 + $0x129] sm:$0xff]
      %v433 = vld [vmem:[#allocation2 + $0x139] sm:$0xff]
      %v434 = vld [vmem:[#allocation2 + $0x141] sm:$0xff]
      %v435 = vld [vmem:[#allocation2 + $0x151] sm:$0xff]
      %v436 = vld [vmem:[#allocation2 + $0x159] sm:$0xff]
      %v437 = vld [vmem:[#allocation2 + $0x169] sm:$0xff]
      %v438 = vld [vmem:[#allocation2 + $0x171] sm:$0xff]
      %v439 = vld [vmem:[#allocation2 + $0x2] sm:$0xff]
      %v440 = vld [vmem:[#allocation2 + $0xa] sm:$0xff]
      %v441 = vld [vmem:[#allocation2 + $0x1a] sm:$0xff]
      %v442 = vld [vmem:[#allocation2 + $0x22] sm:$0xff]
      %v443 = vld [vmem:[#allocation2 + $0x32] sm:$0xff]
      %v444 = vld [vmem:[#allocation2 + $0x3a] sm:$0xff]
      %v445 = vld [vmem:[#allocation2 + $0x4a] sm:$0xff]
      %v446 = vld [vmem:[#allocation2 + $0x52] sm:$0xff]
      %v447 = vld [vmem:[#allocation2 + $0x62] sm:$0xff]
      %v448 = vld [vmem:[#allocation2 + $0x6a] sm:$0xff]
      %v449 = vld [vmem:[#allocation2 + $0x7a] sm:$0xff]
      %v450 = vld [vmem:[#allocation2 + $0x82] sm:$0xff]
      %v451 = vld [vmem:[#allocation2 + $0x92] sm:$0xff]
      %v452 = vld [vmem:[#allocation2 + $0x9a] sm:$0xff]
      %v453 = vld [vmem:[#allocation2 + $0xaa] sm:$0xff]
      %v454 = vld [vmem:[#allocation2 + $0xb2] sm:$0xff]
      %v455 = vld [vmem:[#allocation2 + $0xc2] sm:$0xff]
      %v456 = vld [vmem:[#allocation2 + $0xca] sm:$0xff]
      %v457 = vld [vmem:[#allocation2 + $0xda] sm:$0xff]
      %v458 = vld [vmem:[#allocation2 + $0xe2] sm:$0xff]
      %v459 = vld [vmem:[#allocation2 + $0xf2] sm:$0xff]
      %v460 = vld [vmem:[#allocation2 + $0xfa] sm:$0xff]
      %v461 = vld [vmem:[#allocation2 + $0x10a] sm:$0xff]
      %v462 = vld [vmem:[#allocation2 + $0x112] sm:$0xff]
      %v463 = vld [vmem:[#allocation2 + $0x122] sm:$0xff]
      %v464 = vld [vmem:[#allocation2 + $0x12a] sm:$0xff]
      %v465 = vld [vmem:[#allocation2 + $0x13a] sm:$0xff]
      %v466 = vld [vmem:[#allocation2 + $0x142] sm:$0xff]
      %v467 = vld [vmem:[#allocation2 + $0x152] sm:$0xff]
      %v468 = vld [vmem:[#allocation2 + $0x15a] sm:$0xff]
      %v469 = vld [vmem:[#allocation2 + $0x16a] sm:$0xff]
      %v470 = vld [vmem:[#allocation2 + $0x172] sm:$0xff]
      %v471 = vld [vmem:[%s277] sm:$0xff]
      %v472 = vld [vmem:[%s277 + $0x8] sm:$0xff]
      %v473 = vld [vmem:[%s277 + $0x18] sm:$0xff]
      %v474 = vld [vmem:[%s277 + $0x20] sm:$0xff]
      %v475 = vld [vmem:[%s277 + $0x30] sm:$0xff]
      %v476 = vld [vmem:[%s277 + $0x38] sm:$0xff]
      %v477 = vld [vmem:[%s277 + $0x48] sm:$0xff]
      %v478 = vld [vmem:[%s277 + $0x50] sm:$0xff]
      %v479 = vld [vmem:[%s277 + $0x60] sm:$0xff]
      %v480 = vld [vmem:[%s277 + $0x68] sm:$0xff]
      %v481 = vld [vmem:[%s277 + $0x78] sm:$0xff]
      %v482 = vld [vmem:[%s277 + $0x80] sm:$0xff]
      %v483 = vld [vmem:[%s277 + $0x90] sm:$0xff]
      %v484 = vld [vmem:[%s277 + $0x98] sm:$0xff]
      %v485 = vld [vmem:[%s277 + $0xa8] sm:$0xff]
      %v486 = vld [vmem:[%s277 + $0xb0] sm:$0xff]
      %v487 = vld [vmem:[%s277 + $0xc0] sm:$0xff]
      %v488 = vld [vmem:[%s277 + $0xc8] sm:$0xff]
      %v489 = vld [vmem:[%s277 + $0xd8] sm:$0xff]
      %v490 = vld [vmem:[%s277 + $0xe0] sm:$0xff]
      %v491 = vld [vmem:[%s277 + $0xf0] sm:$0xff]
      %v492 = vld [vmem:[%s277 + $0xf8] sm:$0xff]
      %v493 = vld [vmem:[%s277 + $0x108] sm:$0xff]
      %v494 = vld [vmem:[%s277 + $0x110] sm:$0xff]
      %v495 = vld [vmem:[%s277 + $0x120] sm:$0xff]
      %v496 = vld [vmem:[%s277 + $0x128] sm:$0xff]
      %v497 = vld [vmem:[%s277 + $0x138] sm:$0xff]
      %v498 = vld [vmem:[%s277 + $0x140] sm:$0xff]
      %v499 = vld [vmem:[%s277 + $0x150] sm:$0xff]
      %v500 = vld [vmem:[%s277 + $0x158] sm:$0xff]
      %v501 = vld [vmem:[%s277 + $0x168] sm:$0xff]
      %v502 = vld [vmem:[%s277 + $0x170] sm:$0xff]
      %v503 = vld [vmem:[%s277 + $0x1] sm:$0xff]
      %v504 = vld [vmem:[%s277 + $0x9] sm:$0xff]
      %v505 = vld [vmem:[%s277 + $0x19] sm:$0xff]
      %v506 = vld [vmem:[%s277 + $0x21] sm:$0xff]
      %v507 = vld [vmem:[%s277 + $0x31] sm:$0xff]
      %v508 = vld [vmem:[%s277 + $0x39] sm:$0xff]
      %v509 = vld [vmem:[%s277 + $0x49] sm:$0xff]
      %v510 = vld [vmem:[%s277 + $0x51] sm:$0xff]
      %v511 = vld [vmem:[%s277 + $0x61] sm:$0xff]
      %v512 = vld [vmem:[%s277 + $0x69] sm:$0xff]
      %v513 = vld [vmem:[%s277 + $0x79] sm:$0xff]
      %v514 = vld [vmem:[%s277 + $0x81] sm:$0xff]
      %v515 = vld [vmem:[%s277 + $0x91] sm:$0xff]
      %v516 = vld [vmem:[%s277 + $0x99] sm:$0xff]
      %v517 = vld [vmem:[%s277 + $0xa9] sm:$0xff]
      %v518 = vld [vmem:[%s277 + $0xb1] sm:$0xff]
      %v519 = vld [vmem:[%s277 + $0xc1] sm:$0xff]
      %v520 = vld [vmem:[%s277 + $0xc9] sm:$0xff]
      %v521 = vld [vmem:[%s277 + $0xd9] sm:$0xff]
      %v522 = vld [vmem:[%s277 + $0xe1] sm:$0xff]
      %v523 = vld [vmem:[%s277 + $0xf1] sm:$0xff]
      %v524 = vld [vmem:[%s277 + $0xf9] sm:$0xff]
      %v525 = vld [vmem:[%s277 + $0x109] sm:$0xff]
      %v526 = vld [vmem:[%s277 + $0x111] sm:$0xff]
      %v527 = vld [vmem:[%s277 + $0x121] sm:$0xff]
      %v528 = vld [vmem:[%s277 + $0x129] sm:$0xff]
      %v529 = vld [vmem:[%s277 + $0x139] sm:$0xff]
      %v530 = vld [vmem:[%s277 + $0x141] sm:$0xff]
      %v531 = vld [vmem:[%s277 + $0x151] sm:$0xff]
      %v532 = vld [vmem:[%s277 + $0x159] sm:$0xff]
      %v533 = vld [vmem:[%s277 + $0x169] sm:$0xff]
      %v534 = vld [vmem:[%s277 + $0x171] sm:$0xff]
      %v535 = vld [vmem:[%s277 + $0x2] sm:$0xff]
      %v536 = vld [vmem:[%s277 + $0xa] sm:$0xff]
      %v537 = vld [vmem:[%s277 + $0x1a] sm:$0xff]
      %v538 = vld [vmem:[%s277 + $0x22] sm:$0xff]
      %v539 = vld [vmem:[%s277 + $0x32] sm:$0xff]
      %v540 = vld [vmem:[%s277 + $0x3a] sm:$0xff]
      %v541 = vld [vmem:[%s277 + $0x4a] sm:$0xff]
      %v542 = vld [vmem:[%s277 + $0x52] sm:$0xff]
      %v543 = vld [vmem:[%s277 + $0x62] sm:$0xff]
      %v544 = vld [vmem:[%s277 + $0x6a] sm:$0xff]
      %v545 = vld [vmem:[%s277 + $0x7a] sm:$0xff]
      %v546 = vld [vmem:[%s277 + $0x82] sm:$0xff]
      %v547 = vld [vmem:[%s277 + $0x92] sm:$0xff]
      %v548 = vld [vmem:[%s277 + $0x9a] sm:$0xff]
      %v549 = vld [vmem:[%s277 + $0xaa] sm:$0xff]
      %v550 = vld [vmem:[%s277 + $0xb2] sm:$0xff]
      %v551 = vld [vmem:[%s277 + $0xc2] sm:$0xff]
      %v552 = vld [vmem:[%s277 + $0xca] sm:$0xff]
      %v553 = vld [vmem:[%s277 + $0xda] sm:$0xff]
      %v554 = vld [vmem:[%s277 + $0xe2] sm:$0xff]
      %v555 = vld [vmem:[%s277 + $0xf2] sm:$0xff]
      %v556 = vld [vmem:[%s277 + $0xfa] sm:$0xff]
      %v557 = vld [vmem:[%s277 + $0x10a] sm:$0xff]
      %v558 = vld [vmem:[%s277 + $0x112] sm:$0xff]
      %v559 = vld [vmem:[%s277 + $0x122] sm:$0xff]
      %v560 = vld [vmem:[%s277 + $0x12a] sm:$0xff]
      %v561 = vld [vmem:[%s277 + $0x13a] sm:$0xff]
      %v562 = vld [vmem:[%s277 + $0x142] sm:$0xff]
      %v563 = vld [vmem:[%s277 + $0x152] sm:$0xff]
      %v564 = vld [vmem:[%s277 + $0x15a] sm:$0xff]
      %v565 = vld [vmem:[%s277 + $0x16a] sm:$0xff]
      %v566 = vld [vmem:[%s277 + $0x172] sm:$0xff]
      %s567 = scalar_lea.vmem [#allocation2], 48
      %v568 = vld [vmem:[%s567] sm:$0xff]
      %v569 = vld [vmem:[%s567 + $0x8] sm:$0xff]
      %v570 = vld [vmem:[%s567 + $0x18] sm:$0xff]
      %v571 = vld [vmem:[%s567 + $0x20] sm:$0xff]
      %v572 = vld [vmem:[%s567 + $0x30] sm:$0xff]
      %v573 = vld [vmem:[%s567 + $0x38] sm:$0xff]
      %v574 = vld [vmem:[%s567 + $0x48] sm:$0xff]
      %v575 = vld [vmem:[%s567 + $0x50] sm:$0xff]
      %v576 = vld [vmem:[%s567 + $0x60] sm:$0xff]
      %v577 = vld [vmem:[%s567 + $0x68] sm:$0xff]
      %v578 = vld [vmem:[%s567 + $0x78] sm:$0xff]
      %v579 = vld [vmem:[%s567 + $0x80] sm:$0xff]
      %v580 = vld [vmem:[%s567 + $0x90] sm:$0xff]
      %v581 = vld [vmem:[%s567 + $0x98] sm:$0xff]
      %v582 = vld [vmem:[%s567 + $0xa8] sm:$0xff]
      %v583 = vld [vmem:[%s567 + $0xb0] sm:$0xff]
      %v584 = vld [vmem:[%s567 + $0xc0] sm:$0xff]
      %v585 = vld [vmem:[%s567 + $0xc8] sm:$0xff]
      %v586 = vld [vmem:[%s567 + $0xd8] sm:$0xff]
      %v587 = vld [vmem:[%s567 + $0xe0] sm:$0xff]
      %v588 = vld [vmem:[%s567 + $0xf0] sm:$0xff]
      %v589 = vld [vmem:[%s567 + $0xf8] sm:$0xff]
      %v590 = vld [vmem:[%s567 + $0x108] sm:$0xff]
      %v591 = vld [vmem:[%s567 + $0x110] sm:$0xff]
      %v592 = vld [vmem:[%s567 + $0x120] sm:$0xff]
      %v593 = vld [vmem:[%s567 + $0x128] sm:$0xff]
      %v594 = vld [vmem:[%s567 + $0x138] sm:$0xff]
      %v595 = vld [vmem:[%s567 + $0x140] sm:$0xff]
      %v596 = vld [vmem:[%s567 + $0x150] sm:$0xff]
      %v597 = vld [vmem:[%s567 + $0x158] sm:$0xff]
      %v598 = vld [vmem:[%s567 + $0x168] sm:$0xff]
      %v599 = vld [vmem:[%s567 + $0x170] sm:$0xff]
      %v600 = vld [vmem:[%s567 + $0x1] sm:$0xff]
      %v601 = vld [vmem:[%s567 + $0x9] sm:$0xff]
      %v602 = vld [vmem:[%s567 + $0x19] sm:$0xff]
      %v603 = vld [vmem:[%s567 + $0x21] sm:$0xff]
      %v604 = vld [vmem:[%s567 + $0x31] sm:$0xff]
      %v605 = vld [vmem:[%s567 + $0x39] sm:$0xff]
      %v606 = vld [vmem:[%s567 + $0x49] sm:$0xff]
      %v607 = vld [vmem:[%s567 + $0x51] sm:$0xff]
      %v608 = vld [vmem:[%s567 + $0x61] sm:$0xff]
      %v609 = vld [vmem:[%s567 + $0x69] sm:$0xff]
      %v610 = vld [vmem:[%s567 + $0x79] sm:$0xff]
      %v611 = vld [vmem:[%s567 + $0x81] sm:$0xff]
      %v612 = vld [vmem:[%s567 + $0x91] sm:$0xff]
      %v613 = vld [vmem:[%s567 + $0x99] sm:$0xff]
      %v614 = vld [vmem:[%s567 + $0xa9] sm:$0xff]
      %v615 = vld [vmem:[%s567 + $0xb1] sm:$0xff]
      %v616 = vld [vmem:[%s567 + $0xc1] sm:$0xff]
      %v617 = vld [vmem:[%s567 + $0xc9] sm:$0xff]
      %v618 = vld [vmem:[%s567 + $0xd9] sm:$0xff]
      %v619 = vld [vmem:[%s567 + $0xe1] sm:$0xff]
      %v620 = vld [vmem:[%s567 + $0xf1] sm:$0xff]
      %v621 = vld [vmem:[%s567 + $0xf9] sm:$0xff]
      %v622 = vld [vmem:[%s567 + $0x109] sm:$0xff]
      %v623 = vld [vmem:[%s567 + $0x111] sm:$0xff]
      %v624 = vld [vmem:[%s567 + $0x121] sm:$0xff]
      %v625 = vld [vmem:[%s567 + $0x129] sm:$0xff]
      %v626 = vld [vmem:[%s567 + $0x139] sm:$0xff]
      %v627 = vld [vmem:[%s567 + $0x141] sm:$0xff]
      %v628 = vld [vmem:[%s567 + $0x151] sm:$0xff]
      %v629 = vld [vmem:[%s567 + $0x159] sm:$0xff]
      %v630 = vld [vmem:[%s567 + $0x169] sm:$0xff]
      %v631 = vld [vmem:[%s567 + $0x171] sm:$0xff]
      %v632 = vld [vmem:[%s567 + $0x2] sm:$0xff]
      %v633 = vld [vmem:[%s567 + $0xa] sm:$0xff]
      %v634 = vld [vmem:[%s567 + $0x1a] sm:$0xff]
      %v635 = vld [vmem:[%s567 + $0x22] sm:$0xff]
      %v636 = vld [vmem:[%s567 + $0x32] sm:$0xff]
      %v637 = vld [vmem:[%s567 + $0x3a] sm:$0xff]
      %v638 = vld [vmem:[%s567 + $0x4a] sm:$0xff]
      %v639 = vld [vmem:[%s567 + $0x52] sm:$0xff]
      %v640 = vld [vmem:[%s567 + $0x62] sm:$0xff]
      %v641 = vld [vmem:[%s567 + $0x6a] sm:$0xff]
      %v642 = vld [vmem:[%s567 + $0x7a] sm:$0xff]
      %v643 = vld [vmem:[%s567 + $0x82] sm:$0xff]
      %v644 = vld [vmem:[%s567 + $0x92] sm:$0xff]
      %v645 = vld [vmem:[%s567 + $0x9a] sm:$0xff]
      %v646 = vld [vmem:[%s567 + $0xaa] sm:$0xff]
      %v647 = vld [vmem:[%s567 + $0xb2] sm:$0xff]
      %v648 = vld [vmem:[%s567 + $0xc2] sm:$0xff]
      %v649 = vld [vmem:[%s567 + $0xca] sm:$0xff]
      %v650 = vld [vmem:[%s567 + $0xda] sm:$0xff]
      %v651 = vld [vmem:[%s567 + $0xe2] sm:$0xff]
      %v652 = vld [vmem:[%s567 + $0xf2] sm:$0xff]
      %v653 = vld [vmem:[%s567 + $0xfa] sm:$0xff]
      %v654 = vld [vmem:[%s567 + $0x10a] sm:$0xff]
      %v655 = vld [vmem:[%s567 + $0x112] sm:$0xff]
      %v656 = vld [vmem:[%s567 + $0x122] sm:$0xff]
      %v657 = vld [vmem:[%s567 + $0x12a] sm:$0xff]
      %v658 = vld [vmem:[%s567 + $0x13a] sm:$0xff]
      %v659 = vld [vmem:[%s567 + $0x142] sm:$0xff]
      %v660 = vld [vmem:[%s567 + $0x152] sm:$0xff]
      %v661 = vld [vmem:[%s567 + $0x15a] sm:$0xff]
      %v662 = vld [vmem:[%s567 + $0x16a] sm:$0xff]
      %v663 = vld [vmem:[%s567 + $0x172] sm:$0xff]
      %696 = vrot.lane.b32.xlu0 %v407, 4
      %v697 = vpop.permute.xlu0 %696
      %698 = vrot.lane.b32.xlu0 %v408, 4
      %v699 = vpop.permute.xlu0 %698
      %700 = vrot.lane.b32.xlu0 %v409, 4
      %v701 = vpop.permute.xlu0 %700
      %702 = vrot.lane.b32.xlu0 %v410, 4
      %v703 = vpop.permute.xlu0 %702
      %704 = vrot.lane.b32.xlu0 %v411, 4
      %v705 = vpop.permute.xlu0 %704
      %706 = vrot.lane.b32.xlu0 %v412, 4
      %v707 = vpop.permute.xlu0 %706
      %708 = vrot.lane.b32.xlu0 %v413, 4
      %v709 = vpop.permute.xlu0 %708
      %710 = vrot.lane.b32.xlu0 %v414, 4
      %v711 = vpop.permute.xlu0 %710
      %712 = vrot.lane.b32.xlu0 %v415, 4
      %v713 = vpop.permute.xlu0 %712
      %714 = vrot.lane.b32.xlu0 %v416, 4
      %v715 = vpop.permute.xlu0 %714
      %716 = vrot.lane.b32.xlu0 %v417, 4
      %v717 = vpop.permute.xlu0 %716
      %718 = vrot.lane.b32.xlu0 %v418, 4
      %v719 = vpop.permute.xlu0 %718
      %720 = vrot.lane.b32.xlu0 %v419, 4
      %v721 = vpop.permute.xlu0 %720
      %722 = vrot.lane.b32.xlu0 %v420, 4
      %v723 = vpop.permute.xlu0 %722
      %724 = vrot.lane.b32.xlu0 %v421, 4
      %v725 = vpop.permute.xlu0 %724
      %726 = vrot.lane.b32.xlu0 %v422, 4
      %v727 = vpop.permute.xlu0 %726
      %728 = vrot.lane.b32.xlu0 %v423, 4
      %v729 = vpop.permute.xlu0 %728
      %730 = vrot.lane.b32.xlu0 %v424, 4
      %v731 = vpop.permute.xlu0 %730
      %732 = vrot.lane.b32.xlu0 %v425, 4
      %v733 = vpop.permute.xlu0 %732
      %734 = vrot.lane.b32.xlu0 %v426, 4
      %v735 = vpop.permute.xlu0 %734
      %736 = vrot.lane.b32.xlu0 %v427, 4
      %v737 = vpop.permute.xlu0 %736
      %738 = vrot.lane.b32.xlu0 %v428, 4
      %v739 = vpop.permute.xlu0 %738
      %740 = vrot.lane.b32.xlu0 %v429, 4
      %v741 = vpop.permute.xlu0 %740
      %742 = vrot.lane.b32.xlu0 %v430, 4
      %v743 = vpop.permute.xlu0 %742
      %744 = vrot.lane.b32.xlu0 %v431, 4
      %v745 = vpop.permute.xlu0 %744
      %746 = vrot.lane.b32.xlu0 %v432, 4
      %v747 = vpop.permute.xlu0 %746
      %748 = vrot.lane.b32.xlu0 %v433, 4
      %v749 = vpop.permute.xlu0 %748
      %750 = vrot.lane.b32.xlu0 %v434, 4
      %v751 = vpop.permute.xlu0 %750
      %752 = vrot.lane.b32.xlu0 %v435, 4
      %v753 = vpop.permute.xlu0 %752
      %754 = vrot.lane.b32.xlu0 %v436, 4
      %v755 = vpop.permute.xlu0 %754
      %756 = vrot.lane.b32.xlu0 %v437, 4
      %v757 = vpop.permute.xlu0 %756
      %758 = vrot.lane.b32.xlu0 %v438, 4
      %v759 = vpop.permute.xlu0 %758
      %824 = vrot.lane.b32.xlu0 %v439, 8
      %v825 = vpop.permute.xlu0 %824
      %826 = vrot.lane.b32.xlu0 %v440, 8
      %v827 = vpop.permute.xlu0 %826
      %828 = vrot.lane.b32.xlu0 %v441, 8
      %v829 = vpop.permute.xlu0 %828
      %830 = vrot.lane.b32.xlu0 %v442, 8
      %v831 = vpop.permute.xlu0 %830
      %832 = vrot.lane.b32.xlu0 %v443, 8
      %v833 = vpop.permute.xlu0 %832
      %834 = vrot.lane.b32.xlu0 %v444, 8
      %v835 = vpop.permute.xlu0 %834
      %836 = vrot.lane.b32.xlu0 %v445, 8
      %v837 = vpop.permute.xlu0 %836
      %838 = vrot.lane.b32.xlu0 %v446, 8
      %v839 = vpop.permute.xlu0 %838
      %840 = vrot.lane.b32.xlu0 %v447, 8
      %v841 = vpop.permute.xlu0 %840
      %842 = vrot.lane.b32.xlu0 %v448, 8
      %v843 = vpop.permute.xlu0 %842
      %844 = vrot.lane.b32.xlu0 %v449, 8
      %v845 = vpop.permute.xlu0 %844
      %846 = vrot.lane.b32.xlu0 %v450, 8
      %v847 = vpop.permute.xlu0 %846
      %848 = vrot.lane.b32.xlu0 %v451, 8
      %v849 = vpop.permute.xlu0 %848
      %850 = vrot.lane.b32.xlu0 %v452, 8
      %v851 = vpop.permute.xlu0 %850
      %852 = vrot.lane.b32.xlu0 %v453, 8
      %v853 = vpop.permute.xlu0 %852
      %854 = vrot.lane.b32.xlu0 %v454, 8
      %v855 = vpop.permute.xlu0 %854
      %856 = vrot.lane.b32.xlu0 %v455, 8
      %v857 = vpop.permute.xlu0 %856
      %858 = vrot.lane.b32.xlu0 %v456, 8
      %v859 = vpop.permute.xlu0 %858
      %860 = vrot.lane.b32.xlu0 %v457, 8
      %v861 = vpop.permute.xlu0 %860
      %862 = vrot.lane.b32.xlu0 %v458, 8
      %v863 = vpop.permute.xlu0 %862
      %864 = vrot.lane.b32.xlu0 %v459, 8
      %v865 = vpop.permute.xlu0 %864
      %866 = vrot.lane.b32.xlu0 %v460, 8
      %v867 = vpop.permute.xlu0 %866
      %868 = vrot.lane.b32.xlu0 %v461, 8
      %v869 = vpop.permute.xlu0 %868
      %870 = vrot.lane.b32.xlu0 %v462, 8
      %v871 = vpop.permute.xlu0 %870
      %872 = vrot.lane.b32.xlu0 %v463, 8
      %v873 = vpop.permute.xlu0 %872
      %874 = vrot.lane.b32.xlu0 %v464, 8
      %v875 = vpop.permute.xlu0 %874
      %876 = vrot.lane.b32.xlu0 %v465, 8
      %v877 = vpop.permute.xlu0 %876
      %878 = vrot.lane.b32.xlu0 %v466, 8
      %v879 = vpop.permute.xlu0 %878
      %880 = vrot.lane.b32.xlu0 %v467, 8
      %v881 = vpop.permute.xlu0 %880
      %882 = vrot.lane.b32.xlu0 %v468, 8
      %v883 = vpop.permute.xlu0 %882
      %884 = vrot.lane.b32.xlu0 %v469, 8
      %v885 = vpop.permute.xlu0 %884
      %886 = vrot.lane.b32.xlu0 %v470, 8
      %v887 = vpop.permute.xlu0 %886
      %952 = vrot.lane.b32.xlu0 %v471, 12
      %v953 = vpop.permute.xlu0 %952
      %954 = vrot.lane.b32.xlu0 %v472, 12
      %v955 = vpop.permute.xlu0 %954
      %956 = vrot.lane.b32.xlu0 %v473, 12
      %v957 = vpop.permute.xlu0 %956
      %958 = vrot.lane.b32.xlu0 %v474, 12
      %v959 = vpop.permute.xlu0 %958
      %960 = vrot.lane.b32.xlu0 %v475, 12
      %v961 = vpop.permute.xlu0 %960
      %962 = vrot.lane.b32.xlu0 %v476, 12
      %v963 = vpop.permute.xlu0 %962
      %964 = vrot.lane.b32.xlu0 %v477, 12
      %v965 = vpop.permute.xlu0 %964
      %966 = vrot.lane.b32.xlu0 %v478, 12
      %v967 = vpop.permute.xlu0 %966
      %968 = vrot.lane.b32.xlu0 %v479, 12
      %v969 = vpop.permute.xlu0 %968
      %970 = vrot.lane.b32.xlu0 %v480, 12
      %v971 = vpop.permute.xlu0 %970
      %972 = vrot.lane.b32.xlu0 %v481, 12
      %v973 = vpop.permute.xlu0 %972
      %974 = vrot.lane.b32.xlu0 %v482, 12
      %v975 = vpop.permute.xlu0 %974
      %976 = vrot.lane.b32.xlu0 %v483, 12
      %v977 = vpop.permute.xlu0 %976
      %978 = vrot.lane.b32.xlu0 %v484, 12
      %v979 = vpop.permute.xlu0 %978
      %980 = vrot.lane.b32.xlu0 %v485, 12
      %v981 = vpop.permute.xlu0 %980
      %982 = vrot.lane.b32.xlu0 %v486, 12
      %v983 = vpop.permute.xlu0 %982
      %984 = vrot.lane.b32.xlu0 %v487, 12
      %v985 = vpop.permute.xlu0 %984
      %986 = vrot.lane.b32.xlu0 %v488, 12
      %v987 = vpop.permute.xlu0 %986
      %988 = vrot.lane.b32.xlu0 %v489, 12
      %v989 = vpop.permute.xlu0 %988
      %990 = vrot.lane.b32.xlu0 %v490, 12
      %v991 = vpop.permute.xlu0 %990
      %992 = vrot.lane.b32.xlu0 %v491, 12
      %v993 = vpop.permute.xlu0 %992
      %994 = vrot.lane.b32.xlu0 %v492, 12
      %v995 = vpop.permute.xlu0 %994
      %996 = vrot.lane.b32.xlu0 %v493, 12
      %v997 = vpop.permute.xlu0 %996
      %998 = vrot.lane.b32.xlu0 %v494, 12
      %v999 = vpop.permute.xlu0 %998
      %1000 = vrot.lane.b32.xlu0 %v495, 12
      %v1001 = vpop.permute.xlu0 %1000
      %1002 = vrot.lane.b32.xlu0 %v496, 12
      %v1003 = vpop.permute.xlu0 %1002
      %1004 = vrot.lane.b32.xlu0 %v497, 12
      %v1005 = vpop.permute.xlu0 %1004
      %1006 = vrot.lane.b32.xlu0 %v498, 12
      %v1007 = vpop.permute.xlu0 %1006
      %1008 = vrot.lane.b32.xlu0 %v499, 12
      %v1009 = vpop.permute.xlu0 %1008
      %1010 = vrot.lane.b32.xlu0 %v500, 12
      %v1011 = vpop.permute.xlu0 %1010
      %1012 = vrot.lane.b32.xlu0 %v501, 12
      %v1013 = vpop.permute.xlu0 %1012
      %1014 = vrot.lane.b32.xlu0 %v502, 12
      %v1015 = vpop.permute.xlu0 %1014
      %1080 = vrot.lane.b32.xlu0 %v503, 16
      %v1081 = vpop.permute.xlu0 %1080
      %1082 = vrot.lane.b32.xlu0 %v504, 16
      %v1083 = vpop.permute.xlu0 %1082
      %1084 = vrot.lane.b32.xlu0 %v505, 16
      %v1085 = vpop.permute.xlu0 %1084
      %1086 = vrot.lane.b32.xlu0 %v506, 16
      %v1087 = vpop.permute.xlu0 %1086
      %1088 = vrot.lane.b32.xlu0 %v507, 16
      %v1089 = vpop.permute.xlu0 %1088
      %1090 = vrot.lane.b32.xlu0 %v508, 16
      %v1091 = vpop.permute.xlu0 %1090
      %1092 = vrot.lane.b32.xlu0 %v509, 16
      %v1093 = vpop.permute.xlu0 %1092
      %1094 = vrot.lane.b32.xlu0 %v510, 16
      %v1095 = vpop.permute.xlu0 %1094
      %1096 = vrot.lane.b32.xlu0 %v511, 16
      %v1097 = vpop.permute.xlu0 %1096
      %1098 = vrot.lane.b32.xlu0 %v512, 16
      %v1099 = vpop.permute.xlu0 %1098
      %1100 = vrot.lane.b32.xlu0 %v513, 16
      %v1101 = vpop.permute.xlu0 %1100
      %1102 = vrot.lane.b32.xlu0 %v514, 16
      %v1103 = vpop.permute.xlu0 %1102
      %1104 = vrot.lane.b32.xlu0 %v515, 16
      %v1105 = vpop.permute.xlu0 %1104
      %1106 = vrot.lane.b32.xlu0 %v516, 16
      %v1107 = vpop.permute.xlu0 %1106
      %1108 = vrot.lane.b32.xlu0 %v517, 16
      %v1109 = vpop.permute.xlu0 %1108
      %1110 = vrot.lane.b32.xlu0 %v518, 16
      %v1111 = vpop.permute.xlu0 %1110
      %1112 = vrot.lane.b32.xlu0 %v519, 16
      %v1113 = vpop.permute.xlu0 %1112
      %1114 = vrot.lane.b32.xlu0 %v520, 16
      %v1115 = vpop.permute.xlu0 %1114
      %1116 = vrot.lane.b32.xlu0 %v521, 16
      %v1117 = vpop.permute.xlu0 %1116
      %1118 = vrot.lane.b32.xlu0 %v522, 16
      %v1119 = vpop.permute.xlu0 %1118
      %1120 = vrot.lane.b32.xlu0 %v523, 16
      %v1121 = vpop.permute.xlu0 %1120
      %1122 = vrot.lane.b32.xlu0 %v524, 16
      %v1123 = vpop.permute.xlu0 %1122
      %1124 = vrot.lane.b32.xlu0 %v525, 16
      %v1125 = vpop.permute.xlu0 %1124
      %1126 = vrot.lane.b32.xlu0 %v526, 16
      %v1127 = vpop.permute.xlu0 %1126
      %1128 = vrot.lane.b32.xlu0 %v527, 16
      %v1129 = vpop.permute.xlu0 %1128
      %1130 = vrot.lane.b32.xlu0 %v528, 16
      %v1131 = vpop.permute.xlu0 %1130
      %1132 = vrot.lane.b32.xlu0 %v529, 16
      %v1133 = vpop.permute.xlu0 %1132
      %1134 = vrot.lane.b32.xlu0 %v530, 16
      %v1135 = vpop.permute.xlu0 %1134
      %1136 = vrot.lane.b32.xlu0 %v531, 16
      %v1137 = vpop.permute.xlu0 %1136
      %1138 = vrot.lane.b32.xlu0 %v532, 16
      %v1139 = vpop.permute.xlu0 %1138
      %1140 = vrot.lane.b32.xlu0 %v533, 16
      %v1141 = vpop.permute.xlu0 %1140
      %1142 = vrot.lane.b32.xlu0 %v534, 16
      %v1143 = vpop.permute.xlu0 %1142
      %1208 = vrot.lane.b32.xlu0 %v535, 20
      %v1209 = vpop.permute.xlu0 %1208
      %1210 = vrot.lane.b32.xlu0 %v536, 20
      %v1211 = vpop.permute.xlu0 %1210
      %1212 = vrot.lane.b32.xlu0 %v537, 20
      %v1213 = vpop.permute.xlu0 %1212
      %1214 = vrot.lane.b32.xlu0 %v538, 20
      %v1215 = vpop.permute.xlu0 %1214
      %1216 = vrot.lane.b32.xlu0 %v539, 20
      %v1217 = vpop.permute.xlu0 %1216
      %1218 = vrot.lane.b32.xlu0 %v540, 20
      %v1219 = vpop.permute.xlu0 %1218
      %1220 = vrot.lane.b32.xlu0 %v541, 20
      %v1221 = vpop.permute.xlu0 %1220
      %1222 = vrot.lane.b32.xlu0 %v542, 20
      %v1223 = vpop.permute.xlu0 %1222
      %1224 = vrot.lane.b32.xlu0 %v543, 20
      %v1225 = vpop.permute.xlu0 %1224
      %1226 = vrot.lane.b32.xlu0 %v544, 20
      %v1227 = vpop.permute.xlu0 %1226
      %1228 = vrot.lane.b32.xlu0 %v545, 20
      %v1229 = vpop.permute.xlu0 %1228
      %1230 = vrot.lane.b32.xlu0 %v546, 20
      %v1231 = vpop.permute.xlu0 %1230
      %1232 = vrot.lane.b32.xlu0 %v547, 20
      %v1233 = vpop.permute.xlu0 %1232
      %1234 = vrot.lane.b32.xlu0 %v548, 20
      %v1235 = vpop.permute.xlu0 %1234
      %1236 = vrot.lane.b32.xlu0 %v549, 20
      %v1237 = vpop.permute.xlu0 %1236
      %1238 = vrot.lane.b32.xlu0 %v550, 20
      %v1239 = vpop.permute.xlu0 %1238
      %1240 = vrot.lane.b32.xlu0 %v551, 20
      %v1241 = vpop.permute.xlu0 %1240
      %1242 = vrot.lane.b32.xlu0 %v552, 20
      %v1243 = vpop.permute.xlu0 %1242
      %1244 = vrot.lane.b32.xlu0 %v553, 20
      %v1245 = vpop.permute.xlu0 %1244
      %1246 = vrot.lane.b32.xlu0 %v554, 20
      %v1247 = vpop.permute.xlu0 %1246
      %1248 = vrot.lane.b32.xlu0 %v555, 20
      %v1249 = vpop.permute.xlu0 %1248
      %1250 = vrot.lane.b32.xlu0 %v556, 20
      %v1251 = vpop.permute.xlu0 %1250
      %1252 = vrot.lane.b32.xlu0 %v557, 20
      %v1253 = vpop.permute.xlu0 %1252
      %1254 = vrot.lane.b32.xlu0 %v558, 20
      %v1255 = vpop.permute.xlu0 %1254
      %1256 = vrot.lane.b32.xlu0 %v559, 20
      %v1257 = vpop.permute.xlu0 %1256
      %1258 = vrot.lane.b32.xlu0 %v560, 20
      %v1259 = vpop.permute.xlu0 %1258
      %1260 = vrot.lane.b32.xlu0 %v561, 20
      %v1261 = vpop.permute.xlu0 %1260
      %1262 = vrot.lane.b32.xlu0 %v562, 20
      %v1263 = vpop.permute.xlu0 %1262
      %1264 = vrot.lane.b32.xlu0 %v563, 20
      %v1265 = vpop.permute.xlu0 %1264
      %1266 = vrot.lane.b32.xlu0 %v564, 20
      %v1267 = vpop.permute.xlu0 %1266
      %1268 = vrot.lane.b32.xlu0 %v565, 20
      %v1269 = vpop.permute.xlu0 %1268
      %1270 = vrot.lane.b32.xlu0 %v566, 20
      %v1271 = vpop.permute.xlu0 %1270
      %1336 = vrot.lane.b32.xlu0 %v568, 24
      %v1337 = vpop.permute.xlu0 %1336
      %1338 = vrot.lane.b32.xlu0 %v569, 24
      %v1339 = vpop.permute.xlu0 %1338
      %1340 = vrot.lane.b32.xlu0 %v570, 24
      %v1341 = vpop.permute.xlu0 %1340
      %1342 = vrot.lane.b32.xlu0 %v571, 24
      %v1343 = vpop.permute.xlu0 %1342
      %1344 = vrot.lane.b32.xlu0 %v572, 24
      %v1345 = vpop.permute.xlu0 %1344
      %1346 = vrot.lane.b32.xlu0 %v573, 24
      %v1347 = vpop.permute.xlu0 %1346
      %1348 = vrot.lane.b32.xlu0 %v574, 24
      %v1349 = vpop.permute.xlu0 %1348
      %1350 = vrot.lane.b32.xlu0 %v575, 24
      %v1351 = vpop.permute.xlu0 %1350
      %1352 = vrot.lane.b32.xlu0 %v576, 24
      %v1353 = vpop.permute.xlu0 %1352
      %1354 = vrot.lane.b32.xlu0 %v577, 24
      %v1355 = vpop.permute.xlu0 %1354
      %1356 = vrot.lane.b32.xlu0 %v578, 24
      %v1357 = vpop.permute.xlu0 %1356
      %1358 = vrot.lane.b32.xlu0 %v579, 24
      %v1359 = vpop.permute.xlu0 %1358
      %1360 = vrot.lane.b32.xlu0 %v580, 24
      %v1361 = vpop.permute.xlu0 %1360
      %1362 = vrot.lane.b32.xlu0 %v581, 24
      %v1363 = vpop.permute.xlu0 %1362
      %1364 = vrot.lane.b32.xlu0 %v582, 24
      %v1365 = vpop.permute.xlu0 %1364
      %1366 = vrot.lane.b32.xlu0 %v583, 24
      %v1367 = vpop.permute.xlu0 %1366
      %1368 = vrot.lane.b32.xlu0 %v584, 24
      %v1369 = vpop.permute.xlu0 %1368
      %1370 = vrot.lane.b32.xlu0 %v585, 24
      %v1371 = vpop.permute.xlu0 %1370
      %1372 = vrot.lane.b32.xlu0 %v586, 24
      %v1373 = vpop.permute.xlu0 %1372
      %1374 = vrot.lane.b32.xlu0 %v587, 24
      %v1375 = vpop.permute.xlu0 %1374
      %1376 = vrot.lane.b32.xlu0 %v588, 24
      %v1377 = vpop.permute.xlu0 %1376
      %1378 = vrot.lane.b32.xlu0 %v589, 24
      %v1379 = vpop.permute.xlu0 %1378
      %1380 = vrot.lane.b32.xlu0 %v590, 24
      %v1381 = vpop.permute.xlu0 %1380
      %1382 = vrot.lane.b32.xlu0 %v591, 24
      %v1383 = vpop.permute.xlu0 %1382
      %1384 = vrot.lane.b32.xlu0 %v592, 24
      %v1385 = vpop.permute.xlu0 %1384
      %1386 = vrot.lane.b32.xlu0 %v593, 24
      %v1387 = vpop.permute.xlu0 %1386
      %1388 = vrot.lane.b32.xlu0 %v594, 24
      %v1389 = vpop.permute.xlu0 %1388
      %1390 = vrot.lane.b32.xlu0 %v595, 24
      %v1391 = vpop.permute.xlu0 %1390
      %1392 = vrot.lane.b32.xlu0 %v596, 24
      %v1393 = vpop.permute.xlu0 %1392
      %1394 = vrot.lane.b32.xlu0 %v597, 24
      %v1395 = vpop.permute.xlu0 %1394
      %1396 = vrot.lane.b32.xlu0 %v598, 24
      %v1397 = vpop.permute.xlu0 %1396
      %1398 = vrot.lane.b32.xlu0 %v599, 24
      %v1399 = vpop.permute.xlu0 %1398
      %1464 = vrot.lane.b32.xlu0 %v600, 28
      %v1465 = vpop.permute.xlu0 %1464
      %1466 = vrot.lane.b32.xlu0 %v601, 28
      %v1467 = vpop.permute.xlu0 %1466
      %1468 = vrot.lane.b32.xlu0 %v602, 28
      %v1469 = vpop.permute.xlu0 %1468
      %1470 = vrot.lane.b32.xlu0 %v603, 28
      %v1471 = vpop.permute.xlu0 %1470
      %1472 = vrot.lane.b32.xlu0 %v604, 28
      %v1473 = vpop.permute.xlu0 %1472
      %1474 = vrot.lane.b32.xlu0 %v605, 28
      %v1475 = vpop.permute.xlu0 %1474
      %1476 = vrot.lane.b32.xlu0 %v606, 28
      %v1477 = vpop.permute.xlu0 %1476
      %1478 = vrot.lane.b32.xlu0 %v607, 28
      %v1479 = vpop.permute.xlu0 %1478
      %1480 = vrot.lane.b32.xlu0 %v608, 28
      %v1481 = vpop.permute.xlu0 %1480
      %1482 = vrot.lane.b32.xlu0 %v609, 28
      %v1483 = vpop.permute.xlu0 %1482
      %1484 = vrot.lane.b32.xlu0 %v610, 28
      %v1485 = vpop.permute.xlu0 %1484
      %1486 = vrot.lane.b32.xlu0 %v611, 28
      %v1487 = vpop.permute.xlu0 %1486
      %1488 = vrot.lane.b32.xlu0 %v612, 28
      %v1489 = vpop.permute.xlu0 %1488
      %1490 = vrot.lane.b32.xlu0 %v613, 28
      %v1491 = vpop.permute.xlu0 %1490
      %1492 = vrot.lane.b32.xlu0 %v614, 28
      %v1493 = vpop.permute.xlu0 %1492
      %1494 = vrot.lane.b32.xlu0 %v615, 28
      %v1495 = vpop.permute.xlu0 %1494
      %1496 = vrot.lane.b32.xlu0 %v616, 28
      %v1497 = vpop.permute.xlu0 %1496
      %1498 = vrot.lane.b32.xlu0 %v617, 28
      %v1499 = vpop.permute.xlu0 %1498
      %1500 = vrot.lane.b32.xlu0 %v618, 28
      %v1501 = vpop.permute.xlu0 %1500
      %1502 = vrot.lane.b32.xlu0 %v619, 28
      %v1503 = vpop.permute.xlu0 %1502
      %1504 = vrot.lane.b32.xlu0 %v620, 28
      %v1505 = vpop.permute.xlu0 %1504
      %1506 = vrot.lane.b32.xlu0 %v621, 28
      %v1507 = vpop.permute.xlu0 %1506
      %1508 = vrot.lane.b32.xlu0 %v622, 28
      %v1509 = vpop.permute.xlu0 %1508
      %1510 = vrot.lane.b32.xlu0 %v623, 28
      %v1511 = vpop.permute.xlu0 %1510
      %1512 = vrot.lane.b32.xlu0 %v624, 28
      %v1513 = vpop.permute.xlu0 %1512
      %1514 = vrot.lane.b32.xlu0 %v625, 28
      %v1515 = vpop.permute.xlu0 %1514
      %1516 = vrot.lane.b32.xlu0 %v626, 28
      %v1517 = vpop.permute.xlu0 %1516
      %1518 = vrot.lane.b32.xlu0 %v627, 28
      %v1519 = vpop.permute.xlu0 %1518
      %1520 = vrot.lane.b32.xlu0 %v628, 28
      %v1521 = vpop.permute.xlu0 %1520
      %1522 = vrot.lane.b32.xlu0 %v629, 28
      %v1523 = vpop.permute.xlu0 %1522
      %1524 = vrot.lane.b32.xlu0 %v630, 28
      %v1525 = vpop.permute.xlu0 %1524
      %1526 = vrot.lane.b32.xlu0 %v631, 28
      %v1527 = vpop.permute.xlu0 %1526
      %1592 = vrot.lane.b32.xlu0 %v632, 32
      %v1593 = vpop.permute.xlu0 %1592
      %1594 = vrot.lane.b32.xlu0 %v633, 32
      %v1595 = vpop.permute.xlu0 %1594
      %1596 = vrot.lane.b32.xlu0 %v634, 32
      %v1597 = vpop.permute.xlu0 %1596
      %1598 = vrot.lane.b32.xlu0 %v635, 32
      %v1599 = vpop.permute.xlu0 %1598
      %1600 = vrot.lane.b32.xlu0 %v636, 32
      %v1601 = vpop.permute.xlu0 %1600
      %1602 = vrot.lane.b32.xlu0 %v637, 32
      %v1603 = vpop.permute.xlu0 %1602
      %1604 = vrot.lane.b32.xlu0 %v638, 32
      %v1605 = vpop.permute.xlu0 %1604
      %1606 = vrot.lane.b32.xlu0 %v639, 32
      %v1607 = vpop.permute.xlu0 %1606
      %1608 = vrot.lane.b32.xlu0 %v640, 32
      %v1609 = vpop.permute.xlu0 %1608
      %1610 = vrot.lane.b32.xlu0 %v641, 32
      %v1611 = vpop.permute.xlu0 %1610
      %1612 = vrot.lane.b32.xlu0 %v642, 32
      %v1613 = vpop.permute.xlu0 %1612
      %1614 = vrot.lane.b32.xlu0 %v643, 32
      %v1615 = vpop.permute.xlu0 %1614
      %1616 = vrot.lane.b32.xlu0 %v644, 32
      %v1617 = vpop.permute.xlu0 %1616
      %1618 = vrot.lane.b32.xlu0 %v645, 32
      %v1619 = vpop.permute.xlu0 %1618
      %1620 = vrot.lane.b32.xlu0 %v646, 32
      %v1621 = vpop.permute.xlu0 %1620
      %1622 = vrot.lane.b32.xlu0 %v647, 32
      %v1623 = vpop.permute.xlu0 %1622
      %1624 = vrot.lane.b32.xlu0 %v648, 32
      %v1625 = vpop.permute.xlu0 %1624
      %1626 = vrot.lane.b32.xlu0 %v649, 32
      %v1627 = vpop.permute.xlu0 %1626
      %1628 = vrot.lane.b32.xlu0 %v650, 32
      %v1629 = vpop.permute.xlu0 %1628
      %1630 = vrot.lane.b32.xlu0 %v651, 32
      %v1631 = vpop.permute.xlu0 %1630
      %1632 = vrot.lane.b32.xlu0 %v652, 32
      %v1633 = vpop.permute.xlu0 %1632
      %1634 = vrot.lane.b32.xlu0 %v653, 32
      %v1635 = vpop.permute.xlu0 %1634
      %1636 = vrot.lane.b32.xlu0 %v654, 32
      %v1637 = vpop.permute.xlu0 %1636
      %1638 = vrot.lane.b32.xlu0 %v655, 32
      %v1639 = vpop.permute.xlu0 %1638
      %1640 = vrot.lane.b32.xlu0 %v656, 32
      %v1641 = vpop.permute.xlu0 %1640
      %1642 = vrot.lane.b32.xlu0 %v657, 32
      %v1643 = vpop.permute.xlu0 %1642
      %1644 = vrot.lane.b32.xlu0 %v658, 32
      %v1645 = vpop.permute.xlu0 %1644
      %1646 = vrot.lane.b32.xlu0 %v659, 32
      %v1647 = vpop.permute.xlu0 %1646
      %1648 = vrot.lane.b32.xlu0 %v660, 32
      %v1649 = vpop.permute.xlu0 %1648
      %1650 = vrot.lane.b32.xlu0 %v661, 32
      %v1651 = vpop.permute.xlu0 %1650
      %1652 = vrot.lane.b32.xlu0 %v662, 32
      %v1653 = vpop.permute.xlu0 %1652
      %1654 = vrot.lane.b32.xlu0 %v663, 32
      %v1655 = vpop.permute.xlu0 %1654
      %v1688 = vsel %vm268, %v375, %v697
      %v1689 = vsel %vm268, %v376, %v699
      %v1690 = vsel %vm268, %v377, %v701
      %v1691 = vsel %vm268, %v378, %v703
      %v1692 = vsel %vm268, %v379, %v705
      %v1693 = vsel %vm268, %v380, %v707
      %v1694 = vsel %vm268, %v381, %v709
      %v1695 = vsel %vm268, %v382, %v711
      %v1696 = vsel %vm268, %v383, %v713
      %v1697 = vsel %vm268, %v384, %v715
      %v1698 = vsel %vm268, %v385, %v717
      %v1699 = vsel %vm268, %v386, %v719
      %v1700 = vsel %vm268, %v387, %v721
      %v1701 = vsel %vm268, %v388, %v723
      %v1702 = vsel %vm268, %v389, %v725
      %v1703 = vsel %vm268, %v390, %v727
      %v1704 = vsel %vm268, %v391, %v729
      %v1705 = vsel %vm268, %v392, %v731
      %v1706 = vsel %vm268, %v393, %v733
      %v1707 = vsel %vm268, %v394, %v735
      %v1708 = vsel %vm268, %v395, %v737
      %v1709 = vsel %vm268, %v396, %v739
      %v1710 = vsel %vm268, %v397, %v741
      %v1711 = vsel %vm268, %v398, %v743
      %v1712 = vsel %vm268, %v399, %v745
      %v1713 = vsel %vm268, %v400, %v747
      %v1714 = vsel %vm268, %v401, %v749
      %v1715 = vsel %vm268, %v402, %v751
      %v1716 = vsel %vm268, %v403, %v753
      %v1717 = vsel %vm268, %v404, %v755
      %v1718 = vsel %vm268, %v405, %v757
      %v1719 = vsel %vm268, %v406, %v759
      %vm1720 = vcmask 64512
      %v1721 = vsel %vm1720, %v1688, %v825
      %v1722 = vsel %vm1720, %v1689, %v827
      %v1723 = vsel %vm1720, %v1690, %v829
      %v1724 = vsel %vm1720, %v1691, %v831
      %v1725 = vsel %vm1720, %v1692, %v833
      %v1726 = vsel %vm1720, %v1693, %v835
      %v1727 = vsel %vm1720, %v1694, %v837
      %v1728 = vsel %vm1720, %v1695, %v839
      %v1729 = vsel %vm1720, %v1696, %v841
      %v1730 = vsel %vm1720, %v1697, %v843
      %v1731 = vsel %vm1720, %v1698, %v845
      %v1732 = vsel %vm1720, %v1699, %v847
      %v1733 = vsel %vm1720, %v1700, %v849
      %v1734 = vsel %vm1720, %v1701, %v851
      %v1735 = vsel %vm1720, %v1702, %v853
      %v1736 = vsel %vm1720, %v1703, %v855
      %v1737 = vsel %vm1720, %v1704, %v857
      %v1738 = vsel %vm1720, %v1705, %v859
      %v1739 = vsel %vm1720, %v1706, %v861
      %v1740 = vsel %vm1720, %v1707, %v863
      %v1741 = vsel %vm1720, %v1708, %v865
      %v1742 = vsel %vm1720, %v1709, %v867
      %v1743 = vsel %vm1720, %v1710, %v869
      %v1744 = vsel %vm1720, %v1711, %v871
      %v1745 = vsel %vm1720, %v1712, %v873
      %v1746 = vsel %vm1720, %v1713, %v875
      %v1747 = vsel %vm1720, %v1714, %v877
      %v1748 = vsel %vm1720, %v1715, %v879
      %v1749 = vsel %vm1720, %v1716, %v881
      %v1750 = vsel %vm1720, %v1717, %v883
      %v1751 = vsel %vm1720, %v1718, %v885
      %v1752 = vsel %vm1720, %v1719, %v887
      %vm1753 = vcmask 97280
      %v1754 = vsel %vm1753, %v1721, %v953
      %v1755 = vsel %vm1753, %v1722, %v955
      %v1756 = vsel %vm1753, %v1723, %v957
      %v1757 = vsel %vm1753, %v1724, %v959
      %v1758 = vsel %vm1753, %v1725, %v961
      %v1759 = vsel %vm1753, %v1726, %v963
      %v1760 = vsel %vm1753, %v1727, %v965
      %v1761 = vsel %vm1753, %v1728, %v967
      %v1762 = vsel %vm1753, %v1729, %v969
      %v1763 = vsel %vm1753, %v1730, %v971
      %v1764 = vsel %vm1753, %v1731, %v973
      %v1765 = vsel %vm1753, %v1732, %v975
      %v1766 = vsel %vm1753, %v1733, %v977
      %v1767 = vsel %vm1753, %v1734, %v979
      %v1768 = vsel %vm1753, %v1735, %v981
      %v1769 = vsel %vm1753, %v1736, %v983
      %v1770 = vsel %vm1753, %v1737, %v985
      %v1771 = vsel %vm1753, %v1738, %v987
      %v1772 = vsel %vm1753, %v1739, %v989
      %v1773 = vsel %vm1753, %v1740, %v991
      %v1774 = vsel %vm1753, %v1741, %v993
      %v1775 = vsel %vm1753, %v1742, %v995
      %v1776 = vsel %vm1753, %v1743, %v997
      %v1777 = vsel %vm1753, %v1744, %v999
      %v1778 = vsel %vm1753, %v1745, %v1001
      %v1779 = vsel %vm1753, %v1746, %v1003
      %v1780 = vsel %vm1753, %v1747, %v1005
      %v1781 = vsel %vm1753, %v1748, %v1007
      %v1782 = vsel %vm1753, %v1749, %v1009
      %v1783 = vsel %vm1753, %v1750, %v1011
      %v1784 = vsel %vm1753, %v1751, %v1013
      %v1785 = vsel %vm1753, %v1752, %v1015
      %vm1786 = vcmask 130048
      %v1787 = vsel %vm1786, %v1754, %v1081
      %v1788 = vsel %vm1786, %v1755, %v1083
      %v1789 = vsel %vm1786, %v1756, %v1085
      %v1790 = vsel %vm1786, %v1757, %v1087
      %v1791 = vsel %vm1786, %v1758, %v1089
      %v1792 = vsel %vm1786, %v1759, %v1091
      %v1793 = vsel %vm1786, %v1760, %v1093
      %v1794 = vsel %vm1786, %v1761, %v1095
      %v1795 = vsel %vm1786, %v1762, %v1097
      %v1796 = vsel %vm1786, %v1763, %v1099
      %v1797 = vsel %vm1786, %v1764, %v1101
      %v1798 = vsel %vm1786, %v1765, %v1103
      %v1799 = vsel %vm1786, %v1766, %v1105
      %v1800 = vsel %vm1786, %v1767, %v1107
      %v1801 = vsel %vm1786, %v1768, %v1109
      %v1802 = vsel %vm1786, %v1769, %v1111
      %v1803 = vsel %vm1786, %v1770, %v1113
      %v1804 = vsel %vm1786, %v1771, %v1115
      %v1805 = vsel %vm1786, %v1772, %v1117
      %v1806 = vsel %vm1786, %v1773, %v1119
      %v1807 = vsel %vm1786, %v1774, %v1121
      %v1808 = vsel %vm1786, %v1775, %v1123
      %v1809 = vsel %vm1786, %v1776, %v1125
      %v1810 = vsel %vm1786, %v1777, %v1127
      %v1811 = vsel %vm1786, %v1778, %v1129
      %v1812 = vsel %vm1786, %v1779, %v1131
      %v1813 = vsel %vm1786, %v1780, %v1133
      %v1814 = vsel %vm1786, %v1781, %v1135
      %v1815 = vsel %vm1786, %v1782, %v1137
      %v1816 = vsel %vm1786, %v1783, %v1139
      %v1817 = vsel %vm1786, %v1784, %v1141
      %v1818 = vsel %vm1786, %v1785, %v1143
      %vm1819 = vcmask 162816
      %v1820 = vsel %vm1819, %v1787, %v1209
      %v1821 = vsel %vm1819, %v1788, %v1211
      %v1822 = vsel %vm1819, %v1789, %v1213
      %v1823 = vsel %vm1819, %v1790, %v1215
      %v1824 = vsel %vm1819, %v1791, %v1217
      %v1825 = vsel %vm1819, %v1792, %v1219
      %v1826 = vsel %vm1819, %v1793, %v1221
      %v1827 = vsel %vm1819, %v1794, %v1223
      %v1828 = vsel %vm1819, %v1795, %v1225
      %v1829 = vsel %vm1819, %v1796, %v1227
      %v1830 = vsel %vm1819, %v1797, %v1229
      %v1831 = vsel %vm1819, %v1798, %v1231
      %v1832 = vsel %vm1819, %v1799, %v1233
      %v1833 = vsel %vm1819, %v1800, %v1235
      %v1834 = vsel %vm1819, %v1801, %v1237
      %v1835 = vsel %vm1819, %v1802, %v1239
      %v1836 = vsel %vm1819, %v1803, %v1241
      %v1837 = vsel %vm1819, %v1804, %v1243
      %v1838 = vsel %vm1819, %v1805, %v1245
      %v1839 = vsel %vm1819, %v1806, %v1247
      %v1840 = vsel %vm1819, %v1807, %v1249
      %v1841 = vsel %vm1819, %v1808, %v1251
      %v1842 = vsel %vm1819, %v1809, %v1253
      %v1843 = vsel %vm1819, %v1810, %v1255
      %v1844 = vsel %vm1819, %v1811, %v1257
      %v1845 = vsel %vm1819, %v1812, %v1259
      %v1846 = vsel %vm1819, %v1813, %v1261
      %v1847 = vsel %vm1819, %v1814, %v1263
      %v1848 = vsel %vm1819, %v1815, %v1265
      %v1849 = vsel %vm1819, %v1816, %v1267
      %v1850 = vsel %vm1819, %v1817, %v1269
      %v1851 = vsel %vm1819, %v1818, %v1271
      %vm1852 = vcmask 195584
      %v1853 = vsel %vm1852, %v1820, %v1337
      %v1854 = vsel %vm1852, %v1821, %v1339
      %v1855 = vsel %vm1852, %v1822, %v1341
      %v1856 = vsel %vm1852, %v1823, %v1343
      %v1857 = vsel %vm1852, %v1824, %v1345
      %v1858 = vsel %vm1852, %v1825, %v1347
      %v1859 = vsel %vm1852, %v1826, %v1349
      %v1860 = vsel %vm1852, %v1827, %v1351
      %v1861 = vsel %vm1852, %v1828, %v1353
      %v1862 = vsel %vm1852, %v1829, %v1355
      %v1863 = vsel %vm1852, %v1830, %v1357
      %v1864 = vsel %vm1852, %v1831, %v1359
      %v1865 = vsel %vm1852, %v1832, %v1361
      %v1866 = vsel %vm1852, %v1833, %v1363
      %v1867 = vsel %vm1852, %v1834, %v1365
      %v1868 = vsel %vm1852, %v1835, %v1367
      %v1869 = vsel %vm1852, %v1836, %v1369
      %v1870 = vsel %vm1852, %v1837, %v1371
      %v1871 = vsel %vm1852, %v1838, %v1373
      %v1872 = vsel %vm1852, %v1839, %v1375
      %v1873 = vsel %vm1852, %v1840, %v1377
      %v1874 = vsel %vm1852, %v1841, %v1379
      %v1875 = vsel %vm1852, %v1842, %v1381
      %v1876 = vsel %vm1852, %v1843, %v1383
      %v1877 = vsel %vm1852, %v1844, %v1385
      %v1878 = vsel %vm1852, %v1845, %v1387
      %v1879 = vsel %vm1852, %v1846, %v1389
      %v1880 = vsel %vm1852, %v1847, %v1391
      %v1881 = vsel %vm1852, %v1848, %v1393
      %v1882 = vsel %vm1852, %v1849, %v1395
      %v1883 = vsel %vm1852, %v1850, %v1397
      %v1884 = vsel %vm1852, %v1851, %v1399
      %vm1885 = vcmask 228352
      %v1886 = vsel %vm1885, %v1853, %v1465
      %v1887 = vsel %vm1885, %v1854, %v1467
      %v1888 = vsel %vm1885, %v1855, %v1469
      %v1889 = vsel %vm1885, %v1856, %v1471
      %v1890 = vsel %vm1885, %v1857, %v1473
      %v1891 = vsel %vm1885, %v1858, %v1475
      %v1892 = vsel %vm1885, %v1859, %v1477
      %v1893 = vsel %vm1885, %v1860, %v1479
      %v1894 = vsel %vm1885, %v1861, %v1481
      %v1895 = vsel %vm1885, %v1862, %v1483
      %v1896 = vsel %vm1885, %v1863, %v1485
      %v1897 = vsel %vm1885, %v1864, %v1487
      %v1898 = vsel %vm1885, %v1865, %v1489
      %v1899 = vsel %vm1885, %v1866, %v1491
      %v1900 = vsel %vm1885, %v1867, %v1493
      %v1901 = vsel %vm1885, %v1868, %v1495
      %v1902 = vsel %vm1885, %v1869, %v1497
      %v1903 = vsel %vm1885, %v1870, %v1499
      %v1904 = vsel %vm1885, %v1871, %v1501
      %v1905 = vsel %vm1885, %v1872, %v1503
      %v1906 = vsel %vm1885, %v1873, %v1505
      %v1907 = vsel %vm1885, %v1874, %v1507
      %v1908 = vsel %vm1885, %v1875, %v1509
      %v1909 = vsel %vm1885, %v1876, %v1511
      %v1910 = vsel %vm1885, %v1877, %v1513
      %v1911 = vsel %vm1885, %v1878, %v1515
      %v1912 = vsel %vm1885, %v1879, %v1517
      %v1913 = vsel %vm1885, %v1880, %v1519
      %v1914 = vsel %vm1885, %v1881, %v1521
      %v1915 = vsel %vm1885, %v1882, %v1523
      %v1916 = vsel %vm1885, %v1883, %v1525
      %v1917 = vsel %vm1885, %v1884, %v1527
      %vm1918 = vcmask 261120
      %v1919 = vsel %vm1918, %v1886, %v1593
      %v1920 = vsel %vm1918, %v1887, %v1595
      %v1921 = vsel %vm1918, %v1888, %v1597
      %v1922 = vsel %vm1918, %v1889, %v1599
      %v1923 = vsel %vm1918, %v1890, %v1601
      %v1924 = vsel %vm1918, %v1891, %v1603
      %v1925 = vsel %vm1918, %v1892, %v1605
      %v1926 = vsel %vm1918, %v1893, %v1607
      %v1927 = vsel %vm1918, %v1894, %v1609
      %v1928 = vsel %vm1918, %v1895, %v1611
      %v1929 = vsel %vm1918, %v1896, %v1613
      %v1930 = vsel %vm1918, %v1897, %v1615
      %v1931 = vsel %vm1918, %v1898, %v1617
      %v1932 = vsel %vm1918, %v1899, %v1619
      %v1933 = vsel %vm1918, %v1900, %v1621
      %v1934 = vsel %vm1918, %v1901, %v1623
      %v1935 = vsel %vm1918, %v1902, %v1625
      %v1936 = vsel %vm1918, %v1903, %v1627
      %v1937 = vsel %vm1918, %v1904, %v1629
      %v1938 = vsel %vm1918, %v1905, %v1631
      %v1939 = vsel %vm1918, %v1906, %v1633
      %v1940 = vsel %vm1918, %v1907, %v1635
      %v1941 = vsel %vm1918, %v1908, %v1637
      %v1942 = vsel %vm1918, %v1909, %v1639
      %v1943 = vsel %vm1918, %v1910, %v1641
      %v1944 = vsel %vm1918, %v1911, %v1643
      %v1945 = vsel %vm1918, %v1912, %v1645
      %v1946 = vsel %vm1918, %v1913, %v1647
      %v1947 = vsel %vm1918, %v1914, %v1649
      %v1948 = vsel %vm1918, %v1915, %v1651
      %v1949 = vsel %vm1918, %v1916, %v1653
      %v1950 = vsel %vm1918, %v1917, %v1655
      %v1951 = vpack.c.bf16 %v1920, %v1919
      %v1952 = vpack.c.bf16 %v1922, %v1921
      %v1953 = vpack.c.bf16 %v1924, %v1923
      %v1954 = vpack.c.bf16 %v1926, %v1925
      %v1955 = vpack.c.bf16 %v1928, %v1927
      %v1956 = vpack.c.bf16 %v1930, %v1929
      %v1957 = vpack.c.bf16 %v1932, %v1931
      %v1958 = vpack.c.bf16 %v1934, %v1933
      %v1959 = vpack.c.bf16 %v1936, %v1935
      %v1960 = vpack.c.bf16 %v1938, %v1937
      %v1961 = vpack.c.bf16 %v1940, %v1939
      %v1962 = vpack.c.bf16 %v1942, %v1941
      %v1963 = vpack.c.bf16 %v1944, %v1943
      %v1964 = vpack.c.bf16 %v1946, %v1945
      %v1965 = vpack.c.bf16 %v1948, %v1947
      %v1966 = vpack.c.bf16 %v1950, %v1949
      %v1967 = vld [vmem:[%s1] sm:$0xf]
      %v1968 = vld [vmem:[%s1 + $0x4] sm:$0xf]
      %v1969 = vld [vmem:[%s1 + $0x8] sm:$0xf]
      %v1970 = vld [vmem:[%s1 + $0xc] sm:$0xf]
      %v1971 = vld [vmem:[%s1 + $0x10] sm:$0x3]
      %v1972 = vlaneseq
      %v1973 = vshrl.u32 %v1972, 7
      %v1974 = vsub.s32 0, %v1973
      %v1975 = vrot.slane %v261, %v1974
      %v1981 = vunpack.c.l.b16 %v1967
      %v1982 = vunpack.c.l.b16 %v1968
      %v1983 = vunpack.c.l.b16 %v1969
      %v1984 = vunpack.c.l.b16 %v1970
      %v1985 = vunpack.c.l.b16 %v1971
      %v1986 = vpack.c.b16 %v1982, %v1981
      %v1987 = vpack.c.b16 %v1984, %v1983
      %v1988 = vpack.c.b16 %v1985, %v1985
      %vm1991 = vcmask 293888
      %v1993 = vsel %vm1991, %v1951, 0
      %v1996 = vsel %vm1991, %v1952, 0
      %v1999 = vsel %vm1991, %v1953, 0
      %v2002 = vsel %vm1991, %v1954, 0
      %v2005 = vsel %vm1991, %v1955, 0
      %v2008 = vsel %vm1991, %v1956, 0
      %v2011 = vsel %vm1991, %v1957, 0
      %v2014 = vsel %vm1991, %v1958, 0
      %v2017 = vsel %vm1991, %v1959, 0
      %v2020 = vsel %vm1991, %v1960, 0
      %v2023 = vsel %vm1991, %v1961, 0
      %v2026 = vsel %vm1991, %v1962, 0
      %v2029 = vsel %vm1991, %v1963, 0
      %v2032 = vsel %vm1991, %v1964, 0
      %v2035 = vsel %vm1991, %v1965, 0
      %v2038 = vsel %vm1991, %v1966, 0
      %vm2040 = vcmask 1041408
      %v2042 = vsel %vm2040, %v1988, 0
      %2044 = vmatprep.subr.bf16.mxu0 0
      %2045 = vmatpush1.bf16.msra.mxu0 0
      %2046 = vmatprep.subr.bf16.mxu0 0
      %2047 = vmatpush1.bf16.msra.mxu0 0
      %2048 = vmatprep.subr.bf16.mxu0 0
      %2049 = vmatpush1.bf16.msra.mxu0 0
      %2050 = vmatprep.subr.bf16.mxu0 0
      %2051 = vmatpush1.bf16.msra.mxu0 0
      %2052 = vmatprep.subr.bf16.mxu0 0
      %2053 = vmatpush1.bf16.msra.mxu0 0
      %2054 = vmatprep.subr.bf16.mxu0 0
      %2055 = vmatpush1.bf16.msra.mxu0 %v2042
      %2056 = vmatprep.subr.bf16.mxu0 0
      %2057 = vmatpush1.bf16.msra.mxu0 %v1987
      %2058 = vmatprep.subr.bf16.mxu0 0
      %2059 = vmatpush1.bf16.msra.mxu0 %v1986
      %2060 = vmatprep.subr.bf16.mxu0 0
      %2061 = vmatpush2.bf16.msra.mxu0 0
      %2062 = vmatprep.subr.bf16.mxu0 0
      %2063 = vmatpush2.bf16.msra.mxu0 0
      %2064 = vmatprep.subr.bf16.mxu0 0
      %2065 = vmatpush2.bf16.msra.mxu0 0
      %2066 = vmatprep.subr.bf16.mxu0 0
      %2067 = vmatpush2.bf16.msra.mxu0 0
      %2068 = vmatprep.subr.bf16.mxu0 0
      %2069 = vmatpush2.bf16.msra.mxu0 0
      %2070 = vmatprep.subr.bf16.mxu0 0
      %2071 = vmatpush2.bf16.msra.mxu0 0
      %2072 = vmatprep.subr.bf16.mxu0 0
      %2073 = vmatpush2.bf16.msra.mxu0 0
      %2074 = vmatprep.subr.bf16.mxu0 0
      %2075 = vmatpush2.bf16.msra.mxu0 0
      %2076 = vmatprep.mubr.bf16.mxu0 0
      %2077 = vmatmul.mubr.bf16.gmra.mxu0 %v1993
      %v2078 = vpop.f32.mrf.mxu0
      %v2079 = vadd.f32 %v1975, %v2078
      %v2080 = vpop.f32.mrf.mxu0
      %v2081 = vpop.f32.mrf.mxu0
      %v2082 = vadd.f32 %v1975, %v2081
      %v2083 = vpop.f32.mrf.mxu0
      %2084 = vmatprep.mubr.bf16.mxu0 0
      %2085 = vmatmul.mubr.bf16.gmra.mxu0 %v1996
      %v2086 = vpop.f32.mrf.mxu0
      %v2087 = vadd.f32 %v1975, %v2086
      %v2088 = vpop.f32.mrf.mxu0
      %v2089 = vpop.f32.mrf.mxu0
      %v2090 = vadd.f32 %v1975, %v2089
      %v2091 = vpop.f32.mrf.mxu0
      %2092 = vmatprep.mubr.bf16.mxu0 0
      %2093 = vmatmul.mubr.bf16.gmra.mxu0 %v1999
      %v2094 = vpop.f32.mrf.mxu0
      %v2095 = vadd.f32 %v1975, %v2094
      %v2096 = vpop.f32.mrf.mxu0
      %v2097 = vpop.f32.mrf.mxu0
      %v2098 = vadd.f32 %v1975, %v2097
      %v2099 = vpop.f32.mrf.mxu0
      %2100 = vmatprep.mubr.bf16.mxu0 0
      %2101 = vmatmul.mubr.bf16.gmra.mxu0 %v2002
      %v2102 = vpop.f32.mrf.mxu0
      %v2103 = vadd.f32 %v1975, %v2102
      %v2104 = vpop.f32.mrf.mxu0
      %v2105 = vpop.f32.mrf.mxu0
      %v2106 = vadd.f32 %v1975, %v2105
      %v2107 = vpop.f32.mrf.mxu0
      %2108 = vmatprep.mubr.bf16.mxu0 0
      %2109 = vmatmul.mubr.bf16.gmra.mxu0 %v2005
      %v2110 = vpop.f32.mrf.mxu0
      %v2111 = vadd.f32 %v1975, %v2110
      %v2112 = vpop.f32.mrf.mxu0
      %v2113 = vpop.f32.mrf.mxu0
      %v2114 = vadd.f32 %v1975, %v2113
      %v2115 = vpop.f32.mrf.mxu0
      %2116 = vmatprep.mubr.bf16.mxu0 0
      %2117 = vmatmul.mubr.bf16.gmra.mxu0 %v2008
      %v2118 = vpop.f32.mrf.mxu0
      %v2119 = vadd.f32 %v1975, %v2118
      %v2120 = vpop.f32.mrf.mxu0
      %v2121 = vpop.f32.mrf.mxu0
      %v2122 = vadd.f32 %v1975, %v2121
      %v2123 = vpop.f32.mrf.mxu0
      %2124 = vmatprep.mubr.bf16.mxu0 0
      %2125 = vmatmul.mubr.bf16.gmra.mxu0 %v2011
      %v2126 = vpop.f32.mrf.mxu0
      %v2127 = vadd.f32 %v1975, %v2126
      %v2128 = vpop.f32.mrf.mxu0
      %v2129 = vpop.f32.mrf.mxu0
      %v2130 = vadd.f32 %v1975, %v2129
      %v2131 = vpop.f32.mrf.mxu0
      %2132 = vmatprep.mubr.bf16.mxu0 0
      %2133 = vmatmul.mubr.bf16.gmra.mxu0 %v2014
      %v2134 = vpop.f32.mrf.mxu0
      %v2135 = vadd.f32 %v1975, %v2134
      %v2136 = vpop.f32.mrf.mxu0
      %v2137 = vpop.f32.mrf.mxu0
      %v2138 = vadd.f32 %v1975, %v2137
      %v2139 = vpop.f32.mrf.mxu0
      %2140 = vmatprep.mubr.bf16.mxu0 0
      %2141 = vmatmul.mubr.bf16.gmra.mxu0 %v2017
      %v2142 = vpop.f32.mrf.mxu0
      %v2143 = vadd.f32 %v1975, %v2142
      %v2144 = vpop.f32.mrf.mxu0
      %v2145 = vpop.f32.mrf.mxu0
      %v2146 = vadd.f32 %v1975, %v2145
      %v2147 = vpop.f32.mrf.mxu0
      %2148 = vmatprep.mubr.bf16.mxu0 0
      %2149 = vmatmul.mubr.bf16.gmra.mxu0 %v2020
      %v2150 = vpop.f32.mrf.mxu0
      %v2151 = vadd.f32 %v1975, %v2150
      %v2152 = vpop.f32.mrf.mxu0
      %v2153 = vpop.f32.mrf.mxu0
      %v2154 = vadd.f32 %v1975, %v2153
      %v2155 = vpop.f32.mrf.mxu0
      %2156 = vmatprep.mubr.bf16.mxu0 0
      %2157 = vmatmul.mubr.bf16.gmra.mxu0 %v2023
      %v2158 = vpop.f32.mrf.mxu0
      %v2159 = vadd.f32 %v1975, %v2158
      %v2160 = vpop.f32.mrf.mxu0
      %v2161 = vpop.f32.mrf.mxu0
      %v2162 = vadd.f32 %v1975, %v2161
      %v2163 = vpop.f32.mrf.mxu0
      %2164 = vmatprep.mubr.bf16.mxu0 0
      %2165 = vmatmul.mubr.bf16.gmra.mxu0 %v2026
      %v2166 = vpop.f32.mrf.mxu0
      %v2167 = vadd.f32 %v1975, %v2166
      %v2168 = vpop.f32.mrf.mxu0
      %v2169 = vpop.f32.mrf.mxu0
      %v2170 = vadd.f32 %v1975, %v2169
      %v2171 = vpop.f32.mrf.mxu0
      %2172 = vmatprep.mubr.bf16.mxu0 0
      %2173 = vmatmul.mubr.bf16.gmra.mxu0 %v2029
      %v2174 = vpop.f32.mrf.mxu0
      %v2175 = vadd.f32 %v1975, %v2174
      %v2176 = vpop.f32.mrf.mxu0
      %v2177 = vpop.f32.mrf.mxu0
      %v2178 = vadd.f32 %v1975, %v2177
      %v2179 = vpop.f32.mrf.mxu0
      %2180 = vmatprep.mubr.bf16.mxu0 0
      %2181 = vmatmul.mubr.bf16.gmra.mxu0 %v2032
      %v2182 = vpop.f32.mrf.mxu0
      %v2183 = vadd.f32 %v1975, %v2182
      %v2184 = vpop.f32.mrf.mxu0
      %v2185 = vpop.f32.mrf.mxu0
      %v2186 = vadd.f32 %v1975, %v2185
      %v2187 = vpop.f32.mrf.mxu0
      %2188 = vmatprep.mubr.bf16.mxu0 0
      %2189 = vmatmul.mubr.bf16.gmra.mxu0 %v2035
      %v2190 = vpop.f32.mrf.mxu0
      %v2191 = vadd.f32 %v1975, %v2190
      %v2192 = vpop.f32.mrf.mxu0
      %v2193 = vpop.f32.mrf.mxu0
      %v2194 = vadd.f32 %v1975, %v2193
      %v2195 = vpop.f32.mrf.mxu0
      %2196 = vmatprep.mubr.bf16.mxu0 0
      %2197 = vmatmul.mubr.bf16.gmra.mxu0 %v2038
      %v2198 = vpop.f32.mrf.mxu0
      %v2199 = vadd.f32 %v1975, %v2198
      %v2200 = vpop.f32.mrf.mxu0
      %v2201 = vpop.f32.mrf.mxu0
      %v2202 = vadd.f32 %v1975, %v2201
      %v2203 = vpop.f32.mrf.mxu0
      %2204 = vdwg.mxu0
      %vm2205 = vcmask 523264
      %v2206 = vsel %vm2205, %v2079, 0.0
      %v2207 = vsel %vm2205, %v2082, 0.0
      %v2208 = vadd.f32 %v2206, %v2207
      %v2209 = vsel %vm2205, %v2087, 0.0
      %v2210 = vadd.f32 %v2208, %v2209
      %v2211 = vsel %vm2205, %v2090, 0.0
      %v2212 = vadd.f32 %v2210, %v2211
      %v2213 = vsel %vm2205, %v2095, 0.0
      %v2214 = vadd.f32 %v2212, %v2213
      %v2215 = vsel %vm2205, %v2098, 0.0
      %v2216 = vadd.f32 %v2214, %v2215
      %v2217 = vsel %vm2205, %v2103, 0.0
      %v2218 = vadd.f32 %v2216, %v2217
      %v2219 = vsel %vm2205, %v2106, 0.0
      %v2220 = vadd.f32 %v2218, %v2219
      %v2221 = vsel %vm2205, %v2111, 0.0
      %v2222 = vadd.f32 %v2220, %v2221
      %v2223 = vsel %vm2205, %v2114, 0.0
      %v2224 = vadd.f32 %v2222, %v2223
      %v2225 = vsel %vm2205, %v2119, 0.0
      %v2226 = vadd.f32 %v2224, %v2225
      %v2227 = vsel %vm2205, %v2122, 0.0
      %v2228 = vadd.f32 %v2226, %v2227
      %v2229 = vsel %vm2205, %v2127, 0.0
      %v2230 = vadd.f32 %v2228, %v2229
      %v2231 = vsel %vm2205, %v2130, 0.0
      %v2232 = vadd.f32 %v2230, %v2231
      %v2233 = vsel %vm2205, %v2135, 0.0
      %v2234 = vadd.f32 %v2232, %v2233
      %v2235 = vsel %vm2205, %v2138, 0.0
      %v2236 = vadd.f32 %v2234, %v2235
      %v2237 = vsel %vm2205, %v2143, 0.0
      %v2238 = vadd.f32 %v2236, %v2237
      %v2239 = vsel %vm2205, %v2146, 0.0
      %v2240 = vadd.f32 %v2238, %v2239
      %v2241 = vsel %vm2205, %v2151, 0.0
      %v2242 = vadd.f32 %v2240, %v2241
      %v2243 = vsel %vm2205, %v2154, 0.0
      %v2244 = vadd.f32 %v2242, %v2243
      %v2245 = vsel %vm2205, %v2159, 0.0
      %v2246 = vadd.f32 %v2244, %v2245
      %v2247 = vsel %vm2205, %v2162, 0.0
      %v2248 = vadd.f32 %v2246, %v2247
      %v2249 = vsel %vm2205, %v2167, 0.0
      %v2250 = vadd.f32 %v2248, %v2249
      %v2251 = vsel %vm2205, %v2170, 0.0
      %v2252 = vadd.f32 %v2250, %v2251
      %v2253 = vsel %vm2205, %v2175, 0.0
      %v2254 = vadd.f32 %v2252, %v2253
      %v2255 = vsel %vm2205, %v2178, 0.0
      %v2256 = vadd.f32 %v2254, %v2255
      %v2257 = vsel %vm2205, %v2183, 0.0
      %v2258 = vadd.f32 %v2256, %v2257
      %v2259 = vsel %vm2205, %v2186, 0.0
      %v2260 = vadd.f32 %v2258, %v2259
      %v2261 = vsel %vm2205, %v2191, 0.0
      %v2262 = vadd.f32 %v2260, %v2261
      %v2263 = vsel %vm2205, %v2194, 0.0
      %v2264 = vadd.f32 %v2262, %v2263
      %v2265 = vsel %vm2205, %v2199, 0.0
      %v2266 = vadd.f32 %v2264, %v2265
      %v2267 = vsel %vm2205, %v2202, 0.0
      %v2268 = vadd.f32 %v2266, %v2267
      %v2269 = vrot.slane %v2268, 4
      %v2270 = vadd.f32 %v2268, %v2269
      %v2271 = vrot.slane %v2270, 2
      %v2272 = vadd.f32 %v2270, %v2271
      %v2273 = vrot.slane %v2272, 1
      %v2274 = vadd.f32 %v2272, %v2273
      %v2275 = vmul.f32 %v2274, 0.00390625
      %v2276 = vmul.f32 %v2079, %v2079
      %v2277 = vmul.f32 %v2082, %v2082
      %v2278 = vmul.f32 %v2087, %v2087
      %v2279 = vmul.f32 %v2090, %v2090
      %v2280 = vmul.f32 %v2095, %v2095
      %v2281 = vmul.f32 %v2098, %v2098
      %v2282 = vmul.f32 %v2103, %v2103
      %v2283 = vmul.f32 %v2106, %v2106
      %v2284 = vmul.f32 %v2111, %v2111
      %v2285 = vmul.f32 %v2114, %v2114
      %v2286 = vmul.f32 %v2119, %v2119
      %v2287 = vmul.f32 %v2122, %v2122
      %v2288 = vmul.f32 %v2127, %v2127
      %v2289 = vmul.f32 %v2130, %v2130
      %v2290 = vmul.f32 %v2135, %v2135
      %v2291 = vmul.f32 %v2138, %v2138
      %v2292 = vmul.f32 %v2143, %v2143
      %v2293 = vmul.f32 %v2146, %v2146
      %v2294 = vmul.f32 %v2151, %v2151
      %v2295 = vmul.f32 %v2154, %v2154
      %v2296 = vmul.f32 %v2159, %v2159
      %v2297 = vmul.f32 %v2162, %v2162
      %v2298 = vmul.f32 %v2167, %v2167
      %v2299 = vmul.f32 %v2170, %v2170
      %v2300 = vmul.f32 %v2175, %v2175
      %v2301 = vmul.f32 %v2178, %v2178
      %v2302 = vmul.f32 %v2183, %v2183
      %v2303 = vmul.f32 %v2186, %v2186
      %v2304 = vmul.f32 %v2191, %v2191
      %v2305 = vmul.f32 %v2194, %v2194
      %v2306 = vmul.f32 %v2199, %v2199
      %v2307 = vmul.f32 %v2202, %v2202
      %v2308 = vsel %vm2205, %v2276, 0.0
      %v2309 = vsel %vm2205, %v2277, 0.0
      %v2310 = vadd.f32 %v2308, %v2309
      %v2311 = vsel %vm2205, %v2278, 0.0
      %v2312 = vadd.f32 %v2310, %v2311
      %v2313 = vsel %vm2205, %v2279, 0.0
      %v2314 = vadd.f32 %v2312, %v2313
      %v2315 = vsel %vm2205, %v2280, 0.0
      %v2316 = vadd.f32 %v2314, %v2315
      %v2317 = vsel %vm2205, %v2281, 0.0
      %v2318 = vadd.f32 %v2316, %v2317
      %v2319 = vsel %vm2205, %v2282, 0.0
      %v2320 = vadd.f32 %v2318, %v2319
      %v2321 = vsel %vm2205, %v2283, 0.0
      %v2322 = vadd.f32 %v2320, %v2321
      %v2323 = vsel %vm2205, %v2284, 0.0
      %v2324 = vadd.f32 %v2322, %v2323
      %v2325 = vsel %vm2205, %v2285, 0.0
      %v2326 = vadd.f32 %v2324, %v2325
      %v2327 = vsel %vm2205, %v2286, 0.0
      %v2328 = vadd.f32 %v2326, %v2327
      %v2329 = vsel %vm2205, %v2287, 0.0
      %v2330 = vadd.f32 %v2328, %v2329
      %v2331 = vsel %vm2205, %v2288, 0.0
      %v2332 = vadd.f32 %v2330, %v2331
      %v2333 = vsel %vm2205, %v2289, 0.0
      %v2334 = vadd.f32 %v2332, %v2333
      %v2335 = vsel %vm2205, %v2290, 0.0
      %v2336 = vadd.f32 %v2334, %v2335
      %v2337 = vsel %vm2205, %v2291, 0.0
      %v2338 = vadd.f32 %v2336, %v2337
      %v2339 = vsel %vm2205, %v2292, 0.0
      %v2340 = vadd.f32 %v2338, %v2339
      %v2341 = vsel %vm2205, %v2293, 0.0
      %v2342 = vadd.f32 %v2340, %v2341
      %v2343 = vsel %vm2205, %v2294, 0.0
      %v2344 = vadd.f32 %v2342, %v2343
      %v2345 = vsel %vm2205, %v2295, 0.0
      %v2346 = vadd.f32 %v2344, %v2345
      %v2347 = vsel %vm2205, %v2296, 0.0
      %v2348 = vadd.f32 %v2346, %v2347
      %v2349 = vsel %vm2205, %v2297, 0.0
      %v2350 = vadd.f32 %v2348, %v2349
      %v2351 = vsel %vm2205, %v2298, 0.0
      %v2352 = vadd.f32 %v2350, %v2351
      %v2353 = vsel %vm2205, %v2299, 0.0
      %v2354 = vadd.f32 %v2352, %v2353
      %v2355 = vsel %vm2205, %v2300, 0.0
      %v2356 = vadd.f32 %v2354, %v2355
      %v2357 = vsel %vm2205, %v2301, 0.0
      %v2358 = vadd.f32 %v2356, %v2357
      %v2359 = vsel %vm2205, %v2302, 0.0
      %v2360 = vadd.f32 %v2358, %v2359
      %v2361 = vsel %vm2205, %v2303, 0.0
      %v2362 = vadd.f32 %v2360, %v2361
      %v2363 = vsel %vm2205, %v2304, 0.0
      %v2364 = vadd.f32 %v2362, %v2363
      %v2365 = vsel %vm2205, %v2305, 0.0
      %v2366 = vadd.f32 %v2364, %v2365
      %v2367 = vsel %vm2205, %v2306, 0.0
      %v2368 = vadd.f32 %v2366, %v2367
      %v2369 = vsel %vm2205, %v2307, 0.0
      %v2370 = vadd.f32 %v2368, %v2369
      %v2371 = vrot.slane %v2370, 4
      %v2372 = vadd.f32 %v2370, %v2371
      %v2373 = vrot.slane %v2372, 2
      %v2374 = vadd.f32 %v2372, %v2373
      %v2375 = vrot.slane %v2374, 1
      %v2376 = vadd.f32 %v2374, %v2375
      %v2377 = vmul.f32 %v2376, 0.00390625
      %v2379 = vsel %vm2205, %v2275, 0
      %2381 = vmatprep.subr.mxu0 0.0
      %2382 = vmatpush1.msra.mxu0 0.0
      %2383 = vmatprep.subr.mxu0 0.0
      %2384 = vmatpush1.msra.mxu0 0.0
      %2385 = vmatprep.subr.mxu0 0.0
      %2386 = vmatpush1.msra.mxu0 0.0
      %2387 = vmatprep.subr.mxu0 0.0
      %2388 = vmatpush1.msra.mxu0 0.0
      %2389 = vmatprep.subr.mxu0 0.0
      %2390 = vmatpush1.msra.mxu0 0.0
      %2391 = vmatprep.subr.mxu0 0.0
      %2392 = vmatpush1.msra.mxu0 0.0
      %2393 = vmatprep.subr.mxu0 0.0
      %2394 = vmatpush1.msra.mxu0 0.0
      %2395 = vmatprep.subr.mxu0 0.0
      %2396 = vmatpush1.msra.mxu0 0.0
      %2397 = vmatprep.subr.mxu0 0.0
      %2398 = vmatpush1.msra.mxu0 %v260
      %2399 = vmatprep.subr.mxu0 0.0
      %2400 = vmatpush1.msra.mxu0 %v259
      %2401 = vmatprep.subr.mxu0 0.0
      %2402 = vmatpush1.msra.mxu0 %v258
      %2403 = vmatprep.subr.mxu0 0.0
      %2404 = vmatpush1.msra.mxu0 %v257
      %2405 = vmatprep.subr.mxu0 0.0
      %2406 = vmatpush1.msra.mxu0 %v256
      %2407 = vmatprep.subr.mxu0 0.0
      %2408 = vmatpush1.msra.mxu0 %v255
      %2409 = vmatprep.subr.mxu0 0.0
      %2410 = vmatpush1.msra.mxu0 %v254
      %2411 = vmatprep.subr.mxu0 0.0
      %2412 = vmatpush1.msra.mxu0 %v253
      %2413 = vmatprep.subr.mxu0 0.0
      %2414 = vmatpush2.msra.mxu0 0.0
      %2415 = vmatprep.subr.mxu0 0.0
      %2416 = vmatpush2.msra.mxu0 0.0
      %2417 = vmatprep.subr.mxu0 0.0
      %2418 = vmatpush2.msra.mxu0 0.0
      %2419 = vmatprep.subr.mxu0 0.0
      %2420 = vmatpush2.msra.mxu0 0.0
      %2421 = vmatprep.subr.mxu0 0.0
      %2422 = vmatpush2.msra.mxu0 0.0
      %2423 = vmatprep.subr.mxu0 0.0
      %2424 = vmatpush2.msra.mxu0 0.0
      %2425 = vmatprep.subr.mxu0 0.0
      %2426 = vmatpush2.msra.mxu0 0.0
      %2427 = vmatprep.subr.mxu0 0.0
      %2428 = vmatpush2.msra.mxu0 0.0
      %2429 = vmatprep.subr.mxu0 0.0
      %2430 = vmatpush2.msra.mxu0 0.0
      %2431 = vmatprep.subr.mxu0 0.0
      %2432 = vmatpush2.msra.mxu0 0.0
      %2433 = vmatprep.subr.mxu0 0.0
      %2434 = vmatpush2.msra.mxu0 0.0
      %2435 = vmatprep.subr.mxu0 0.0
      %2436 = vmatpush2.msra.mxu0 0.0
      %2437 = vmatprep.subr.mxu0 0.0
      %2438 = vmatpush2.msra.mxu0 0.0
      %2439 = vmatprep.subr.mxu0 0.0
      %2440 = vmatpush2.msra.mxu0 0.0
      %2441 = vmatprep.subr.mxu0 0.0
      %2442 = vmatpush2.msra.mxu0 0.0
      %2443 = vmatprep.subr.mxu0 0.0
      %2444 = vmatpush2.msra.mxu0 0.0
      %2445 = vmatprep.mubr.f32.mxu0 0.0
      %2446 = vmatmul.mubr.f32.gmra.mxu0 %v2379
      %v2447 = vpop.f32.mrf.mxu0
      %v2448 = vadd.f32 0.0, %v2447
      %v2449 = vpop.f32.mrf.mxu0
      %2450 = vdwg.mxu0
      %v2452 = vsel %vm2205, %v2377, 0
      %2454 = vmatprep.subr.mxu0 0.0
      %2455 = vmatpush1.msra.mxu0 0.0
      %2456 = vmatprep.subr.mxu0 0.0
      %2457 = vmatpush1.msra.mxu0 0.0
      %2458 = vmatprep.subr.mxu0 0.0
      %2459 = vmatpush1.msra.mxu0 0.0
      %2460 = vmatprep.subr.mxu0 0.0
      %2461 = vmatpush1.msra.mxu0 0.0
      %2462 = vmatprep.subr.mxu0 0.0
      %2463 = vmatpush1.msra.mxu0 0.0
      %2464 = vmatprep.subr.mxu0 0.0
      %2465 = vmatpush1.msra.mxu0 0.0
      %2466 = vmatprep.subr.mxu0 0.0
      %2467 = vmatpush1.msra.mxu0 0.0
      %2468 = vmatprep.subr.mxu0 0.0
      %2469 = vmatpush1.msra.mxu0 0.0
      %2470 = vmatprep.subr.mxu0 0.0
      %2471 = vmatpush1.msra.mxu0 %v260
      %2472 = vmatprep.subr.mxu0 0.0
      %2473 = vmatpush1.msra.mxu0 %v259
      %2474 = vmatprep.subr.mxu0 0.0
      %2475 = vmatpush1.msra.mxu0 %v258
      %2476 = vmatprep.subr.mxu0 0.0
      %2477 = vmatpush1.msra.mxu0 %v257
      %2478 = vmatprep.subr.mxu0 0.0
      %2479 = vmatpush1.msra.mxu0 %v256
      %2480 = vmatprep.subr.mxu0 0.0
      %2481 = vmatpush1.msra.mxu0 %v255
      %2482 = vmatprep.subr.mxu0 0.0
      %2483 = vmatpush1.msra.mxu0 %v254
      %2484 = vmatprep.subr.mxu0 0.0
      %2485 = vmatpush1.msra.mxu0 %v253
      %2486 = vmatprep.subr.mxu0 0.0
      %2487 = vmatpush2.msra.mxu0 0.0
      %2488 = vmatprep.subr.mxu0 0.0
      %2489 = vmatpush2.msra.mxu0 0.0
      %2490 = vmatprep.subr.mxu0 0.0
      %2491 = vmatpush2.msra.mxu0 0.0
      %2492 = vmatprep.subr.mxu0 0.0
      %2493 = vmatpush2.msra.mxu0 0.0
      %2494 = vmatprep.subr.mxu0 0.0
      %2495 = vmatpush2.msra.mxu0 0.0
      %2496 = vmatprep.subr.mxu0 0.0
      %2497 = vmatpush2.msra.mxu0 0.0
      %2498 = vmatprep.subr.mxu0 0.0
      %2499 = vmatpush2.msra.mxu0 0.0
      %2500 = vmatprep.subr.mxu0 0.0
      %2501 = vmatpush2.msra.mxu0 0.0
      %2502 = vmatprep.subr.mxu0 0.0
      %2503 = vmatpush2.msra.mxu0 0.0
      %2504 = vmatprep.subr.mxu0 0.0
      %2505 = vmatpush2.msra.mxu0 0.0
      %2506 = vmatprep.subr.mxu0 0.0
      %2507 = vmatpush2.msra.mxu0 0.0
      %2508 = vmatprep.subr.mxu0 0.0
      %2509 = vmatpush2.msra.mxu0 0.0
      %2510 = vmatprep.subr.mxu0 0.0
      %2511 = vmatpush2.msra.mxu0 0.0
      %2512 = vmatprep.subr.mxu0 0.0
      %2513 = vmatpush2.msra.mxu0 0.0
      %2514 = vmatprep.subr.mxu0 0.0
      %2515 = vmatpush2.msra.mxu0 0.0
      %2516 = vmatprep.subr.mxu0 0.0
      %2517 = vmatpush2.msra.mxu0 0.0
      %2518 = vmatprep.mubr.f32.mxu0 0.0
      %2519 = vmatmul.mubr.f32.gmra.mxu0 %v2452
      %v2520 = vpop.f32.mrf.mxu0
      %v2521 = vadd.f32 0.0, %v2520
      %v2522 = vpop.f32.mrf.mxu0
      %2523 = vdwg.mxu0
      %v2524 = vmul.f32 %v2448, %v2448
      %v2525 = vsub.f32 %v2521, %v2524
      %v2526 = vadd.f32 %v2525, 1e-05
      %v2527 = vrsqrt.pop %v2526
      %v2528 = vmul.f32 %v2527, %v262
      %v2529 = vlaneseq
      %v2530 = vshrl.u32 %v2529, 7
      %v2531 = vsub.s32 0, %v2530
      %v2532 = vrot.slane %v2448, %v2531
      %v2533 = vsub.f32 %v2079, %v2532
      %v2534 = vsub.f32 %v2082, %v2532
      %v2535 = vsub.f32 %v2087, %v2532
      %v2536 = vsub.f32 %v2090, %v2532
      %v2537 = vsub.f32 %v2095, %v2532
      %v2538 = vsub.f32 %v2098, %v2532
      %v2539 = vsub.f32 %v2103, %v2532
      %v2540 = vsub.f32 %v2106, %v2532
      %v2541 = vsub.f32 %v2111, %v2532
      %v2542 = vsub.f32 %v2114, %v2532
      %v2543 = vsub.f32 %v2119, %v2532
      %v2544 = vsub.f32 %v2122, %v2532
      %v2545 = vsub.f32 %v2127, %v2532
      %v2546 = vsub.f32 %v2130, %v2532
      %v2547 = vsub.f32 %v2135, %v2532
      %v2548 = vsub.f32 %v2138, %v2532
      %v2549 = vsub.f32 %v2143, %v2532
      %v2550 = vsub.f32 %v2146, %v2532
      %v2551 = vsub.f32 %v2151, %v2532
      %v2552 = vsub.f32 %v2154, %v2532
      %v2553 = vsub.f32 %v2159, %v2532
      %v2554 = vsub.f32 %v2162, %v2532
      %v2555 = vsub.f32 %v2167, %v2532
      %v2556 = vsub.f32 %v2170, %v2532
      %v2557 = vsub.f32 %v2175, %v2532
      %v2558 = vsub.f32 %v2178, %v2532
      %v2559 = vsub.f32 %v2183, %v2532
      %v2560 = vsub.f32 %v2186, %v2532
      %v2561 = vsub.f32 %v2191, %v2532
      %v2562 = vsub.f32 %v2194, %v2532
      %v2563 = vsub.f32 %v2199, %v2532
      %v2564 = vsub.f32 %v2202, %v2532
      %v2565 = vlaneseq
      %v2566 = vshrl.u32 %v2565, 7
      %v2567 = vsub.s32 0, %v2566
      %v2568 = vrot.slane %v2528, %v2567
      %v2569 = vmul.f32 %v2533, %v2568
      %v2570 = vmul.f32 %v2534, %v2568
      %v2571 = vmul.f32 %v2535, %v2568
      %v2572 = vmul.f32 %v2536, %v2568
      %v2573 = vmul.f32 %v2537, %v2568
      %v2574 = vmul.f32 %v2538, %v2568
      %v2575 = vmul.f32 %v2539, %v2568
      %v2576 = vmul.f32 %v2540, %v2568
      %v2577 = vmul.f32 %v2541, %v2568
      %v2578 = vmul.f32 %v2542, %v2568
      %v2579 = vmul.f32 %v2543, %v2568
      %v2580 = vmul.f32 %v2544, %v2568
      %v2581 = vmul.f32 %v2545, %v2568
      %v2582 = vmul.f32 %v2546, %v2568
      %v2583 = vmul.f32 %v2547, %v2568
      %v2584 = vmul.f32 %v2548, %v2568
      %v2585 = vmul.f32 %v2549, %v2568
      %v2586 = vmul.f32 %v2550, %v2568
      %v2587 = vmul.f32 %v2551, %v2568
      %v2588 = vmul.f32 %v2552, %v2568
      %v2589 = vmul.f32 %v2553, %v2568
      %v2590 = vmul.f32 %v2554, %v2568
      %v2591 = vmul.f32 %v2555, %v2568
      %v2592 = vmul.f32 %v2556, %v2568
      %v2593 = vmul.f32 %v2557, %v2568
      %v2594 = vmul.f32 %v2558, %v2568
      %v2595 = vmul.f32 %v2559, %v2568
      %v2596 = vmul.f32 %v2560, %v2568
      %v2597 = vmul.f32 %v2561, %v2568
      %v2598 = vmul.f32 %v2562, %v2568
      %v2599 = vmul.f32 %v2563, %v2568
      %v2600 = vmul.f32 %v2564, %v2568
      %v2601 = vlaneseq
      %v2602 = vshrl.u32 %v2601, 7
      %v2603 = vsub.s32 0, %v2602
      %v2604 = vrot.slane %v263, %v2603
      %v2605 = vadd.f32 %v2569, %v2604
      %v2606 = vadd.f32 %v2570, %v2604
      %v2607 = vadd.f32 %v2571, %v2604
      %v2608 = vadd.f32 %v2572, %v2604
      %v2609 = vadd.f32 %v2573, %v2604
      %v2610 = vadd.f32 %v2574, %v2604
      %v2611 = vadd.f32 %v2575, %v2604
      %v2612 = vadd.f32 %v2576, %v2604
      %v2613 = vadd.f32 %v2577, %v2604
      %v2614 = vadd.f32 %v2578, %v2604
      %v2615 = vadd.f32 %v2579, %v2604
      %v2616 = vadd.f32 %v2580, %v2604
      %v2617 = vadd.f32 %v2581, %v2604
      %v2618 = vadd.f32 %v2582, %v2604
      %v2619 = vadd.f32 %v2583, %v2604
      %v2620 = vadd.f32 %v2584, %v2604
      %v2621 = vadd.f32 %v2585, %v2604
      %v2622 = vadd.f32 %v2586, %v2604
      %v2623 = vadd.f32 %v2587, %v2604
      %v2624 = vadd.f32 %v2588, %v2604
      %v2625 = vadd.f32 %v2589, %v2604
      %v2626 = vadd.f32 %v2590, %v2604
      %v2627 = vadd.f32 %v2591, %v2604
      %v2628 = vadd.f32 %v2592, %v2604
      %v2629 = vadd.f32 %v2593, %v2604
      %v2630 = vadd.f32 %v2594, %v2604
      %v2631 = vadd.f32 %v2595, %v2604
      %v2632 = vadd.f32 %v2596, %v2604
      %v2633 = vadd.f32 %v2597, %v2604
      %v2634 = vadd.f32 %v2598, %v2604
      %v2635 = vadd.f32 %v2599, %v2604
      %v2636 = vadd.f32 %v2600, %v2604
      %v2637 = vmul.f32 %v2605, 0.5
      %v2638 = vmul.f32 %v2606, 0.5
      %v2639 = vmul.f32 %v2607, 0.5
      %v2640 = vmul.f32 %v2608, 0.5
      %v2641 = vmul.f32 %v2609, 0.5
      %v2642 = vmul.f32 %v2610, 0.5
      %v2643 = vmul.f32 %v2611, 0.5
      %v2644 = vmul.f32 %v2612, 0.5
      %v2645 = vmul.f32 %v2613, 0.5
      %v2646 = vmul.f32 %v2614, 0.5
      %v2647 = vmul.f32 %v2615, 0.5
      %v2648 = vmul.f32 %v2616, 0.5
      %v2649 = vmul.f32 %v2617, 0.5
      %v2650 = vmul.f32 %v2618, 0.5
      %v2651 = vmul.f32 %v2619, 0.5
      %v2652 = vmul.f32 %v2620, 0.5
      %v2653 = vmul.f32 %v2621, 0.5
      %v2654 = vmul.f32 %v2622, 0.5
      %v2655 = vmul.f32 %v2623, 0.5
      %v2656 = vmul.f32 %v2624, 0.5
      %v2657 = vmul.f32 %v2625, 0.5
      %v2658 = vmul.f32 %v2626, 0.5
      %v2659 = vmul.f32 %v2627, 0.5
      %v2660 = vmul.f32 %v2628, 0.5
      %v2661 = vmul.f32 %v2629, 0.5
      %v2662 = vmul.f32 %v2630, 0.5
      %v2663 = vmul.f32 %v2631, 0.5
      %v2664 = vmul.f32 %v2632, 0.5
      %v2665 = vmul.f32 %v2633, 0.5
      %v2666 = vmul.f32 %v2634, 0.5
      %v2667 = vmul.f32 %v2635, 0.5
      %v2668 = vmul.f32 %v2636, 0.5
      %v2669 = vmul.f32 %v2605, %v2605
      %v2670 = vmul.f32 %v2606, %v2606
      %v2671 = vmul.f32 %v2607, %v2607
      %v2672 = vmul.f32 %v2608, %v2608
      %v2673 = vmul.f32 %v2609, %v2609
      %v2674 = vmul.f32 %v2610, %v2610
      %v2675 = vmul.f32 %v2611, %v2611
      %v2676 = vmul.f32 %v2612, %v2612
      %v2677 = vmul.f32 %v2613, %v2613
      %v2678 = vmul.f32 %v2614, %v2614
      %v2679 = vmul.f32 %v2615, %v2615
      %v2680 = vmul.f32 %v2616, %v2616
      %v2681 = vmul.f32 %v2617, %v2617
      %v2682 = vmul.f32 %v2618, %v2618
      %v2683 = vmul.f32 %v2619, %v2619
      %v2684 = vmul.f32 %v2620, %v2620
      %v2685 = vmul.f32 %v2621, %v2621
      %v2686 = vmul.f32 %v2622, %v2622
      %v2687 = vmul.f32 %v2623, %v2623
      %v2688 = vmul.f32 %v2624, %v2624
      %v2689 = vmul.f32 %v2625, %v2625
      %v2690 = vmul.f32 %v2626, %v2626
      %v2691 = vmul.f32 %v2627, %v2627
      %v2692 = vmul.f32 %v2628, %v2628
      %v2693 = vmul.f32 %v2629, %v2629
      %v2694 = vmul.f32 %v2630, %v2630
      %v2695 = vmul.f32 %v2631, %v2631
      %v2696 = vmul.f32 %v2632, %v2632
      %v2697 = vmul.f32 %v2633, %v2633
      %v2698 = vmul.f32 %v2634, %v2634
      %v2699 = vmul.f32 %v2635, %v2635
      %v2700 = vmul.f32 %v2636, %v2636
      %v2701 = vmul.f32 %v2669, %v2605
      %v2702 = vmul.f32 %v2670, %v2606
      %v2703 = vmul.f32 %v2671, %v2607
      %v2704 = vmul.f32 %v2672, %v2608
      %v2705 = vmul.f32 %v2673, %v2609
      %v2706 = vmul.f32 %v2674, %v2610
      %v2707 = vmul.f32 %v2675, %v2611
      %v2708 = vmul.f32 %v2676, %v2612
      %v2709 = vmul.f32 %v2677, %v2613
      %v2710 = vmul.f32 %v2678, %v2614
      %v2711 = vmul.f32 %v2679, %v2615
      %v2712 = vmul.f32 %v2680, %v2616
      %v2713 = vmul.f32 %v2681, %v2617
      %v2714 = vmul.f32 %v2682, %v2618
      %v2715 = vmul.f32 %v2683, %v2619
      %v2716 = vmul.f32 %v2684, %v2620
      %v2717 = vmul.f32 %v2685, %v2621
      %v2718 = vmul.f32 %v2686, %v2622
      %v2719 = vmul.f32 %v2687, %v2623
      %v2720 = vmul.f32 %v2688, %v2624
      %v2721 = vmul.f32 %v2689, %v2625
      %v2722 = vmul.f32 %v2690, %v2626
      %v2723 = vmul.f32 %v2691, %v2627
      %v2724 = vmul.f32 %v2692, %v2628
      %v2725 = vmul.f32 %v2693, %v2629
      %v2726 = vmul.f32 %v2694, %v2630
      %v2727 = vmul.f32 %v2695, %v2631
      %v2728 = vmul.f32 %v2696, %v2632
      %v2729 = vmul.f32 %v2697, %v2633
      %v2730 = vmul.f32 %v2698, %v2634
      %v2731 = vmul.f32 %v2699, %v2635
      %v2732 = vmul.f32 %v2700, %v2636
      %v2733 = vmul.f32 %v2701, 0.044715
      %v2734 = vmul.f32 %v2702, 0.044715
      %v2735 = vmul.f32 %v2703, 0.044715
      %v2736 = vmul.f32 %v2704, 0.044715
      %v2737 = vmul.f32 %v2705, 0.044715
      %v2738 = vmul.f32 %v2706, 0.044715
      %v2739 = vmul.f32 %v2707, 0.044715
      %v2740 = vmul.f32 %v2708, 0.044715
      %v2741 = vmul.f32 %v2709, 0.044715
      %v2742 = vmul.f32 %v2710, 0.044715
      %v2743 = vmul.f32 %v2711, 0.044715
      %v2744 = vmul.f32 %v2712, 0.044715
      %v2745 = vmul.f32 %v2713, 0.044715
      %v2746 = vmul.f32 %v2714, 0.044715
      %v2747 = vmul.f32 %v2715, 0.044715
      %v2748 = vmul.f32 %v2716, 0.044715
      %v2749 = vmul.f32 %v2717, 0.044715
      %v2750 = vmul.f32 %v2718, 0.044715
      %v2751 = vmul.f32 %v2719, 0.044715
      %v2752 = vmul.f32 %v2720, 0.044715
      %v2753 = vmul.f32 %v2721, 0.044715
      %v2754 = vmul.f32 %v2722, 0.044715
      %v2755 = vmul.f32 %v2723, 0.044715
      %v2756 = vmul.f32 %v2724, 0.044715
      %v2757 = vmul.f32 %v2725, 0.044715
      %v2758 = vmul.f32 %v2726, 0.044715
      %v2759 = vmul.f32 %v2727, 0.044715
      %v2760 = vmul.f32 %v2728, 0.044715
      %v2761 = vmul.f32 %v2729, 0.044715
      %v2762 = vmul.f32 %v2730, 0.044715
      %v2763 = vmul.f32 %v2731, 0.044715
      %v2764 = vmul.f32 %v2732, 0.044715
      %v2765 = vadd.f32 %v2605, %v2733
      %v2766 = vadd.f32 %v2606, %v2734
      %v2767 = vadd.f32 %v2607, %v2735
      %v2768 = vadd.f32 %v2608, %v2736
      %v2769 = vadd.f32 %v2609, %v2737
      %v2770 = vadd.f32 %v2610, %v2738
      %v2771 = vadd.f32 %v2611, %v2739
      %v2772 = vadd.f32 %v2612, %v2740
      %v2773 = vadd.f32 %v2613, %v2741
      %v2774 = vadd.f32 %v2614, %v2742
      %v2775 = vadd.f32 %v2615, %v2743
      %v2776 = vadd.f32 %v2616, %v2744
      %v2777 = vadd.f32 %v2617, %v2745
      %v2778 = vadd.f32 %v2618, %v2746
      %v2779 = vadd.f32 %v2619, %v2747
      %v2780 = vadd.f32 %v2620, %v2748
      %v2781 = vadd.f32 %v2621, %v2749
      %v2782 = vadd.f32 %v2622, %v2750
      %v2783 = vadd.f32 %v2623, %v2751
      %v2784 = vadd.f32 %v2624, %v2752
      %v2785 = vadd.f32 %v2625, %v2753
      %v2786 = vadd.f32 %v2626, %v2754
      %v2787 = vadd.f32 %v2627, %v2755
      %v2788 = vadd.f32 %v2628, %v2756
      %v2789 = vadd.f32 %v2629, %v2757
      %v2790 = vadd.f32 %v2630, %v2758
      %v2791 = vadd.f32 %v2631, %v2759
      %v2792 = vadd.f32 %v2632, %v2760
      %v2793 = vadd.f32 %v2633, %v2761
      %v2794 = vadd.f32 %v2634, %v2762
      %v2795 = vadd.f32 %v2635, %v2763
      %v2796 = vadd.f32 %v2636, %v2764
      %v2797 = vmul.f32 %v2765, 0.7978846
      %v2798 = vmul.f32 %v2766, 0.7978846
      %v2799 = vmul.f32 %v2767, 0.7978846
      %v2800 = vmul.f32 %v2768, 0.7978846
      %v2801 = vmul.f32 %v2769, 0.7978846
      %v2802 = vmul.f32 %v2770, 0.7978846
      %v2803 = vmul.f32 %v2771, 0.7978846
      %v2804 = vmul.f32 %v2772, 0.7978846
      %v2805 = vmul.f32 %v2773, 0.7978846
      %v2806 = vmul.f32 %v2774, 0.7978846
      %v2807 = vmul.f32 %v2775, 0.7978846
      %v2808 = vmul.f32 %v2776, 0.7978846
      %v2809 = vmul.f32 %v2777, 0.7978846
      %v2810 = vmul.f32 %v2778, 0.7978846
      %v2811 = vmul.f32 %v2779, 0.7978846
      %v2812 = vmul.f32 %v2780, 0.7978846
      %v2813 = vmul.f32 %v2781, 0.7978846
      %v2814 = vmul.f32 %v2782, 0.7978846
      %v2815 = vmul.f32 %v2783, 0.7978846
      %v2816 = vmul.f32 %v2784, 0.7978846
      %v2817 = vmul.f32 %v2785, 0.7978846
      %v2818 = vmul.f32 %v2786, 0.7978846
      %v2819 = vmul.f32 %v2787, 0.7978846
      %v2820 = vmul.f32 %v2788, 0.7978846
      %v2821 = vmul.f32 %v2789, 0.7978846
      %v2822 = vmul.f32 %v2790, 0.7978846
      %v2823 = vmul.f32 %v2791, 0.7978846
      %v2824 = vmul.f32 %v2792, 0.7978846
      %v2825 = vmul.f32 %v2793, 0.7978846
      %v2826 = vmul.f32 %v2794, 0.7978846
      %v2827 = vmul.f32 %v2795, 0.7978846
      %v2828 = vmul.f32 %v2796, 0.7978846
      %v2829 = vtanh.pop %v2797
      %v2830 = vtanh.pop %v2798
      %v2831 = vtanh.pop %v2799
      %v2832 = vtanh.pop %v2800
      %v2833 = vtanh.pop %v2801
      %v2834 = vtanh.pop %v2802
      %v2835 = vtanh.pop %v2803
      %v2836 = vtanh.pop %v2804
      %v2837 = vtanh.pop %v2805
      %v2838 = vtanh.pop %v2806
      %v2839 = vtanh.pop %v2807
      %v2840 = vtanh.pop %v2808
      %v2841 = vtanh.pop %v2809
      %v2842 = vtanh.pop %v2810
      %v2843 = vtanh.pop %v2811
      %v2844 = vtanh.pop %v2812
      %v2845 = vtanh.pop %v2813
      %v2846 = vtanh.pop %v2814
      %v2847 = vtanh.pop %v2815
      %v2848 = vtanh.pop %v2816
      %v2849 = vtanh.pop %v2817
      %v2850 = vtanh.pop %v2818
      %v2851 = vtanh.pop %v2819
      %v2852 = vtanh.pop %v2820
      %v2853 = vtanh.pop %v2821
      %v2854 = vtanh.pop %v2822
      %v2855 = vtanh.pop %v2823
      %v2856 = vtanh.pop %v2824
      %v2857 = vtanh.pop %v2825
      %v2858 = vtanh.pop %v2826
      %v2859 = vtanh.pop %v2827
      %v2860 = vtanh.pop %v2828
      %v2861 = vadd.f32 %v2829, 1.0
      %v2862 = vadd.f32 %v2830, 1.0
      %v2863 = vadd.f32 %v2831, 1.0
      %v2864 = vadd.f32 %v2832, 1.0
      %v2865 = vadd.f32 %v2833, 1.0
      %v2866 = vadd.f32 %v2834, 1.0
      %v2867 = vadd.f32 %v2835, 1.0
      %v2868 = vadd.f32 %v2836, 1.0
      %v2869 = vadd.f32 %v2837, 1.0
      %v2870 = vadd.f32 %v2838, 1.0
      %v2871 = vadd.f32 %v2839, 1.0
      %v2872 = vadd.f32 %v2840, 1.0
      %v2873 = vadd.f32 %v2841, 1.0
      %v2874 = vadd.f32 %v2842, 1.0
      %v2875 = vadd.f32 %v2843, 1.0
      %v2876 = vadd.f32 %v2844, 1.0
      %v2877 = vadd.f32 %v2845, 1.0
      %v2878 = vadd.f32 %v2846, 1.0
      %v2879 = vadd.f32 %v2847, 1.0
      %v2880 = vadd.f32 %v2848, 1.0
      %v2881 = vadd.f32 %v2849, 1.0
      %v2882 = vadd.f32 %v2850, 1.0
      %v2883 = vadd.f32 %v2851, 1.0
      %v2884 = vadd.f32 %v2852, 1.0
      %v2885 = vadd.f32 %v2853, 1.0
      %v2886 = vadd.f32 %v2854, 1.0
      %v2887 = vadd.f32 %v2855, 1.0
      %v2888 = vadd.f32 %v2856, 1.0
      %v2889 = vadd.f32 %v2857, 1.0
      %v2890 = vadd.f32 %v2858, 1.0
      %v2891 = vadd.f32 %v2859, 1.0
      %v2892 = vadd.f32 %v2860, 1.0
      %v2893 = vmul.f32 %v2637, %v2861
      %v2894 = vmul.f32 %v2638, %v2862
      %v2895 = vmul.f32 %v2639, %v2863
      %v2896 = vmul.f32 %v2640, %v2864
      %v2897 = vmul.f32 %v2641, %v2865
      %v2898 = vmul.f32 %v2642, %v2866
      %v2899 = vmul.f32 %v2643, %v2867
      %v2900 = vmul.f32 %v2644, %v2868
      %v2901 = vmul.f32 %v2645, %v2869
      %v2902 = vmul.f32 %v2646, %v2870
      %v2903 = vmul.f32 %v2647, %v2871
      %v2904 = vmul.f32 %v2648, %v2872
      %v2905 = vmul.f32 %v2649, %v2873
      %v2906 = vmul.f32 %v2650, %v2874
      %v2907 = vmul.f32 %v2651, %v2875
      %v2908 = vmul.f32 %v2652, %v2876
      %v2909 = vmul.f32 %v2653, %v2877
      %v2910 = vmul.f32 %v2654, %v2878
      %v2911 = vmul.f32 %v2655, %v2879
      %v2912 = vmul.f32 %v2656, %v2880
      %v2913 = vmul.f32 %v2657, %v2881
      %v2914 = vmul.f32 %v2658, %v2882
      %v2915 = vmul.f32 %v2659, %v2883
      %v2916 = vmul.f32 %v2660, %v2884
      %v2917 = vmul.f32 %v2661, %v2885
      %v2918 = vmul.f32 %v2662, %v2886
      %v2919 = vmul.f32 %v2663, %v2887
      %v2920 = vmul.f32 %v2664, %v2888
      %v2921 = vmul.f32 %v2665, %v2889
      %v2922 = vmul.f32 %v2666, %v2890
      %v2923 = vmul.f32 %v2667, %v2891
      %v2924 = vmul.f32 %v2668, %v2892
      %2925 = vst.msk [vmem:[#allocation3] sm:$0xff] %vm2205, 0.0
      %2926 = vst.msk [vmem:[#allocation3 + $0x8] sm:$0xff] %vm2205, 0.0
      %vm2927 = vcmask 517120
      %2928 = vst.msk [vmem:[#allocation3 + $0x10] sm:$0x3] %vm2927, 0.0
      %s2929 = scalar_lea.vmem [#allocation3], 408
      %2930 = vst.msk [vmem:[%s2929] sm:$0xff] %vm2205, 0.0
      %2931 = vst.msk [vmem:[%s2929 + $0x8] sm:$0xff] %vm2205, 0.0
      %2932 = vst.msk [vmem:[%s2929 + $0x10] sm:$0x3] %vm2927, 0.0
      %s2933 = scalar_lea.vmem [#allocation3], 24
      %vm2934 = vcmask 516096
      %2935 = vst.msk [vmem:[%s2933] sm:$0x1] %vm2934, 0.0
      %2936 = vst.msk [vmem:[%s2933 + $0x18] sm:$0x1] %vm2934, 0.0
      %2937 = vst.msk [vmem:[%s2933 + $0x30] sm:$0x1] %vm2934, 0.0
      %2938 = vst.msk [vmem:[%s2933 + $0x48] sm:$0x1] %vm2934, 0.0
      %2939 = vst.msk [vmem:[%s2933 + $0x60] sm:$0x1] %vm2934, 0.0
      %2940 = vst.msk [vmem:[%s2933 + $0x78] sm:$0x1] %vm2934, 0.0
      %2941 = vst.msk [vmem:[%s2933 + $0x90] sm:$0x1] %vm2934, 0.0
      %2942 = vst.msk [vmem:[%s2933 + $0xa8] sm:$0x1] %vm2934, 0.0
      %2943 = vst.msk [vmem:[%s2933 + $0xc0] sm:$0x1] %vm2934, 0.0
      %2944 = vst.msk [vmem:[%s2933 + $0xd8] sm:$0x1] %vm2934, 0.0
      %2945 = vst.msk [vmem:[%s2933 + $0xf0] sm:$0x1] %vm2934, 0.0
      %2946 = vst.msk [vmem:[%s2933 + $0x108] sm:$0x1] %vm2934, 0.0
      %2947 = vst.msk [vmem:[%s2933 + $0x120] sm:$0x1] %vm2934, 0.0
      %2948 = vst.msk [vmem:[%s2933 + $0x138] sm:$0x1] %vm2934, 0.0
      %2949 = vst.msk [vmem:[%s2933 + $0x150] sm:$0x1] %vm2934, 0.0
      %2950 = vst.msk [vmem:[%s2933 + $0x168] sm:$0x1] %vm2934, 0.0
      %2951 = vst.msk [vmem:[%s2933 + $0x11] sm:$0x1] %vm2934, 0.0
      %2952 = vst.msk [vmem:[%s2933 + $0x29] sm:$0x1] %vm2934, 0.0
      %2953 = vst.msk [vmem:[%s2933 + $0x41] sm:$0x1] %vm2934, 0.0
      %2954 = vst.msk [vmem:[%s2933 + $0x59] sm:$0x1] %vm2934, 0.0
      %2955 = vst.msk [vmem:[%s2933 + $0x71] sm:$0x1] %vm2934, 0.0
      %2956 = vst.msk [vmem:[%s2933 + $0x89] sm:$0x1] %vm2934, 0.0
      %2957 = vst.msk [vmem:[%s2933 + $0xa1] sm:$0x1] %vm2934, 0.0
      %2958 = vst.msk [vmem:[%s2933 + $0xb9] sm:$0x1] %vm2934, 0.0
      %2959 = vst.msk [vmem:[%s2933 + $0xd1] sm:$0x1] %vm2934, 0.0
      %2960 = vst.msk [vmem:[%s2933 + $0xe9] sm:$0x1] %vm2934, 0.0
      %2961 = vst.msk [vmem:[%s2933 + $0x101] sm:$0x1] %vm2934, 0.0
      %2962 = vst.msk [vmem:[%s2933 + $0x119] sm:$0x1] %vm2934, 0.0
      %2963 = vst.msk [vmem:[%s2933 + $0x131] sm:$0x1] %vm2934, 0.0
      %2964 = vst.msk [vmem:[%s2933 + $0x149] sm:$0x1] %vm2934, 0.0
      %2965 = vst.msk [vmem:[%s2933 + $0x161] sm:$0x1] %vm2934, 0.0
      %2966 = vst.msk [vmem:[%s2933 + $0x179] sm:$0x1] %vm2934, 0.0
      %2967 = vst.msk [vmem:[%s2933 + $0x1] sm:$0xff] %vm2205, %v2893
      %2968 = vst.msk [vmem:[%s2933 + $0x9] sm:$0xff] %vm2205, %v2894
      %2969 = vst.msk [vmem:[%s2933 + $0x19] sm:$0xff] %vm2205, %v2895
      %2970 = vst.msk [vmem:[%s2933 + $0x21] sm:$0xff] %vm2205, %v2896
      %2971 = vst.msk [vmem:[%s2933 + $0x31] sm:$0xff] %vm2205, %v2897
      %2972 = vst.msk [vmem:[%s2933 + $0x39] sm:$0xff] %vm2205, %v2898
      %2973 = vst.msk [vmem:[%s2933 + $0x49] sm:$0xff] %vm2205, %v2899
      %2974 = vst.msk [vmem:[%s2933 + $0x51] sm:$0xff] %vm2205, %v2900
      %2975 = vst.msk [vmem:[%s2933 + $0x61] sm:$0xff] %vm2205, %v2901
      %2976 = vst.msk [vmem:[%s2933 + $0x69] sm:$0xff] %vm2205, %v2902
      %2977 = vst.msk [vmem:[%s2933 + $0x79] sm:$0xff] %vm2205, %v2903
      %2978 = vst.msk [vmem:[%s2933 + $0x81] sm:$0xff] %vm2205, %v2904
      %2979 = vst.msk [vmem:[%s2933 + $0x91] sm:$0xff] %vm2205, %v2905
      %2980 = vst.msk [vmem:[%s2933 + $0x99] sm:$0xff] %vm2205, %v2906
      %2981 = vst.msk [vmem:[%s2933 + $0xa9] sm:$0xff] %vm2205, %v2907
      %2982 = vst.msk [vmem:[%s2933 + $0xb1] sm:$0xff] %vm2205, %v2908
      %2983 = vst.msk [vmem:[%s2933 + $0xc1] sm:$0xff] %vm2205, %v2909
      %2984 = vst.msk [vmem:[%s2933 + $0xc9] sm:$0xff] %vm2205, %v2910
      %2985 = vst.msk [vmem:[%s2933 + $0xd9] sm:$0xff] %vm2205, %v2911
      %2986 = vst.msk [vmem:[%s2933 + $0xe1] sm:$0xff] %vm2205, %v2912
      %2987 = vst.msk [vmem:[%s2933 + $0xf1] sm:$0xff] %vm2205, %v2913
      %2988 = vst.msk [vmem:[%s2933 + $0xf9] sm:$0xff] %vm2205, %v2914
      %2989 = vst.msk [vmem:[%s2933 + $0x109] sm:$0xff] %vm2205, %v2915
      %2990 = vst.msk [vmem:[%s2933 + $0x111] sm:$0xff] %vm2205, %v2916
      %2991 = vst.msk [vmem:[%s2933 + $0x121] sm:$0xff] %vm2205, %v2917
      %2992 = vst.msk [vmem:[%s2933 + $0x129] sm:$0xff] %vm2205, %v2918
      %2993 = vst.msk [vmem:[%s2933 + $0x139] sm:$0xff] %vm2205, %v2919
      %2994 = vst.msk [vmem:[%s2933 + $0x141] sm:$0xff] %vm2205, %v2920
      %2995 = vst.msk [vmem:[%s2933 + $0x151] sm:$0xff] %vm2205, %v2921
      %2996 = vst.msk [vmem:[%s2933 + $0x159] sm:$0xff] %vm2205, %v2922
      %2997 = vst.msk [vmem:[%s2933 + $0x169] sm:$0xff] %vm2205, %v2923
      %2998 = vst.msk [vmem:[%s2933 + $0x171] sm:$0xff] %vm2205, %v2924
      %v2999 = vld [vmem:[#allocation3] sm:$0xff]
      %v3000 = vld [vmem:[#allocation3 + $0x8] sm:$0xff]
      %v3001 = vld [vmem:[#allocation3 + $0x18] sm:$0xff]
      %v3002 = vld [vmem:[#allocation3 + $0x20] sm:$0xff]
      %v3003 = vld [vmem:[#allocation3 + $0x30] sm:$0xff]
      %v3004 = vld [vmem:[#allocation3 + $0x38] sm:$0xff]
      %v3005 = vld [vmem:[#allocation3 + $0x48] sm:$0xff]
      %v3006 = vld [vmem:[#allocation3 + $0x50] sm:$0xff]
      %v3007 = vld [vmem:[#allocation3 + $0x60] sm:$0xff]
      %v3008 = vld [vmem:[#allocation3 + $0x68] sm:$0xff]
      %v3009 = vld [vmem:[#allocation3 + $0x78] sm:$0xff]
      %v3010 = vld [vmem:[#allocation3 + $0x80] sm:$0xff]
      %v3011 = vld [vmem:[#allocation3 + $0x90] sm:$0xff]
      %v3012 = vld [vmem:[#allocation3 + $0x98] sm:$0xff]
      %v3013 = vld [vmem:[#allocation3 + $0xa8] sm:$0xff]
      %v3014 = vld [vmem:[#allocation3 + $0xb0] sm:$0xff]
      %v3015 = vld [vmem:[#allocation3 + $0xc0] sm:$0xff]
      %v3016 = vld [vmem:[#allocation3 + $0xc8] sm:$0xff]
      %v3017 = vld [vmem:[#allocation3 + $0xd8] sm:$0xff]
      %v3018 = vld [vmem:[#allocation3 + $0xe0] sm:$0xff]
      %v3019 = vld [vmem:[#allocation3 + $0xf0] sm:$0xff]
      %v3020 = vld [vmem:[#allocation3 + $0xf8] sm:$0xff]
      %v3021 = vld [vmem:[#allocation3 + $0x108] sm:$0xff]
      %v3022 = vld [vmem:[#allocation3 + $0x110] sm:$0xff]
      %v3023 = vld [vmem:[#allocation3 + $0x120] sm:$0xff]
      %v3024 = vld [vmem:[#allocation3 + $0x128] sm:$0xff]
      %v3025 = vld [vmem:[#allocation3 + $0x138] sm:$0xff]
      %v3026 = vld [vmem:[#allocation3 + $0x140] sm:$0xff]
      %v3027 = vld [vmem:[#allocation3 + $0x150] sm:$0xff]
      %v3028 = vld [vmem:[#allocation3 + $0x158] sm:$0xff]
      %v3029 = vld [vmem:[#allocation3 + $0x168] sm:$0xff]
      %v3030 = vld [vmem:[#allocation3 + $0x170] sm:$0xff]
      %v3031 = vpack.c.bf16 %v3000, %v2999
      %v3032 = vpack.c.bf16 %v3002, %v3001
      %v3033 = vpack.c.bf16 %v3004, %v3003
      %v3034 = vpack.c.bf16 %v3006, %v3005
      %v3035 = vpack.c.bf16 %v3008, %v3007
      %v3036 = vpack.c.bf16 %v3010, %v3009
      %v3037 = vpack.c.bf16 %v3012, %v3011
      %v3038 = vpack.c.bf16 %v3014, %v3013
      %v3039 = vpack.c.bf16 %v3016, %v3015
      %v3040 = vpack.c.bf16 %v3018, %v3017
      %v3041 = vpack.c.bf16 %v3020, %v3019
      %v3042 = vpack.c.bf16 %v3022, %v3021
      %v3043 = vpack.c.bf16 %v3024, %v3023
      %v3044 = vpack.c.bf16 %v3026, %v3025
      %v3045 = vpack.c.bf16 %v3028, %v3027
      %v3046 = vpack.c.bf16 %v3030, %v3029
      %v3047 = vld [vmem:[%s2] sm:$0xf]
      %v3048 = vld [vmem:[%s2 + $0x4] sm:$0xf]
      %v3049 = vld [vmem:[%s2 + $0x8] sm:$0xf]
      %v3050 = vld [vmem:[%s2 + $0xc] sm:$0xf]
      %v3051 = vld [vmem:[%s2 + $0x10] sm:$0xf]
      %v3052 = vld [vmem:[%s2 + $0x14] sm:$0xf]
      %v3053 = vld [vmem:[%s2 + $0x18] sm:$0xf]
      %v3054 = vld [vmem:[%s2 + $0x1c] sm:$0xf]
      %v3055 = vld [vmem:[#allocation3 + $0x1] sm:$0xff]
      %v3056 = vld [vmem:[#allocation3 + $0x9] sm:$0xff]
      %v3057 = vld [vmem:[#allocation3 + $0x19] sm:$0xff]
      %v3058 = vld [vmem:[#allocation3 + $0x21] sm:$0xff]
      %v3059 = vld [vmem:[#allocation3 + $0x31] sm:$0xff]
      %v3060 = vld [vmem:[#allocation3 + $0x39] sm:$0xff]
      %v3061 = vld [vmem:[#allocation3 + $0x49] sm:$0xff]
      %v3062 = vld [vmem:[#allocation3 + $0x51] sm:$0xff]
      %v3063 = vld [vmem:[#allocation3 + $0x61] sm:$0xff]
      %v3064 = vld [vmem:[#allocation3 + $0x69] sm:$0xff]
      %v3065 = vld [vmem:[#allocation3 + $0x79] sm:$0xff]
      %v3066 = vld [vmem:[#allocation3 + $0x81] sm:$0xff]
      %v3067 = vld [vmem:[#allocation3 + $0x91] sm:$0xff]
      %v3068 = vld [vmem:[#allocation3 + $0x99] sm:$0xff]
      %v3069 = vld [vmem:[#allocation3 + $0xa9] sm:$0xff]
      %v3070 = vld [vmem:[#allocation3 + $0xb1] sm:$0xff]
      %v3071 = vld [vmem:[#allocation3 + $0xc1] sm:$0xff]
      %v3072 = vld [vmem:[#allocation3 + $0xc9] sm:$0xff]
      %v3073 = vld [vmem:[#allocation3 + $0xd9] sm:$0xff]
      %v3074 = vld [vmem:[#allocation3 + $0xe1] sm:$0xff]
      %v3075 = vld [vmem:[#allocation3 + $0xf1] sm:$0xff]
      %v3076 = vld [vmem:[#allocation3 + $0xf9] sm:$0xff]
      %v3077 = vld [vmem:[#allocation3 + $0x109] sm:$0xff]
      %v3078 = vld [vmem:[#allocation3 + $0x111] sm:$0xff]
      %v3079 = vld [vmem:[#allocation3 + $0x121] sm:$0xff]
      %v3080 = vld [vmem:[#allocation3 + $0x129] sm:$0xff]
      %v3081 = vld [vmem:[#allocation3 + $0x139] sm:$0xff]
      %v3082 = vld [vmem:[#allocation3 + $0x141] sm:$0xff]
      %v3083 = vld [vmem:[#allocation3 + $0x151] sm:$0xff]
      %v3084 = vld [vmem:[#allocation3 + $0x159] sm:$0xff]
      %v3085 = vld [vmem:[#allocation3 + $0x169] sm:$0xff]
      %v3086 = vld [vmem:[#allocation3 + $0x171] sm:$0xff]
      %v3087 = vpack.c.bf16 %v3056, %v3055
      %v3088 = vpack.c.bf16 %v3058, %v3057
      %v3089 = vpack.c.bf16 %v3060, %v3059
      %v3090 = vpack.c.bf16 %v3062, %v3061
      %v3091 = vpack.c.bf16 %v3064, %v3063
      %v3092 = vpack.c.bf16 %v3066, %v3065
      %v3093 = vpack.c.bf16 %v3068, %v3067
      %v3094 = vpack.c.bf16 %v3070, %v3069
      %v3095 = vpack.c.bf16 %v3072, %v3071
      %v3096 = vpack.c.bf16 %v3074, %v3073
      %v3097 = vpack.c.bf16 %v3076, %v3075
      %v3098 = vpack.c.bf16 %v3078, %v3077
      %v3099 = vpack.c.bf16 %v3080, %v3079
      %v3100 = vpack.c.bf16 %v3082, %v3081
      %v3101 = vpack.c.bf16 %v3084, %v3083
      %v3102 = vpack.c.bf16 %v3086, %v3085
      %s3103 = scalar_lea.vmem %s2, 32
      %v3104 = vld [vmem:[%s3103] sm:$0xf]
      %v3105 = vld [vmem:[%s3103 + $0x4] sm:$0xf]
      %v3106 = vld [vmem:[%s3103 + $0x8] sm:$0xf]
      %v3107 = vld [vmem:[%s3103 + $0xc] sm:$0xf]
      %v3108 = vld [vmem:[%s3103 + $0x10] sm:$0xf]
      %v3109 = vld [vmem:[%s3103 + $0x14] sm:$0xf]
      %v3110 = vld [vmem:[%s3103 + $0x18] sm:$0xf]
      %v3111 = vld [vmem:[%s3103 + $0x1c] sm:$0xf]
      %v3120 = vunpack.c.l.b16 %v3104
      %v3121 = vunpack.c.l.b16 %v3105
      %v3122 = vunpack.c.l.b16 %v3106
      %v3123 = vunpack.c.l.b16 %v3107
      %v3124 = vunpack.c.l.b16 %v3108
      %v3125 = vunpack.c.l.b16 %v3109
      %v3126 = vunpack.c.l.b16 %v3110
      %v3127 = vunpack.c.l.b16 %v3111
      %v3128 = vpack.c.b16 %v3121, %v3120
      %v3129 = vpack.c.b16 %v3123, %v3122
      %v3130 = vpack.c.b16 %v3125, %v3124
      %v3131 = vpack.c.b16 %v3127, %v3126
      %v3137 = vsel %vm2205, %v3087, 0
      %v3140 = vsel %vm2205, %v3088, 0
      %v3143 = vsel %vm2205, %v3089, 0
      %v3146 = vsel %vm2205, %v3090, 0
      %v3149 = vsel %vm2205, %v3091, 0
      %v3152 = vsel %vm2205, %v3092, 0
      %v3155 = vsel %vm2205, %v3093, 0
      %v3158 = vsel %vm2205, %v3094, 0
      %v3161 = vsel %vm2205, %v3095, 0
      %v3164 = vsel %vm2205, %v3096, 0
      %v3167 = vsel %vm2205, %v3097, 0
      %v3170 = vsel %vm2205, %v3098, 0
      %v3173 = vsel %vm2205, %v3099, 0
      %v3176 = vsel %vm2205, %v3100, 0
      %v3179 = vsel %vm2205, %v3101, 0
      %v3182 = vsel %vm2205, %v3102, 0
      %3184 = vmatprep.subr.bf16.mxu0 0
      %3185 = vmatpush1.bf16.msra.mxu0 0
      %3186 = vmatprep.subr.bf16.mxu0 0
      %3187 = vmatpush1.bf16.msra.mxu0 0
      %3188 = vmatprep.subr.bf16.mxu0 0
      %3189 = vmatpush1.bf16.msra.mxu0 0
      %3190 = vmatprep.subr.bf16.mxu0 0
      %3191 = vmatpush1.bf16.msra.mxu0 0
      %3192 = vmatprep.subr.bf16.mxu0 0
      %3193 = vmatpush1.bf16.msra.mxu0 %v3131
      %3194 = vmatprep.subr.bf16.mxu0 0
      %3195 = vmatpush1.bf16.msra.mxu0 %v3130
      %3196 = vmatprep.subr.bf16.mxu0 0
      %3197 = vmatpush1.bf16.msra.mxu0 %v3129
      %3198 = vmatprep.subr.bf16.mxu0 0
      %3199 = vmatpush1.bf16.msra.mxu0 %v3128
      %3200 = vmatprep.subr.bf16.mxu0 0
      %3201 = vmatpush2.bf16.msra.mxu0 0
      %3202 = vmatprep.subr.bf16.mxu0 0
      %3203 = vmatpush2.bf16.msra.mxu0 0
      %3204 = vmatprep.subr.bf16.mxu0 0
      %3205 = vmatpush2.bf16.msra.mxu0 0
      %3206 = vmatprep.subr.bf16.mxu0 0
      %3207 = vmatpush2.bf16.msra.mxu0 0
      %3208 = vmatprep.subr.bf16.mxu0 0
      %3209 = vmatpush2.bf16.msra.mxu0 0
      %3210 = vmatprep.subr.bf16.mxu0 0
      %3211 = vmatpush2.bf16.msra.mxu0 0
      %3212 = vmatprep.subr.bf16.mxu0 0
      %3213 = vmatpush2.bf16.msra.mxu0 0
      %3214 = vmatprep.subr.bf16.mxu0 0
      %3215 = vmatpush2.bf16.msra.mxu0 0
      %3216 = vmatprep.mubr.bf16.mxu0 0
      %3217 = vmatmul.mubr.bf16.gmra.mxu0 %v3137
      %v3218 = vpop.f32.mrf.mxu0
      %v3219 = vadd.f32 0.0, %v3218
      %v3220 = vpop.f32.mrf.mxu0
      %v3221 = vpop.f32.mrf.mxu0
      %v3222 = vadd.f32 0.0, %v3221
      %v3223 = vpop.f32.mrf.mxu0
      %3224 = vmatprep.mubr.bf16.mxu0 0
      %3225 = vmatmul.mubr.bf16.gmra.mxu0 %v3140
      %v3226 = vpop.f32.mrf.mxu0
      %v3227 = vadd.f32 0.0, %v3226
      %v3228 = vpop.f32.mrf.mxu0
      %v3229 = vpop.f32.mrf.mxu0
      %v3230 = vadd.f32 0.0, %v3229
      %v3231 = vpop.f32.mrf.mxu0
      %3232 = vmatprep.mubr.bf16.mxu0 0
      %3233 = vmatmul.mubr.bf16.gmra.mxu0 %v3143
      %v3234 = vpop.f32.mrf.mxu0
      %v3235 = vadd.f32 0.0, %v3234
      %v3236 = vpop.f32.mrf.mxu0
      %v3237 = vpop.f32.mrf.mxu0
      %v3238 = vadd.f32 0.0, %v3237
      %v3239 = vpop.f32.mrf.mxu0
      %3240 = vmatprep.mubr.bf16.mxu0 0
      %3241 = vmatmul.mubr.bf16.gmra.mxu0 %v3146
      %v3242 = vpop.f32.mrf.mxu0
      %v3243 = vadd.f32 0.0, %v3242
      %v3244 = vpop.f32.mrf.mxu0
      %v3245 = vpop.f32.mrf.mxu0
      %v3246 = vadd.f32 0.0, %v3245
      %v3247 = vpop.f32.mrf.mxu0
      %3248 = vmatprep.mubr.bf16.mxu0 0
      %3249 = vmatmul.mubr.bf16.gmra.mxu0 %v3149
      %v3250 = vpop.f32.mrf.mxu0
      %v3251 = vadd.f32 0.0, %v3250
      %v3252 = vpop.f32.mrf.mxu0
      %v3253 = vpop.f32.mrf.mxu0
      %v3254 = vadd.f32 0.0, %v3253
      %v3255 = vpop.f32.mrf.mxu0
      %3256 = vmatprep.mubr.bf16.mxu0 0
      %3257 = vmatmul.mubr.bf16.gmra.mxu0 %v3152
      %v3258 = vpop.f32.mrf.mxu0
      %v3259 = vadd.f32 0.0, %v3258
      %v3260 = vpop.f32.mrf.mxu0
      %v3261 = vpop.f32.mrf.mxu0
      %v3262 = vadd.f32 0.0, %v3261
      %v3263 = vpop.f32.mrf.mxu0
      %3264 = vmatprep.mubr.bf16.mxu0 0
      %3265 = vmatmul.mubr.bf16.gmra.mxu0 %v3155
      %v3266 = vpop.f32.mrf.mxu0
      %v3267 = vadd.f32 0.0, %v3266
      %v3268 = vpop.f32.mrf.mxu0
      %v3269 = vpop.f32.mrf.mxu0
      %v3270 = vadd.f32 0.0, %v3269
      %v3271 = vpop.f32.mrf.mxu0
      %3272 = vmatprep.mubr.bf16.mxu0 0
      %3273 = vmatmul.mubr.bf16.gmra.mxu0 %v3158
      %v3274 = vpop.f32.mrf.mxu0
      %v3275 = vadd.f32 0.0, %v3274
      %v3276 = vpop.f32.mrf.mxu0
      %v3277 = vpop.f32.mrf.mxu0
      %v3278 = vadd.f32 0.0, %v3277
      %v3279 = vpop.f32.mrf.mxu0
      %3280 = vmatprep.mubr.bf16.mxu0 0
      %3281 = vmatmul.mubr.bf16.gmra.mxu0 %v3161
      %v3282 = vpop.f32.mrf.mxu0
      %v3283 = vadd.f32 0.0, %v3282
      %v3284 = vpop.f32.mrf.mxu0
      %v3285 = vpop.f32.mrf.mxu0
      %v3286 = vadd.f32 0.0, %v3285
      %v3287 = vpop.f32.mrf.mxu0
      %3288 = vmatprep.mubr.bf16.mxu0 0
      %3289 = vmatmul.mubr.bf16.gmra.mxu0 %v3164
      %v3290 = vpop.f32.mrf.mxu0
      %v3291 = vadd.f32 0.0, %v3290
      %v3292 = vpop.f32.mrf.mxu0
      %v3293 = vpop.f32.mrf.mxu0
      %v3294 = vadd.f32 0.0, %v3293
      %v3295 = vpop.f32.mrf.mxu0
      %3296 = vmatprep.mubr.bf16.mxu0 0
      %3297 = vmatmul.mubr.bf16.gmra.mxu0 %v3167
      %v3298 = vpop.f32.mrf.mxu0
      %v3299 = vadd.f32 0.0, %v3298
      %v3300 = vpop.f32.mrf.mxu0
      %v3301 = vpop.f32.mrf.mxu0
      %v3302 = vadd.f32 0.0, %v3301
      %v3303 = vpop.f32.mrf.mxu0
      %3304 = vmatprep.mubr.bf16.mxu0 0
      %3305 = vmatmul.mubr.bf16.gmra.mxu0 %v3170
      %v3306 = vpop.f32.mrf.mxu0
      %v3307 = vadd.f32 0.0, %v3306
      %v3308 = vpop.f32.mrf.mxu0
      %v3309 = vpop.f32.mrf.mxu0
      %v3310 = vadd.f32 0.0, %v3309
      %v3311 = vpop.f32.mrf.mxu0
      %3312 = vmatprep.mubr.bf16.mxu0 0
      %3313 = vmatmul.mubr.bf16.gmra.mxu0 %v3173
      %v3314 = vpop.f32.mrf.mxu0
      %v3315 = vadd.f32 0.0, %v3314
      %v3316 = vpop.f32.mrf.mxu0
      %v3317 = vpop.f32.mrf.mxu0
      %v3318 = vadd.f32 0.0, %v3317
      %v3319 = vpop.f32.mrf.mxu0
      %3320 = vmatprep.mubr.bf16.mxu0 0
      %3321 = vmatmul.mubr.bf16.gmra.mxu0 %v3176
      %v3322 = vpop.f32.mrf.mxu0
      %v3323 = vadd.f32 0.0, %v3322
      %v3324 = vpop.f32.mrf.mxu0
      %v3325 = vpop.f32.mrf.mxu0
      %v3326 = vadd.f32 0.0, %v3325
      %v3327 = vpop.f32.mrf.mxu0
      %3328 = vmatprep.mubr.bf16.mxu0 0
      %3329 = vmatmul.mubr.bf16.gmra.mxu0 %v3179
      %v3330 = vpop.f32.mrf.mxu0
      %v3331 = vadd.f32 0.0, %v3330
      %v3332 = vpop.f32.mrf.mxu0
      %v3333 = vpop.f32.mrf.mxu0
      %v3334 = vadd.f32 0.0, %v3333
      %v3335 = vpop.f32.mrf.mxu0
      %3336 = vmatprep.mubr.bf16.mxu0 0
      %3337 = vmatmul.mubr.bf16.gmra.mxu0 %v3182
      %v3338 = vpop.f32.mrf.mxu0
      %v3339 = vadd.f32 0.0, %v3338
      %v3340 = vpop.f32.mrf.mxu0
      %v3341 = vpop.f32.mrf.mxu0
      %v3342 = vadd.f32 0.0, %v3341
      %v3343 = vpop.f32.mrf.mxu0
      %3344 = vdwg.mxu0
      %v3353 = vunpack.c.l.b16 %v3047
      %v3354 = vunpack.c.l.b16 %v3048
      %v3355 = vunpack.c.l.b16 %v3049
      %v3356 = vunpack.c.l.b16 %v3050
      %v3357 = vunpack.c.l.b16 %v3051
      %v3358 = vunpack.c.l.b16 %v3052
      %v3359 = vunpack.c.l.b16 %v3053
      %v3360 = vunpack.c.l.b16 %v3054
      %v3361 = vpack.c.b16 %v3354, %v3353
      %v3362 = vpack.c.b16 %v3356, %v3355
      %v3363 = vpack.c.b16 %v3358, %v3357
      %v3364 = vpack.c.b16 %v3360, %v3359
      %v3370 = vsel %vm2205, %v3031, 0
      %v3373 = vsel %vm2205, %v3032, 0
      %v3376 = vsel %vm2205, %v3033, 0
      %v3379 = vsel %vm2205, %v3034, 0
      %v3382 = vsel %vm2205, %v3035, 0
      %v3385 = vsel %vm2205, %v3036, 0
      %v3388 = vsel %vm2205, %v3037, 0
      %v3391 = vsel %vm2205, %v3038, 0
      %v3394 = vsel %vm2205, %v3039, 0
      %v3397 = vsel %vm2205, %v3040, 0
      %v3400 = vsel %vm2205, %v3041, 0
      %v3403 = vsel %vm2205, %v3042, 0
      %v3406 = vsel %vm2205, %v3043, 0
      %v3409 = vsel %vm2205, %v3044, 0
      %v3412 = vsel %vm2205, %v3045, 0
      %v3415 = vsel %vm2205, %v3046, 0
      %3417 = vmatprep.subr.bf16.mxu0 0
      %3418 = vmatpush1.bf16.msra.mxu0 0
      %3419 = vmatprep.subr.bf16.mxu0 0
      %3420 = vmatpush1.bf16.msra.mxu0 0
      %3421 = vmatprep.subr.bf16.mxu0 0
      %3422 = vmatpush1.bf16.msra.mxu0 0
      %3423 = vmatprep.subr.bf16.mxu0 0
      %3424 = vmatpush1.bf16.msra.mxu0 0
      %3425 = vmatprep.subr.bf16.mxu0 0
      %3426 = vmatpush1.bf16.msra.mxu0 %v3364
      %3427 = vmatprep.subr.bf16.mxu0 0
      %3428 = vmatpush1.bf16.msra.mxu0 %v3363
      %3429 = vmatprep.subr.bf16.mxu0 0
      %3430 = vmatpush1.bf16.msra.mxu0 %v3362
      %3431 = vmatprep.subr.bf16.mxu0 0
      %3432 = vmatpush1.bf16.msra.mxu0 %v3361
      %3433 = vmatprep.subr.bf16.mxu0 0
      %3434 = vmatpush2.bf16.msra.mxu0 0
      %3435 = vmatprep.subr.bf16.mxu0 0
      %3436 = vmatpush2.bf16.msra.mxu0 0
      %3437 = vmatprep.subr.bf16.mxu0 0
      %3438 = vmatpush2.bf16.msra.mxu0 0
      %3439 = vmatprep.subr.bf16.mxu0 0
      %3440 = vmatpush2.bf16.msra.mxu0 0
      %3441 = vmatprep.subr.bf16.mxu0 0
      %3442 = vmatpush2.bf16.msra.mxu0 0
      %3443 = vmatprep.subr.bf16.mxu0 0
      %3444 = vmatpush2.bf16.msra.mxu0 0
      %3445 = vmatprep.subr.bf16.mxu0 0
      %3446 = vmatpush2.bf16.msra.mxu0 0
      %3447 = vmatprep.subr.bf16.mxu0 0
      %3448 = vmatpush2.bf16.msra.mxu0 0
      %3449 = vmatprep.mubr.bf16.mxu0 0
      %3450 = vmatmul.mubr.bf16.gmra.mxu0 %v3370
      %v3451 = vpop.f32.mrf.mxu0
      %v3452 = vadd.f32 %v3219, %v3451
      %v3453 = vpop.f32.mrf.mxu0
      %v3454 = vpop.f32.mrf.mxu0
      %v3455 = vadd.f32 %v3222, %v3454
      %v3456 = vpop.f32.mrf.mxu0
      %3457 = vmatprep.mubr.bf16.mxu0 0
      %3458 = vmatmul.mubr.bf16.gmra.mxu0 %v3373
      %v3459 = vpop.f32.mrf.mxu0
      %v3460 = vadd.f32 %v3227, %v3459
      %v3461 = vpop.f32.mrf.mxu0
      %v3462 = vpop.f32.mrf.mxu0
      %v3463 = vadd.f32 %v3230, %v3462
      %v3464 = vpop.f32.mrf.mxu0
      %3465 = vmatprep.mubr.bf16.mxu0 0
      %3466 = vmatmul.mubr.bf16.gmra.mxu0 %v3376
      %v3467 = vpop.f32.mrf.mxu0
      %v3468 = vadd.f32 %v3235, %v3467
      %v3469 = vpop.f32.mrf.mxu0
      %v3470 = vpop.f32.mrf.mxu0
      %v3471 = vadd.f32 %v3238, %v3470
      %v3472 = vpop.f32.mrf.mxu0
      %3473 = vmatprep.mubr.bf16.mxu0 0
      %3474 = vmatmul.mubr.bf16.gmra.mxu0 %v3379
      %v3475 = vpop.f32.mrf.mxu0
      %v3476 = vadd.f32 %v3243, %v3475
      %v3477 = vpop.f32.mrf.mxu0
      %v3478 = vpop.f32.mrf.mxu0
      %v3479 = vadd.f32 %v3246, %v3478
      %v3480 = vpop.f32.mrf.mxu0
      %3481 = vmatprep.mubr.bf16.mxu0 0
      %3482 = vmatmul.mubr.bf16.gmra.mxu0 %v3382
      %v3483 = vpop.f32.mrf.mxu0
      %v3484 = vadd.f32 %v3251, %v3483
      %v3485 = vpop.f32.mrf.mxu0
      %v3486 = vpop.f32.mrf.mxu0
      %v3487 = vadd.f32 %v3254, %v3486
      %v3488 = vpop.f32.mrf.mxu0
      %3489 = vmatprep.mubr.bf16.mxu0 0
      %3490 = vmatmul.mubr.bf16.gmra.mxu0 %v3385
      %v3491 = vpop.f32.mrf.mxu0
      %v3492 = vadd.f32 %v3259, %v3491
      %v3493 = vpop.f32.mrf.mxu0
      %v3494 = vpop.f32.mrf.mxu0
      %v3495 = vadd.f32 %v3262, %v3494
      %v3496 = vpop.f32.mrf.mxu0
      %3497 = vmatprep.mubr.bf16.mxu0 0
      %3498 = vmatmul.mubr.bf16.gmra.mxu0 %v3388
      %v3499 = vpop.f32.mrf.mxu0
      %v3500 = vadd.f32 %v3267, %v3499
      %v3501 = vpop.f32.mrf.mxu0
      %v3502 = vpop.f32.mrf.mxu0
      %v3503 = vadd.f32 %v3270, %v3502
      %v3504 = vpop.f32.mrf.mxu0
      %3505 = vmatprep.mubr.bf16.mxu0 0
      %3506 = vmatmul.mubr.bf16.gmra.mxu0 %v3391
      %v3507 = vpop.f32.mrf.mxu0
      %v3508 = vadd.f32 %v3275, %v3507
      %v3509 = vpop.f32.mrf.mxu0
      %v3510 = vpop.f32.mrf.mxu0
      %v3511 = vadd.f32 %v3278, %v3510
      %v3512 = vpop.f32.mrf.mxu0
      %3513 = vmatprep.mubr.bf16.mxu0 0
      %3514 = vmatmul.mubr.bf16.gmra.mxu0 %v3394
      %v3515 = vpop.f32.mrf.mxu0
      %v3516 = vadd.f32 %v3283, %v3515
      %v3517 = vpop.f32.mrf.mxu0
      %v3518 = vpop.f32.mrf.mxu0
      %v3519 = vadd.f32 %v3286, %v3518
      %v3520 = vpop.f32.mrf.mxu0
      %3521 = vmatprep.mubr.bf16.mxu0 0
      %3522 = vmatmul.mubr.bf16.gmra.mxu0 %v3397
      %v3523 = vpop.f32.mrf.mxu0
      %v3524 = vadd.f32 %v3291, %v3523
      %v3525 = vpop.f32.mrf.mxu0
      %v3526 = vpop.f32.mrf.mxu0
      %v3527 = vadd.f32 %v3294, %v3526
      %v3528 = vpop.f32.mrf.mxu0
      %3529 = vmatprep.mubr.bf16.mxu0 0
      %3530 = vmatmul.mubr.bf16.gmra.mxu0 %v3400
      %v3531 = vpop.f32.mrf.mxu0
      %v3532 = vadd.f32 %v3299, %v3531
      %v3533 = vpop.f32.mrf.mxu0
      %v3534 = vpop.f32.mrf.mxu0
      %v3535 = vadd.f32 %v3302, %v3534
      %v3536 = vpop.f32.mrf.mxu0
      %3537 = vmatprep.mubr.bf16.mxu0 0
      %3538 = vmatmul.mubr.bf16.gmra.mxu0 %v3403
      %v3539 = vpop.f32.mrf.mxu0
      %v3540 = vadd.f32 %v3307, %v3539
      %v3541 = vpop.f32.mrf.mxu0
      %v3542 = vpop.f32.mrf.mxu0
      %v3543 = vadd.f32 %v3310, %v3542
      %v3544 = vpop.f32.mrf.mxu0
      %3545 = vmatprep.mubr.bf16.mxu0 0
      %3546 = vmatmul.mubr.bf16.gmra.mxu0 %v3406
      %v3547 = vpop.f32.mrf.mxu0
      %v3548 = vadd.f32 %v3315, %v3547
      %v3549 = vpop.f32.mrf.mxu0
      %v3550 = vpop.f32.mrf.mxu0
      %v3551 = vadd.f32 %v3318, %v3550
      %v3552 = vpop.f32.mrf.mxu0
      %3553 = vmatprep.mubr.bf16.mxu0 0
      %3554 = vmatmul.mubr.bf16.gmra.mxu0 %v3409
      %v3555 = vpop.f32.mrf.mxu0
      %v3556 = vadd.f32 %v3323, %v3555
      %v3557 = vpop.f32.mrf.mxu0
      %v3558 = vpop.f32.mrf.mxu0
      %v3559 = vadd.f32 %v3326, %v3558
      %v3560 = vpop.f32.mrf.mxu0
      %3561 = vmatprep.mubr.bf16.mxu0 0
      %3562 = vmatmul.mubr.bf16.gmra.mxu0 %v3412
      %v3563 = vpop.f32.mrf.mxu0
      %v3564 = vadd.f32 %v3331, %v3563
      %v3565 = vpop.f32.mrf.mxu0
      %v3566 = vpop.f32.mrf.mxu0
      %v3567 = vadd.f32 %v3334, %v3566
      %v3568 = vpop.f32.mrf.mxu0
      %3569 = vmatprep.mubr.bf16.mxu0 0
      %3570 = vmatmul.mubr.bf16.gmra.mxu0 %v3415
      %v3571 = vpop.f32.mrf.mxu0
      %v3572 = vadd.f32 %v3339, %v3571
      %v3573 = vpop.f32.mrf.mxu0
      %v3574 = vpop.f32.mrf.mxu0
      %v3575 = vadd.f32 %v3342, %v3574
      %v3576 = vpop.f32.mrf.mxu0
      %3577 = vdwg.mxu0
      %v3578 = vld [vmem:[#allocation3 + $0x2] sm:$0xff]
      %v3579 = vld [vmem:[#allocation3 + $0xa] sm:$0xff]
      %v3580 = vld [vmem:[#allocation3 + $0x1a] sm:$0xff]
      %v3581 = vld [vmem:[#allocation3 + $0x22] sm:$0xff]
      %v3582 = vld [vmem:[#allocation3 + $0x32] sm:$0xff]
      %v3583 = vld [vmem:[#allocation3 + $0x3a] sm:$0xff]
      %v3584 = vld [vmem:[#allocation3 + $0x4a] sm:$0xff]
      %v3585 = vld [vmem:[#allocation3 + $0x52] sm:$0xff]
      %v3586 = vld [vmem:[#allocation3 + $0x62] sm:$0xff]
      %v3587 = vld [vmem:[#allocation3 + $0x6a] sm:$0xff]
      %v3588 = vld [vmem:[#allocation3 + $0x7a] sm:$0xff]
      %v3589 = vld [vmem:[#allocation3 + $0x82] sm:$0xff]
      %v3590 = vld [vmem:[#allocation3 + $0x92] sm:$0xff]
      %v3591 = vld [vmem:[#allocation3 + $0x9a] sm:$0xff]
      %v3592 = vld [vmem:[#allocation3 + $0xaa] sm:$0xff]
      %v3593 = vld [vmem:[#allocation3 + $0xb2] sm:$0xff]
      %v3594 = vld [vmem:[#allocation3 + $0xc2] sm:$0xff]
      %v3595 = vld [vmem:[#allocation3 + $0xca] sm:$0xff]
      %v3596 = vld [vmem:[#allocation3 + $0xda] sm:$0xff]
      %v3597 = vld [vmem:[#allocation3 + $0xe2] sm:$0xff]
      %v3598 = vld [vmem:[#allocation3 + $0xf2] sm:$0xff]
      %v3599 = vld [vmem:[#allocation3 + $0xfa] sm:$0xff]
      %v3600 = vld [vmem:[#allocation3 + $0x10a] sm:$0xff]
      %v3601 = vld [vmem:[#allocation3 + $0x112] sm:$0xff]
      %v3602 = vld [vmem:[#allocation3 + $0x122] sm:$0xff]
      %v3603 = vld [vmem:[#allocation3 + $0x12a] sm:$0xff]
      %v3604 = vld [vmem:[#allocation3 + $0x13a] sm:$0xff]
      %v3605 = vld [vmem:[#allocation3 + $0x142] sm:$0xff]
      %v3606 = vld [vmem:[#allocation3 + $0x152] sm:$0xff]
      %v3607 = vld [vmem:[#allocation3 + $0x15a] sm:$0xff]
      %v3608 = vld [vmem:[#allocation3 + $0x16a] sm:$0xff]
      %v3609 = vld [vmem:[#allocation3 + $0x172] sm:$0xff]
      %v3610 = vpack.c.bf16 %v3579, %v3578
      %v3611 = vpack.c.bf16 %v3581, %v3580
      %v3612 = vpack.c.bf16 %v3583, %v3582
      %v3613 = vpack.c.bf16 %v3585, %v3584
      %v3614 = vpack.c.bf16 %v3587, %v3586
      %v3615 = vpack.c.bf16 %v3589, %v3588
      %v3616 = vpack.c.bf16 %v3591, %v3590
      %v3617 = vpack.c.bf16 %v3593, %v3592
      %v3618 = vpack.c.bf16 %v3595, %v3594
      %v3619 = vpack.c.bf16 %v3597, %v3596
      %v3620 = vpack.c.bf16 %v3599, %v3598
      %v3621 = vpack.c.bf16 %v3601, %v3600
      %v3622 = vpack.c.bf16 %v3603, %v3602
      %v3623 = vpack.c.bf16 %v3605, %v3604
      %v3624 = vpack.c.bf16 %v3607, %v3606
      %v3625 = vpack.c.bf16 %v3609, %v3608
      %s3626 = scalar_lea.vmem %s2, 64
      %v3627 = vld [vmem:[%s3626] sm:$0xf]
      %v3628 = vld [vmem:[%s3626 + $0x4] sm:$0xf]
      %v3629 = vld [vmem:[%s3626 + $0x8] sm:$0xf]
      %v3630 = vld [vmem:[%s3626 + $0xc] sm:$0xf]
      %v3631 = vld [vmem:[%s3626 + $0x10] sm:$0xf]
      %v3632 = vld [vmem:[%s3626 + $0x14] sm:$0xf]
      %v3633 = vld [vmem:[%s3626 + $0x18] sm:$0xf]
      %v3634 = vld [vmem:[%s3626 + $0x1c] sm:$0xf]
      %v3643 = vunpack.c.l.b16 %v3627
      %v3644 = vunpack.c.l.b16 %v3628
      %v3645 = vunpack.c.l.b16 %v3629
      %v3646 = vunpack.c.l.b16 %v3630
      %v3647 = vunpack.c.l.b16 %v3631
      %v3648 = vunpack.c.l.b16 %v3632
      %v3649 = vunpack.c.l.b16 %v3633
      %v3650 = vunpack.c.l.b16 %v3634
      %v3651 = vpack.c.b16 %v3644, %v3643
      %v3652 = vpack.c.b16 %v3646, %v3645
      %v3653 = vpack.c.b16 %v3648, %v3647
      %v3654 = vpack.c.b16 %v3650, %v3649
      %v3660 = vsel %vm2205, %v3610, 0
      %v3663 = vsel %vm2205, %v3611, 0
      %v3666 = vsel %vm2205, %v3612, 0
      %v3669 = vsel %vm2205, %v3613, 0
      %v3672 = vsel %vm2205, %v3614, 0
      %v3675 = vsel %vm2205, %v3615, 0
      %v3678 = vsel %vm2205, %v3616, 0
      %v3681 = vsel %vm2205, %v3617, 0
      %v3684 = vsel %vm2205, %v3618, 0
      %v3687 = vsel %vm2205, %v3619, 0
      %v3690 = vsel %vm2205, %v3620, 0
      %v3693 = vsel %vm2205, %v3621, 0
      %v3696 = vsel %vm2205, %v3622, 0
      %v3699 = vsel %vm2205, %v3623, 0
      %v3702 = vsel %vm2205, %v3624, 0
      %v3705 = vsel %vm2205, %v3625, 0
      %3707 = vmatprep.subr.bf16.mxu0 0
      %3708 = vmatpush1.bf16.msra.mxu0 0
      %3709 = vmatprep.subr.bf16.mxu0 0
      %3710 = vmatpush1.bf16.msra.mxu0 0
      %3711 = vmatprep.subr.bf16.mxu0 0
      %3712 = vmatpush1.bf16.msra.mxu0 0
      %3713 = vmatprep.subr.bf16.mxu0 0
      %3714 = vmatpush1.bf16.msra.mxu0 0
      %3715 = vmatprep.subr.bf16.mxu0 0
      %3716 = vmatpush1.bf16.msra.mxu0 %v3654
      %3717 = vmatprep.subr.bf16.mxu0 0
      %3718 = vmatpush1.bf16.msra.mxu0 %v3653
      %3719 = vmatprep.subr.bf16.mxu0 0
      %3720 = vmatpush1.bf16.msra.mxu0 %v3652
      %3721 = vmatprep.subr.bf16.mxu0 0
      %3722 = vmatpush1.bf16.msra.mxu0 %v3651
      %3723 = vmatprep.subr.bf16.mxu0 0
      %3724 = vmatpush2.bf16.msra.mxu0 0
      %3725 = vmatprep.subr.bf16.mxu0 0
      %3726 = vmatpush2.bf16.msra.mxu0 0
      %3727 = vmatprep.subr.bf16.mxu0 0
      %3728 = vmatpush2.bf16.msra.mxu0 0
      %3729 = vmatprep.subr.bf16.mxu0 0
      %3730 = vmatpush2.bf16.msra.mxu0 0
      %3731 = vmatprep.subr.bf16.mxu0 0
      %3732 = vmatpush2.bf16.msra.mxu0 0
      %3733 = vmatprep.subr.bf16.mxu0 0
      %3734 = vmatpush2.bf16.msra.mxu0 0
      %3735 = vmatprep.subr.bf16.mxu0 0
      %3736 = vmatpush2.bf16.msra.mxu0 0
      %3737 = vmatprep.subr.bf16.mxu0 0
      %3738 = vmatpush2.bf16.msra.mxu0 0
      %3739 = vmatprep.mubr.bf16.mxu0 0
      %3740 = vmatmul.mubr.bf16.gmra.mxu0 %v3660
      %v3741 = vpop.f32.mrf.mxu0
      %v3742 = vadd.f32 0.0, %v3741
      %v3743 = vpop.f32.mrf.mxu0
      %v3744 = vpop.f32.mrf.mxu0
      %v3745 = vadd.f32 0.0, %v3744
      %v3746 = vpop.f32.mrf.mxu0
      %3747 = vmatprep.mubr.bf16.mxu0 0
      %3748 = vmatmul.mubr.bf16.gmra.mxu0 %v3663
      %v3749 = vpop.f32.mrf.mxu0
      %v3750 = vadd.f32 0.0, %v3749
      %v3751 = vpop.f32.mrf.mxu0
      %v3752 = vpop.f32.mrf.mxu0
      %v3753 = vadd.f32 0.0, %v3752
      %v3754 = vpop.f32.mrf.mxu0
      %3755 = vmatprep.mubr.bf16.mxu0 0
      %3756 = vmatmul.mubr.bf16.gmra.mxu0 %v3666
      %v3757 = vpop.f32.mrf.mxu0
      %v3758 = vadd.f32 0.0, %v3757
      %v3759 = vpop.f32.mrf.mxu0
      %v3760 = vpop.f32.mrf.mxu0
      %v3761 = vadd.f32 0.0, %v3760
      %v3762 = vpop.f32.mrf.mxu0
      %3763 = vmatprep.mubr.bf16.mxu0 0
      %3764 = vmatmul.mubr.bf16.gmra.mxu0 %v3669
      %v3765 = vpop.f32.mrf.mxu0
      %v3766 = vadd.f32 0.0, %v3765
      %v3767 = vpop.f32.mrf.mxu0
      %v3768 = vpop.f32.mrf.mxu0
      %v3769 = vadd.f32 0.0, %v3768
      %v3770 = vpop.f32.mrf.mxu0
      %3771 = vmatprep.mubr.bf16.mxu0 0
      %3772 = vmatmul.mubr.bf16.gmra.mxu0 %v3672
      %v3773 = vpop.f32.mrf.mxu0
      %v3774 = vadd.f32 0.0, %v3773
      %v3775 = vpop.f32.mrf.mxu0
      %v3776 = vpop.f32.mrf.mxu0
      %v3777 = vadd.f32 0.0, %v3776
      %v3778 = vpop.f32.mrf.mxu0
      %3779 = vmatprep.mubr.bf16.mxu0 0
      %3780 = vmatmul.mubr.bf16.gmra.mxu0 %v3675
      %v3781 = vpop.f32.mrf.mxu0
      %v3782 = vadd.f32 0.0, %v3781
      %v3783 = vpop.f32.mrf.mxu0
      %v3784 = vpop.f32.mrf.mxu0
      %v3785 = vadd.f32 0.0, %v3784
      %v3786 = vpop.f32.mrf.mxu0
      %3787 = vmatprep.mubr.bf16.mxu0 0
      %3788 = vmatmul.mubr.bf16.gmra.mxu0 %v3678
      %v3789 = vpop.f32.mrf.mxu0
      %v3790 = vadd.f32 0.0, %v3789
      %v3791 = vpop.f32.mrf.mxu0
      %v3792 = vpop.f32.mrf.mxu0
      %v3793 = vadd.f32 0.0, %v3792
      %v3794 = vpop.f32.mrf.mxu0
      %3795 = vmatprep.mubr.bf16.mxu0 0
      %3796 = vmatmul.mubr.bf16.gmra.mxu0 %v3681
      %v3797 = vpop.f32.mrf.mxu0
      %v3798 = vadd.f32 0.0, %v3797
      %v3799 = vpop.f32.mrf.mxu0
      %v3800 = vpop.f32.mrf.mxu0
      %v3801 = vadd.f32 0.0, %v3800
      %v3802 = vpop.f32.mrf.mxu0
      %3803 = vmatprep.mubr.bf16.mxu0 0
      %3804 = vmatmul.mubr.bf16.gmra.mxu0 %v3684
      %v3805 = vpop.f32.mrf.mxu0
      %v3806 = vadd.f32 0.0, %v3805
      %v3807 = vpop.f32.mrf.mxu0
      %v3808 = vpop.f32.mrf.mxu0
      %v3809 = vadd.f32 0.0, %v3808
      %v3810 = vpop.f32.mrf.mxu0
      %3811 = vmatprep.mubr.bf16.mxu0 0
      %3812 = vmatmul.mubr.bf16.gmra.mxu0 %v3687
      %v3813 = vpop.f32.mrf.mxu0
      %v3814 = vadd.f32 0.0, %v3813
      %v3815 = vpop.f32.mrf.mxu0
      %v3816 = vpop.f32.mrf.mxu0
      %v3817 = vadd.f32 0.0, %v3816
      %v3818 = vpop.f32.mrf.mxu0
      %3819 = vmatprep.mubr.bf16.mxu0 0
      %3820 = vmatmul.mubr.bf16.gmra.mxu0 %v3690
      %v3821 = vpop.f32.mrf.mxu0
      %v3822 = vadd.f32 0.0, %v3821
      %v3823 = vpop.f32.mrf.mxu0
      %v3824 = vpop.f32.mrf.mxu0
      %v3825 = vadd.f32 0.0, %v3824
      %v3826 = vpop.f32.mrf.mxu0
      %3827 = vmatprep.mubr.bf16.mxu0 0
      %3828 = vmatmul.mubr.bf16.gmra.mxu0 %v3693
      %v3829 = vpop.f32.mrf.mxu0
      %v3830 = vadd.f32 0.0, %v3829
      %v3831 = vpop.f32.mrf.mxu0
      %v3832 = vpop.f32.mrf.mxu0
      %v3833 = vadd.f32 0.0, %v3832
      %v3834 = vpop.f32.mrf.mxu0
      %3835 = vmatprep.mubr.bf16.mxu0 0
      %3836 = vmatmul.mubr.bf16.gmra.mxu0 %v3696
      %v3837 = vpop.f32.mrf.mxu0
      %v3838 = vadd.f32 0.0, %v3837
      %v3839 = vpop.f32.mrf.mxu0
      %v3840 = vpop.f32.mrf.mxu0
      %v3841 = vadd.f32 0.0, %v3840
      %v3842 = vpop.f32.mrf.mxu0
      %3843 = vmatprep.mubr.bf16.mxu0 0
      %3844 = vmatmul.mubr.bf16.gmra.mxu0 %v3699
      %v3845 = vpop.f32.mrf.mxu0
      %v3846 = vadd.f32 0.0, %v3845
      %v3847 = vpop.f32.mrf.mxu0
      %v3848 = vpop.f32.mrf.mxu0
      %v3849 = vadd.f32 0.0, %v3848
      %v3850 = vpop.f32.mrf.mxu0
      %3851 = vmatprep.mubr.bf16.mxu0 0
      %3852 = vmatmul.mubr.bf16.gmra.mxu0 %v3702
      %v3853 = vpop.f32.mrf.mxu0
      %v3854 = vadd.f32 0.0, %v3853
      %v3855 = vpop.f32.mrf.mxu0
      %v3856 = vpop.f32.mrf.mxu0
      %v3857 = vadd.f32 0.0, %v3856
      %v3858 = vpop.f32.mrf.mxu0
      %3859 = vmatprep.mubr.bf16.mxu0 0
      %3860 = vmatmul.mubr.bf16.gmra.mxu0 %v3705
      %v3861 = vpop.f32.mrf.mxu0
      %v3862 = vadd.f32 0.0, %v3861
      %v3863 = vpop.f32.mrf.mxu0
      %v3864 = vpop.f32.mrf.mxu0
      %v3865 = vadd.f32 0.0, %v3864
      %v3866 = vpop.f32.mrf.mxu0
      %3867 = vdwg.mxu0
      %v3868 = vadd.f32 %v3452, %v3742
      %v3869 = vadd.f32 %v3455, %v3745
      %v3870 = vadd.f32 %v3460, %v3750
      %v3871 = vadd.f32 %v3463, %v3753
      %v3872 = vadd.f32 %v3468, %v3758
      %v3873 = vadd.f32 %v3471, %v3761
      %v3874 = vadd.f32 %v3476, %v3766
      %v3875 = vadd.f32 %v3479, %v3769
      %v3876 = vadd.f32 %v3484, %v3774
      %v3877 = vadd.f32 %v3487, %v3777
      %v3878 = vadd.f32 %v3492, %v3782
      %v3879 = vadd.f32 %v3495, %v3785
      %v3880 = vadd.f32 %v3500, %v3790
      %v3881 = vadd.f32 %v3503, %v3793
      %v3882 = vadd.f32 %v3508, %v3798
      %v3883 = vadd.f32 %v3511, %v3801
      %v3884 = vadd.f32 %v3516, %v3806
      %v3885 = vadd.f32 %v3519, %v3809
      %v3886 = vadd.f32 %v3524, %v3814
      %v3887 = vadd.f32 %v3527, %v3817
      %v3888 = vadd.f32 %v3532, %v3822
      %v3889 = vadd.f32 %v3535, %v3825
      %v3890 = vadd.f32 %v3540, %v3830
      %v3891 = vadd.f32 %v3543, %v3833
      %v3892 = vadd.f32 %v3548, %v3838
      %v3893 = vadd.f32 %v3551, %v3841
      %v3894 = vadd.f32 %v3556, %v3846
      %v3895 = vadd.f32 %v3559, %v3849
      %v3896 = vadd.f32 %v3564, %v3854
      %v3897 = vadd.f32 %v3567, %v3857
      %v3898 = vadd.f32 %v3572, %v3862
      %v3899 = vadd.f32 %v3575, %v3865
      %v3900 = vld [vmem:[%s2933] sm:$0xff]
      %v3901 = vld [vmem:[%s2933 + $0x8] sm:$0xff]
      %v3902 = vld [vmem:[%s2933 + $0x18] sm:$0xff]
      %v3903 = vld [vmem:[%s2933 + $0x20] sm:$0xff]
      %v3904 = vld [vmem:[%s2933 + $0x30] sm:$0xff]
      %v3905 = vld [vmem:[%s2933 + $0x38] sm:$0xff]
      %v3906 = vld [vmem:[%s2933 + $0x48] sm:$0xff]
      %v3907 = vld [vmem:[%s2933 + $0x50] sm:$0xff]
      %v3908 = vld [vmem:[%s2933 + $0x60] sm:$0xff]
      %v3909 = vld [vmem:[%s2933 + $0x68] sm:$0xff]
      %v3910 = vld [vmem:[%s2933 + $0x78] sm:$0xff]
      %v3911 = vld [vmem:[%s2933 + $0x80] sm:$0xff]
      %v3912 = vld [vmem:[%s2933 + $0x90] sm:$0xff]
      %v3913 = vld [vmem:[%s2933 + $0x98] sm:$0xff]
      %v3914 = vld [vmem:[%s2933 + $0xa8] sm:$0xff]
      %v3915 = vld [vmem:[%s2933 + $0xb0] sm:$0xff]
      %v3916 = vld [vmem:[%s2933 + $0xc0] sm:$0xff]
      %v3917 = vld [vmem:[%s2933 + $0xc8] sm:$0xff]
      %v3918 = vld [vmem:[%s2933 + $0xd8] sm:$0xff]
      %v3919 = vld [vmem:[%s2933 + $0xe0] sm:$0xff]
      %v3920 = vld [vmem:[%s2933 + $0xf0] sm:$0xff]
      %v3921 = vld [vmem:[%s2933 + $0xf8] sm:$0xff]
      %v3922 = vld [vmem:[%s2933 + $0x108] sm:$0xff]
      %v3923 = vld [vmem:[%s2933 + $0x110] sm:$0xff]
      %v3924 = vld [vmem:[%s2933 + $0x120] sm:$0xff]
      %v3925 = vld [vmem:[%s2933 + $0x128] sm:$0xff]
      %v3926 = vld [vmem:[%s2933 + $0x138] sm:$0xff]
      %v3927 = vld [vmem:[%s2933 + $0x140] sm:$0xff]
      %v3928 = vld [vmem:[%s2933 + $0x150] sm:$0xff]
      %v3929 = vld [vmem:[%s2933 + $0x158] sm:$0xff]
      %v3930 = vld [vmem:[%s2933 + $0x168] sm:$0xff]
      %v3931 = vld [vmem:[%s2933 + $0x170] sm:$0xff]
      %v3932 = vpack.c.bf16 %v3901, %v3900
      %v3933 = vpack.c.bf16 %v3903, %v3902
      %v3934 = vpack.c.bf16 %v3905, %v3904
      %v3935 = vpack.c.bf16 %v3907, %v3906
      %v3936 = vpack.c.bf16 %v3909, %v3908
      %v3937 = vpack.c.bf16 %v3911, %v3910
      %v3938 = vpack.c.bf16 %v3913, %v3912
      %v3939 = vpack.c.bf16 %v3915, %v3914
      %v3940 = vpack.c.bf16 %v3917, %v3916
      %v3941 = vpack.c.bf16 %v3919, %v3918
      %v3942 = vpack.c.bf16 %v3921, %v3920
      %v3943 = vpack.c.bf16 %v3923, %v3922
      %v3944 = vpack.c.bf16 %v3925, %v3924
      %v3945 = vpack.c.bf16 %v3927, %v3926
      %v3946 = vpack.c.bf16 %v3929, %v3928
      %v3947 = vpack.c.bf16 %v3931, %v3930
      %s3948 = scalar_lea.vmem %s2, 96
      %v3949 = vld [vmem:[%s3948] sm:$0xf]
      %v3950 = vld [vmem:[%s3948 + $0x4] sm:$0xf]
      %v3951 = vld [vmem:[%s3948 + $0x8] sm:$0xf]
      %v3952 = vld [vmem:[%s3948 + $0xc] sm:$0xf]
      %v3953 = vld [vmem:[%s3948 + $0x10] sm:$0xf]
      %v3954 = vld [vmem:[%s3948 + $0x14] sm:$0xf]
      %v3955 = vld [vmem:[%s3948 + $0x18] sm:$0xf]
      %v3956 = vld [vmem:[%s3948 + $0x1c] sm:$0xf]
      %v3965 = vunpack.c.l.b16 %v3949
      %v3966 = vunpack.c.l.b16 %v3950
      %v3967 = vunpack.c.l.b16 %v3951
      %v3968 = vunpack.c.l.b16 %v3952
      %v3969 = vunpack.c.l.b16 %v3953
      %v3970 = vunpack.c.l.b16 %v3954
      %v3971 = vunpack.c.l.b16 %v3955
      %v3972 = vunpack.c.l.b16 %v3956
      %v3973 = vpack.c.b16 %v3966, %v3965
      %v3974 = vpack.c.b16 %v3968, %v3967
      %v3975 = vpack.c.b16 %v3970, %v3969
      %v3976 = vpack.c.b16 %v3972, %v3971
      %v3982 = vsel %vm2205, %v3932, 0
      %v3985 = vsel %vm2205, %v3933, 0
      %v3988 = vsel %vm2205, %v3934, 0
      %v3991 = vsel %vm2205, %v3935, 0
      %v3994 = vsel %vm2205, %v3936, 0
      %v3997 = vsel %vm2205, %v3937, 0
      %v4000 = vsel %vm2205, %v3938, 0
      %v4003 = vsel %vm2205, %v3939, 0
      %v4006 = vsel %vm2205, %v3940, 0
      %v4009 = vsel %vm2205, %v3941, 0
      %v4012 = vsel %vm2205, %v3942, 0
      %v4015 = vsel %vm2205, %v3943, 0
      %v4018 = vsel %vm2205, %v3944, 0
      %v4021 = vsel %vm2205, %v3945, 0
      %v4024 = vsel %vm2205, %v3946, 0
      %v4027 = vsel %vm2205, %v3947, 0
      %4029 = vmatprep.subr.bf16.mxu0 0
      %4030 = vmatpush1.bf16.msra.mxu0 0
      %4031 = vmatprep.subr.bf16.mxu0 0
      %4032 = vmatpush1.bf16.msra.mxu0 0
      %4033 = vmatprep.subr.bf16.mxu0 0
      %4034 = vmatpush1.bf16.msra.mxu0 0
      %4035 = vmatprep.subr.bf16.mxu0 0
      %4036 = vmatpush1.bf16.msra.mxu0 0
      %4037 = vmatprep.subr.bf16.mxu0 0
      %4038 = vmatpush1.bf16.msra.mxu0 %v3976
      %4039 = vmatprep.subr.bf16.mxu0 0
      %4040 = vmatpush1.bf16.msra.mxu0 %v3975
      %4041 = vmatprep.subr.bf16.mxu0 0
      %4042 = vmatpush1.bf16.msra.mxu0 %v3974
      %4043 = vmatprep.subr.bf16.mxu0 0
      %4044 = vmatpush1.bf16.msra.mxu0 %v3973
      %4045 = vmatprep.subr.bf16.mxu0 0
      %4046 = vmatpush2.bf16.msra.mxu0 0
      %4047 = vmatprep.subr.bf16.mxu0 0
      %4048 = vmatpush2.bf16.msra.mxu0 0
      %4049 = vmatprep.subr.bf16.mxu0 0
      %4050 = vmatpush2.bf16.msra.mxu0 0
      %4051 = vmatprep.subr.bf16.mxu0 0
      %4052 = vmatpush2.bf16.msra.mxu0 0
      %4053 = vmatprep.subr.bf16.mxu0 0
      %4054 = vmatpush2.bf16.msra.mxu0 0
      %4055 = vmatprep.subr.bf16.mxu0 0
      %4056 = vmatpush2.bf16.msra.mxu0 0
      %4057 = vmatprep.subr.bf16.mxu0 0
      %4058 = vmatpush2.bf16.msra.mxu0 0
      %4059 = vmatprep.subr.bf16.mxu0 0
      %4060 = vmatpush2.bf16.msra.mxu0 0
      %4061 = vmatprep.mubr.bf16.mxu0 0
      %4062 = vmatmul.mubr.bf16.gmra.mxu0 %v3982
      %v4063 = vpop.f32.mrf.mxu0
      %v4064 = vadd.f32 0.0, %v4063
      %v4065 = vpop.f32.mrf.mxu0
      %v4066 = vpop.f32.mrf.mxu0
      %v4067 = vadd.f32 0.0, %v4066
      %v4068 = vpop.f32.mrf.mxu0
      %4069 = vmatprep.mubr.bf16.mxu0 0
      %4070 = vmatmul.mubr.bf16.gmra.mxu0 %v3985
      %v4071 = vpop.f32.mrf.mxu0
      %v4072 = vadd.f32 0.0, %v4071
      %v4073 = vpop.f32.mrf.mxu0
      %v4074 = vpop.f32.mrf.mxu0
      %v4075 = vadd.f32 0.0, %v4074
      %v4076 = vpop.f32.mrf.mxu0
      %4077 = vmatprep.mubr.bf16.mxu0 0
      %4078 = vmatmul.mubr.bf16.gmra.mxu0 %v3988
      %v4079 = vpop.f32.mrf.mxu0
      %v4080 = vadd.f32 0.0, %v4079
      %v4081 = vpop.f32.mrf.mxu0
      %v4082 = vpop.f32.mrf.mxu0
      %v4083 = vadd.f32 0.0, %v4082
      %v4084 = vpop.f32.mrf.mxu0
      %4085 = vmatprep.mubr.bf16.mxu0 0
      %4086 = vmatmul.mubr.bf16.gmra.mxu0 %v3991
      %v4087 = vpop.f32.mrf.mxu0
      %v4088 = vadd.f32 0.0, %v4087
      %v4089 = vpop.f32.mrf.mxu0
      %v4090 = vpop.f32.mrf.mxu0
      %v4091 = vadd.f32 0.0, %v4090
      %v4092 = vpop.f32.mrf.mxu0
      %4093 = vmatprep.mubr.bf16.mxu0 0
      %4094 = vmatmul.mubr.bf16.gmra.mxu0 %v3994
      %v4095 = vpop.f32.mrf.mxu0
      %v4096 = vadd.f32 0.0, %v4095
      %v4097 = vpop.f32.mrf.mxu0
      %v4098 = vpop.f32.mrf.mxu0
      %v4099 = vadd.f32 0.0, %v4098
      %v4100 = vpop.f32.mrf.mxu0
      %4101 = vmatprep.mubr.bf16.mxu0 0
      %4102 = vmatmul.mubr.bf16.gmra.mxu0 %v3997
      %v4103 = vpop.f32.mrf.mxu0
      %v4104 = vadd.f32 0.0, %v4103
      %v4105 = vpop.f32.mrf.mxu0
      %v4106 = vpop.f32.mrf.mxu0
      %v4107 = vadd.f32 0.0, %v4106
      %v4108 = vpop.f32.mrf.mxu0
      %4109 = vmatprep.mubr.bf16.mxu0 0
      %4110 = vmatmul.mubr.bf16.gmra.mxu0 %v4000
      %v4111 = vpop.f32.mrf.mxu0
      %v4112 = vadd.f32 0.0, %v4111
      %v4113 = vpop.f32.mrf.mxu0
      %v4114 = vpop.f32.mrf.mxu0
      %v4115 = vadd.f32 0.0, %v4114
      %v4116 = vpop.f32.mrf.mxu0
      %4117 = vmatprep.mubr.bf16.mxu0 0
      %4118 = vmatmul.mubr.bf16.gmra.mxu0 %v4003
      %v4119 = vpop.f32.mrf.mxu0
      %v4120 = vadd.f32 0.0, %v4119
      %v4121 = vpop.f32.mrf.mxu0
      %v4122 = vpop.f32.mrf.mxu0
      %v4123 = vadd.f32 0.0, %v4122
      %v4124 = vpop.f32.mrf.mxu0
      %4125 = vmatprep.mubr.bf16.mxu0 0
      %4126 = vmatmul.mubr.bf16.gmra.mxu0 %v4006
      %v4127 = vpop.f32.mrf.mxu0
      %v4128 = vadd.f32 0.0, %v4127
      %v4129 = vpop.f32.mrf.mxu0
      %v4130 = vpop.f32.mrf.mxu0
      %v4131 = vadd.f32 0.0, %v4130
      %v4132 = vpop.f32.mrf.mxu0
      %4133 = vmatprep.mubr.bf16.mxu0 0
      %4134 = vmatmul.mubr.bf16.gmra.mxu0 %v4009
      %v4135 = vpop.f32.mrf.mxu0
      %v4136 = vadd.f32 0.0, %v4135
      %v4137 = vpop.f32.mrf.mxu0
      %v4138 = vpop.f32.mrf.mxu0
      %v4139 = vadd.f32 0.0, %v4138
      %v4140 = vpop.f32.mrf.mxu0
      %4141 = vmatprep.mubr.bf16.mxu0 0
      %4142 = vmatmul.mubr.bf16.gmra.mxu0 %v4012
      %v4143 = vpop.f32.mrf.mxu0
      %v4144 = vadd.f32 0.0, %v4143
      %v4145 = vpop.f32.mrf.mxu0
      %v4146 = vpop.f32.mrf.mxu0
      %v4147 = vadd.f32 0.0, %v4146
      %v4148 = vpop.f32.mrf.mxu0
      %4149 = vmatprep.mubr.bf16.mxu0 0
      %4150 = vmatmul.mubr.bf16.gmra.mxu0 %v4015
      %v4151 = vpop.f32.mrf.mxu0
      %v4152 = vadd.f32 0.0, %v4151
      %v4153 = vpop.f32.mrf.mxu0
      %v4154 = vpop.f32.mrf.mxu0
      %v4155 = vadd.f32 0.0, %v4154
      %v4156 = vpop.f32.mrf.mxu0
      %4157 = vmatprep.mubr.bf16.mxu0 0
      %4158 = vmatmul.mubr.bf16.gmra.mxu0 %v4018
      %v4159 = vpop.f32.mrf.mxu0
      %v4160 = vadd.f32 0.0, %v4159
      %v4161 = vpop.f32.mrf.mxu0
      %v4162 = vpop.f32.mrf.mxu0
      %v4163 = vadd.f32 0.0, %v4162
      %v4164 = vpop.f32.mrf.mxu0
      %4165 = vmatprep.mubr.bf16.mxu0 0
      %4166 = vmatmul.mubr.bf16.gmra.mxu0 %v4021
      %v4167 = vpop.f32.mrf.mxu0
      %v4168 = vadd.f32 0.0, %v4167
      %v4169 = vpop.f32.mrf.mxu0
      %v4170 = vpop.f32.mrf.mxu0
      %v4171 = vadd.f32 0.0, %v4170
      %v4172 = vpop.f32.mrf.mxu0
      %4173 = vmatprep.mubr.bf16.mxu0 0
      %4174 = vmatmul.mubr.bf16.gmra.mxu0 %v4024
      %v4175 = vpop.f32.mrf.mxu0
      %v4176 = vadd.f32 0.0, %v4175
      %v4177 = vpop.f32.mrf.mxu0
      %v4178 = vpop.f32.mrf.mxu0
      %v4179 = vadd.f32 0.0, %v4178
      %v4180 = vpop.f32.mrf.mxu0
      %4181 = vmatprep.mubr.bf16.mxu0 0
      %4182 = vmatmul.mubr.bf16.gmra.mxu0 %v4027
      %v4183 = vpop.f32.mrf.mxu0
      %v4184 = vadd.f32 0.0, %v4183
      %v4185 = vpop.f32.mrf.mxu0
      %v4186 = vpop.f32.mrf.mxu0
      %v4187 = vadd.f32 0.0, %v4186
      %v4188 = vpop.f32.mrf.mxu0
      %4189 = vdwg.mxu0
      %v4190 = vadd.f32 %v3868, %v4064
      %v4191 = vadd.f32 %v3869, %v4067
      %v4192 = vadd.f32 %v3870, %v4072
      %v4193 = vadd.f32 %v3871, %v4075
      %v4194 = vadd.f32 %v3872, %v4080
      %v4195 = vadd.f32 %v3873, %v4083
      %v4196 = vadd.f32 %v3874, %v4088
      %v4197 = vadd.f32 %v3875, %v4091
      %v4198 = vadd.f32 %v3876, %v4096
      %v4199 = vadd.f32 %v3877, %v4099
      %v4200 = vadd.f32 %v3878, %v4104
      %v4201 = vadd.f32 %v3879, %v4107
      %v4202 = vadd.f32 %v3880, %v4112
      %v4203 = vadd.f32 %v3881, %v4115
      %v4204 = vadd.f32 %v3882, %v4120
      %v4205 = vadd.f32 %v3883, %v4123
      %v4206 = vadd.f32 %v3884, %v4128
      %v4207 = vadd.f32 %v3885, %v4131
      %v4208 = vadd.f32 %v3886, %v4136
      %v4209 = vadd.f32 %v3887, %v4139
      %v4210 = vadd.f32 %v3888, %v4144
      %v4211 = vadd.f32 %v3889, %v4147
      %v4212 = vadd.f32 %v3890, %v4152
      %v4213 = vadd.f32 %v3891, %v4155
      %v4214 = vadd.f32 %v3892, %v4160
      %v4215 = vadd.f32 %v3893, %v4163
      %v4216 = vadd.f32 %v3894, %v4168
      %v4217 = vadd.f32 %v3895, %v4171
      %v4218 = vadd.f32 %v3896, %v4176
      %v4219 = vadd.f32 %v3897, %v4179
      %v4220 = vadd.f32 %v3898, %v4184
      %v4221 = vadd.f32 %v3899, %v4187
      %v4222 = vld [vmem:[%s2933 + $0x1] sm:$0xff]
      %v4223 = vld [vmem:[%s2933 + $0x9] sm:$0xff]
      %v4224 = vld [vmem:[%s2933 + $0x19] sm:$0xff]
      %v4225 = vld [vmem:[%s2933 + $0x21] sm:$0xff]
      %v4226 = vld [vmem:[%s2933 + $0x31] sm:$0xff]
      %v4227 = vld [vmem:[%s2933 + $0x39] sm:$0xff]
      %v4228 = vld [vmem:[%s2933 + $0x49] sm:$0xff]
      %v4229 = vld [vmem:[%s2933 + $0x51] sm:$0xff]
      %v4230 = vld [vmem:[%s2933 + $0x61] sm:$0xff]
      %v4231 = vld [vmem:[%s2933 + $0x69] sm:$0xff]
      %v4232 = vld [vmem:[%s2933 + $0x79] sm:$0xff]
      %v4233 = vld [vmem:[%s2933 + $0x81] sm:$0xff]
      %v4234 = vld [vmem:[%s2933 + $0x91] sm:$0xff]
      %v4235 = vld [vmem:[%s2933 + $0x99] sm:$0xff]
      %v4236 = vld [vmem:[%s2933 + $0xa9] sm:$0xff]
      %v4237 = vld [vmem:[%s2933 + $0xb1] sm:$0xff]
      %v4238 = vld [vmem:[%s2933 + $0xc1] sm:$0xff]
      %v4239 = vld [vmem:[%s2933 + $0xc9] sm:$0xff]
      %v4240 = vld [vmem:[%s2933 + $0xd9] sm:$0xff]
      %v4241 = vld [vmem:[%s2933 + $0xe1] sm:$0xff]
      %v4242 = vld [vmem:[%s2933 + $0xf1] sm:$0xff]
      %v4243 = vld [vmem:[%s2933 + $0xf9] sm:$0xff]
      %v4244 = vld [vmem:[%s2933 + $0x109] sm:$0xff]
      %v4245 = vld [vmem:[%s2933 + $0x111] sm:$0xff]
      %v4246 = vld [vmem:[%s2933 + $0x121] sm:$0xff]
      %v4247 = vld [vmem:[%s2933 + $0x129] sm:$0xff]
      %v4248 = vld [vmem:[%s2933 + $0x139] sm:$0xff]
      %v4249 = vld [vmem:[%s2933 + $0x141] sm:$0xff]
      %v4250 = vld [vmem:[%s2933 + $0x151] sm:$0xff]
      %v4251 = vld [vmem:[%s2933 + $0x159] sm:$0xff]
      %v4252 = vld [vmem:[%s2933 + $0x169] sm:$0xff]
      %v4253 = vld [vmem:[%s2933 + $0x171] sm:$0xff]
      %v4254 = vpack.c.bf16 %v4223, %v4222
      %v4255 = vpack.c.bf16 %v4225, %v4224
      %v4256 = vpack.c.bf16 %v4227, %v4226
      %v4257 = vpack.c.bf16 %v4229, %v4228
      %v4258 = vpack.c.bf16 %v4231, %v4230
      %v4259 = vpack.c.bf16 %v4233, %v4232
      %v4260 = vpack.c.bf16 %v4235, %v4234
      %v4261 = vpack.c.bf16 %v4237, %v4236
      %v4262 = vpack.c.bf16 %v4239, %v4238
      %v4263 = vpack.c.bf16 %v4241, %v4240
      %v4264 = vpack.c.bf16 %v4243, %v4242
      %v4265 = vpack.c.bf16 %v4245, %v4244
      %v4266 = vpack.c.bf16 %v4247, %v4246
      %v4267 = vpack.c.bf16 %v4249, %v4248
      %v4268 = vpack.c.bf16 %v4251, %v4250
      %v4269 = vpack.c.bf16 %v4253, %v4252
      %s4270 = scalar_lea.vmem %s2, 128
      %v4271 = vld [vmem:[%s4270] sm:$0xf]
      %v4272 = vld [vmem:[%s4270 + $0x4] sm:$0xf]
      %v4273 = vld [vmem:[%s4270 + $0x8] sm:$0xf]
      %v4274 = vld [vmem:[%s4270 + $0xc] sm:$0xf]
      %v4275 = vld [vmem:[%s4270 + $0x10] sm:$0xf]
      %v4276 = vld [vmem:[%s4270 + $0x14] sm:$0xf]
      %v4277 = vld [vmem:[%s4270 + $0x18] sm:$0xf]
      %v4278 = vld [vmem:[%s4270 + $0x1c] sm:$0xf]
      %v4287 = vunpack.c.l.b16 %v4271
      %v4288 = vunpack.c.l.b16 %v4272
      %v4289 = vunpack.c.l.b16 %v4273
      %v4290 = vunpack.c.l.b16 %v4274
      %v4291 = vunpack.c.l.b16 %v4275
      %v4292 = vunpack.c.l.b16 %v4276
      %v4293 = vunpack.c.l.b16 %v4277
      %v4294 = vunpack.c.l.b16 %v4278
      %v4295 = vpack.c.b16 %v4288, %v4287
      %v4296 = vpack.c.b16 %v4290, %v4289
      %v4297 = vpack.c.b16 %v4292, %v4291
      %v4298 = vpack.c.b16 %v4294, %v4293
      %v4304 = vsel %vm2205, %v4254, 0
      %v4307 = vsel %vm2205, %v4255, 0
      %v4310 = vsel %vm2205, %v4256, 0
      %v4313 = vsel %vm2205, %v4257, 0
      %v4316 = vsel %vm2205, %v4258, 0
      %v4319 = vsel %vm2205, %v4259, 0
      %v4322 = vsel %vm2205, %v4260, 0
      %v4325 = vsel %vm2205, %v4261, 0
      %v4328 = vsel %vm2205, %v4262, 0
      %v4331 = vsel %vm2205, %v4263, 0
      %v4334 = vsel %vm2205, %v4264, 0
      %v4337 = vsel %vm2205, %v4265, 0
      %v4340 = vsel %vm2205, %v4266, 0
      %v4343 = vsel %vm2205, %v4267, 0
      %v4346 = vsel %vm2205, %v4268, 0
      %v4349 = vsel %vm2205, %v4269, 0
      %4351 = vmatprep.subr.bf16.mxu0 0
      %4352 = vmatpush1.bf16.msra.mxu0 0
      %4353 = vmatprep.subr.bf16.mxu0 0
      %4354 = vmatpush1.bf16.msra.mxu0 0
      %4355 = vmatprep.subr.bf16.mxu0 0
      %4356 = vmatpush1.bf16.msra.mxu0 0
      %4357 = vmatprep.subr.bf16.mxu0 0
      %4358 = vmatpush1.bf16.msra.mxu0 0
      %4359 = vmatprep.subr.bf16.mxu0 0
      %4360 = vmatpush1.bf16.msra.mxu0 %v4298
      %4361 = vmatprep.subr.bf16.mxu0 0
      %4362 = vmatpush1.bf16.msra.mxu0 %v4297
      %4363 = vmatprep.subr.bf16.mxu0 0
      %4364 = vmatpush1.bf16.msra.mxu0 %v4296
      %4365 = vmatprep.subr.bf16.mxu0 0
      %4366 = vmatpush1.bf16.msra.mxu0 %v4295
      %4367 = vmatprep.subr.bf16.mxu0 0
      %4368 = vmatpush2.bf16.msra.mxu0 0
      %4369 = vmatprep.subr.bf16.mxu0 0
      %4370 = vmatpush2.bf16.msra.mxu0 0
      %4371 = vmatprep.subr.bf16.mxu0 0
      %4372 = vmatpush2.bf16.msra.mxu0 0
      %4373 = vmatprep.subr.bf16.mxu0 0
      %4374 = vmatpush2.bf16.msra.mxu0 0
      %4375 = vmatprep.subr.bf16.mxu0 0
      %4376 = vmatpush2.bf16.msra.mxu0 0
      %4377 = vmatprep.subr.bf16.mxu0 0
      %4378 = vmatpush2.bf16.msra.mxu0 0
      %4379 = vmatprep.subr.bf16.mxu0 0
      %4380 = vmatpush2.bf16.msra.mxu0 0
      %4381 = vmatprep.subr.bf16.mxu0 0
      %4382 = vmatpush2.bf16.msra.mxu0 0
      %4383 = vmatprep.mubr.bf16.mxu0 0
      %4384 = vmatmul.mubr.bf16.gmra.mxu0 %v4304
      %v4385 = vpop.f32.mrf.mxu0
      %v4386 = vadd.f32 0.0, %v4385
      %v4387 = vpop.f32.mrf.mxu0
      %v4388 = vpop.f32.mrf.mxu0
      %v4389 = vadd.f32 0.0, %v4388
      %v4390 = vpop.f32.mrf.mxu0
      %4391 = vmatprep.mubr.bf16.mxu0 0
      %4392 = vmatmul.mubr.bf16.gmra.mxu0 %v4307
      %v4393 = vpop.f32.mrf.mxu0
      %v4394 = vadd.f32 0.0, %v4393
      %v4395 = vpop.f32.mrf.mxu0
      %v4396 = vpop.f32.mrf.mxu0
      %v4397 = vadd.f32 0.0, %v4396
      %v4398 = vpop.f32.mrf.mxu0
      %4399 = vmatprep.mubr.bf16.mxu0 0
      %4400 = vmatmul.mubr.bf16.gmra.mxu0 %v4310
      %v4401 = vpop.f32.mrf.mxu0
      %v4402 = vadd.f32 0.0, %v4401
      %v4403 = vpop.f32.mrf.mxu0
      %v4404 = vpop.f32.mrf.mxu0
      %v4405 = vadd.f32 0.0, %v4404
      %v4406 = vpop.f32.mrf.mxu0
      %4407 = vmatprep.mubr.bf16.mxu0 0
      %4408 = vmatmul.mubr.bf16.gmra.mxu0 %v4313
      %v4409 = vpop.f32.mrf.mxu0
      %v4410 = vadd.f32 0.0, %v4409
      %v4411 = vpop.f32.mrf.mxu0
      %v4412 = vpop.f32.mrf.mxu0
      %v4413 = vadd.f32 0.0, %v4412
      %v4414 = vpop.f32.mrf.mxu0
      %4415 = vmatprep.mubr.bf16.mxu0 0
      %4416 = vmatmul.mubr.bf16.gmra.mxu0 %v4316
      %v4417 = vpop.f32.mrf.mxu0
      %v4418 = vadd.f32 0.0, %v4417
      %v4419 = vpop.f32.mrf.mxu0
      %v4420 = vpop.f32.mrf.mxu0
      %v4421 = vadd.f32 0.0, %v4420
      %v4422 = vpop.f32.mrf.mxu0
      %4423 = vmatprep.mubr.bf16.mxu0 0
      %4424 = vmatmul.mubr.bf16.gmra.mxu0 %v4319
      %v4425 = vpop.f32.mrf.mxu0
      %v4426 = vadd.f32 0.0, %v4425
      %v4427 = vpop.f32.mrf.mxu0
      %v4428 = vpop.f32.mrf.mxu0
      %v4429 = vadd.f32 0.0, %v4428
      %v4430 = vpop.f32.mrf.mxu0
      %4431 = vmatprep.mubr.bf16.mxu0 0
      %4432 = vmatmul.mubr.bf16.gmra.mxu0 %v4322
      %v4433 = vpop.f32.mrf.mxu0
      %v4434 = vadd.f32 0.0, %v4433
      %v4435 = vpop.f32.mrf.mxu0
      %v4436 = vpop.f32.mrf.mxu0
      %v4437 = vadd.f32 0.0, %v4436
      %v4438 = vpop.f32.mrf.mxu0
      %4439 = vmatprep.mubr.bf16.mxu0 0
      %4440 = vmatmul.mubr.bf16.gmra.mxu0 %v4325
      %v4441 = vpop.f32.mrf.mxu0
      %v4442 = vadd.f32 0.0, %v4441
      %v4443 = vpop.f32.mrf.mxu0
      %v4444 = vpop.f32.mrf.mxu0
      %v4445 = vadd.f32 0.0, %v4444
      %v4446 = vpop.f32.mrf.mxu0
      %4447 = vmatprep.mubr.bf16.mxu0 0
      %4448 = vmatmul.mubr.bf16.gmra.mxu0 %v4328
      %v4449 = vpop.f32.mrf.mxu0
      %v4450 = vadd.f32 0.0, %v4449
      %v4451 = vpop.f32.mrf.mxu0
      %v4452 = vpop.f32.mrf.mxu0
      %v4453 = vadd.f32 0.0, %v4452
      %v4454 = vpop.f32.mrf.mxu0
      %4455 = vmatprep.mubr.bf16.mxu0 0
      %4456 = vmatmul.mubr.bf16.gmra.mxu0 %v4331
      %v4457 = vpop.f32.mrf.mxu0
      %v4458 = vadd.f32 0.0, %v4457
      %v4459 = vpop.f32.mrf.mxu0
      %v4460 = vpop.f32.mrf.mxu0
      %v4461 = vadd.f32 0.0, %v4460
      %v4462 = vpop.f32.mrf.mxu0
      %4463 = vmatprep.mubr.bf16.mxu0 0
      %4464 = vmatmul.mubr.bf16.gmra.mxu0 %v4334
      %v4465 = vpop.f32.mrf.mxu0
      %v4466 = vadd.f32 0.0, %v4465
      %v4467 = vpop.f32.mrf.mxu0
      %v4468 = vpop.f32.mrf.mxu0
      %v4469 = vadd.f32 0.0, %v4468
      %v4470 = vpop.f32.mrf.mxu0
      %4471 = vmatprep.mubr.bf16.mxu0 0
      %4472 = vmatmul.mubr.bf16.gmra.mxu0 %v4337
      %v4473 = vpop.f32.mrf.mxu0
      %v4474 = vadd.f32 0.0, %v4473
      %v4475 = vpop.f32.mrf.mxu0
      %v4476 = vpop.f32.mrf.mxu0
      %v4477 = vadd.f32 0.0, %v4476
      %v4478 = vpop.f32.mrf.mxu0
      %4479 = vmatprep.mubr.bf16.mxu0 0
      %4480 = vmatmul.mubr.bf16.gmra.mxu0 %v4340
      %v4481 = vpop.f32.mrf.mxu0
      %v4482 = vadd.f32 0.0, %v4481
      %v4483 = vpop.f32.mrf.mxu0
      %v4484 = vpop.f32.mrf.mxu0
      %v4485 = vadd.f32 0.0, %v4484
      %v4486 = vpop.f32.mrf.mxu0
      %4487 = vmatprep.mubr.bf16.mxu0 0
      %4488 = vmatmul.mubr.bf16.gmra.mxu0 %v4343
      %v4489 = vpop.f32.mrf.mxu0
      %v4490 = vadd.f32 0.0, %v4489
      %v4491 = vpop.f32.mrf.mxu0
      %v4492 = vpop.f32.mrf.mxu0
      %v4493 = vadd.f32 0.0, %v4492
      %v4494 = vpop.f32.mrf.mxu0
      %4495 = vmatprep.mubr.bf16.mxu0 0
      %4496 = vmatmul.mubr.bf16.gmra.mxu0 %v4346
      %v4497 = vpop.f32.mrf.mxu0
      %v4498 = vadd.f32 0.0, %v4497
      %v4499 = vpop.f32.mrf.mxu0
      %v4500 = vpop.f32.mrf.mxu0
      %v4501 = vadd.f32 0.0, %v4500
      %v4502 = vpop.f32.mrf.mxu0
      %4503 = vmatprep.mubr.bf16.mxu0 0
      %4504 = vmatmul.mubr.bf16.gmra.mxu0 %v4349
      %v4505 = vpop.f32.mrf.mxu0
      %v4506 = vadd.f32 0.0, %v4505
      %v4507 = vpop.f32.mrf.mxu0
      %v4508 = vpop.f32.mrf.mxu0
      %v4509 = vadd.f32 0.0, %v4508
      %v4510 = vpop.f32.mrf.mxu0
      %4511 = vdwg.mxu0
      %v4512 = vadd.f32 %v4190, %v4386
      %v4513 = vadd.f32 %v4191, %v4389
      %v4514 = vadd.f32 %v4192, %v4394
      %v4515 = vadd.f32 %v4193, %v4397
      %v4516 = vadd.f32 %v4194, %v4402
      %v4517 = vadd.f32 %v4195, %v4405
      %v4518 = vadd.f32 %v4196, %v4410
      %v4519 = vadd.f32 %v4197, %v4413
      %v4520 = vadd.f32 %v4198, %v4418
      %v4521 = vadd.f32 %v4199, %v4421
      %v4522 = vadd.f32 %v4200, %v4426
      %v4523 = vadd.f32 %v4201, %v4429
      %v4524 = vadd.f32 %v4202, %v4434
      %v4525 = vadd.f32 %v4203, %v4437
      %v4526 = vadd.f32 %v4204, %v4442
      %v4527 = vadd.f32 %v4205, %v4445
      %v4528 = vadd.f32 %v4206, %v4450
      %v4529 = vadd.f32 %v4207, %v4453
      %v4530 = vadd.f32 %v4208, %v4458
      %v4531 = vadd.f32 %v4209, %v4461
      %v4532 = vadd.f32 %v4210, %v4466
      %v4533 = vadd.f32 %v4211, %v4469
      %v4534 = vadd.f32 %v4212, %v4474
      %v4535 = vadd.f32 %v4213, %v4477
      %v4536 = vadd.f32 %v4214, %v4482
      %v4537 = vadd.f32 %v4215, %v4485
      %v4538 = vadd.f32 %v4216, %v4490
      %v4539 = vadd.f32 %v4217, %v4493
      %v4540 = vadd.f32 %v4218, %v4498
      %v4541 = vadd.f32 %v4219, %v4501
      %v4542 = vadd.f32 %v4220, %v4506
      %v4543 = vadd.f32 %v4221, %v4509
      %v4544 = vld [vmem:[%s2933 + $0x2] sm:$0xff]
      %v4545 = vld [vmem:[%s2933 + $0xa] sm:$0xff]
      %v4546 = vld [vmem:[%s2933 + $0x1a] sm:$0xff]
      %v4547 = vld [vmem:[%s2933 + $0x22] sm:$0xff]
      %v4548 = vld [vmem:[%s2933 + $0x32] sm:$0xff]
      %v4549 = vld [vmem:[%s2933 + $0x3a] sm:$0xff]
      %v4550 = vld [vmem:[%s2933 + $0x4a] sm:$0xff]
      %v4551 = vld [vmem:[%s2933 + $0x52] sm:$0xff]
      %v4552 = vld [vmem:[%s2933 + $0x62] sm:$0xff]
      %v4553 = vld [vmem:[%s2933 + $0x6a] sm:$0xff]
      %v4554 = vld [vmem:[%s2933 + $0x7a] sm:$0xff]
      %v4555 = vld [vmem:[%s2933 + $0x82] sm:$0xff]
      %v4556 = vld [vmem:[%s2933 + $0x92] sm:$0xff]
      %v4557 = vld [vmem:[%s2933 + $0x9a] sm:$0xff]
      %v4558 = vld [vmem:[%s2933 + $0xaa] sm:$0xff]
      %v4559 = vld [vmem:[%s2933 + $0xb2] sm:$0xff]
      %v4560 = vld [vmem:[%s2933 + $0xc2] sm:$0xff]
      %v4561 = vld [vmem:[%s2933 + $0xca] sm:$0xff]
      %v4562 = vld [vmem:[%s2933 + $0xda] sm:$0xff]
      %v4563 = vld [vmem:[%s2933 + $0xe2] sm:$0xff]
      %v4564 = vld [vmem:[%s2933 + $0xf2] sm:$0xff]
      %v4565 = vld [vmem:[%s2933 + $0xfa] sm:$0xff]
      %v4566 = vld [vmem:[%s2933 + $0x10a] sm:$0xff]
      %v4567 = vld [vmem:[%s2933 + $0x112] sm:$0xff]
      %v4568 = vld [vmem:[%s2933 + $0x122] sm:$0xff]
      %v4569 = vld [vmem:[%s2933 + $0x12a] sm:$0xff]
      %v4570 = vld [vmem:[%s2933 + $0x13a] sm:$0xff]
      %v4571 = vld [vmem:[%s2933 + $0x142] sm:$0xff]
      %v4572 = vld [vmem:[%s2933 + $0x152] sm:$0xff]
      %v4573 = vld [vmem:[%s2933 + $0x15a] sm:$0xff]
      %v4574 = vld [vmem:[%s2933 + $0x16a] sm:$0xff]
      %v4575 = vld [vmem:[%s2933 + $0x172] sm:$0xff]
      %v4576 = vpack.c.bf16 %v4545, %v4544
      %v4577 = vpack.c.bf16 %v4547, %v4546
      %v4578 = vpack.c.bf16 %v4549, %v4548
      %v4579 = vpack.c.bf16 %v4551, %v4550
      %v4580 = vpack.c.bf16 %v4553, %v4552
      %v4581 = vpack.c.bf16 %v4555, %v4554
      %v4582 = vpack.c.bf16 %v4557, %v4556
      %v4583 = vpack.c.bf16 %v4559, %v4558
      %v4584 = vpack.c.bf16 %v4561, %v4560
      %v4585 = vpack.c.bf16 %v4563, %v4562
      %v4586 = vpack.c.bf16 %v4565, %v4564
      %v4587 = vpack.c.bf16 %v4567, %v4566
      %v4588 = vpack.c.bf16 %v4569, %v4568
      %v4589 = vpack.c.bf16 %v4571, %v4570
      %v4590 = vpack.c.bf16 %v4573, %v4572
      %v4591 = vpack.c.bf16 %v4575, %v4574
      %s4592 = scalar_lea.vmem %s2, 160
      %v4593 = vld [vmem:[%s4592] sm:$0xf]
      %v4594 = vld [vmem:[%s4592 + $0x4] sm:$0xf]
      %v4595 = vld [vmem:[%s4592 + $0x8] sm:$0xf]
      %v4596 = vld [vmem:[%s4592 + $0xc] sm:$0xf]
      %v4597 = vld [vmem:[%s4592 + $0x10] sm:$0xf]
      %v4598 = vld [vmem:[%s4592 + $0x14] sm:$0xf]
      %v4599 = vld [vmem:[%s4592 + $0x18] sm:$0xf]
      %v4600 = vld [vmem:[%s4592 + $0x1c] sm:$0xf]
      %v4609 = vunpack.c.l.b16 %v4593
      %v4610 = vunpack.c.l.b16 %v4594
      %v4611 = vunpack.c.l.b16 %v4595
      %v4612 = vunpack.c.l.b16 %v4596
      %v4613 = vunpack.c.l.b16 %v4597
      %v4614 = vunpack.c.l.b16 %v4598
      %v4615 = vunpack.c.l.b16 %v4599
      %v4616 = vunpack.c.l.b16 %v4600
      %v4617 = vpack.c.b16 %v4610, %v4609
      %v4618 = vpack.c.b16 %v4612, %v4611
      %v4619 = vpack.c.b16 %v4614, %v4613
      %v4620 = vpack.c.b16 %v4616, %v4615
      %v4626 = vsel %vm2205, %v4576, 0
      %v4629 = vsel %vm2205, %v4577, 0
      %v4632 = vsel %vm2205, %v4578, 0
      %v4635 = vsel %vm2205, %v4579, 0
      %v4638 = vsel %vm2205, %v4580, 0
      %v4641 = vsel %vm2205, %v4581, 0
      %v4644 = vsel %vm2205, %v4582, 0
      %v4647 = vsel %vm2205, %v4583, 0
      %v4650 = vsel %vm2205, %v4584, 0
      %v4653 = vsel %vm2205, %v4585, 0
      %v4656 = vsel %vm2205, %v4586, 0
      %v4659 = vsel %vm2205, %v4587, 0
      %v4662 = vsel %vm2205, %v4588, 0
      %v4665 = vsel %vm2205, %v4589, 0
      %v4668 = vsel %vm2205, %v4590, 0
      %v4671 = vsel %vm2205, %v4591, 0
      %4673 = vmatprep.subr.bf16.mxu0 0
      %4674 = vmatpush1.bf16.msra.mxu0 0
      %4675 = vmatprep.subr.bf16.mxu0 0
      %4676 = vmatpush1.bf16.msra.mxu0 0
      %4677 = vmatprep.subr.bf16.mxu0 0
      %4678 = vmatpush1.bf16.msra.mxu0 0
      %4679 = vmatprep.subr.bf16.mxu0 0
      %4680 = vmatpush1.bf16.msra.mxu0 0
      %4681 = vmatprep.subr.bf16.mxu0 0
      %4682 = vmatpush1.bf16.msra.mxu0 %v4620
      %4683 = vmatprep.subr.bf16.mxu0 0
      %4684 = vmatpush1.bf16.msra.mxu0 %v4619
      %4685 = vmatprep.subr.bf16.mxu0 0
      %4686 = vmatpush1.bf16.msra.mxu0 %v4618
      %4687 = vmatprep.subr.bf16.mxu0 0
      %4688 = vmatpush1.bf16.msra.mxu0 %v4617
      %4689 = vmatprep.subr.bf16.mxu0 0
      %4690 = vmatpush2.bf16.msra.mxu0 0
      %4691 = vmatprep.subr.bf16.mxu0 0
      %4692 = vmatpush2.bf16.msra.mxu0 0
      %4693 = vmatprep.subr.bf16.mxu0 0
      %4694 = vmatpush2.bf16.msra.mxu0 0
      %4695 = vmatprep.subr.bf16.mxu0 0
      %4696 = vmatpush2.bf16.msra.mxu0 0
      %4697 = vmatprep.subr.bf16.mxu0 0
      %4698 = vmatpush2.bf16.msra.mxu0 0
      %4699 = vmatprep.subr.bf16.mxu0 0
      %4700 = vmatpush2.bf16.msra.mxu0 0
      %4701 = vmatprep.subr.bf16.mxu0 0
      %4702 = vmatpush2.bf16.msra.mxu0 0
      %4703 = vmatprep.subr.bf16.mxu0 0
      %4704 = vmatpush2.bf16.msra.mxu0 0
      %4705 = vmatprep.mubr.bf16.mxu0 0
      %4706 = vmatmul.mubr.bf16.gmra.mxu0 %v4626
      %v4707 = vpop.f32.mrf.mxu0
      %v4708 = vadd.f32 0.0, %v4707
      %v4709 = vpop.f32.mrf.mxu0
      %v4710 = vpop.f32.mrf.mxu0
      %v4711 = vadd.f32 0.0, %v4710
      %v4712 = vpop.f32.mrf.mxu0
      %4713 = vmatprep.mubr.bf16.mxu0 0
      %4714 = vmatmul.mubr.bf16.gmra.mxu0 %v4629
      %v4715 = vpop.f32.mrf.mxu0
      %v4716 = vadd.f32 0.0, %v4715
      %v4717 = vpop.f32.mrf.mxu0
      %v4718 = vpop.f32.mrf.mxu0
      %v4719 = vadd.f32 0.0, %v4718
      %v4720 = vpop.f32.mrf.mxu0
      %4721 = vmatprep.mubr.bf16.mxu0 0
      %4722 = vmatmul.mubr.bf16.gmra.mxu0 %v4632
      %v4723 = vpop.f32.mrf.mxu0
      %v4724 = vadd.f32 0.0, %v4723
      %v4725 = vpop.f32.mrf.mxu0
      %v4726 = vpop.f32.mrf.mxu0
      %v4727 = vadd.f32 0.0, %v4726
      %v4728 = vpop.f32.mrf.mxu0
      %4729 = vmatprep.mubr.bf16.mxu0 0
      %4730 = vmatmul.mubr.bf16.gmra.mxu0 %v4635
      %v4731 = vpop.f32.mrf.mxu0
      %v4732 = vadd.f32 0.0, %v4731
      %v4733 = vpop.f32.mrf.mxu0
      %v4734 = vpop.f32.mrf.mxu0
      %v4735 = vadd.f32 0.0, %v4734
      %v4736 = vpop.f32.mrf.mxu0
      %4737 = vmatprep.mubr.bf16.mxu0 0
      %4738 = vmatmul.mubr.bf16.gmra.mxu0 %v4638
      %v4739 = vpop.f32.mrf.mxu0
      %v4740 = vadd.f32 0.0, %v4739
      %v4741 = vpop.f32.mrf.mxu0
      %v4742 = vpop.f32.mrf.mxu0
      %v4743 = vadd.f32 0.0, %v4742
      %v4744 = vpop.f32.mrf.mxu0
      %4745 = vmatprep.mubr.bf16.mxu0 0
      %4746 = vmatmul.mubr.bf16.gmra.mxu0 %v4641
      %v4747 = vpop.f32.mrf.mxu0
      %v4748 = vadd.f32 0.0, %v4747
      %v4749 = vpop.f32.mrf.mxu0
      %v4750 = vpop.f32.mrf.mxu0
      %v4751 = vadd.f32 0.0, %v4750
      %v4752 = vpop.f32.mrf.mxu0
      %4753 = vmatprep.mubr.bf16.mxu0 0
      %4754 = vmatmul.mubr.bf16.gmra.mxu0 %v4644
      %v4755 = vpop.f32.mrf.mxu0
      %v4756 = vadd.f32 0.0, %v4755
      %v4757 = vpop.f32.mrf.mxu0
      %v4758 = vpop.f32.mrf.mxu0
      %v4759 = vadd.f32 0.0, %v4758
      %v4760 = vpop.f32.mrf.mxu0
      %4761 = vmatprep.mubr.bf16.mxu0 0
      %4762 = vmatmul.mubr.bf16.gmra.mxu0 %v4647
      %v4763 = vpop.f32.mrf.mxu0
      %v4764 = vadd.f32 0.0, %v4763
      %v4765 = vpop.f32.mrf.mxu0
      %v4766 = vpop.f32.mrf.mxu0
      %v4767 = vadd.f32 0.0, %v4766
      %v4768 = vpop.f32.mrf.mxu0
      %4769 = vmatprep.mubr.bf16.mxu0 0
      %4770 = vmatmul.mubr.bf16.gmra.mxu0 %v4650
      %v4771 = vpop.f32.mrf.mxu0
      %v4772 = vadd.f32 0.0, %v4771
      %v4773 = vpop.f32.mrf.mxu0
      %v4774 = vpop.f32.mrf.mxu0
      %v4775 = vadd.f32 0.0, %v4774
      %v4776 = vpop.f32.mrf.mxu0
      %4777 = vmatprep.mubr.bf16.mxu0 0
      %4778 = vmatmul.mubr.bf16.gmra.mxu0 %v4653
      %v4779 = vpop.f32.mrf.mxu0
      %v4780 = vadd.f32 0.0, %v4779
      %v4781 = vpop.f32.mrf.mxu0
      %v4782 = vpop.f32.mrf.mxu0
      %v4783 = vadd.f32 0.0, %v4782
      %v4784 = vpop.f32.mrf.mxu0
      %4785 = vmatprep.mubr.bf16.mxu0 0
      %4786 = vmatmul.mubr.bf16.gmra.mxu0 %v4656
      %v4787 = vpop.f32.mrf.mxu0
      %v4788 = vadd.f32 0.0, %v4787
      %v4789 = vpop.f32.mrf.mxu0
      %v4790 = vpop.f32.mrf.mxu0
      %v4791 = vadd.f32 0.0, %v4790
      %v4792 = vpop.f32.mrf.mxu0
      %4793 = vmatprep.mubr.bf16.mxu0 0
      %4794 = vmatmul.mubr.bf16.gmra.mxu0 %v4659
      %v4795 = vpop.f32.mrf.mxu0
      %v4796 = vadd.f32 0.0, %v4795
      %v4797 = vpop.f32.mrf.mxu0
      %v4798 = vpop.f32.mrf.mxu0
      %v4799 = vadd.f32 0.0, %v4798
      %v4800 = vpop.f32.mrf.mxu0
      %4801 = vmatprep.mubr.bf16.mxu0 0
      %4802 = vmatmul.mubr.bf16.gmra.mxu0 %v4662
      %v4803 = vpop.f32.mrf.mxu0
      %v4804 = vadd.f32 0.0, %v4803
      %v4805 = vpop.f32.mrf.mxu0
      %v4806 = vpop.f32.mrf.mxu0
      %v4807 = vadd.f32 0.0, %v4806
      %v4808 = vpop.f32.mrf.mxu0
      %4809 = vmatprep.mubr.bf16.mxu0 0
      %4810 = vmatmul.mubr.bf16.gmra.mxu0 %v4665
      %v4811 = vpop.f32.mrf.mxu0
      %v4812 = vadd.f32 0.0, %v4811
      %v4813 = vpop.f32.mrf.mxu0
      %v4814 = vpop.f32.mrf.mxu0
      %v4815 = vadd.f32 0.0, %v4814
      %v4816 = vpop.f32.mrf.mxu0
      %4817 = vmatprep.mubr.bf16.mxu0 0
      %4818 = vmatmul.mubr.bf16.gmra.mxu0 %v4668
      %v4819 = vpop.f32.mrf.mxu0
      %v4820 = vadd.f32 0.0, %v4819
      %v4821 = vpop.f32.mrf.mxu0
      %v4822 = vpop.f32.mrf.mxu0
      %v4823 = vadd.f32 0.0, %v4822
      %v4824 = vpop.f32.mrf.mxu0
      %4825 = vmatprep.mubr.bf16.mxu0 0
      %4826 = vmatmul.mubr.bf16.gmra.mxu0 %v4671
      %v4827 = vpop.f32.mrf.mxu0
      %v4828 = vadd.f32 0.0, %v4827
      %v4829 = vpop.f32.mrf.mxu0
      %v4830 = vpop.f32.mrf.mxu0
      %v4831 = vadd.f32 0.0, %v4830
      %v4832 = vpop.f32.mrf.mxu0
      %4833 = vdwg.mxu0
      %v4834 = vadd.f32 %v4512, %v4708
      %v4835 = vadd.f32 %v4513, %v4711
      %v4836 = vadd.f32 %v4514, %v4716
      %v4837 = vadd.f32 %v4515, %v4719
      %v4838 = vadd.f32 %v4516, %v4724
      %v4839 = vadd.f32 %v4517, %v4727
      %v4840 = vadd.f32 %v4518, %v4732
      %v4841 = vadd.f32 %v4519, %v4735
      %v4842 = vadd.f32 %v4520, %v4740
      %v4843 = vadd.f32 %v4521, %v4743
      %v4844 = vadd.f32 %v4522, %v4748
      %v4845 = vadd.f32 %v4523, %v4751
      %v4846 = vadd.f32 %v4524, %v4756
      %v4847 = vadd.f32 %v4525, %v4759
      %v4848 = vadd.f32 %v4526, %v4764
      %v4849 = vadd.f32 %v4527, %v4767
      %v4850 = vadd.f32 %v4528, %v4772
      %v4851 = vadd.f32 %v4529, %v4775
      %v4852 = vadd.f32 %v4530, %v4780
      %v4853 = vadd.f32 %v4531, %v4783
      %v4854 = vadd.f32 %v4532, %v4788
      %v4855 = vadd.f32 %v4533, %v4791
      %v4856 = vadd.f32 %v4534, %v4796
      %v4857 = vadd.f32 %v4535, %v4799
      %v4858 = vadd.f32 %v4536, %v4804
      %v4859 = vadd.f32 %v4537, %v4807
      %v4860 = vadd.f32 %v4538, %v4812
      %v4861 = vadd.f32 %v4539, %v4815
      %v4862 = vadd.f32 %v4540, %v4820
      %v4863 = vadd.f32 %v4541, %v4823
      %v4864 = vadd.f32 %v4542, %v4828
      %v4865 = vadd.f32 %v4543, %v4831
      %s4866 = scalar_lea.vmem [#allocation3], 48
      %v4867 = vld [vmem:[%s4866] sm:$0xff]
      %v4868 = vld [vmem:[%s4866 + $0x8] sm:$0xff]
      %v4869 = vld [vmem:[%s4866 + $0x18] sm:$0xff]
      %v4870 = vld [vmem:[%s4866 + $0x20] sm:$0xff]
      %v4871 = vld [vmem:[%s4866 + $0x30] sm:$0xff]
      %v4872 = vld [vmem:[%s4866 + $0x38] sm:$0xff]
      %v4873 = vld [vmem:[%s4866 + $0x48] sm:$0xff]
      %v4874 = vld [vmem:[%s4866 + $0x50] sm:$0xff]
      %v4875 = vld [vmem:[%s4866 + $0x60] sm:$0xff]
      %v4876 = vld [vmem:[%s4866 + $0x68] sm:$0xff]
      %v4877 = vld [vmem:[%s4866 + $0x78] sm:$0xff]
      %v4878 = vld [vmem:[%s4866 + $0x80] sm:$0xff]
      %v4879 = vld [vmem:[%s4866 + $0x90] sm:$0xff]
      %v4880 = vld [vmem:[%s4866 + $0x98] sm:$0xff]
      %v4881 = vld [vmem:[%s4866 + $0xa8] sm:$0xff]
      %v4882 = vld [vmem:[%s4866 + $0xb0] sm:$0xff]
      %v4883 = vld [vmem:[%s4866 + $0xc0] sm:$0xff]
      %v4884 = vld [vmem:[%s4866 + $0xc8] sm:$0xff]
      %v4885 = vld [vmem:[%s4866 + $0xd8] sm:$0xff]
      %v4886 = vld [vmem:[%s4866 + $0xe0] sm:$0xff]
      %v4887 = vld [vmem:[%s4866 + $0xf0] sm:$0xff]
      %v4888 = vld [vmem:[%s4866 + $0xf8] sm:$0xff]
      %v4889 = vld [vmem:[%s4866 + $0x108] sm:$0xff]
      %v4890 = vld [vmem:[%s4866 + $0x110] sm:$0xff]
      %v4891 = vld [vmem:[%s4866 + $0x120] sm:$0xff]
      %v4892 = vld [vmem:[%s4866 + $0x128] sm:$0xff]
      %v4893 = vld [vmem:[%s4866 + $0x138] sm:$0xff]
      %v4894 = vld [vmem:[%s4866 + $0x140] sm:$0xff]
      %v4895 = vld [vmem:[%s4866 + $0x150] sm:$0xff]
      %v4896 = vld [vmem:[%s4866 + $0x158] sm:$0xff]
      %v4897 = vld [vmem:[%s4866 + $0x168] sm:$0xff]
      %v4898 = vld [vmem:[%s4866 + $0x170] sm:$0xff]
      %v4899 = vpack.c.bf16 %v4868, %v4867
      %v4900 = vpack.c.bf16 %v4870, %v4869
      %v4901 = vpack.c.bf16 %v4872, %v4871
      %v4902 = vpack.c.bf16 %v4874, %v4873
      %v4903 = vpack.c.bf16 %v4876, %v4875
      %v4904 = vpack.c.bf16 %v4878, %v4877
      %v4905 = vpack.c.bf16 %v4880, %v4879
      %v4906 = vpack.c.bf16 %v4882, %v4881
      %v4907 = vpack.c.bf16 %v4884, %v4883
      %v4908 = vpack.c.bf16 %v4886, %v4885
      %v4909 = vpack.c.bf16 %v4888, %v4887
      %v4910 = vpack.c.bf16 %v4890, %v4889
      %v4911 = vpack.c.bf16 %v4892, %v4891
      %v4912 = vpack.c.bf16 %v4894, %v4893
      %v4913 = vpack.c.bf16 %v4896, %v4895
      %v4914 = vpack.c.bf16 %v4898, %v4897
      %s4915 = scalar_lea.vmem %s2, 192
      %v4916 = vld [vmem:[%s4915] sm:$0xf]
      %v4917 = vld [vmem:[%s4915 + $0x4] sm:$0xf]
      %v4918 = vld [vmem:[%s4915 + $0x8] sm:$0xf]
      %v4919 = vld [vmem:[%s4915 + $0xc] sm:$0xf]
      %v4920 = vld [vmem:[%s4915 + $0x10] sm:$0xf]
      %v4921 = vld [vmem:[%s4915 + $0x14] sm:$0xf]
      %v4922 = vld [vmem:[%s4915 + $0x18] sm:$0xf]
      %v4923 = vld [vmem:[%s4915 + $0x1c] sm:$0xf]
      %v4932 = vunpack.c.l.b16 %v4916
      %v4933 = vunpack.c.l.b16 %v4917
      %v4934 = vunpack.c.l.b16 %v4918
      %v4935 = vunpack.c.l.b16 %v4919
      %v4936 = vunpack.c.l.b16 %v4920
      %v4937 = vunpack.c.l.b16 %v4921
      %v4938 = vunpack.c.l.b16 %v4922
      %v4939 = vunpack.c.l.b16 %v4923
      %v4940 = vpack.c.b16 %v4933, %v4932
      %v4941 = vpack.c.b16 %v4935, %v4934
      %v4942 = vpack.c.b16 %v4937, %v4936
      %v4943 = vpack.c.b16 %v4939, %v4938
      %v4949 = vsel %vm2205, %v4899, 0
      %v4952 = vsel %vm2205, %v4900, 0
      %v4955 = vsel %vm2205, %v4901, 0
      %v4958 = vsel %vm2205, %v4902, 0
      %v4961 = vsel %vm2205, %v4903, 0
      %v4964 = vsel %vm2205, %v4904, 0
      %v4967 = vsel %vm2205, %v4905, 0
      %v4970 = vsel %vm2205, %v4906, 0
      %v4973 = vsel %vm2205, %v4907, 0
      %v4976 = vsel %vm2205, %v4908, 0
      %v4979 = vsel %vm2205, %v4909, 0
      %v4982 = vsel %vm2205, %v4910, 0
      %v4985 = vsel %vm2205, %v4911, 0
      %v4988 = vsel %vm2205, %v4912, 0
      %v4991 = vsel %vm2205, %v4913, 0
      %v4994 = vsel %vm2205, %v4914, 0
      %4996 = vmatprep.subr.bf16.mxu0 0
      %4997 = vmatpush1.bf16.msra.mxu0 0
      %4998 = vmatprep.subr.bf16.mxu0 0
      %4999 = vmatpush1.bf16.msra.mxu0 0
      %5000 = vmatprep.subr.bf16.mxu0 0
      %5001 = vmatpush1.bf16.msra.mxu0 0
      %5002 = vmatprep.subr.bf16.mxu0 0
      %5003 = vmatpush1.bf16.msra.mxu0 0
      %5004 = vmatprep.subr.bf16.mxu0 0
      %5005 = vmatpush1.bf16.msra.mxu0 %v4943
      %5006 = vmatprep.subr.bf16.mxu0 0
      %5007 = vmatpush1.bf16.msra.mxu0 %v4942
      %5008 = vmatprep.subr.bf16.mxu0 0
      %5009 = vmatpush1.bf16.msra.mxu0 %v4941
      %5010 = vmatprep.subr.bf16.mxu0 0
      %5011 = vmatpush1.bf16.msra.mxu0 %v4940
      %5012 = vmatprep.subr.bf16.mxu0 0
      %5013 = vmatpush2.bf16.msra.mxu0 0
      %5014 = vmatprep.subr.bf16.mxu0 0
      %5015 = vmatpush2.bf16.msra.mxu0 0
      %5016 = vmatprep.subr.bf16.mxu0 0
      %5017 = vmatpush2.bf16.msra.mxu0 0
      %5018 = vmatprep.subr.bf16.mxu0 0
      %5019 = vmatpush2.bf16.msra.mxu0 0
      %5020 = vmatprep.subr.bf16.mxu0 0
      %5021 = vmatpush2.bf16.msra.mxu0 0
      %5022 = vmatprep.subr.bf16.mxu0 0
      %5023 = vmatpush2.bf16.msra.mxu0 0
      %5024 = vmatprep.subr.bf16.mxu0 0
      %5025 = vmatpush2.bf16.msra.mxu0 0
      %5026 = vmatprep.subr.bf16.mxu0 0
      %5027 = vmatpush2.bf16.msra.mxu0 0
      %5028 = vmatprep.mubr.bf16.mxu0 0
      %5029 = vmatmul.mubr.bf16.gmra.mxu0 %v4949
      %v5030 = vpop.f32.mrf.mxu0
      %v5031 = vadd.f32 0.0, %v5030
      %v5032 = vpop.f32.mrf.mxu0
      %v5033 = vpop.f32.mrf.mxu0
      %v5034 = vadd.f32 0.0, %v5033
      %v5035 = vpop.f32.mrf.mxu0
      %5036 = vmatprep.mubr.bf16.mxu0 0
      %5037 = vmatmul.mubr.bf16.gmra.mxu0 %v4952
      %v5038 = vpop.f32.mrf.mxu0
      %v5039 = vadd.f32 0.0, %v5038
      %v5040 = vpop.f32.mrf.mxu0
      %v5041 = vpop.f32.mrf.mxu0
      %v5042 = vadd.f32 0.0, %v5041
      %v5043 = vpop.f32.mrf.mxu0
      %5044 = vmatprep.mubr.bf16.mxu0 0
      %5045 = vmatmul.mubr.bf16.gmra.mxu0 %v4955
      %v5046 = vpop.f32.mrf.mxu0
      %v5047 = vadd.f32 0.0, %v5046
      %v5048 = vpop.f32.mrf.mxu0
      %v5049 = vpop.f32.mrf.mxu0
      %v5050 = vadd.f32 0.0, %v5049
      %v5051 = vpop.f32.mrf.mxu0
      %5052 = vmatprep.mubr.bf16.mxu0 0
      %5053 = vmatmul.mubr.bf16.gmra.mxu0 %v4958
      %v5054 = vpop.f32.mrf.mxu0
      %v5055 = vadd.f32 0.0, %v5054
      %v5056 = vpop.f32.mrf.mxu0
      %v5057 = vpop.f32.mrf.mxu0
      %v5058 = vadd.f32 0.0, %v5057
      %v5059 = vpop.f32.mrf.mxu0
      %5060 = vmatprep.mubr.bf16.mxu0 0
      %5061 = vmatmul.mubr.bf16.gmra.mxu0 %v4961
      %v5062 = vpop.f32.mrf.mxu0
      %v5063 = vadd.f32 0.0, %v5062
      %v5064 = vpop.f32.mrf.mxu0
      %v5065 = vpop.f32.mrf.mxu0
      %v5066 = vadd.f32 0.0, %v5065
      %v5067 = vpop.f32.mrf.mxu0
      %5068 = vmatprep.mubr.bf16.mxu0 0
      %5069 = vmatmul.mubr.bf16.gmra.mxu0 %v4964
      %v5070 = vpop.f32.mrf.mxu0
      %v5071 = vadd.f32 0.0, %v5070
      %v5072 = vpop.f32.mrf.mxu0
      %v5073 = vpop.f32.mrf.mxu0
      %v5074 = vadd.f32 0.0, %v5073
      %v5075 = vpop.f32.mrf.mxu0
      %5076 = vmatprep.mubr.bf16.mxu0 0
      %5077 = vmatmul.mubr.bf16.gmra.mxu0 %v4967
      %v5078 = vpop.f32.mrf.mxu0
      %v5079 = vadd.f32 0.0, %v5078
      %v5080 = vpop.f32.mrf.mxu0
      %v5081 = vpop.f32.mrf.mxu0
      %v5082 = vadd.f32 0.0, %v5081
      %v5083 = vpop.f32.mrf.mxu0
      %5084 = vmatprep.mubr.bf16.mxu0 0
      %5085 = vmatmul.mubr.bf16.gmra.mxu0 %v4970
      %v5086 = vpop.f32.mrf.mxu0
      %v5087 = vadd.f32 0.0, %v5086
      %v5088 = vpop.f32.mrf.mxu0
      %v5089 = vpop.f32.mrf.mxu0
      %v5090 = vadd.f32 0.0, %v5089
      %v5091 = vpop.f32.mrf.mxu0
      %5092 = vmatprep.mubr.bf16.mxu0 0
      %5093 = vmatmul.mubr.bf16.gmra.mxu0 %v4973
      %v5094 = vpop.f32.mrf.mxu0
      %v5095 = vadd.f32 0.0, %v5094
      %v5096 = vpop.f32.mrf.mxu0
      %v5097 = vpop.f32.mrf.mxu0
      %v5098 = vadd.f32 0.0, %v5097
      %v5099 = vpop.f32.mrf.mxu0
      %5100 = vmatprep.mubr.bf16.mxu0 0
      %5101 = vmatmul.mubr.bf16.gmra.mxu0 %v4976
      %v5102 = vpop.f32.mrf.mxu0
      %v5103 = vadd.f32 0.0, %v5102
      %v5104 = vpop.f32.mrf.mxu0
      %v5105 = vpop.f32.mrf.mxu0
      %v5106 = vadd.f32 0.0, %v5105
      %v5107 = vpop.f32.mrf.mxu0
      %5108 = vmatprep.mubr.bf16.mxu0 0
      %5109 = vmatmul.mubr.bf16.gmra.mxu0 %v4979
      %v5110 = vpop.f32.mrf.mxu0
      %v5111 = vadd.f32 0.0, %v5110
      %v5112 = vpop.f32.mrf.mxu0
      %v5113 = vpop.f32.mrf.mxu0
      %v5114 = vadd.f32 0.0, %v5113
      %v5115 = vpop.f32.mrf.mxu0
      %5116 = vmatprep.mubr.bf16.mxu0 0
      %5117 = vmatmul.mubr.bf16.gmra.mxu0 %v4982
      %v5118 = vpop.f32.mrf.mxu0
      %v5119 = vadd.f32 0.0, %v5118
      %v5120 = vpop.f32.mrf.mxu0
      %v5121 = vpop.f32.mrf.mxu0
      %v5122 = vadd.f32 0.0, %v5121
      %v5123 = vpop.f32.mrf.mxu0
      %5124 = vmatprep.mubr.bf16.mxu0 0
      %5125 = vmatmul.mubr.bf16.gmra.mxu0 %v4985
      %v5126 = vpop.f32.mrf.mxu0
      %v5127 = vadd.f32 0.0, %v5126
      %v5128 = vpop.f32.mrf.mxu0
      %v5129 = vpop.f32.mrf.mxu0
      %v5130 = vadd.f32 0.0, %v5129
      %v5131 = vpop.f32.mrf.mxu0
      %5132 = vmatprep.mubr.bf16.mxu0 0
      %5133 = vmatmul.mubr.bf16.gmra.mxu0 %v4988
      %v5134 = vpop.f32.mrf.mxu0
      %v5135 = vadd.f32 0.0, %v5134
      %v5136 = vpop.f32.mrf.mxu0
      %v5137 = vpop.f32.mrf.mxu0
      %v5138 = vadd.f32 0.0, %v5137
      %v5139 = vpop.f32.mrf.mxu0
      %5140 = vmatprep.mubr.bf16.mxu0 0
      %5141 = vmatmul.mubr.bf16.gmra.mxu0 %v4991
      %v5142 = vpop.f32.mrf.mxu0
      %v5143 = vadd.f32 0.0, %v5142
      %v5144 = vpop.f32.mrf.mxu0
      %v5145 = vpop.f32.mrf.mxu0
      %v5146 = vadd.f32 0.0, %v5145
      %v5147 = vpop.f32.mrf.mxu0
      %5148 = vmatprep.mubr.bf16.mxu0 0
      %5149 = vmatmul.mubr.bf16.gmra.mxu0 %v4994
      %v5150 = vpop.f32.mrf.mxu0
      %v5151 = vadd.f32 0.0, %v5150
      %v5152 = vpop.f32.mrf.mxu0
      %v5153 = vpop.f32.mrf.mxu0
      %v5154 = vadd.f32 0.0, %v5153
      %v5155 = vpop.f32.mrf.mxu0
      %5156 = vdwg.mxu0
      %v5157 = vadd.f32 %v4834, %v5031
      %v5158 = vadd.f32 %v4835, %v5034
      %v5159 = vadd.f32 %v4836, %v5039
      %v5160 = vadd.f32 %v4837, %v5042
      %v5161 = vadd.f32 %v4838, %v5047
      %v5162 = vadd.f32 %v4839, %v5050
      %v5163 = vadd.f32 %v4840, %v5055
      %v5164 = vadd.f32 %v4841, %v5058
      %v5165 = vadd.f32 %v4842, %v5063
      %v5166 = vadd.f32 %v4843, %v5066
      %v5167 = vadd.f32 %v4844, %v5071
      %v5168 = vadd.f32 %v4845, %v5074
      %v5169 = vadd.f32 %v4846, %v5079
      %v5170 = vadd.f32 %v4847, %v5082
      %v5171 = vadd.f32 %v4848, %v5087
      %v5172 = vadd.f32 %v4849, %v5090
      %v5173 = vadd.f32 %v4850, %v5095
      %v5174 = vadd.f32 %v4851, %v5098
      %v5175 = vadd.f32 %v4852, %v5103
      %v5176 = vadd.f32 %v4853, %v5106
      %v5177 = vadd.f32 %v4854, %v5111
      %v5178 = vadd.f32 %v4855, %v5114
      %v5179 = vadd.f32 %v4856, %v5119
      %v5180 = vadd.f32 %v4857, %v5122
      %v5181 = vadd.f32 %v4858, %v5127
      %v5182 = vadd.f32 %v4859, %v5130
      %v5183 = vadd.f32 %v4860, %v5135
      %v5184 = vadd.f32 %v4861, %v5138
      %v5185 = vadd.f32 %v4862, %v5143
      %v5186 = vadd.f32 %v4863, %v5146
      %v5187 = vadd.f32 %v4864, %v5151
      %v5188 = vadd.f32 %v4865, %v5154
      %v5189 = vld [vmem:[%s4866 + $0x1] sm:$0xff]
      %v5190 = vld [vmem:[%s4866 + $0x9] sm:$0xff]
      %v5191 = vld [vmem:[%s4866 + $0x19] sm:$0xff]
      %v5192 = vld [vmem:[%s4866 + $0x21] sm:$0xff]
      %v5193 = vld [vmem:[%s4866 + $0x31] sm:$0xff]
      %v5194 = vld [vmem:[%s4866 + $0x39] sm:$0xff]
      %v5195 = vld [vmem:[%s4866 + $0x49] sm:$0xff]
      %v5196 = vld [vmem:[%s4866 + $0x51] sm:$0xff]
      %v5197 = vld [vmem:[%s4866 + $0x61] sm:$0xff]
      %v5198 = vld [vmem:[%s4866 + $0x69] sm:$0xff]
      %v5199 = vld [vmem:[%s4866 + $0x79] sm:$0xff]
      %v5200 = vld [vmem:[%s4866 + $0x81] sm:$0xff]
      %v5201 = vld [vmem:[%s4866 + $0x91] sm:$0xff]
      %v5202 = vld [vmem:[%s4866 + $0x99] sm:$0xff]
      %v5203 = vld [vmem:[%s4866 + $0xa9] sm:$0xff]
      %v5204 = vld [vmem:[%s4866 + $0xb1] sm:$0xff]
      %v5205 = vld [vmem:[%s4866 + $0xc1] sm:$0xff]
      %v5206 = vld [vmem:[%s4866 + $0xc9] sm:$0xff]
      %v5207 = vld [vmem:[%s4866 + $0xd9] sm:$0xff]
      %v5208 = vld [vmem:[%s4866 + $0xe1] sm:$0xff]
      %v5209 = vld [vmem:[%s4866 + $0xf1] sm:$0xff]
      %v5210 = vld [vmem:[%s4866 + $0xf9] sm:$0xff]
      %v5211 = vld [vmem:[%s4866 + $0x109] sm:$0xff]
      %v5212 = vld [vmem:[%s4866 + $0x111] sm:$0xff]
      %v5213 = vld [vmem:[%s4866 + $0x121] sm:$0xff]
      %v5214 = vld [vmem:[%s4866 + $0x129] sm:$0xff]
      %v5215 = vld [vmem:[%s4866 + $0x139] sm:$0xff]
      %v5216 = vld [vmem:[%s4866 + $0x141] sm:$0xff]
      %v5217 = vld [vmem:[%s4866 + $0x151] sm:$0xff]
      %v5218 = vld [vmem:[%s4866 + $0x159] sm:$0xff]
      %v5219 = vld [vmem:[%s4866 + $0x169] sm:$0xff]
      %v5220 = vld [vmem:[%s4866 + $0x171] sm:$0xff]
      %v5221 = vpack.c.bf16 %v5190, %v5189
      %v5222 = vpack.c.bf16 %v5192, %v5191
      %v5223 = vpack.c.bf16 %v5194, %v5193
      %v5224 = vpack.c.bf16 %v5196, %v5195
      %v5225 = vpack.c.bf16 %v5198, %v5197
      %v5226 = vpack.c.bf16 %v5200, %v5199
      %v5227 = vpack.c.bf16 %v5202, %v5201
      %v5228 = vpack.c.bf16 %v5204, %v5203
      %v5229 = vpack.c.bf16 %v5206, %v5205
      %v5230 = vpack.c.bf16 %v5208, %v5207
      %v5231 = vpack.c.bf16 %v5210, %v5209
      %v5232 = vpack.c.bf16 %v5212, %v5211
      %v5233 = vpack.c.bf16 %v5214, %v5213
      %v5234 = vpack.c.bf16 %v5216, %v5215
      %v5235 = vpack.c.bf16 %v5218, %v5217
      %v5236 = vpack.c.bf16 %v5220, %v5219
      %s5237 = scalar_lea.vmem %s2, 224
      %v5238 = vld [vmem:[%s5237] sm:$0xf]
      %v5239 = vld [vmem:[%s5237 + $0x4] sm:$0xf]
      %v5240 = vld [vmem:[%s5237 + $0x8] sm:$0xf]
      %v5241 = vld [vmem:[%s5237 + $0xc] sm:$0xf]
      %v5242 = vld [vmem:[%s5237 + $0x10] sm:$0xf]
      %v5243 = vld [vmem:[%s5237 + $0x14] sm:$0xf]
      %v5244 = vld [vmem:[%s5237 + $0x18] sm:$0xf]
      %v5245 = vld [vmem:[%s5237 + $0x1c] sm:$0xf]
      %v5254 = vunpack.c.l.b16 %v5238
      %v5255 = vunpack.c.l.b16 %v5239
      %v5256 = vunpack.c.l.b16 %v5240
      %v5257 = vunpack.c.l.b16 %v5241
      %v5258 = vunpack.c.l.b16 %v5242
      %v5259 = vunpack.c.l.b16 %v5243
      %v5260 = vunpack.c.l.b16 %v5244
      %v5261 = vunpack.c.l.b16 %v5245
      %v5262 = vpack.c.b16 %v5255, %v5254
      %v5263 = vpack.c.b16 %v5257, %v5256
      %v5264 = vpack.c.b16 %v5259, %v5258
      %v5265 = vpack.c.b16 %v5261, %v5260
      %v5271 = vsel %vm2205, %v5221, 0
      %v5274 = vsel %vm2205, %v5222, 0
      %v5277 = vsel %vm2205, %v5223, 0
      %v5280 = vsel %vm2205, %v5224, 0
      %v5283 = vsel %vm2205, %v5225, 0
      %v5286 = vsel %vm2205, %v5226, 0
      %v5289 = vsel %vm2205, %v5227, 0
      %v5292 = vsel %vm2205, %v5228, 0
      %v5295 = vsel %vm2205, %v5229, 0
      %v5298 = vsel %vm2205, %v5230, 0
      %v5301 = vsel %vm2205, %v5231, 0
      %v5304 = vsel %vm2205, %v5232, 0
      %v5307 = vsel %vm2205, %v5233, 0
      %v5310 = vsel %vm2205, %v5234, 0
      %v5313 = vsel %vm2205, %v5235, 0
      %v5316 = vsel %vm2205, %v5236, 0
      %5318 = vmatprep.subr.bf16.mxu0 0
      %5319 = vmatpush1.bf16.msra.mxu0 0
      %5320 = vmatprep.subr.bf16.mxu0 0
      %5321 = vmatpush1.bf16.msra.mxu0 0
      %5322 = vmatprep.subr.bf16.mxu0 0
      %5323 = vmatpush1.bf16.msra.mxu0 0
      %5324 = vmatprep.subr.bf16.mxu0 0
      %5325 = vmatpush1.bf16.msra.mxu0 0
      %5326 = vmatprep.subr.bf16.mxu0 0
      %5327 = vmatpush1.bf16.msra.mxu0 %v5265
      %5328 = vmatprep.subr.bf16.mxu0 0
      %5329 = vmatpush1.bf16.msra.mxu0 %v5264
      %5330 = vmatprep.subr.bf16.mxu0 0
      %5331 = vmatpush1.bf16.msra.mxu0 %v5263
      %5332 = vmatprep.subr.bf16.mxu0 0
      %5333 = vmatpush1.bf16.msra.mxu0 %v5262
      %5334 = vmatprep.subr.bf16.mxu0 0
      %5335 = vmatpush2.bf16.msra.mxu0 0
      %5336 = vmatprep.subr.bf16.mxu0 0
      %5337 = vmatpush2.bf16.msra.mxu0 0
      %5338 = vmatprep.subr.bf16.mxu0 0
      %5339 = vmatpush2.bf16.msra.mxu0 0
      %5340 = vmatprep.subr.bf16.mxu0 0
      %5341 = vmatpush2.bf16.msra.mxu0 0
      %5342 = vmatprep.subr.bf16.mxu0 0
      %5343 = vmatpush2.bf16.msra.mxu0 0
      %5344 = vmatprep.subr.bf16.mxu0 0
      %5345 = vmatpush2.bf16.msra.mxu0 0
      %5346 = vmatprep.subr.bf16.mxu0 0
      %5347 = vmatpush2.bf16.msra.mxu0 0
      %5348 = vmatprep.subr.bf16.mxu0 0
      %5349 = vmatpush2.bf16.msra.mxu0 0
      %5350 = vmatprep.mubr.bf16.mxu0 0
      %5351 = vmatmul.mubr.bf16.gmra.mxu0 %v5271
      %v5352 = vpop.f32.mrf.mxu0
      %v5353 = vadd.f32 0.0, %v5352
      %v5354 = vpop.f32.mrf.mxu0
      %v5355 = vpop.f32.mrf.mxu0
      %v5356 = vadd.f32 0.0, %v5355
      %v5357 = vpop.f32.mrf.mxu0
      %5358 = vmatprep.mubr.bf16.mxu0 0
      %5359 = vmatmul.mubr.bf16.gmra.mxu0 %v5274
      %v5360 = vpop.f32.mrf.mxu0
      %v5361 = vadd.f32 0.0, %v5360
      %v5362 = vpop.f32.mrf.mxu0
      %v5363 = vpop.f32.mrf.mxu0
      %v5364 = vadd.f32 0.0, %v5363
      %v5365 = vpop.f32.mrf.mxu0
      %5366 = vmatprep.mubr.bf16.mxu0 0
      %5367 = vmatmul.mubr.bf16.gmra.mxu0 %v5277
      %v5368 = vpop.f32.mrf.mxu0
      %v5369 = vadd.f32 0.0, %v5368
      %v5370 = vpop.f32.mrf.mxu0
      %v5371 = vpop.f32.mrf.mxu0
      %v5372 = vadd.f32 0.0, %v5371
      %v5373 = vpop.f32.mrf.mxu0
      %5374 = vmatprep.mubr.bf16.mxu0 0
      %5375 = vmatmul.mubr.bf16.gmra.mxu0 %v5280
      %v5376 = vpop.f32.mrf.mxu0
      %v5377 = vadd.f32 0.0, %v5376
      %v5378 = vpop.f32.mrf.mxu0
      %v5379 = vpop.f32.mrf.mxu0
      %v5380 = vadd.f32 0.0, %v5379
      %v5381 = vpop.f32.mrf.mxu0
      %5382 = vmatprep.mubr.bf16.mxu0 0
      %5383 = vmatmul.mubr.bf16.gmra.mxu0 %v5283
      %v5384 = vpop.f32.mrf.mxu0
      %v5385 = vadd.f32 0.0, %v5384
      %v5386 = vpop.f32.mrf.mxu0
      %v5387 = vpop.f32.mrf.mxu0
      %v5388 = vadd.f32 0.0, %v5387
      %v5389 = vpop.f32.mrf.mxu0
      %5390 = vmatprep.mubr.bf16.mxu0 0
      %5391 = vmatmul.mubr.bf16.gmra.mxu0 %v5286
      %v5392 = vpop.f32.mrf.mxu0
      %v5393 = vadd.f32 0.0, %v5392
      %v5394 = vpop.f32.mrf.mxu0
      %v5395 = vpop.f32.mrf.mxu0
      %v5396 = vadd.f32 0.0, %v5395
      %v5397 = vpop.f32.mrf.mxu0
      %5398 = vmatprep.mubr.bf16.mxu0 0
      %5399 = vmatmul.mubr.bf16.gmra.mxu0 %v5289
      %v5400 = vpop.f32.mrf.mxu0
      %v5401 = vadd.f32 0.0, %v5400
      %v5402 = vpop.f32.mrf.mxu0
      %v5403 = vpop.f32.mrf.mxu0
      %v5404 = vadd.f32 0.0, %v5403
      %v5405 = vpop.f32.mrf.mxu0
      %5406 = vmatprep.mubr.bf16.mxu0 0
      %5407 = vmatmul.mubr.bf16.gmra.mxu0 %v5292
      %v5408 = vpop.f32.mrf.mxu0
      %v5409 = vadd.f32 0.0, %v5408
      %v5410 = vpop.f32.mrf.mxu0
      %v5411 = vpop.f32.mrf.mxu0
      %v5412 = vadd.f32 0.0, %v5411
      %v5413 = vpop.f32.mrf.mxu0
      %5414 = vmatprep.mubr.bf16.mxu0 0
      %5415 = vmatmul.mubr.bf16.gmra.mxu0 %v5295
      %v5416 = vpop.f32.mrf.mxu0
      %v5417 = vadd.f32 0.0, %v5416
      %v5418 = vpop.f32.mrf.mxu0
      %v5419 = vpop.f32.mrf.mxu0
      %v5420 = vadd.f32 0.0, %v5419
      %v5421 = vpop.f32.mrf.mxu0
      %5422 = vmatprep.mubr.bf16.mxu0 0
      %5423 = vmatmul.mubr.bf16.gmra.mxu0 %v5298
      %v5424 = vpop.f32.mrf.mxu0
      %v5425 = vadd.f32 0.0, %v5424
      %v5426 = vpop.f32.mrf.mxu0
      %v5427 = vpop.f32.mrf.mxu0
      %v5428 = vadd.f32 0.0, %v5427
      %v5429 = vpop.f32.mrf.mxu0
      %5430 = vmatprep.mubr.bf16.mxu0 0
      %5431 = vmatmul.mubr.bf16.gmra.mxu0 %v5301
      %v5432 = vpop.f32.mrf.mxu0
      %v5433 = vadd.f32 0.0, %v5432
      %v5434 = vpop.f32.mrf.mxu0
      %v5435 = vpop.f32.mrf.mxu0
      %v5436 = vadd.f32 0.0, %v5435
      %v5437 = vpop.f32.mrf.mxu0
      %5438 = vmatprep.mubr.bf16.mxu0 0
      %5439 = vmatmul.mubr.bf16.gmra.mxu0 %v5304
      %v5440 = vpop.f32.mrf.mxu0
      %v5441 = vadd.f32 0.0, %v5440
      %v5442 = vpop.f32.mrf.mxu0
      %v5443 = vpop.f32.mrf.mxu0
      %v5444 = vadd.f32 0.0, %v5443
      %v5445 = vpop.f32.mrf.mxu0
      %5446 = vmatprep.mubr.bf16.mxu0 0
      %5447 = vmatmul.mubr.bf16.gmra.mxu0 %v5307
      %v5448 = vpop.f32.mrf.mxu0
      %v5449 = vadd.f32 0.0, %v5448
      %v5450 = vpop.f32.mrf.mxu0
      %v5451 = vpop.f32.mrf.mxu0
      %v5452 = vadd.f32 0.0, %v5451
      %v5453 = vpop.f32.mrf.mxu0
      %5454 = vmatprep.mubr.bf16.mxu0 0
      %5455 = vmatmul.mubr.bf16.gmra.mxu0 %v5310
      %v5456 = vpop.f32.mrf.mxu0
      %v5457 = vadd.f32 0.0, %v5456
      %v5458 = vpop.f32.mrf.mxu0
      %v5459 = vpop.f32.mrf.mxu0
      %v5460 = vadd.f32 0.0, %v5459
      %v5461 = vpop.f32.mrf.mxu0
      %5462 = vmatprep.mubr.bf16.mxu0 0
      %5463 = vmatmul.mubr.bf16.gmra.mxu0 %v5313
      %v5464 = vpop.f32.mrf.mxu0
      %v5465 = vadd.f32 0.0, %v5464
      %v5466 = vpop.f32.mrf.mxu0
      %v5467 = vpop.f32.mrf.mxu0
      %v5468 = vadd.f32 0.0, %v5467
      %v5469 = vpop.f32.mrf.mxu0
      %5470 = vmatprep.mubr.bf16.mxu0 0
      %5471 = vmatmul.mubr.bf16.gmra.mxu0 %v5316
      %v5472 = vpop.f32.mrf.mxu0
      %v5473 = vadd.f32 0.0, %v5472
      %v5474 = vpop.f32.mrf.mxu0
      %v5475 = vpop.f32.mrf.mxu0
      %v5476 = vadd.f32 0.0, %v5475
      %v5477 = vpop.f32.mrf.mxu0
      %5478 = vdwg.mxu0
      %v5479 = vadd.f32 %v5157, %v5353
      %v5480 = vadd.f32 %v5158, %v5356
      %v5481 = vadd.f32 %v5159, %v5361
      %v5482 = vadd.f32 %v5160, %v5364
      %v5483 = vadd.f32 %v5161, %v5369
      %v5484 = vadd.f32 %v5162, %v5372
      %v5485 = vadd.f32 %v5163, %v5377
      %v5486 = vadd.f32 %v5164, %v5380
      %v5487 = vadd.f32 %v5165, %v5385
      %v5488 = vadd.f32 %v5166, %v5388
      %v5489 = vadd.f32 %v5167, %v5393
      %v5490 = vadd.f32 %v5168, %v5396
      %v5491 = vadd.f32 %v5169, %v5401
      %v5492 = vadd.f32 %v5170, %v5404
      %v5493 = vadd.f32 %v5171, %v5409
      %v5494 = vadd.f32 %v5172, %v5412
      %v5495 = vadd.f32 %v5173, %v5417
      %v5496 = vadd.f32 %v5174, %v5420
      %v5497 = vadd.f32 %v5175, %v5425
      %v5498 = vadd.f32 %v5176, %v5428
      %v5499 = vadd.f32 %v5177, %v5433
      %v5500 = vadd.f32 %v5178, %v5436
      %v5501 = vadd.f32 %v5179, %v5441
      %v5502 = vadd.f32 %v5180, %v5444
      %v5503 = vadd.f32 %v5181, %v5449
      %v5504 = vadd.f32 %v5182, %v5452
      %v5505 = vadd.f32 %v5183, %v5457
      %v5506 = vadd.f32 %v5184, %v5460
      %v5507 = vadd.f32 %v5185, %v5465
      %v5508 = vadd.f32 %v5186, %v5468
      %v5509 = vadd.f32 %v5187, %v5473
      %v5510 = vadd.f32 %v5188, %v5476
      %v5511 = vld [vmem:[%s4866 + $0x2] sm:$0xff]
      %v5512 = vld [vmem:[%s4866 + $0xa] sm:$0xff]
      %v5513 = vld [vmem:[%s4866 + $0x1a] sm:$0xff]
      %v5514 = vld [vmem:[%s4866 + $0x22] sm:$0xff]
      %v5515 = vld [vmem:[%s4866 + $0x32] sm:$0xff]
      %v5516 = vld [vmem:[%s4866 + $0x3a] sm:$0xff]
      %v5517 = vld [vmem:[%s4866 + $0x4a] sm:$0xff]
      %v5518 = vld [vmem:[%s4866 + $0x52] sm:$0xff]
      %v5519 = vld [vmem:[%s4866 + $0x62] sm:$0xff]
      %v5520 = vld [vmem:[%s4866 + $0x6a] sm:$0xff]
      %v5521 = vld [vmem:[%s4866 + $0x7a] sm:$0xff]
      %v5522 = vld [vmem:[%s4866 + $0x82] sm:$0xff]
      %v5523 = vld [vmem:[%s4866 + $0x92] sm:$0xff]
      %v5524 = vld [vmem:[%s4866 + $0x9a] sm:$0xff]
      %v5525 = vld [vmem:[%s4866 + $0xaa] sm:$0xff]
      %v5526 = vld [vmem:[%s4866 + $0xb2] sm:$0xff]
      %v5527 = vld [vmem:[%s4866 + $0xc2] sm:$0xff]
      %v5528 = vld [vmem:[%s4866 + $0xca] sm:$0xff]
      %v5529 = vld [vmem:[%s4866 + $0xda] sm:$0xff]
      %v5530 = vld [vmem:[%s4866 + $0xe2] sm:$0xff]
      %v5531 = vld [vmem:[%s4866 + $0xf2] sm:$0xff]
      %v5532 = vld [vmem:[%s4866 + $0xfa] sm:$0xff]
      %v5533 = vld [vmem:[%s4866 + $0x10a] sm:$0xff]
      %v5534 = vld [vmem:[%s4866 + $0x112] sm:$0xff]
      %v5535 = vld [vmem:[%s4866 + $0x122] sm:$0xff]
      %v5536 = vld [vmem:[%s4866 + $0x12a] sm:$0xff]
      %v5537 = vld [vmem:[%s4866 + $0x13a] sm:$0xff]
      %v5538 = vld [vmem:[%s4866 + $0x142] sm:$0xff]
      %v5539 = vld [vmem:[%s4866 + $0x152] sm:$0xff]
      %v5540 = vld [vmem:[%s4866 + $0x15a] sm:$0xff]
      %v5541 = vld [vmem:[%s4866 + $0x16a] sm:$0xff]
      %v5542 = vld [vmem:[%s4866 + $0x172] sm:$0xff]
      %v5543 = vpack.c.bf16 %v5512, %v5511
      %v5544 = vpack.c.bf16 %v5514, %v5513
      %v5545 = vpack.c.bf16 %v5516, %v5515
      %v5546 = vpack.c.bf16 %v5518, %v5517
      %v5547 = vpack.c.bf16 %v5520, %v5519
      %v5548 = vpack.c.bf16 %v5522, %v5521
      %v5549 = vpack.c.bf16 %v5524, %v5523
      %v5550 = vpack.c.bf16 %v5526, %v5525
      %v5551 = vpack.c.bf16 %v5528, %v5527
      %v5552 = vpack.c.bf16 %v5530, %v5529
      %v5553 = vpack.c.bf16 %v5532, %v5531
      %v5554 = vpack.c.bf16 %v5534, %v5533
      %v5555 = vpack.c.bf16 %v5536, %v5535
      %v5556 = vpack.c.bf16 %v5538, %v5537
      %v5557 = vpack.c.bf16 %v5540, %v5539
      %v5558 = vpack.c.bf16 %v5542, %v5541
      %s5559 = scalar_lea.vmem %s2, 256
      %v5560 = vld [vmem:[%s5559] sm:$0xf]
      %v5561 = vld [vmem:[%s5559 + $0x4] sm:$0xf]
      %v5562 = vld [vmem:[%s5559 + $0x8] sm:$0xf]
      %v5563 = vld [vmem:[%s5559 + $0xc] sm:$0xf]
      %v5564 = vld [vmem:[%s5559 + $0x10] sm:$0xf]
      %v5565 = vld [vmem:[%s5559 + $0x14] sm:$0xf]
      %v5566 = vld [vmem:[%s5559 + $0x18] sm:$0xf]
      %v5567 = vld [vmem:[%s5559 + $0x1c] sm:$0xf]
      %v5576 = vunpack.c.l.b16 %v5560
      %v5577 = vunpack.c.l.b16 %v5561
      %v5578 = vunpack.c.l.b16 %v5562
      %v5579 = vunpack.c.l.b16 %v5563
      %v5580 = vunpack.c.l.b16 %v5564
      %v5581 = vunpack.c.l.b16 %v5565
      %v5582 = vunpack.c.l.b16 %v5566
      %v5583 = vunpack.c.l.b16 %v5567
      %v5584 = vpack.c.b16 %v5577, %v5576
      %v5585 = vpack.c.b16 %v5579, %v5578
      %v5586 = vpack.c.b16 %v5581, %v5580
      %v5587 = vpack.c.b16 %v5583, %v5582
      %v5593 = vsel %vm2205, %v5543, 0
      %v5596 = vsel %vm2205, %v5544, 0
      %v5599 = vsel %vm2205, %v5545, 0
      %v5602 = vsel %vm2205, %v5546, 0
      %v5605 = vsel %vm2205, %v5547, 0
      %v5608 = vsel %vm2205, %v5548, 0
      %v5611 = vsel %vm2205, %v5549, 0
      %v5614 = vsel %vm2205, %v5550, 0
      %v5617 = vsel %vm2205, %v5551, 0
      %v5620 = vsel %vm2205, %v5552, 0
      %v5623 = vsel %vm2205, %v5553, 0
      %v5626 = vsel %vm2205, %v5554, 0
      %v5629 = vsel %vm2205, %v5555, 0
      %v5632 = vsel %vm2205, %v5556, 0
      %v5635 = vsel %vm2205, %v5557, 0
      %v5638 = vsel %vm2205, %v5558, 0
      %5640 = vmatprep.subr.bf16.mxu0 0
      %5641 = vmatpush1.bf16.msra.mxu0 0
      %5642 = vmatprep.subr.bf16.mxu0 0
      %5643 = vmatpush1.bf16.msra.mxu0 0
      %5644 = vmatprep.subr.bf16.mxu0 0
      %5645 = vmatpush1.bf16.msra.mxu0 0
      %5646 = vmatprep.subr.bf16.mxu0 0
      %5647 = vmatpush1.bf16.msra.mxu0 0
      %5648 = vmatprep.subr.bf16.mxu0 0
      %5649 = vmatpush1.bf16.msra.mxu0 %v5587
      %5650 = vmatprep.subr.bf16.mxu0 0
      %5651 = vmatpush1.bf16.msra.mxu0 %v5586
      %5652 = vmatprep.subr.bf16.mxu0 0
      %5653 = vmatpush1.bf16.msra.mxu0 %v5585
      %5654 = vmatprep.subr.bf16.mxu0 0
      %5655 = vmatpush1.bf16.msra.mxu0 %v5584
      %5656 = vmatprep.subr.bf16.mxu0 0
      %5657 = vmatpush2.bf16.msra.mxu0 0
      %5658 = vmatprep.subr.bf16.mxu0 0
      %5659 = vmatpush2.bf16.msra.mxu0 0
      %5660 = vmatprep.subr.bf16.mxu0 0
      %5661 = vmatpush2.bf16.msra.mxu0 0
      %5662 = vmatprep.subr.bf16.mxu0 0
      %5663 = vmatpush2.bf16.msra.mxu0 0
      %5664 = vmatprep.subr.bf16.mxu0 0
      %5665 = vmatpush2.bf16.msra.mxu0 0
      %5666 = vmatprep.subr.bf16.mxu0 0
      %5667 = vmatpush2.bf16.msra.mxu0 0
      %5668 = vmatprep.subr.bf16.mxu0 0
      %5669 = vmatpush2.bf16.msra.mxu0 0
      %5670 = vmatprep.subr.bf16.mxu0 0
      %5671 = vmatpush2.bf16.msra.mxu0 0
      %5672 = vmatprep.mubr.bf16.mxu0 0
      %5673 = vmatmul.mubr.bf16.gmra.mxu0 %v5593
      %v5674 = vpop.f32.mrf.mxu0
      %v5675 = vadd.f32 0.0, %v5674
      %v5676 = vpop.f32.mrf.mxu0
      %v5677 = vpop.f32.mrf.mxu0
      %v5678 = vadd.f32 0.0, %v5677
      %v5679 = vpop.f32.mrf.mxu0
      %5680 = vmatprep.mubr.bf16.mxu0 0
      %5681 = vmatmul.mubr.bf16.gmra.mxu0 %v5596
      %v5682 = vpop.f32.mrf.mxu0
      %v5683 = vadd.f32 0.0, %v5682
      %v5684 = vpop.f32.mrf.mxu0
      %v5685 = vpop.f32.mrf.mxu0
      %v5686 = vadd.f32 0.0, %v5685
      %v5687 = vpop.f32.mrf.mxu0
      %5688 = vmatprep.mubr.bf16.mxu0 0
      %5689 = vmatmul.mubr.bf16.gmra.mxu0 %v5599
      %v5690 = vpop.f32.mrf.mxu0
      %v5691 = vadd.f32 0.0, %v5690
      %v5692 = vpop.f32.mrf.mxu0
      %v5693 = vpop.f32.mrf.mxu0
      %v5694 = vadd.f32 0.0, %v5693
      %v5695 = vpop.f32.mrf.mxu0
      %5696 = vmatprep.mubr.bf16.mxu0 0
      %5697 = vmatmul.mubr.bf16.gmra.mxu0 %v5602
      %v5698 = vpop.f32.mrf.mxu0
      %v5699 = vadd.f32 0.0, %v5698
      %v5700 = vpop.f32.mrf.mxu0
      %v5701 = vpop.f32.mrf.mxu0
      %v5702 = vadd.f32 0.0, %v5701
      %v5703 = vpop.f32.mrf.mxu0
      %5704 = vmatprep.mubr.bf16.mxu0 0
      %5705 = vmatmul.mubr.bf16.gmra.mxu0 %v5605
      %v5706 = vpop.f32.mrf.mxu0
      %v5707 = vadd.f32 0.0, %v5706
      %v5708 = vpop.f32.mrf.mxu0
      %v5709 = vpop.f32.mrf.mxu0
      %v5710 = vadd.f32 0.0, %v5709
      %v5711 = vpop.f32.mrf.mxu0
      %5712 = vmatprep.mubr.bf16.mxu0 0
      %5713 = vmatmul.mubr.bf16.gmra.mxu0 %v5608
      %v5714 = vpop.f32.mrf.mxu0
      %v5715 = vadd.f32 0.0, %v5714
      %v5716 = vpop.f32.mrf.mxu0
      %v5717 = vpop.f32.mrf.mxu0
      %v5718 = vadd.f32 0.0, %v5717
      %v5719 = vpop.f32.mrf.mxu0
      %5720 = vmatprep.mubr.bf16.mxu0 0
      %5721 = vmatmul.mubr.bf16.gmra.mxu0 %v5611
      %v5722 = vpop.f32.mrf.mxu0
      %v5723 = vadd.f32 0.0, %v5722
      %v5724 = vpop.f32.mrf.mxu0
      %v5725 = vpop.f32.mrf.mxu0
      %v5726 = vadd.f32 0.0, %v5725
      %v5727 = vpop.f32.mrf.mxu0
      %5728 = vmatprep.mubr.bf16.mxu0 0
      %5729 = vmatmul.mubr.bf16.gmra.mxu0 %v5614
      %v5730 = vpop.f32.mrf.mxu0
      %v5731 = vadd.f32 0.0, %v5730
      %v5732 = vpop.f32.mrf.mxu0
      %v5733 = vpop.f32.mrf.mxu0
      %v5734 = vadd.f32 0.0, %v5733
      %v5735 = vpop.f32.mrf.mxu0
      %5736 = vmatprep.mubr.bf16.mxu0 0
      %5737 = vmatmul.mubr.bf16.gmra.mxu0 %v5617
      %v5738 = vpop.f32.mrf.mxu0
      %v5739 = vadd.f32 0.0, %v5738
      %v5740 = vpop.f32.mrf.mxu0
      %v5741 = vpop.f32.mrf.mxu0
      %v5742 = vadd.f32 0.0, %v5741
      %v5743 = vpop.f32.mrf.mxu0
      %5744 = vmatprep.mubr.bf16.mxu0 0
      %5745 = vmatmul.mubr.bf16.gmra.mxu0 %v5620
      %v5746 = vpop.f32.mrf.mxu0
      %v5747 = vadd.f32 0.0, %v5746
      %v5748 = vpop.f32.mrf.mxu0
      %v5749 = vpop.f32.mrf.mxu0
      %v5750 = vadd.f32 0.0, %v5749
      %v5751 = vpop.f32.mrf.mxu0
      %5752 = vmatprep.mubr.bf16.mxu0 0
      %5753 = vmatmul.mubr.bf16.gmra.mxu0 %v5623
      %v5754 = vpop.f32.mrf.mxu0
      %v5755 = vadd.f32 0.0, %v5754
      %v5756 = vpop.f32.mrf.mxu0
      %v5757 = vpop.f32.mrf.mxu0
      %v5758 = vadd.f32 0.0, %v5757
      %v5759 = vpop.f32.mrf.mxu0
      %5760 = vmatprep.mubr.bf16.mxu0 0
      %5761 = vmatmul.mubr.bf16.gmra.mxu0 %v5626
      %v5762 = vpop.f32.mrf.mxu0
      %v5763 = vadd.f32 0.0, %v5762
      %v5764 = vpop.f32.mrf.mxu0
      %v5765 = vpop.f32.mrf.mxu0
      %v5766 = vadd.f32 0.0, %v5765
      %v5767 = vpop.f32.mrf.mxu0
      %5768 = vmatprep.mubr.bf16.mxu0 0
      %5769 = vmatmul.mubr.bf16.gmra.mxu0 %v5629
      %v5770 = vpop.f32.mrf.mxu0
      %v5771 = vadd.f32 0.0, %v5770
      %v5772 = vpop.f32.mrf.mxu0
      %v5773 = vpop.f32.mrf.mxu0
      %v5774 = vadd.f32 0.0, %v5773
      %v5775 = vpop.f32.mrf.mxu0
      %5776 = vmatprep.mubr.bf16.mxu0 0
      %5777 = vmatmul.mubr.bf16.gmra.mxu0 %v5632
      %v5778 = vpop.f32.mrf.mxu0
      %v5779 = vadd.f32 0.0, %v5778
      %v5780 = vpop.f32.mrf.mxu0
      %v5781 = vpop.f32.mrf.mxu0
      %v5782 = vadd.f32 0.0, %v5781
      %v5783 = vpop.f32.mrf.mxu0
      %5784 = vmatprep.mubr.bf16.mxu0 0
      %5785 = vmatmul.mubr.bf16.gmra.mxu0 %v5635
      %v5786 = vpop.f32.mrf.mxu0
      %v5787 = vadd.f32 0.0, %v5786
      %v5788 = vpop.f32.mrf.mxu0
      %v5789 = vpop.f32.mrf.mxu0
      %v5790 = vadd.f32 0.0, %v5789
      %v5791 = vpop.f32.mrf.mxu0
      %5792 = vmatprep.mubr.bf16.mxu0 0
      %5793 = vmatmul.mubr.bf16.gmra.mxu0 %v5638
      %v5794 = vpop.f32.mrf.mxu0
      %v5795 = vadd.f32 0.0, %v5794
      %v5796 = vpop.f32.mrf.mxu0
      %v5797 = vpop.f32.mrf.mxu0
      %v5798 = vadd.f32 0.0, %v5797
      %v5799 = vpop.f32.mrf.mxu0
      %5800 = vdwg.mxu0
      %v5801 = vadd.f32 %v5479, %v5675
      %v5802 = vadd.f32 %v5480, %v5678
      %v5803 = vadd.f32 %v5481, %v5683
      %v5804 = vadd.f32 %v5482, %v5686
      %v5805 = vadd.f32 %v5483, %v5691
      %v5806 = vadd.f32 %v5484, %v5694
      %v5807 = vadd.f32 %v5485, %v5699
      %v5808 = vadd.f32 %v5486, %v5702
      %v5809 = vadd.f32 %v5487, %v5707
      %v5810 = vadd.f32 %v5488, %v5710
      %v5811 = vadd.f32 %v5489, %v5715
      %v5812 = vadd.f32 %v5490, %v5718
      %v5813 = vadd.f32 %v5491, %v5723
      %v5814 = vadd.f32 %v5492, %v5726
      %v5815 = vadd.f32 %v5493, %v5731
      %v5816 = vadd.f32 %v5494, %v5734
      %v5817 = vadd.f32 %v5495, %v5739
      %v5818 = vadd.f32 %v5496, %v5742
      %v5819 = vadd.f32 %v5497, %v5747
      %v5820 = vadd.f32 %v5498, %v5750
      %v5821 = vadd.f32 %v5499, %v5755
      %v5822 = vadd.f32 %v5500, %v5758
      %v5823 = vadd.f32 %v5501, %v5763
      %v5824 = vadd.f32 %v5502, %v5766
      %v5825 = vadd.f32 %v5503, %v5771
      %v5826 = vadd.f32 %v5504, %v5774
      %v5827 = vadd.f32 %v5505, %v5779
      %v5828 = vadd.f32 %v5506, %v5782
      %v5829 = vadd.f32 %v5507, %v5787
      %v5830 = vadd.f32 %v5508, %v5790
      %v5831 = vadd.f32 %v5509, %v5795
      %v5832 = vadd.f32 %v5510, %v5798
      %v5833 = vlaneseq
      %v5834 = vshrl.u32 %v5833, 7
      %v5835 = vsub.s32 0, %v5834
      %v5836 = vrot.slane %v264, %v5835
      %v5837 = vadd.f32 %v5801, %v5836
      %v5838 = vadd.f32 %v5802, %v5836
      %v5839 = vadd.f32 %v5803, %v5836
      %v5840 = vadd.f32 %v5804, %v5836
      %v5841 = vadd.f32 %v5805, %v5836
      %v5842 = vadd.f32 %v5806, %v5836
      %v5843 = vadd.f32 %v5807, %v5836
      %v5844 = vadd.f32 %v5808, %v5836
      %v5845 = vadd.f32 %v5809, %v5836
      %v5846 = vadd.f32 %v5810, %v5836
      %v5847 = vadd.f32 %v5811, %v5836
      %v5848 = vadd.f32 %v5812, %v5836
      %v5849 = vadd.f32 %v5813, %v5836
      %v5850 = vadd.f32 %v5814, %v5836
      %v5851 = vadd.f32 %v5815, %v5836
      %v5852 = vadd.f32 %v5816, %v5836
      %v5853 = vadd.f32 %v5817, %v5836
      %v5854 = vadd.f32 %v5818, %v5836
      %v5855 = vadd.f32 %v5819, %v5836
      %v5856 = vadd.f32 %v5820, %v5836
      %v5857 = vadd.f32 %v5821, %v5836
      %v5858 = vadd.f32 %v5822, %v5836
      %v5859 = vadd.f32 %v5823, %v5836
      %v5860 = vadd.f32 %v5824, %v5836
      %v5861 = vadd.f32 %v5825, %v5836
      %v5862 = vadd.f32 %v5826, %v5836
      %v5863 = vadd.f32 %v5827, %v5836
      %v5864 = vadd.f32 %v5828, %v5836
      %v5865 = vadd.f32 %v5829, %v5836
      %v5866 = vadd.f32 %v5830, %v5836
      %v5867 = vadd.f32 %v5831, %v5836
      %v5868 = vadd.f32 %v5832, %v5836
      %v5869 = vsel %vm2205, %v5837, 0.0
      %v5870 = vsel %vm2205, %v5838, 0.0
      %v5871 = vadd.f32 %v5869, %v5870
      %v5872 = vsel %vm2205, %v5839, 0.0
      %v5873 = vadd.f32 %v5871, %v5872
      %v5874 = vsel %vm2205, %v5840, 0.0
      %v5875 = vadd.f32 %v5873, %v5874
      %v5876 = vsel %vm2205, %v5841, 0.0
      %v5877 = vadd.f32 %v5875, %v5876
      %v5878 = vsel %vm2205, %v5842, 0.0
      %v5879 = vadd.f32 %v5877, %v5878
      %v5880 = vsel %vm2205, %v5843, 0.0
      %v5881 = vadd.f32 %v5879, %v5880
      %v5882 = vsel %vm2205, %v5844, 0.0
      %v5883 = vadd.f32 %v5881, %v5882
      %v5884 = vsel %vm2205, %v5845, 0.0
      %v5885 = vadd.f32 %v5883, %v5884
      %v5886 = vsel %vm2205, %v5846, 0.0
      %v5887 = vadd.f32 %v5885, %v5886
      %v5888 = vsel %vm2205, %v5847, 0.0
      %v5889 = vadd.f32 %v5887, %v5888
      %v5890 = vsel %vm2205, %v5848, 0.0
      %v5891 = vadd.f32 %v5889, %v5890
      %v5892 = vsel %vm2205, %v5849, 0.0
      %v5893 = vadd.f32 %v5891, %v5892
      %v5894 = vsel %vm2205, %v5850, 0.0
      %v5895 = vadd.f32 %v5893, %v5894
      %v5896 = vsel %vm2205, %v5851, 0.0
      %v5897 = vadd.f32 %v5895, %v5896
      %v5898 = vsel %vm2205, %v5852, 0.0
      %v5899 = vadd.f32 %v5897, %v5898
      %v5900 = vsel %vm2205, %v5853, 0.0
      %v5901 = vadd.f32 %v5899, %v5900
      %v5902 = vsel %vm2205, %v5854, 0.0
      %v5903 = vadd.f32 %v5901, %v5902
      %v5904 = vsel %vm2205, %v5855, 0.0
      %v5905 = vadd.f32 %v5903, %v5904
      %v5906 = vsel %vm2205, %v5856, 0.0
      %v5907 = vadd.f32 %v5905, %v5906
      %v5908 = vsel %vm2205, %v5857, 0.0
      %v5909 = vadd.f32 %v5907, %v5908
      %v5910 = vsel %vm2205, %v5858, 0.0
      %v5911 = vadd.f32 %v5909, %v5910
      %v5912 = vsel %vm2205, %v5859, 0.0
      %v5913 = vadd.f32 %v5911, %v5912
      %v5914 = vsel %vm2205, %v5860, 0.0
      %v5915 = vadd.f32 %v5913, %v5914
      %v5916 = vsel %vm2205, %v5861, 0.0
      %v5917 = vadd.f32 %v5915, %v5916
      %v5918 = vsel %vm2205, %v5862, 0.0
      %v5919 = vadd.f32 %v5917, %v5918
      %v5920 = vsel %vm2205, %v5863, 0.0
      %v5921 = vadd.f32 %v5919, %v5920
      %v5922 = vsel %vm2205, %v5864, 0.0
      %v5923 = vadd.f32 %v5921, %v5922
      %v5924 = vsel %vm2205, %v5865, 0.0
      %v5925 = vadd.f32 %v5923, %v5924
      %v5926 = vsel %vm2205, %v5866, 0.0
      %v5927 = vadd.f32 %v5925, %v5926
      %v5928 = vsel %vm2205, %v5867, 0.0
      %v5929 = vadd.f32 %v5927, %v5928
      %v5930 = vsel %vm2205, %v5868, 0.0
      %v5931 = vadd.f32 %v5929, %v5930
      %v5932 = vrot.slane %v5931, 4
      %v5933 = vadd.f32 %v5931, %v5932
      %v5934 = vrot.slane %v5933, 2
      %v5935 = vadd.f32 %v5933, %v5934
      %v5936 = vrot.slane %v5935, 1
      %v5937 = vadd.f32 %v5935, %v5936
      %v5938 = vmul.f32 %v5937, 0.00390625
      %v5939 = vmul.f32 %v5837, %v5837
      %v5940 = vmul.f32 %v5838, %v5838
      %v5941 = vmul.f32 %v5839, %v5839
      %v5942 = vmul.f32 %v5840, %v5840
      %v5943 = vmul.f32 %v5841, %v5841
      %v5944 = vmul.f32 %v5842, %v5842
      %v5945 = vmul.f32 %v5843, %v5843
      %v5946 = vmul.f32 %v5844, %v5844
      %v5947 = vmul.f32 %v5845, %v5845
      %v5948 = vmul.f32 %v5846, %v5846
      %v5949 = vmul.f32 %v5847, %v5847
      %v5950 = vmul.f32 %v5848, %v5848
      %v5951 = vmul.f32 %v5849, %v5849
      %v5952 = vmul.f32 %v5850, %v5850
      %v5953 = vmul.f32 %v5851, %v5851
      %v5954 = vmul.f32 %v5852, %v5852
      %v5955 = vmul.f32 %v5853, %v5853
      %v5956 = vmul.f32 %v5854, %v5854
      %v5957 = vmul.f32 %v5855, %v5855
      %v5958 = vmul.f32 %v5856, %v5856
      %v5959 = vmul.f32 %v5857, %v5857
      %v5960 = vmul.f32 %v5858, %v5858
      %v5961 = vmul.f32 %v5859, %v5859
      %v5962 = vmul.f32 %v5860, %v5860
      %v5963 = vmul.f32 %v5861, %v5861
      %v5964 = vmul.f32 %v5862, %v5862
      %v5965 = vmul.f32 %v5863, %v5863
      %v5966 = vmul.f32 %v5864, %v5864
      %v5967 = vmul.f32 %v5865, %v5865
      %v5968 = vmul.f32 %v5866, %v5866
      %v5969 = vmul.f32 %v5867, %v5867
      %v5970 = vmul.f32 %v5868, %v5868
      %v5971 = vsel %vm2205, %v5939, 0.0
      %v5972 = vsel %vm2205, %v5940, 0.0
      %v5973 = vadd.f32 %v5971, %v5972
      %v5974 = vsel %vm2205, %v5941, 0.0
      %v5975 = vadd.f32 %v5973, %v5974
      %v5976 = vsel %vm2205, %v5942, 0.0
      %v5977 = vadd.f32 %v5975, %v5976
      %v5978 = vsel %vm2205, %v5943, 0.0
      %v5979 = vadd.f32 %v5977, %v5978
      %v5980 = vsel %vm2205, %v5944, 0.0
      %v5981 = vadd.f32 %v5979, %v5980
      %v5982 = vsel %vm2205, %v5945, 0.0
      %v5983 = vadd.f32 %v5981, %v5982
      %v5984 = vsel %vm2205, %v5946, 0.0
      %v5985 = vadd.f32 %v5983, %v5984
      %v5986 = vsel %vm2205, %v5947, 0.0
      %v5987 = vadd.f32 %v5985, %v5986
      %v5988 = vsel %vm2205, %v5948, 0.0
      %v5989 = vadd.f32 %v5987, %v5988
      %v5990 = vsel %vm2205, %v5949, 0.0
      %v5991 = vadd.f32 %v5989, %v5990
      %v5992 = vsel %vm2205, %v5950, 0.0
      %v5993 = vadd.f32 %v5991, %v5992
      %v5994 = vsel %vm2205, %v5951, 0.0
      %v5995 = vadd.f32 %v5993, %v5994
      %v5996 = vsel %vm2205, %v5952, 0.0
      %v5997 = vadd.f32 %v5995, %v5996
      %v5998 = vsel %vm2205, %v5953, 0.0
      %v5999 = vadd.f32 %v5997, %v5998
      %v6000 = vsel %vm2205, %v5954, 0.0
      %v6001 = vadd.f32 %v5999, %v6000
      %v6002 = vsel %vm2205, %v5955, 0.0
      %v6003 = vadd.f32 %v6001, %v6002
      %v6004 = vsel %vm2205, %v5956, 0.0
      %v6005 = vadd.f32 %v6003, %v6004
      %v6006 = vsel %vm2205, %v5957, 0.0
      %v6007 = vadd.f32 %v6005, %v6006
      %v6008 = vsel %vm2205, %v5958, 0.0
      %v6009 = vadd.f32 %v6007, %v6008
      %v6010 = vsel %vm2205, %v5959, 0.0
      %v6011 = vadd.f32 %v6009, %v6010
      %v6012 = vsel %vm2205, %v5960, 0.0
      %v6013 = vadd.f32 %v6011, %v6012
      %v6014 = vsel %vm2205, %v5961, 0.0
      %v6015 = vadd.f32 %v6013, %v6014
      %v6016 = vsel %vm2205, %v5962, 0.0
      %v6017 = vadd.f32 %v6015, %v6016
      %v6018 = vsel %vm2205, %v5963, 0.0
      %v6019 = vadd.f32 %v6017, %v6018
      %v6020 = vsel %vm2205, %v5964, 0.0
      %v6021 = vadd.f32 %v6019, %v6020
      %v6022 = vsel %vm2205, %v5965, 0.0
      %v6023 = vadd.f32 %v6021, %v6022
      %v6024 = vsel %vm2205, %v5966, 0.0
      %v6025 = vadd.f32 %v6023, %v6024
      %v6026 = vsel %vm2205, %v5967, 0.0
      %v6027 = vadd.f32 %v6025, %v6026
      %v6028 = vsel %vm2205, %v5968, 0.0
      %v6029 = vadd.f32 %v6027, %v6028
      %v6030 = vsel %vm2205, %v5969, 0.0
      %v6031 = vadd.f32 %v6029, %v6030
      %v6032 = vsel %vm2205, %v5970, 0.0
      %v6033 = vadd.f32 %v6031, %v6032
      %v6034 = vrot.slane %v6033, 4
      %v6035 = vadd.f32 %v6033, %v6034
      %v6036 = vrot.slane %v6035, 2
      %v6037 = vadd.f32 %v6035, %v6036
      %v6038 = vrot.slane %v6037, 1
      %v6039 = vadd.f32 %v6037, %v6038
      %v6040 = vmul.f32 %v6039, 0.00390625
      %v6042 = vsel %vm2205, %v5938, 0
      %6044 = vmatprep.subr.mxu0 0.0
      %6045 = vmatpush1.msra.mxu0 0.0
      %6046 = vmatprep.subr.mxu0 0.0
      %6047 = vmatpush1.msra.mxu0 0.0
      %6048 = vmatprep.subr.mxu0 0.0
      %6049 = vmatpush1.msra.mxu0 0.0
      %6050 = vmatprep.subr.mxu0 0.0
      %6051 = vmatpush1.msra.mxu0 0.0
      %6052 = vmatprep.subr.mxu0 0.0
      %6053 = vmatpush1.msra.mxu0 0.0
      %6054 = vmatprep.subr.mxu0 0.0
      %6055 = vmatpush1.msra.mxu0 0.0
      %6056 = vmatprep.subr.mxu0 0.0
      %6057 = vmatpush1.msra.mxu0 0.0
      %6058 = vmatprep.subr.mxu0 0.0
      %6059 = vmatpush1.msra.mxu0 0.0
      %6060 = vmatprep.subr.mxu0 0.0
      %6061 = vmatpush1.msra.mxu0 %v260
      %6062 = vmatprep.subr.mxu0 0.0
      %6063 = vmatpush1.msra.mxu0 %v259
      %6064 = vmatprep.subr.mxu0 0.0
      %6065 = vmatpush1.msra.mxu0 %v258
      %6066 = vmatprep.subr.mxu0 0.0
      %6067 = vmatpush1.msra.mxu0 %v257
      %6068 = vmatprep.subr.mxu0 0.0
      %6069 = vmatpush1.msra.mxu0 %v256
      %6070 = vmatprep.subr.mxu0 0.0
      %6071 = vmatpush1.msra.mxu0 %v255
      %6072 = vmatprep.subr.mxu0 0.0
      %6073 = vmatpush1.msra.mxu0 %v254
      %6074 = vmatprep.subr.mxu0 0.0
      %6075 = vmatpush1.msra.mxu0 %v253
      %6076 = vmatprep.subr.mxu0 0.0
      %6077 = vmatpush2.msra.mxu0 0.0
      %6078 = vmatprep.subr.mxu0 0.0
      %6079 = vmatpush2.msra.mxu0 0.0
      %6080 = vmatprep.subr.mxu0 0.0
      %6081 = vmatpush2.msra.mxu0 0.0
      %6082 = vmatprep.subr.mxu0 0.0
      %6083 = vmatpush2.msra.mxu0 0.0
      %6084 = vmatprep.subr.mxu0 0.0
      %6085 = vmatpush2.msra.mxu0 0.0
      %6086 = vmatprep.subr.mxu0 0.0
      %6087 = vmatpush2.msra.mxu0 0.0
      %6088 = vmatprep.subr.mxu0 0.0
      %6089 = vmatpush2.msra.mxu0 0.0
      %6090 = vmatprep.subr.mxu0 0.0
      %6091 = vmatpush2.msra.mxu0 0.0
      %6092 = vmatprep.subr.mxu0 0.0
      %6093 = vmatpush2.msra.mxu0 0.0
      %6094 = vmatprep.subr.mxu0 0.0
      %6095 = vmatpush2.msra.mxu0 0.0
      %6096 = vmatprep.subr.mxu0 0.0
      %6097 = vmatpush2.msra.mxu0 0.0
      %6098 = vmatprep.subr.mxu0 0.0
      %6099 = vmatpush2.msra.mxu0 0.0
      %6100 = vmatprep.subr.mxu0 0.0
      %6101 = vmatpush2.msra.mxu0 0.0
      %6102 = vmatprep.subr.mxu0 0.0
      %6103 = vmatpush2.msra.mxu0 0.0
      %6104 = vmatprep.subr.mxu0 0.0
      %6105 = vmatpush2.msra.mxu0 0.0
      %6106 = vmatprep.subr.mxu0 0.0
      %6107 = vmatpush2.msra.mxu0 0.0
      %6108 = vmatprep.mubr.f32.mxu0 0.0
      %6109 = vmatmul.mubr.f32.gmra.mxu0 %v6042
      %v6110 = vpop.f32.mrf.mxu0
      %v6111 = vadd.f32 0.0, %v6110
      %v6112 = vpop.f32.mrf.mxu0
      %6113 = vdwg.mxu0
      %v6115 = vsel %vm2205, %v6040, 0
      %6117 = vmatprep.subr.mxu0 0.0
      %6118 = vmatpush1.msra.mxu0 0.0
      %6119 = vmatprep.subr.mxu0 0.0
      %6120 = vmatpush1.msra.mxu0 0.0
      %6121 = vmatprep.subr.mxu0 0.0
      %6122 = vmatpush1.msra.mxu0 0.0
      %6123 = vmatprep.subr.mxu0 0.0
      %6124 = vmatpush1.msra.mxu0 0.0
      %6125 = vmatprep.subr.mxu0 0.0
      %6126 = vmatpush1.msra.mxu0 0.0
      %6127 = vmatprep.subr.mxu0 0.0
      %6128 = vmatpush1.msra.mxu0 0.0
      %6129 = vmatprep.subr.mxu0 0.0
      %6130 = vmatpush1.msra.mxu0 0.0
      %6131 = vmatprep.subr.mxu0 0.0
      %6132 = vmatpush1.msra.mxu0 0.0
      %6133 = vmatprep.subr.mxu0 0.0
      %6134 = vmatpush1.msra.mxu0 %v260
      %6135 = vmatprep.subr.mxu0 0.0
      %6136 = vmatpush1.msra.mxu0 %v259
      %6137 = vmatprep.subr.mxu0 0.0
      %6138 = vmatpush1.msra.mxu0 %v258
      %6139 = vmatprep.subr.mxu0 0.0
      %6140 = vmatpush1.msra.mxu0 %v257
      %6141 = vmatprep.subr.mxu0 0.0
      %6142 = vmatpush1.msra.mxu0 %v256
      %6143 = vmatprep.subr.mxu0 0.0
      %6144 = vmatpush1.msra.mxu0 %v255
      %6145 = vmatprep.subr.mxu0 0.0
      %6146 = vmatpush1.msra.mxu0 %v254
      %6147 = vmatprep.subr.mxu0 0.0
      %6148 = vmatpush1.msra.mxu0 %v253
      %6149 = vmatprep.subr.mxu0 0.0
      %6150 = vmatpush2.msra.mxu0 0.0
      %6151 = vmatprep.subr.mxu0 0.0
      %6152 = vmatpush2.msra.mxu0 0.0
      %6153 = vmatprep.subr.mxu0 0.0
      %6154 = vmatpush2.msra.mxu0 0.0
      %6155 = vmatprep.subr.mxu0 0.0
      %6156 = vmatpush2.msra.mxu0 0.0
      %6157 = vmatprep.subr.mxu0 0.0
      %6158 = vmatpush2.msra.mxu0 0.0
      %6159 = vmatprep.subr.mxu0 0.0
      %6160 = vmatpush2.msra.mxu0 0.0
      %6161 = vmatprep.subr.mxu0 0.0
      %6162 = vmatpush2.msra.mxu0 0.0
      %6163 = vmatprep.subr.mxu0 0.0
      %6164 = vmatpush2.msra.mxu0 0.0
      %6165 = vmatprep.subr.mxu0 0.0
      %6166 = vmatpush2.msra.mxu0 0.0
      %6167 = vmatprep.subr.mxu0 0.0
      %6168 = vmatpush2.msra.mxu0 0.0
      %6169 = vmatprep.subr.mxu0 0.0
      %6170 = vmatpush2.msra.mxu0 0.0
      %6171 = vmatprep.subr.mxu0 0.0
      %6172 = vmatpush2.msra.mxu0 0.0
      %6173 = vmatprep.subr.mxu0 0.0
      %6174 = vmatpush2.msra.mxu0 0.0
      %6175 = vmatprep.subr.mxu0 0.0
      %6176 = vmatpush2.msra.mxu0 0.0
      %6177 = vmatprep.subr.mxu0 0.0
      %6178 = vmatpush2.msra.mxu0 0.0
      %6179 = vmatprep.subr.mxu0 0.0
      %6180 = vmatpush2.msra.mxu0 0.0
      %6181 = vmatprep.mubr.f32.mxu0 0.0
      %6182 = vmatmul.mubr.f32.gmra.mxu0 %v6115
      %v6183 = vpop.f32.mrf.mxu0
      %v6184 = vadd.f32 0.0, %v6183
      %v6185 = vpop.f32.mrf.mxu0
      %6186 = vdwg.mxu0
      %v6187 = vmul.f32 %v6111, %v6111
      %v6188 = vsub.f32 %v6184, %v6187
      %v6189 = vadd.f32 %v6188, 1e-05
      %v6190 = vrsqrt.pop %v6189
      %v6191 = vmul.f32 %v6190, %v265
      %v6192 = vlaneseq
      %v6193 = vshrl.u32 %v6192, 7
      %v6194 = vsub.s32 0, %v6193
      %v6195 = vrot.slane %v6111, %v6194
      %v6196 = vsub.f32 %v5837, %v6195
      %v6197 = vsub.f32 %v5838, %v6195
      %v6198 = vsub.f32 %v5839, %v6195
      %v6199 = vsub.f32 %v5840, %v6195
      %v6200 = vsub.f32 %v5841, %v6195
      %v6201 = vsub.f32 %v5842, %v6195
      %v6202 = vsub.f32 %v5843, %v6195
      %v6203 = vsub.f32 %v5844, %v6195
      %v6204 = vsub.f32 %v5845, %v6195
      %v6205 = vsub.f32 %v5846, %v6195
      %v6206 = vsub.f32 %v5847, %v6195
      %v6207 = vsub.f32 %v5848, %v6195
      %v6208 = vsub.f32 %v5849, %v6195
      %v6209 = vsub.f32 %v5850, %v6195
      %v6210 = vsub.f32 %v5851, %v6195
      %v6211 = vsub.f32 %v5852, %v6195
      %v6212 = vsub.f32 %v5853, %v6195
      %v6213 = vsub.f32 %v5854, %v6195
      %v6214 = vsub.f32 %v5855, %v6195
      %v6215 = vsub.f32 %v5856, %v6195
      %v6216 = vsub.f32 %v5857, %v6195
      %v6217 = vsub.f32 %v5858, %v6195
      %v6218 = vsub.f32 %v5859, %v6195
      %v6219 = vsub.f32 %v5860, %v6195
      %v6220 = vsub.f32 %v5861, %v6195
      %v6221 = vsub.f32 %v5862, %v6195
      %v6222 = vsub.f32 %v5863, %v6195
      %v6223 = vsub.f32 %v5864, %v6195
      %v6224 = vsub.f32 %v5865, %v6195
      %v6225 = vsub.f32 %v5866, %v6195
      %v6226 = vsub.f32 %v5867, %v6195
      %v6227 = vsub.f32 %v5868, %v6195
      %v6228 = vlaneseq
      %v6229 = vshrl.u32 %v6228, 7
      %v6230 = vsub.s32 0, %v6229
      %v6231 = vrot.slane %v6191, %v6230
      %v6232 = vmul.f32 %v6196, %v6231
      %v6233 = vmul.f32 %v6197, %v6231
      %v6234 = vmul.f32 %v6198, %v6231
      %v6235 = vmul.f32 %v6199, %v6231
      %v6236 = vmul.f32 %v6200, %v6231
      %v6237 = vmul.f32 %v6201, %v6231
      %v6238 = vmul.f32 %v6202, %v6231
      %v6239 = vmul.f32 %v6203, %v6231
      %v6240 = vmul.f32 %v6204, %v6231
      %v6241 = vmul.f32 %v6205, %v6231
      %v6242 = vmul.f32 %v6206, %v6231
      %v6243 = vmul.f32 %v6207, %v6231
      %v6244 = vmul.f32 %v6208, %v6231
      %v6245 = vmul.f32 %v6209, %v6231
      %v6246 = vmul.f32 %v6210, %v6231
      %v6247 = vmul.f32 %v6211, %v6231
      %v6248 = vmul.f32 %v6212, %v6231
      %v6249 = vmul.f32 %v6213, %v6231
      %v6250 = vmul.f32 %v6214, %v6231
      %v6251 = vmul.f32 %v6215, %v6231
      %v6252 = vmul.f32 %v6216, %v6231
      %v6253 = vmul.f32 %v6217, %v6231
      %v6254 = vmul.f32 %v6218, %v6231
      %v6255 = vmul.f32 %v6219, %v6231
      %v6256 = vmul.f32 %v6220, %v6231
      %v6257 = vmul.f32 %v6221, %v6231
      %v6258 = vmul.f32 %v6222, %v6231
      %v6259 = vmul.f32 %v6223, %v6231
      %v6260 = vmul.f32 %v6224, %v6231
      %v6261 = vmul.f32 %v6225, %v6231
      %v6262 = vmul.f32 %v6226, %v6231
      %v6263 = vmul.f32 %v6227, %v6231
      %v6264 = vlaneseq
      %v6265 = vshrl.u32 %v6264, 7
      %v6266 = vsub.s32 0, %v6265
      %v6267 = vrot.slane %v266, %v6266
      %v6268 = vadd.f32 %v6232, %v6267
      %v6269 = vadd.f32 %v6233, %v6267
      %v6270 = vadd.f32 %v6234, %v6267
      %v6271 = vadd.f32 %v6235, %v6267
      %v6272 = vadd.f32 %v6236, %v6267
      %v6273 = vadd.f32 %v6237, %v6267
      %v6274 = vadd.f32 %v6238, %v6267
      %v6275 = vadd.f32 %v6239, %v6267
      %v6276 = vadd.f32 %v6240, %v6267
      %v6277 = vadd.f32 %v6241, %v6267
      %v6278 = vadd.f32 %v6242, %v6267
      %v6279 = vadd.f32 %v6243, %v6267
      %v6280 = vadd.f32 %v6244, %v6267
      %v6281 = vadd.f32 %v6245, %v6267
      %v6282 = vadd.f32 %v6246, %v6267
      %v6283 = vadd.f32 %v6247, %v6267
      %v6284 = vadd.f32 %v6248, %v6267
      %v6285 = vadd.f32 %v6249, %v6267
      %v6286 = vadd.f32 %v6250, %v6267
      %v6287 = vadd.f32 %v6251, %v6267
      %v6288 = vadd.f32 %v6252, %v6267
      %v6289 = vadd.f32 %v6253, %v6267
      %v6290 = vadd.f32 %v6254, %v6267
      %v6291 = vadd.f32 %v6255, %v6267
      %v6292 = vadd.f32 %v6256, %v6267
      %v6293 = vadd.f32 %v6257, %v6267
      %v6294 = vadd.f32 %v6258, %v6267
      %v6295 = vadd.f32 %v6259, %v6267
      %v6296 = vadd.f32 %v6260, %v6267
      %v6297 = vadd.f32 %v6261, %v6267
      %v6298 = vadd.f32 %v6262, %v6267
      %v6299 = vadd.f32 %v6263, %v6267
      %v6300 = vmul.f32 %v6268, 0.5
      %v6301 = vmul.f32 %v6269, 0.5
      %v6302 = vmul.f32 %v6270, 0.5
      %v6303 = vmul.f32 %v6271, 0.5
      %v6304 = vmul.f32 %v6272, 0.5
      %v6305 = vmul.f32 %v6273, 0.5
      %v6306 = vmul.f32 %v6274, 0.5
      %v6307 = vmul.f32 %v6275, 0.5
      %v6308 = vmul.f32 %v6276, 0.5
      %v6309 = vmul.f32 %v6277, 0.5
      %v6310 = vmul.f32 %v6278, 0.5
      %v6311 = vmul.f32 %v6279, 0.5
      %v6312 = vmul.f32 %v6280, 0.5
      %v6313 = vmul.f32 %v6281, 0.5
      %v6314 = vmul.f32 %v6282, 0.5
      %v6315 = vmul.f32 %v6283, 0.5
      %v6316 = vmul.f32 %v6284, 0.5
      %v6317 = vmul.f32 %v6285, 0.5
      %v6318 = vmul.f32 %v6286, 0.5
      %v6319 = vmul.f32 %v6287, 0.5
      %v6320 = vmul.f32 %v6288, 0.5
      %v6321 = vmul.f32 %v6289, 0.5
      %v6322 = vmul.f32 %v6290, 0.5
      %v6323 = vmul.f32 %v6291, 0.5
      %v6324 = vmul.f32 %v6292, 0.5
      %v6325 = vmul.f32 %v6293, 0.5
      %v6326 = vmul.f32 %v6294, 0.5
      %v6327 = vmul.f32 %v6295, 0.5
      %v6328 = vmul.f32 %v6296, 0.5
      %v6329 = vmul.f32 %v6297, 0.5
      %v6330 = vmul.f32 %v6298, 0.5
      %v6331 = vmul.f32 %v6299, 0.5
      %v6332 = vmul.f32 %v6268, %v6268
      %v6333 = vmul.f32 %v6269, %v6269
      %v6334 = vmul.f32 %v6270, %v6270
      %v6335 = vmul.f32 %v6271, %v6271
      %v6336 = vmul.f32 %v6272, %v6272
      %v6337 = vmul.f32 %v6273, %v6273
      %v6338 = vmul.f32 %v6274, %v6274
      %v6339 = vmul.f32 %v6275, %v6275
      %v6340 = vmul.f32 %v6276, %v6276
      %v6341 = vmul.f32 %v6277, %v6277
      %v6342 = vmul.f32 %v6278, %v6278
      %v6343 = vmul.f32 %v6279, %v6279
      %v6344 = vmul.f32 %v6280, %v6280
      %v6345 = vmul.f32 %v6281, %v6281
      %v6346 = vmul.f32 %v6282, %v6282
      %v6347 = vmul.f32 %v6283, %v6283
      %v6348 = vmul.f32 %v6284, %v6284
      %v6349 = vmul.f32 %v6285, %v6285
      %v6350 = vmul.f32 %v6286, %v6286
      %v6351 = vmul.f32 %v6287, %v6287
      %v6352 = vmul.f32 %v6288, %v6288
      %v6353 = vmul.f32 %v6289, %v6289
      %v6354 = vmul.f32 %v6290, %v6290
      %v6355 = vmul.f32 %v6291, %v6291
      %v6356 = vmul.f32 %v6292, %v6292
      %v6357 = vmul.f32 %v6293, %v6293
      %v6358 = vmul.f32 %v6294, %v6294
      %v6359 = vmul.f32 %v6295, %v6295
      %v6360 = vmul.f32 %v6296, %v6296
      %v6361 = vmul.f32 %v6297, %v6297
      %v6362 = vmul.f32 %v6298, %v6298
      %v6363 = vmul.f32 %v6299, %v6299
      %v6364 = vmul.f32 %v6332, %v6268
      %v6365 = vmul.f32 %v6333, %v6269
      %v6366 = vmul.f32 %v6334, %v6270
      %v6367 = vmul.f32 %v6335, %v6271
      %v6368 = vmul.f32 %v6336, %v6272
      %v6369 = vmul.f32 %v6337, %v6273
      %v6370 = vmul.f32 %v6338, %v6274
      %v6371 = vmul.f32 %v6339, %v6275
      %v6372 = vmul.f32 %v6340, %v6276
      %v6373 = vmul.f32 %v6341, %v6277
      %v6374 = vmul.f32 %v6342, %v6278
      %v6375 = vmul.f32 %v6343, %v6279
      %v6376 = vmul.f32 %v6344, %v6280
      %v6377 = vmul.f32 %v6345, %v6281
      %v6378 = vmul.f32 %v6346, %v6282
      %v6379 = vmul.f32 %v6347, %v6283
      %v6380 = vmul.f32 %v6348, %v6284
      %v6381 = vmul.f32 %v6349, %v6285
      %v6382 = vmul.f32 %v6350, %v6286
      %v6383 = vmul.f32 %v6351, %v6287
      %v6384 = vmul.f32 %v6352, %v6288
      %v6385 = vmul.f32 %v6353, %v6289
      %v6386 = vmul.f32 %v6354, %v6290
      %v6387 = vmul.f32 %v6355, %v6291
      %v6388 = vmul.f32 %v6356, %v6292
      %v6389 = vmul.f32 %v6357, %v6293
      %v6390 = vmul.f32 %v6358, %v6294
      %v6391 = vmul.f32 %v6359, %v6295
      %v6392 = vmul.f32 %v6360, %v6296
      %v6393 = vmul.f32 %v6361, %v6297
      %v6394 = vmul.f32 %v6362, %v6298
      %v6395 = vmul.f32 %v6363, %v6299
      %v6396 = vmul.f32 %v6364, 0.044715
      %v6397 = vmul.f32 %v6365, 0.044715
      %v6398 = vmul.f32 %v6366, 0.044715
      %v6399 = vmul.f32 %v6367, 0.044715
      %v6400 = vmul.f32 %v6368, 0.044715
      %v6401 = vmul.f32 %v6369, 0.044715
      %v6402 = vmul.f32 %v6370, 0.044715
      %v6403 = vmul.f32 %v6371, 0.044715
      %v6404 = vmul.f32 %v6372, 0.044715
      %v6405 = vmul.f32 %v6373, 0.044715
      %v6406 = vmul.f32 %v6374, 0.044715
      %v6407 = vmul.f32 %v6375, 0.044715
      %v6408 = vmul.f32 %v6376, 0.044715
      %v6409 = vmul.f32 %v6377, 0.044715
      %v6410 = vmul.f32 %v6378, 0.044715
      %v6411 = vmul.f32 %v6379, 0.044715
      %v6412 = vmul.f32 %v6380, 0.044715
      %v6413 = vmul.f32 %v6381, 0.044715
      %v6414 = vmul.f32 %v6382, 0.044715
      %v6415 = vmul.f32 %v6383, 0.044715
      %v6416 = vmul.f32 %v6384, 0.044715
      %v6417 = vmul.f32 %v6385, 0.044715
      %v6418 = vmul.f32 %v6386, 0.044715
      %v6419 = vmul.f32 %v6387, 0.044715
      %v6420 = vmul.f32 %v6388, 0.044715
      %v6421 = vmul.f32 %v6389, 0.044715
      %v6422 = vmul.f32 %v6390, 0.044715
      %v6423 = vmul.f32 %v6391, 0.044715
      %v6424 = vmul.f32 %v6392, 0.044715
      %v6425 = vmul.f32 %v6393, 0.044715
      %v6426 = vmul.f32 %v6394, 0.044715
      %v6427 = vmul.f32 %v6395, 0.044715
      %v6428 = vadd.f32 %v6268, %v6396
      %v6429 = vadd.f32 %v6269, %v6397
      %v6430 = vadd.f32 %v6270, %v6398
      %v6431 = vadd.f32 %v6271, %v6399
      %v6432 = vadd.f32 %v6272, %v6400
      %v6433 = vadd.f32 %v6273, %v6401
      %v6434 = vadd.f32 %v6274, %v6402
      %v6435 = vadd.f32 %v6275, %v6403
      %v6436 = vadd.f32 %v6276, %v6404
      %v6437 = vadd.f32 %v6277, %v6405
      %v6438 = vadd.f32 %v6278, %v6406
      %v6439 = vadd.f32 %v6279, %v6407
      %v6440 = vadd.f32 %v6280, %v6408
      %v6441 = vadd.f32 %v6281, %v6409
      %v6442 = vadd.f32 %v6282, %v6410
      %v6443 = vadd.f32 %v6283, %v6411
      %v6444 = vadd.f32 %v6284, %v6412
      %v6445 = vadd.f32 %v6285, %v6413
      %v6446 = vadd.f32 %v6286, %v6414
      %v6447 = vadd.f32 %v6287, %v6415
      %v6448 = vadd.f32 %v6288, %v6416
      %v6449 = vadd.f32 %v6289, %v6417
      %v6450 = vadd.f32 %v6290, %v6418
      %v6451 = vadd.f32 %v6291, %v6419
      %v6452 = vadd.f32 %v6292, %v6420
      %v6453 = vadd.f32 %v6293, %v6421
      %v6454 = vadd.f32 %v6294, %v6422
      %v6455 = vadd.f32 %v6295, %v6423
      %v6456 = vadd.f32 %v6296, %v6424
      %v6457 = vadd.f32 %v6297, %v6425
      %v6458 = vadd.f32 %v6298, %v6426
      %v6459 = vadd.f32 %v6299, %v6427
      %v6460 = vmul.f32 %v6428, 0.7978846
      %v6461 = vmul.f32 %v6429, 0.7978846
      %v6462 = vmul.f32 %v6430, 0.7978846
      %v6463 = vmul.f32 %v6431, 0.7978846
      %v6464 = vmul.f32 %v6432, 0.7978846
      %v6465 = vmul.f32 %v6433, 0.7978846
      %v6466 = vmul.f32 %v6434, 0.7978846
      %v6467 = vmul.f32 %v6435, 0.7978846
      %v6468 = vmul.f32 %v6436, 0.7978846
      %v6469 = vmul.f32 %v6437, 0.7978846
      %v6470 = vmul.f32 %v6438, 0.7978846
      %v6471 = vmul.f32 %v6439, 0.7978846
      %v6472 = vmul.f32 %v6440, 0.7978846
      %v6473 = vmul.f32 %v6441, 0.7978846
      %v6474 = vmul.f32 %v6442, 0.7978846
      %v6475 = vmul.f32 %v6443, 0.7978846
      %v6476 = vmul.f32 %v6444, 0.7978846
      %v6477 = vmul.f32 %v6445, 0.7978846
      %v6478 = vmul.f32 %v6446, 0.7978846
      %v6479 = vmul.f32 %v6447, 0.7978846
      %v6480 = vmul.f32 %v6448, 0.7978846
      %v6481 = vmul.f32 %v6449, 0.7978846
      %v6482 = vmul.f32 %v6450, 0.7978846
      %v6483 = vmul.f32 %v6451, 0.7978846
      %v6484 = vmul.f32 %v6452, 0.7978846
      %v6485 = vmul.f32 %v6453, 0.7978846
      %v6486 = vmul.f32 %v6454, 0.7978846
      %v6487 = vmul.f32 %v6455, 0.7978846
      %v6488 = vmul.f32 %v6456, 0.7978846
      %v6489 = vmul.f32 %v6457, 0.7978846
      %v6490 = vmul.f32 %v6458, 0.7978846
      %v6491 = vmul.f32 %v6459, 0.7978846
      %v6492 = vtanh.pop %v6460
      %v6493 = vtanh.pop %v6461
      %v6494 = vtanh.pop %v6462
      %v6495 = vtanh.pop %v6463
      %v6496 = vtanh.pop %v6464
      %v6497 = vtanh.pop %v6465
      %v6498 = vtanh.pop %v6466
      %v6499 = vtanh.pop %v6467
      %v6500 = vtanh.pop %v6468
      %v6501 = vtanh.pop %v6469
      %v6502 = vtanh.pop %v6470
      %v6503 = vtanh.pop %v6471
      %v6504 = vtanh.pop %v6472
      %v6505 = vtanh.pop %v6473
      %v6506 = vtanh.pop %v6474
      %v6507 = vtanh.pop %v6475
      %v6508 = vtanh.pop %v6476
      %v6509 = vtanh.pop %v6477
      %v6510 = vtanh.pop %v6478
      %v6511 = vtanh.pop %v6479
      %v6512 = vtanh.pop %v6480
      %v6513 = vtanh.pop %v6481
      %v6514 = vtanh.pop %v6482
      %v6515 = vtanh.pop %v6483
      %v6516 = vtanh.pop %v6484
      %v6517 = vtanh.pop %v6485
      %v6518 = vtanh.pop %v6486
      %v6519 = vtanh.pop %v6487
      %v6520 = vtanh.pop %v6488
      %v6521 = vtanh.pop %v6489
      %v6522 = vtanh.pop %v6490
      %v6523 = vtanh.pop %v6491
      %v6524 = vadd.f32 %v6492, 1.0
      %v6525 = vadd.f32 %v6493, 1.0
      %v6526 = vadd.f32 %v6494, 1.0
      %v6527 = vadd.f32 %v6495, 1.0
      %v6528 = vadd.f32 %v6496, 1.0
      %v6529 = vadd.f32 %v6497, 1.0
      %v6530 = vadd.f32 %v6498, 1.0
      %v6531 = vadd.f32 %v6499, 1.0
      %v6532 = vadd.f32 %v6500, 1.0
      %v6533 = vadd.f32 %v6501, 1.0
      %v6534 = vadd.f32 %v6502, 1.0
      %v6535 = vadd.f32 %v6503, 1.0
      %v6536 = vadd.f32 %v6504, 1.0
      %v6537 = vadd.f32 %v6505, 1.0
      %v6538 = vadd.f32 %v6506, 1.0
      %v6539 = vadd.f32 %v6507, 1.0
      %v6540 = vadd.f32 %v6508, 1.0
      %v6541 = vadd.f32 %v6509, 1.0
      %v6542 = vadd.f32 %v6510, 1.0
      %v6543 = vadd.f32 %v6511, 1.0
      %v6544 = vadd.f32 %v6512, 1.0
      %v6545 = vadd.f32 %v6513, 1.0
      %v6546 = vadd.f32 %v6514, 1.0
      %v6547 = vadd.f32 %v6515, 1.0
      %v6548 = vadd.f32 %v6516, 1.0
      %v6549 = vadd.f32 %v6517, 1.0
      %v6550 = vadd.f32 %v6518, 1.0
      %v6551 = vadd.f32 %v6519, 1.0
      %v6552 = vadd.f32 %v6520, 1.0
      %v6553 = vadd.f32 %v6521, 1.0
      %v6554 = vadd.f32 %v6522, 1.0
      %v6555 = vadd.f32 %v6523, 1.0
      %v6556 = vmul.f32 %v6300, %v6524
      %v6557 = vmul.f32 %v6301, %v6525
      %v6558 = vmul.f32 %v6302, %v6526
      %v6559 = vmul.f32 %v6303, %v6527
      %v6560 = vmul.f32 %v6304, %v6528
      %v6561 = vmul.f32 %v6305, %v6529
      %v6562 = vmul.f32 %v6306, %v6530
      %v6563 = vmul.f32 %v6307, %v6531
      %v6564 = vmul.f32 %v6308, %v6532
      %v6565 = vmul.f32 %v6309, %v6533
      %v6566 = vmul.f32 %v6310, %v6534
      %v6567 = vmul.f32 %v6311, %v6535
      %v6568 = vmul.f32 %v6312, %v6536
      %v6569 = vmul.f32 %v6313, %v6537
      %v6570 = vmul.f32 %v6314, %v6538
      %v6571 = vmul.f32 %v6315, %v6539
      %v6572 = vmul.f32 %v6316, %v6540
      %v6573 = vmul.f32 %v6317, %v6541
      %v6574 = vmul.f32 %v6318, %v6542
      %v6575 = vmul.f32 %v6319, %v6543
      %v6576 = vmul.f32 %v6320, %v6544
      %v6577 = vmul.f32 %v6321, %v6545
      %v6578 = vmul.f32 %v6322, %v6546
      %v6579 = vmul.f32 %v6323, %v6547
      %v6580 = vmul.f32 %v6324, %v6548
      %v6581 = vmul.f32 %v6325, %v6549
      %v6582 = vmul.f32 %v6326, %v6550
      %v6583 = vmul.f32 %v6327, %v6551
      %v6584 = vmul.f32 %v6328, %v6552
      %v6585 = vmul.f32 %v6329, %v6553
      %v6586 = vmul.f32 %v6330, %v6554
      %v6587 = vmul.f32 %v6331, %v6555
      %v6588 = vpack.c.bf16 %v6557, %v6556
      %v6589 = vpack.c.bf16 %v6559, %v6558
      %v6590 = vpack.c.bf16 %v6561, %v6560
      %v6591 = vpack.c.bf16 %v6563, %v6562
      %v6592 = vpack.c.bf16 %v6565, %v6564
      %v6593 = vpack.c.bf16 %v6567, %v6566
      %v6594 = vpack.c.bf16 %v6569, %v6568
      %v6595 = vpack.c.bf16 %v6571, %v6570
      %v6596 = vpack.c.bf16 %v6573, %v6572
      %v6597 = vpack.c.bf16 %v6575, %v6574
      %v6598 = vpack.c.bf16 %v6577, %v6576
      %v6599 = vpack.c.bf16 %v6579, %v6578
      %v6600 = vpack.c.bf16 %v6581, %v6580
      %v6601 = vpack.c.bf16 %v6583, %v6582
      %v6602 = vpack.c.bf16 %v6585, %v6584
      %v6603 = vpack.c.bf16 %v6587, %v6586
      %v6604 = vld [vmem:[%s3] sm:$0xf]
      %v6605 = vld [vmem:[%s3 + $0x4] sm:$0xf]
      %v6606 = vld [vmem:[%s3 + $0x8] sm:$0xf]
      %v6607 = vld [vmem:[%s3 + $0xc] sm:$0xf]
      %v6608 = vld [vmem:[%s3 + $0x10] sm:$0xf]
      %v6609 = vld [vmem:[%s3 + $0x14] sm:$0xf]
      %v6610 = vld [vmem:[%s3 + $0x18] sm:$0xf]
      %v6611 = vld [vmem:[%s3 + $0x1c] sm:$0xf]
      %v6612 = vlaneseq
      %v6613 = vshrl.u32 %v6612, 7
      %v6614 = vsub.s32 0, %v6613
      %v6615 = vrot.slane %v267, %v6614
      %v6624 = vunpack.c.l.b16 %v6604
      %v6625 = vunpack.c.l.b16 %v6605
      %v6626 = vunpack.c.l.b16 %v6606
      %v6627 = vunpack.c.l.b16 %v6607
      %v6628 = vunpack.c.l.b16 %v6608
      %v6629 = vunpack.c.l.b16 %v6609
      %v6630 = vunpack.c.l.b16 %v6610
      %v6631 = vunpack.c.l.b16 %v6611
      %v6632 = vpack.c.b16 %v6625, %v6624
      %v6633 = vpack.c.b16 %v6627, %v6626
      %v6634 = vpack.c.b16 %v6629, %v6628
      %v6635 = vpack.c.b16 %v6631, %v6630
      %v6641 = vsel %vm2205, %v6588, 0
      %v6644 = vsel %vm2205, %v6589, 0
      %v6647 = vsel %vm2205, %v6590, 0
      %v6650 = vsel %vm2205, %v6591, 0
      %v6653 = vsel %vm2205, %v6592, 0
      %v6656 = vsel %vm2205, %v6593, 0
      %v6659 = vsel %vm2205, %v6594, 0
      %v6662 = vsel %vm2205, %v6595, 0
      %v6665 = vsel %vm2205, %v6596, 0
      %v6668 = vsel %vm2205, %v6597, 0
      %v6671 = vsel %vm2205, %v6598, 0
      %v6674 = vsel %vm2205, %v6599, 0
      %v6677 = vsel %vm2205, %v6600, 0
      %v6680 = vsel %vm2205, %v6601, 0
      %v6683 = vsel %vm2205, %v6602, 0
      %v6686 = vsel %vm2205, %v6603, 0
      %6688 = vmatprep.subr.bf16.mxu0 0
      %6689 = vmatpush1.bf16.msra.mxu0 0
      %6690 = vmatprep.subr.bf16.mxu0 0
      %6691 = vmatpush1.bf16.msra.mxu0 0
      %6692 = vmatprep.subr.bf16.mxu0 0
      %6693 = vmatpush1.bf16.msra.mxu0 0
      %6694 = vmatprep.subr.bf16.mxu0 0
      %6695 = vmatpush1.bf16.msra.mxu0 0
      %6696 = vmatprep.subr.bf16.mxu0 0
      %6697 = vmatpush1.bf16.msra.mxu0 %v6635
      %6698 = vmatprep.subr.bf16.mxu0 0
      %6699 = vmatpush1.bf16.msra.mxu0 %v6634
      %6700 = vmatprep.subr.bf16.mxu0 0
      %6701 = vmatpush1.bf16.msra.mxu0 %v6633
      %6702 = vmatprep.subr.bf16.mxu0 0
      %6703 = vmatpush1.bf16.msra.mxu0 %v6632
      %6704 = vmatprep.subr.bf16.mxu0 0
      %6705 = vmatpush2.bf16.msra.mxu0 0
      %6706 = vmatprep.subr.bf16.mxu0 0
      %6707 = vmatpush2.bf16.msra.mxu0 0
      %6708 = vmatprep.subr.bf16.mxu0 0
      %6709 = vmatpush2.bf16.msra.mxu0 0
      %6710 = vmatprep.subr.bf16.mxu0 0
      %6711 = vmatpush2.bf16.msra.mxu0 0
      %6712 = vmatprep.subr.bf16.mxu0 0
      %6713 = vmatpush2.bf16.msra.mxu0 0
      %6714 = vmatprep.subr.bf16.mxu0 0
      %6715 = vmatpush2.bf16.msra.mxu0 0
      %6716 = vmatprep.subr.bf16.mxu0 0
      %6717 = vmatpush2.bf16.msra.mxu0 0
      %6718 = vmatprep.subr.bf16.mxu0 0
      %6719 = vmatpush2.bf16.msra.mxu0 0
      %6720 = vmatprep.mubr.bf16.mxu0 0
      %6721 = vmatmul.mubr.bf16.gmra.mxu0 %v6641
      %v6722 = vpop.f32.mrf.mxu0
      %v6723 = vadd.f32 %v6615, %v6722
      %v6724 = vpop.f32.mrf.mxu0
      %v6725 = vpop.f32.mrf.mxu0
      %v6726 = vadd.f32 %v6615, %v6725
      %v6727 = vpop.f32.mrf.mxu0
      %6728 = vmatprep.mubr.bf16.mxu0 0
      %6729 = vmatmul.mubr.bf16.gmra.mxu0 %v6644
      %v6730 = vpop.f32.mrf.mxu0
      %v6731 = vadd.f32 %v6615, %v6730
      %v6732 = vpop.f32.mrf.mxu0
      %v6733 = vpop.f32.mrf.mxu0
      %v6734 = vadd.f32 %v6615, %v6733
      %v6735 = vpop.f32.mrf.mxu0
      %6736 = vmatprep.mubr.bf16.mxu0 0
      %6737 = vmatmul.mubr.bf16.gmra.mxu0 %v6647
      %v6738 = vpop.f32.mrf.mxu0
      %v6739 = vadd.f32 %v6615, %v6738
      %v6740 = vpop.f32.mrf.mxu0
      %v6741 = vpop.f32.mrf.mxu0
      %v6742 = vadd.f32 %v6615, %v6741
      %v6743 = vpop.f32.mrf.mxu0
      %6744 = vmatprep.mubr.bf16.mxu0 0
      %6745 = vmatmul.mubr.bf16.gmra.mxu0 %v6650
      %v6746 = vpop.f32.mrf.mxu0
      %v6747 = vadd.f32 %v6615, %v6746
      %v6748 = vpop.f32.mrf.mxu0
      %v6749 = vpop.f32.mrf.mxu0
      %v6750 = vadd.f32 %v6615, %v6749
      %v6751 = vpop.f32.mrf.mxu0
      %6752 = vmatprep.mubr.bf16.mxu0 0
      %6753 = vmatmul.mubr.bf16.gmra.mxu0 %v6653
      %v6754 = vpop.f32.mrf.mxu0
      %v6755 = vadd.f32 %v6615, %v6754
      %v6756 = vpop.f32.mrf.mxu0
      %v6757 = vpop.f32.mrf.mxu0
      %v6758 = vadd.f32 %v6615, %v6757
      %v6759 = vpop.f32.mrf.mxu0
      %6760 = vmatprep.mubr.bf16.mxu0 0
      %6761 = vmatmul.mubr.bf16.gmra.mxu0 %v6656
      %v6762 = vpop.f32.mrf.mxu0
      %v6763 = vadd.f32 %v6615, %v6762
      %v6764 = vpop.f32.mrf.mxu0
      %v6765 = vpop.f32.mrf.mxu0
      %v6766 = vadd.f32 %v6615, %v6765
      %v6767 = vpop.f32.mrf.mxu0
      %6768 = vmatprep.mubr.bf16.mxu0 0
      %6769 = vmatmul.mubr.bf16.gmra.mxu0 %v6659
      %v6770 = vpop.f32.mrf.mxu0
      %v6771 = vadd.f32 %v6615, %v6770
      %v6772 = vpop.f32.mrf.mxu0
      %v6773 = vpop.f32.mrf.mxu0
      %v6774 = vadd.f32 %v6615, %v6773
      %v6775 = vpop.f32.mrf.mxu0
      %6776 = vmatprep.mubr.bf16.mxu0 0
      %6777 = vmatmul.mubr.bf16.gmra.mxu0 %v6662
      %v6778 = vpop.f32.mrf.mxu0
      %v6779 = vadd.f32 %v6615, %v6778
      %v6780 = vpop.f32.mrf.mxu0
      %v6781 = vpop.f32.mrf.mxu0
      %v6782 = vadd.f32 %v6615, %v6781
      %v6783 = vpop.f32.mrf.mxu0
      %6784 = vmatprep.mubr.bf16.mxu0 0
      %6785 = vmatmul.mubr.bf16.gmra.mxu0 %v6665
      %v6786 = vpop.f32.mrf.mxu0
      %v6787 = vadd.f32 %v6615, %v6786
      %v6788 = vpop.f32.mrf.mxu0
      %v6789 = vpop.f32.mrf.mxu0
      %v6790 = vadd.f32 %v6615, %v6789
      %v6791 = vpop.f32.mrf.mxu0
      %6792 = vmatprep.mubr.bf16.mxu0 0
      %6793 = vmatmul.mubr.bf16.gmra.mxu0 %v6668
      %v6794 = vpop.f32.mrf.mxu0
      %v6795 = vadd.f32 %v6615, %v6794
      %v6796 = vpop.f32.mrf.mxu0
      %v6797 = vpop.f32.mrf.mxu0
      %v6798 = vadd.f32 %v6615, %v6797
      %v6799 = vpop.f32.mrf.mxu0
      %6800 = vmatprep.mubr.bf16.mxu0 0
      %6801 = vmatmul.mubr.bf16.gmra.mxu0 %v6671
      %v6802 = vpop.f32.mrf.mxu0
      %v6803 = vadd.f32 %v6615, %v6802
      %v6804 = vpop.f32.mrf.mxu0
      %v6805 = vpop.f32.mrf.mxu0
      %v6806 = vadd.f32 %v6615, %v6805
      %v6807 = vpop.f32.mrf.mxu0
      %6808 = vmatprep.mubr.bf16.mxu0 0
      %6809 = vmatmul.mubr.bf16.gmra.mxu0 %v6674
      %v6810 = vpop.f32.mrf.mxu0
      %v6811 = vadd.f32 %v6615, %v6810
      %v6812 = vpop.f32.mrf.mxu0
      %v6813 = vpop.f32.mrf.mxu0
      %v6814 = vadd.f32 %v6615, %v6813
      %v6815 = vpop.f32.mrf.mxu0
      %6816 = vmatprep.mubr.bf16.mxu0 0
      %6817 = vmatmul.mubr.bf16.gmra.mxu0 %v6677
      %v6818 = vpop.f32.mrf.mxu0
      %v6819 = vadd.f32 %v6615, %v6818
      %v6820 = vpop.f32.mrf.mxu0
      %v6821 = vpop.f32.mrf.mxu0
      %v6822 = vadd.f32 %v6615, %v6821
      %v6823 = vpop.f32.mrf.mxu0
      %6824 = vmatprep.mubr.bf16.mxu0 0
      %6825 = vmatmul.mubr.bf16.gmra.mxu0 %v6680
      %v6826 = vpop.f32.mrf.mxu0
      %v6827 = vadd.f32 %v6615, %v6826
      %v6828 = vpop.f32.mrf.mxu0
      %v6829 = vpop.f32.mrf.mxu0
      %v6830 = vadd.f32 %v6615, %v6829
      %v6831 = vpop.f32.mrf.mxu0
      %6832 = vmatprep.mubr.bf16.mxu0 0
      %6833 = vmatmul.mubr.bf16.gmra.mxu0 %v6683
      %v6834 = vpop.f32.mrf.mxu0
      %v6835 = vadd.f32 %v6615, %v6834
      %v6836 = vpop.f32.mrf.mxu0
      %v6837 = vpop.f32.mrf.mxu0
      %v6838 = vadd.f32 %v6615, %v6837
      %v6839 = vpop.f32.mrf.mxu0
      %6840 = vmatprep.mubr.bf16.mxu0 0
      %6841 = vmatmul.mubr.bf16.gmra.mxu0 %v6686
      %v6842 = vpop.f32.mrf.mxu0
      %v6843 = vadd.f32 %v6615, %v6842
      %v6844 = vpop.f32.mrf.mxu0
      %v6845 = vpop.f32.mrf.mxu0
      %v6846 = vadd.f32 %v6615, %v6845
      %v6847 = vpop.f32.mrf.mxu0
      %6848 = vdwg.mxu0
      %v6849 = vpack.c.bf16 %v6726, %v6723
      %v6850 = vpack.c.bf16 %v6734, %v6731
      %v6851 = vpack.c.bf16 %v6742, %v6739
      %v6852 = vpack.c.bf16 %v6750, %v6747
      %v6853 = vpack.c.bf16 %v6758, %v6755
      %v6854 = vpack.c.bf16 %v6766, %v6763
      %v6855 = vpack.c.bf16 %v6774, %v6771
      %v6856 = vpack.c.bf16 %v6782, %v6779
      %v6857 = vpack.c.bf16 %v6790, %v6787
      %v6858 = vpack.c.bf16 %v6798, %v6795
      %v6859 = vpack.c.bf16 %v6806, %v6803
      %v6860 = vpack.c.bf16 %v6814, %v6811
      %v6861 = vpack.c.bf16 %v6822, %v6819
      %v6862 = vpack.c.bf16 %v6830, %v6827
      %v6863 = vpack.c.bf16 %v6838, %v6835
      %v6864 = vpack.c.bf16 %v6846, %v6843
      %v6881 = vunpack.c.l.b16 %v6849
      %v6882 = vunpack.c.h.b16 %v6849
      %v6883 = vunpack.c.l.b16 %v6850
      %v6884 = vunpack.c.h.b16 %v6850
      %v6885 = vunpack.c.l.b16 %v6851
      %v6886 = vunpack.c.h.b16 %v6851
      %v6887 = vunpack.c.l.b16 %v6852
      %v6888 = vunpack.c.h.b16 %v6852
      %v6889 = vunpack.c.l.b16 %v6853
      %v6890 = vunpack.c.h.b16 %v6853
      %v6891 = vunpack.c.l.b16 %v6854
      %v6892 = vunpack.c.h.b16 %v6854
      %v6893 = vunpack.c.l.b16 %v6855
      %v6894 = vunpack.c.h.b16 %v6855
      %v6895 = vunpack.c.l.b16 %v6856
      %v6896 = vunpack.c.h.b16 %v6856
      %v6897 = vunpack.c.l.b16 %v6857
      %v6898 = vunpack.c.h.b16 %v6857
      %v6899 = vunpack.c.l.b16 %v6858
      %v6900 = vunpack.c.h.b16 %v6858
      %v6901 = vunpack.c.l.b16 %v6859
      %v6902 = vunpack.c.h.b16 %v6859
      %v6903 = vunpack.c.l.b16 %v6860
      %v6904 = vunpack.c.h.b16 %v6860
      %v6905 = vunpack.c.l.b16 %v6861
      %v6906 = vunpack.c.h.b16 %v6861
      %v6907 = vunpack.c.l.b16 %v6862
      %v6908 = vunpack.c.h.b16 %v6862
      %v6909 = vunpack.c.l.b16 %v6863
      %v6910 = vunpack.c.h.b16 %v6863
      %v6911 = vunpack.c.l.b16 %v6864
      %v6912 = vunpack.c.h.b16 %v6864
      %v6913 = vpack.c.b16 %v6881, %v6881
      %v6914 = vpack.c.b16 %v6882, %v6882
      %v6915 = vpack.c.b16 %v6883, %v6883
      %v6916 = vpack.c.b16 %v6884, %v6884
      %v6917 = vpack.c.b16 %v6885, %v6885
      %v6918 = vpack.c.b16 %v6886, %v6886
      %v6919 = vpack.c.b16 %v6887, %v6887
      %v6920 = vpack.c.b16 %v6888, %v6888
      %v6921 = vpack.c.b16 %v6889, %v6889
      %v6922 = vpack.c.b16 %v6890, %v6890
      %v6923 = vpack.c.b16 %v6891, %v6891
      %v6924 = vpack.c.b16 %v6892, %v6892
      %v6925 = vpack.c.b16 %v6893, %v6893
      %v6926 = vpack.c.b16 %v6894, %v6894
      %v6927 = vpack.c.b16 %v6895, %v6895
      %v6928 = vpack.c.b16 %v6896, %v6896
      %v6929 = vpack.c.b16 %v6897, %v6897
      %v6930 = vpack.c.b16 %v6898, %v6898
      %v6931 = vpack.c.b16 %v6899, %v6899
      %v6932 = vpack.c.b16 %v6900, %v6900
      %v6933 = vpack.c.b16 %v6901, %v6901
      %v6934 = vpack.c.b16 %v6902, %v6902
      %v6935 = vpack.c.b16 %v6903, %v6903
      %v6936 = vpack.c.b16 %v6904, %v6904
      %v6937 = vpack.c.b16 %v6905, %v6905
      %v6938 = vpack.c.b16 %v6906, %v6906
      %v6939 = vpack.c.b16 %v6907, %v6907
      %v6940 = vpack.c.b16 %v6908, %v6908
      %v6941 = vpack.c.b16 %v6909, %v6909
      %v6942 = vpack.c.b16 %v6910, %v6910
      %v6943 = vpack.c.b16 %v6911, %v6911
      %v6944 = vpack.c.b16 %v6912, %v6912
      %vm6977 = vcmask 519168
      %6978 = vst.msk [vmem:[%s251] sm:$0xf] %vm6977, %v6913
      %6979 = vst.msk [vmem:[%s251 + $0x4] sm:$0xf] %vm6977, %v6914
      %6980 = vst.msk [vmem:[%s251 + $0x8] sm:$0xf] %vm6977, %v6915
      %6981 = vst.msk [vmem:[%s251 + $0xc] sm:$0xf] %vm6977, %v6916
      %6982 = vst.msk [vmem:[%s251 + $0x10] sm:$0xf] %vm6977, %v6917
      %6983 = vst.msk [vmem:[%s251 + $0x14] sm:$0xf] %vm6977, %v6918
      %6984 = vst.msk [vmem:[%s251 + $0x18] sm:$0xf] %vm6977, %v6919
      %6985 = vst.msk [vmem:[%s251 + $0x1c] sm:$0xf] %vm6977, %v6920
      %6986 = vst.msk [vmem:[%s251 + $0x20] sm:$0xf] %vm6977, %v6921
      %6987 = vst.msk [vmem:[%s251 + $0x24] sm:$0xf] %vm6977, %v6922
      %6988 = vst.msk [vmem:[%s251 + $0x28] sm:$0xf] %vm6977, %v6923
      %6989 = vst.msk [vmem:[%s251 + $0x2c] sm:$0xf] %vm6977, %v6924
      %6990 = vst.msk [vmem:[%s251 + $0x30] sm:$0xf] %vm6977, %v6925
      %6991 = vst.msk [vmem:[%s251 + $0x34] sm:$0xf] %vm6977, %v6926
      %6992 = vst.msk [vmem:[%s251 + $0x38] sm:$0xf] %vm6977, %v6927
      %6993 = vst.msk [vmem:[%s251 + $0x3c] sm:$0xf] %vm6977, %v6928
      %6994 = vst.msk [vmem:[%s251 + $0x40] sm:$0xf] %vm6977, %v6929
      %6995 = vst.msk [vmem:[%s251 + $0x44] sm:$0xf] %vm6977, %v6930
      %6996 = vst.msk [vmem:[%s251 + $0x48] sm:$0xf] %vm6977, %v6931
      %6997 = vst.msk [vmem:[%s251 + $0x4c] sm:$0xf] %vm6977, %v6932
      %6998 = vst.msk [vmem:[%s251 + $0x50] sm:$0xf] %vm6977, %v6933
      %6999 = vst.msk [vmem:[%s251 + $0x54] sm:$0xf] %vm6977, %v6934
      %7000 = vst.msk [vmem:[%s251 + $0x58] sm:$0xf] %vm6977, %v6935
      %7001 = vst.msk [vmem:[%s251 + $0x5c] sm:$0xf] %vm6977, %v6936
      %7002 = vst.msk [vmem:[%s251 + $0x60] sm:$0xf] %vm6977, %v6937
      %7003 = vst.msk [vmem:[%s251 + $0x64] sm:$0xf] %vm6977, %v6938
      %7004 = vst.msk [vmem:[%s251 + $0x68] sm:$0xf] %vm6977, %v6939
      %7005 = vst.msk [vmem:[%s251 + $0x6c] sm:$0xf] %vm6977, %v6940
      %7006 = vst.msk [vmem:[%s251 + $0x70] sm:$0xf] %vm6977, %v6941
      %7007 = vst.msk [vmem:[%s251 + $0x74] sm:$0xf] %vm6977, %v6942
      %7008 = vst.msk [vmem:[%s251 + $0x78] sm:$0xf] %vm6977, %v6943
      %7009 = vst.msk [vmem:[%s251 + $0x7c] sm:$0xf] %vm6977, %v6944
      %p7010 = scmp.lt.s32.totalorder %s17, 1
      %s7011 = scalar_select %p7010, %s17, 1
      %s7012 = smul.addr %s7011, 32
      %s7013 = smul.addr %s7012, 4
      %s7014 = scalar_lea.vmem %s6, %s7013
      // Predicated region
      $region45: #{decoder_block_forward.1} parent=43 // pred_check
        %p7015 = pneg %p166
      $region46: #{decoder_block_forward.1} parent=43 // pred_check_branch
        %7017 = sbr.rel (%p7015) target = $region48
      $region47: #{decoder_block_forward.1} parent=43 // pred_region
        _
      $region48: #{decoder_block_forward.1} parent=43 // pred_fallthru
        _
    $region44: #{decoder_block_forward.1} parent=5 // pred_fallthru
      _
    %p7018 = scmp.le.s32.totalorder 2, %s12
    // Predicated region
    $region49: #{decoder_block_forward.1} parent=5 // pred_check
      %p7019 = pneg %p7018
    $region50: #{decoder_block_forward.1} parent=5 // pred_check_branch
      %7021 = sbr.rel (%p7019) target = $region52
    $region51: #{decoder_block_forward.1} parent=5 // pred_region
      %s7022 = ssub.s32 %s12, 2
      // Predicated region
      $region53: #{decoder_block_forward.1} parent=51 // pred_check
        %p7023 = pneg %p172
      $region54: #{decoder_block_forward.1} parent=51 // pred_check_branch
        %7025 = sbr.rel (%p7023) target = $region56
      $region55: #{decoder_block_forward.1} parent=51 // pred_region
        %p7026 = scmp.lt.s32.totalorder %s18, 1
        %s7027 = scalar_select %p7026, %s18, 1
        %s7028 = smul.addr %s7027, 32
        %s7029 = smul.addr %s7028, 4
        %s7030 = scalar_lea.vmem %s6, %s7029
      $region56: #{decoder_block_forward.1} parent=51 // pred_fallthru
        _
    $region52: #{decoder_block_forward.1} parent=5 // pred_fallthru
      _
  $region6: #{decoder_block_forward.1} parent=0 // loop_footer
    %s16 = sadd.s32 1, %s12
  $region7: #{decoder_block_forward.1} parent=0 // loop_footer_branch
    %11 = sbr.rel target = $region3
  $region8: #{decoder_block_forward.1} parent=0 // loop_exit
    _

</llo_original>
